<compile_context>
chip_gen: v7x
topology: tpu7x:2x2x1
jax: 0.10.0
libtpu: 0.0.40
codegen_flags: <defaults>
</compile_context>

<pallas_src>
import functools

import numpy as np
import jax
import jax.numpy as jnp
from jax import lax
from jax.experimental import pallas as pl
from jax.experimental.pallas import tpu as pltpu

EPS = 1e-5
LANE = 128


def _round_up(x, m):
    return ((x + m - 1) // m) * m


# ----------------------------------------------------------------------------
# Bilinear interpolation matrices (torch F.interpolate, align_corners=False).
# ----------------------------------------------------------------------------
@functools.lru_cache(maxsize=None)
def _interp_matrix(out_size, in_size):
    scale = in_size / out_size
    src = (np.arange(out_size, dtype=np.float64) + 0.5) * scale - 0.5
    src = np.maximum(src, 0.0)
    i0 = np.minimum(np.floor(src).astype(np.int64), in_size - 1)
    i1 = np.minimum(i0 + 1, in_size - 1)
    frac = src - i0
    m = np.zeros((out_size, in_size), dtype=np.float64)
    m[np.arange(out_size), i0] += 1.0 - frac
    m[np.arange(out_size), i1] += frac
    return m.astype(np.float32)


# ----------------------------------------------------------------------------
# Kernel 1: fused separable bilinear resize (NCHW in, NCHW out, bf16 result).
# Per (batch, channel-block):  t = deep_blk @ Ww^T  then  out = Wh @ t.
# Both passes stay inside one kernel -> no f32 intermediate round-trips HBM
# and no wrapper transposes of the (4x larger) upsampled tensor are needed.
# ----------------------------------------------------------------------------
def _resize_kernel(deep_ref, wwT_ref, wh_ref, o_ref, *, cb, hd, wd, h_out, w_out):
    x = deep_ref[0]                                            # (cb, Hd, Wd) f32
    # W-pass: contract Wd (batched over the channel block).
    wwT_b = jnp.broadcast_to(wwT_ref[...], (cb, wd, w_out))
    t = lax.dot_general(x, wwT_b, (((2,), (1,)), ((0,), (0,))),
                        preferred_element_type=jnp.float32)    # (cb, Hd, W)
    # H-pass: contract Hd (batched over the channel block).
    wh_b = jnp.broadcast_to(wh_ref[...], (cb, h_out, hd))
    out = lax.dot_general(wh_b, t, (((2,), (1,)), ((0,), (0,))),
                          preferred_element_type=jnp.float32)  # (cb, H, W)
    o_ref[0] = out.astype(o_ref.dtype)


def resize_bilinear(deep, wwT, wh, H, W):
    N, Cd, Hd, Wd = deep.shape
    cb = 1
    for cand in (32, 16, 8, 4, 2, 1):                # largest channel block <= 32
        if Cd % cand == 0:
            cb = cand
            break
    return pl.pallas_call(
        functools.partial(_resize_kernel, cb=cb, hd=Hd, wd=Wd, h_out=H, w_out=W),
        out_shape=jax.ShapeDtypeStruct((N, Cd, H, W), jnp.bfloat16),
        grid=(N, Cd // cb),
        in_specs=[
            pl.BlockSpec((1, cb, Hd, Wd), lambda b, c: (b, c, 0, 0)),
            pl.BlockSpec((Wd, W), lambda b, c: (0, 0)),
            pl.BlockSpec((H, Hd), lambda b, c: (0, 0)),
        ],
        out_specs=pl.BlockSpec((1, cb, H, W), lambda b, c: (b, c, 0, 0)),
        compiler_params=pltpu.CompilerParams(
            dimension_semantics=("parallel", "parallel")),
    )(deep, wwT, wh)


# ----------------------------------------------------------------------------
# Shared 9-tap zero-padded 3x3 conv accumulation (dy-grouped, result-masked).
#
# tap_fn(t) -> (HW, Cout) f32: per-tap pointwise contribution (input @ K[t])
# at every *input* pixel.  Per dy group the +/-1 column shift of the dx=0/2
# taps is an XLU roll on the result (the wrapped element is zeroed by the
# column mask), and the group is written with one sublane-aligned slab access
# into the padded accumulator:  accp[pad - (dy-1)*W + q] += g_dy[q], pad = W.
# The pad rows [0, W) and [HW+W, HW+2W) are never read, so no zero-init is
# needed: the dy=1 group (covering the whole read range) is stored with `=`.
# ----------------------------------------------------------------------------
def _conv3x3_accumulate(accp_ref, tap_fn, H, W):
    HW = H * W
    pad = W
    col = lax.broadcasted_iota(jnp.int32, (HW, 1), 0) % W
    mask_last = (col != (W - 1)).astype(jnp.float32)    # kill wrap of dx=0 taps
    mask_first = (col != 0).astype(jnp.float32)         # kill wrap of dx=2 taps
    for k, dy in enumerate((1, 0, 2)):                  # dy=1 first (plain `=` slab)
        y0 = tap_fn(dy * 3 + 0)
        y1 = tap_fn(dy * 3 + 1)
        y2 = tap_fn(dy * 3 + 2)
        g = (y1
             + pltpu.roll(mask_last * y0, shift=1, axis=0)
             + pltpu.roll(mask_first * y2, shift=HW - 1, axis=0))
        s = pad - (dy - 1) * W                          # 2W / W / 0, all % W == 0
        if k == 0:
            accp_ref[s:s + HW, :] = g
        else:
            accp_ref[s:s + HW, :] += g
    return accp_ref[pad:pad + HW, :]


# ----------------------------------------------------------------------------
# Kernel 2: fused  reduce(1x1+BN+ReLU)  +  channel-concat  +  conv1(3x3+BN+ReLU)
# x and mid arrive channel-first ((C, HW) per batch) -> transposed dot_generals
# feed the MXU directly; no wrapper transposes of the wide activations.
# ----------------------------------------------------------------------------
def _conv1_kernel(x_ref, mid_ref, wr_ref, wx_ref, wm_ref, br_ref, b1_ref,
                  o_ref, accp_ref, *, H, W):
    mid = mid_ref[0].astype(jnp.bfloat16)                      # (Cmid, HW)
    m = lax.dot_general(mid, wr_ref[...], (((0,), (0,)), ((), ())),
                        preferred_element_type=jnp.float32)    # (HW, Cr)
    m = jnp.maximum(m + br_ref[...], 0.0).astype(jnp.bfloat16)

    x = x_ref[0]                                               # (Cd, HW) bf16

    def tap(t):
        yx = lax.dot_general(x, wx_ref[t], (((0,), (0,)), ((), ())),
                             preferred_element_type=jnp.float32)
        ym = jnp.dot(m, wm_ref[t], preferred_element_type=jnp.float32)
        return yx + ym

    acc = _conv3x3_accumulate(accp_ref, tap, H, W)
    o_ref[0] = jnp.maximum(acc + b1_ref[...], 0.0).astype(o_ref.dtype)


def conv1_fused(x, mid, fp, H, W):
    N, Cd, HW = x.shape
    Cmid = mid.shape[1]
    Cr = fp["wr"].shape[-1]
    Cout = fp["wx"].shape[-1]
    return pl.pallas_call(
        functools.partial(_conv1_kernel, H=H, W=W),
        out_shape=jax.ShapeDtypeStruct((N, HW, Cout), jnp.bfloat16),
        grid=(N,),
        in_specs=[
            pl.BlockSpec((1, Cd, HW), lambda i: (i, 0, 0)),
            pl.BlockSpec((1, Cmid, HW), lambda i: (i, 0, 0)),
            pl.BlockSpec((Cmid, Cr), lambda i: (0, 0)),
            pl.BlockSpec((9, Cd, Cout), lambda i: (0, 0, 0)),
            pl.BlockSpec((9, Cr, Cout), lambda i: (0, 0, 0)),
            pl.BlockSpec((1, Cr), lambda i: (0, 0)),
            pl.BlockSpec((1, Cout), lambda i: (0, 0)),
        ],
        out_specs=pl.BlockSpec((1, HW, Cout), lambda i: (i, 0, 0)),
        scratch_shapes=[pltpu.VMEM((HW + 2 * W, Cout), jnp.float32)],
        compiler_params=pltpu.CompilerParams(dimension_semantics=("parallel",)),
    )(x, mid, fp["wr"], fp["wx"], fp["wm"], fp["br"], fp["b1"])


# ----------------------------------------------------------------------------
# Kernel 3: fused  conv2(3x3+BN+ReLU)  +  conv3(1x1+bias, lane-padded output)
# ----------------------------------------------------------------------------
def _conv2_conv3_kernel(h_ref, w2_ref, b2_ref, w3_ref, b3_ref,
                        o_ref, accp_ref, *, H, W):
    h = h_ref[0]                                               # (HW, C) bf16

    def tap(t):
        return jnp.dot(h, w2_ref[t], preferred_element_type=jnp.float32)

    acc = _conv3x3_accumulate(accp_ref, tap, H, W)
    acc = jnp.maximum(acc + b2_ref[...], 0.0)                  # conv2 output (f32)

    logits = jnp.dot(acc.astype(jnp.bfloat16), w3_ref[...],
                     preferred_element_type=jnp.float32) + b3_ref[...]
    o_ref[0] = logits.astype(o_ref.dtype)


def conv2_conv3_fused(h, fp, H, W):
    N, HW, C = h.shape
    ncls_pad = fp["w3"].shape[-1]
    return pl.pallas_call(
        functools.partial(_conv2_conv3_kernel, H=H, W=W),
        out_shape=jax.ShapeDtypeStruct((N, HW, ncls_pad), jnp.float32),
        grid=(N,),
        in_specs=[
            pl.BlockSpec((1, HW, C), lambda i: (i, 0, 0)),
            pl.BlockSpec((9, C, C), lambda i: (0, 0, 0)),
            pl.BlockSpec((1, C), lambda i: (0, 0)),
            pl.BlockSpec((C, ncls_pad), lambda i: (0, 0)),
            pl.BlockSpec((1, ncls_pad), lambda i: (0, 0)),
        ],
        out_specs=pl.BlockSpec((1, HW, ncls_pad), lambda i: (i, 0, 0)),
        scratch_shapes=[pltpu.VMEM((HW + 2 * W, C), jnp.float32)],
        compiler_params=pltpu.CompilerParams(dimension_semantics=("parallel",)),
    )(h, fp["w2"], fp["b2"], fp["w3"], fp["b3"])


# ----------------------------------------------------------------------------
# BatchNorm folding and parameter packing (done ONCE, outside the forward).
# ----------------------------------------------------------------------------
def _fold_bn(bn):
    scale = bn["gamma"] / jnp.sqrt(bn["var"] + EPS)
    shift = bn["beta"] - bn["mean"] * scale
    return scale, shift


def fold_params(params):
    mid_ch, reduce_ch = params["reduce_w"].shape
    cout1 = params["conv1_w"].shape[-1]
    n_classes = params["conv3_w"].shape[-1]
    ncls_pad = _round_up(n_classes, LANE)

    s_r, b_r = _fold_bn(params["reduce_bn"])
    s1, b1 = _fold_bn(params["bn1"])
    s2, b2 = _fold_bn(params["bn2"])

    wr = (params["reduce_w"] * s_r[None, :]).astype(jnp.bfloat16)
    w1 = params["conv1_w"] * s1[None, None, None, :]              # (3,3,Cd+Cr,Cout)
    wx = w1[:, :, :mid_ch, :].reshape(9, mid_ch, cout1).astype(jnp.bfloat16)
    wm = w1[:, :, mid_ch:, :].reshape(9, reduce_ch, cout1).astype(jnp.bfloat16)
    w2 = (params["conv2_w"] * s2[None, None, None, :]).reshape(
        9, cout1, cout1).astype(jnp.bfloat16)
    w3 = jnp.zeros((cout1, ncls_pad), jnp.bfloat16).at[:, :n_classes].set(
        params["conv3_w"].astype(jnp.bfloat16))
    b3 = jnp.zeros((1, ncls_pad), jnp.float32).at[:, :n_classes].set(
        params["conv3_b"].astype(jnp.float32))

    return dict(
        wr=wr, br=b_r.reshape(1, -1).astype(jnp.float32),
        wx=wx, wm=wm, b1=b1.reshape(1, -1).astype(jnp.float32),
        w2=w2, b2=b2.reshape(1, -1).astype(jnp.float32),
        w3=w3, b3=b3,
    )


def init_params(key, mid_ch, reduce_ch, n_classes):
    ks = jax.random.split(key, 8)

    def bn(k, c):
        k1, k2, k3, k4 = jax.random.split(k, 4)
        return dict(
            gamma=jax.random.uniform(k1, (c,), minval=0.5, maxval=1.5),
            beta=0.1 * jax.random.normal(k2, (c,)),
            mean=0.1 * jax.random.normal(k3, (c,)),
            var=jax.random.uniform(k4, (c,), minval=0.5, maxval=1.5),
        )

    cat_ch = mid_ch + reduce_ch
    return dict(
        reduce_w=0.1 * jax.random.normal(ks[0], (mid_ch, reduce_ch)),
        reduce_bn=bn(ks[1], reduce_ch),
        conv1_w=0.1 * jax.random.normal(ks[2], (3, 3, cat_ch, mid_ch)),   # HWIO
        bn1=bn(ks[3], mid_ch),
        conv2_w=0.1 * jax.random.normal(ks[4], (3, 3, mid_ch, mid_ch)),
        bn2=bn(ks[5], mid_ch),
        conv3_w=0.1 * jax.random.normal(ks[6], (mid_ch, n_classes)),
        conv3_b=0.1 * jax.random.normal(ks[7], (n_classes,)),
    )


# ----------------------------------------------------------------------------
# Full decoder forward (NCHW in / NCHW out, like the PyTorch module).
# ----------------------------------------------------------------------------
def deeplabv3p_decoder_forward(mid_feature_nchw, deep_feature_nchw, fp, n_classes):
    N, Cmid, H, W = mid_feature_nchw.shape
    _, Cd, Hd, Wd = deep_feature_nchw.shape
    HW = H * W

    wwT = jnp.asarray(_interp_matrix(W, Wd).T)       # (Wd, W) f32
    wh = jnp.asarray(_interp_matrix(H, Hd))          # (H, Hd) f32

    # Fused separable bilinear resize, NCHW in / NCHW out, bf16 result.
    x = resize_bilinear(deep_feature_nchw, wwT, wh, H, W)        # (N, Cd, H, W)
    x = x.reshape(N, Cd, HW)                                     # free reshape

    mid = mid_feature_nchw.reshape(N, Cmid, HW)                  # free reshape (f32)

    h1 = conv1_fused(x, mid, fp, H, W)                           # (N, HW, Cout) bf16
    out = conv2_conv3_fused(h1, fp, H, W)                        # (N, HW, ncls_pad)

    out = out.reshape(N, H, W, -1)[..., :n_classes]
    return jnp.transpose(out, (0, 3, 1, 2))                      # back to NCHW


# ----------------------------------------------------------------------------
# Pure-JAX reference (f32) for the correctness check.
# ----------------------------------------------------------------------------
def reference_forward(mid, deep, params, n_classes):
    def bn(x, p):
        s = p["gamma"] / jnp.sqrt(p["var"] + EPS)
        return x * s + (p["beta"] - p["mean"] * s)

    N, Cmid, H, W = mid.shape
    Hd, Wd = deep.shape[2:]
    mid_l = jnp.transpose(mid, (0, 2, 3, 1))
    m = jax.nn.relu(bn(mid_l @ params["reduce_w"], params["reduce_bn"]))
    wh = jnp.asarray(_interp_matrix(H, Hd))
    ww = jnp.asarray(_interp_matrix(W, Wd))
    x = jnp.einsum('hH,wW,ncHW->nhwc', wh, ww, deep)
    h = jnp.concatenate([x, m], axis=-1)
    dn = ('NHWC', 'HWIO', 'NHWC')
    h = jax.nn.relu(bn(lax.conv_general_dilated(
        h, params["conv1_w"], (1, 1), 'SAME', dimension_numbers=dn), params["bn1"]))
    h = jax.nn.relu(bn(lax.conv_general_dilated(
        h, params["conv2_w"], (1, 1), 'SAME', dimension_numbers=dn), params["bn2"]))
    out = h @ params["conv3_w"] + params["conv3_b"]
    return jnp.transpose(out, (0, 3, 1, 2))


if __name__ == "__main__":
    mid_ch, reduce_ch, n_classes = 8, 4, 3
    N, H, W = 2, 16, 16        # mid_feature spatial size
    Hd, Wd = 8, 8              # deep_feature spatial size (upsampled to H, W)

    key = jax.random.PRNGKey(0)
    k_mid, k_deep, k_params = jax.random.split(key, 3)
    mid_feature = jax.random.normal(k_mid, (N, mid_ch, H, W), jnp.float32)
    deep_feature = jax.random.normal(k_deep, (N, mid_ch, Hd, Wd), jnp.float32)

    params = init_params(k_params, mid_ch, reduce_ch, n_classes)
    fp = fold_params(params)   # BN folding / weight packing done once

    fwd = jax.jit(deeplabv3p_decoder_forward, static_argnames=("n_classes",))
    out = jax.block_until_ready(fwd(mid_feature, deep_feature, fp, n_classes=n_classes))

    assert out.shape == (N, n_classes, H, W), out.shape
    assert bool(jnp.all(jnp.isfinite(out)))

    ref = reference_forward(mid_feature, deep_feature, params, n_classes)
    max_err = float(jnp.max(jnp.abs(out - ref)))
    assert max_err < 1e-1, f"max abs error vs reference: {max_err}"
    print("KERNEL_OK")
</pallas_src>

<mosaic_0001>
module attributes {stable_mosaic.version = 11 : i64} {
  func.func @_resize_kernel(%arg0: i32, %arg1: i32, %arg2: memref<1x8x8x8xf32, #tpu.memory_space<vmem>>, %arg3: memref<8x16xf32, #tpu.memory_space<vmem>>, %arg4: memref<16x8xf32, #tpu.memory_space<vmem>>, %arg5: memref<1x8x16x16xbf16, #tpu.memory_space<vmem>>) attributes {dimension_semantics = [#tpu.dimension_semantics<parallel>, #tpu.dimension_semantics<parallel>], iteration_bounds = array<i64: 2, 1>, scalar_prefetch = 0 : i64, scratch_operands = 0 : i64, tpu.core_type = #tpu.core_type<tc>, window_params = [{transform_indices = @transform_0, window_bounds = array<i64: 1, 8, 8, 8>}, {pipeline_mode = #tpu.pipeline_mode<synchronous>, transform_indices = @transform_1, window_bounds = array<i64: 8, 16>}, {pipeline_mode = #tpu.pipeline_mode<synchronous>, transform_indices = @transform_2, window_bounds = array<i64: 16, 8>}, {transform_indices = @transform_3, window_bounds = array<i64: 1, 8, 16, 16>}]} {
    %c0 = arith.constant 0 : index
    %c0_0 = arith.constant 0 : index
    %c0_1 = arith.constant 0 : index
    %c0_2 = arith.constant 0 : index
    %0 = vector.load %arg2[%c0, %c0_0, %c0_1, %c0_2] : memref<1x8x8x8xf32, #tpu.memory_space<vmem>>, vector<1x8x8x8xf32>
    %1 = vector.shape_cast %0 : vector<1x8x8x8xf32> to vector<8x8x8xf32>
    %c0_3 = arith.constant 0 : index
    %c0_4 = arith.constant 0 : index
    %2 = vector.load %arg3[%c0_3, %c0_4] : memref<8x16xf32, #tpu.memory_space<vmem>>, vector<8x16xf32>
    %3 = vector.shape_cast %2 : vector<8x16xf32> to vector<1x8x16xf32>
    %4 = vector.broadcast %3 : vector<1x8x16xf32> to vector<8x8x16xf32>
    %cst = arith.constant dense<0.000000e+00> : vector<8x8x16xf32>
    %5 = tpu.matmul %1, %4, %cst {dimension_numbers = #tpu.dot_dimension_numbers<[2], [1], [1], [2], [0, 0, 0, 1, 1, 2], [0], [0]>} : vector<8x8x8xf32>, vector<8x8x16xf32>, vector<8x8x16xf32> -> vector<8x8x16xf32>
    %c0_5 = arith.constant 0 : index
    %c0_6 = arith.constant 0 : index
    %6 = vector.load %arg4[%c0_5, %c0_6] : memref<16x8xf32, #tpu.memory_space<vmem>>, vector<16x8xf32>
    %7 = vector.shape_cast %6 : vector<16x8xf32> to vector<1x16x8xf32>
    %8 = vector.broadcast %7 : vector<1x16x8xf32> to vector<8x16x8xf32>
    %cst_7 = arith.constant dense<0.000000e+00> : vector<8x16x16xf32>
    %9 = tpu.matmul %8, %5, %cst_7 {dimension_numbers = #tpu.dot_dimension_numbers<[2], [1], [1], [2], [0, 0, 0, 1, 1, 2], [0], [0]>} : vector<8x16x8xf32>, vector<8x8x16xf32>, vector<8x16x16xf32> -> vector<8x16x16xf32>
    %10 = arith.truncf %9 : vector<8x16x16xf32> to vector<8x16x16xbf16>
    %c0_8 = arith.constant 0 : index
    %c0_9 = arith.constant 0 : index
    %c0_10 = arith.constant 0 : index
    %c0_11 = arith.constant 0 : index
    %11 = vector.load %arg5[%c0_8, %c0_9, %c0_10, %c0_11] : memref<1x8x16x16xbf16, #tpu.memory_space<vmem>>, vector<1x8x16x16xbf16>
    %12 = vector.shape_cast %11 : vector<1x8x16x16xbf16> to vector<8x16x16xbf16>
    %13 = vector.shape_cast %10 : vector<8x16x16xbf16> to vector<1x8x16x16xbf16>
    tpu.vector_store %arg5[%c0_8, %c0_9, %c0_10, %c0_11], %13 {strides = array<i32>} : memref<1x8x16x16xbf16, #tpu.memory_space<vmem>>, vector<1x8x16x16xbf16>,
    return
  }
  func.func @transform_0(%arg0: i32, %arg1: i32) -> (i32, i32, i32, i32) {
    %c0_i32 = arith.constant 0 : i32
    %c0_i32_0 = arith.constant 0 : i32
    %c0_i32_1 = arith.constant 0 : i32
    return %arg0, %arg1, %c0_i32, %c0_i32_0 : i32, i32, i32, i32
  }
  func.func @transform_1(%arg0: i32, %arg1: i32) -> (i32, i32) {
    %c0_i32 = arith.constant 0 : i32
    %c0_i32_0 = arith.constant 0 : i32
    %c0_i32_1 = arith.constant 0 : i32
    return %c0_i32, %c0_i32_0 : i32, i32
  }
  func.func @transform_2(%arg0: i32, %arg1: i32) -> (i32, i32) {
    %c0_i32 = arith.constant 0 : i32
    %c0_i32_0 = arith.constant 0 : i32
    %c0_i32_1 = arith.constant 0 : i32
    return %c0_i32, %c0_i32_0 : i32, i32
  }
  func.func @transform_3(%arg0: i32, %arg1: i32) -> (i32, i32, i32, i32) {
    %c0_i32 = arith.constant 0 : i32
    %c0_i32_0 = arith.constant 0 : i32
    %c0_i32_1 = arith.constant 0 : i32
    return %arg0, %arg1, %c0_i32, %c0_i32_0 : i32, i32, i32, i32
  }
}

module attributes {stable_mosaic.version = 11 : i64} {
  func.func @_conv2_conv3_kernel(%arg0: i32, %arg1: memref<1x256x8xbf16, #tpu.memory_space<vmem>>, %arg2: memref<9x8x8xbf16, #tpu.memory_space<vmem>>, %arg3: memref<1x8xf32, #tpu.memory_space<vmem>>, %arg4: memref<8x128xbf16, #tpu.memory_space<vmem>>, %arg5: memref<1x128xf32, #tpu.memory_space<vmem>>, %arg6: memref<1x256x128xf32, #tpu.memory_space<vmem>>, %arg7: memref<288x8xf32, #tpu.memory_space<vmem>>) attributes {dimension_semantics = [#tpu.dimension_semantics<parallel>], iteration_bounds = array<i64: 2>, scalar_prefetch = 0 : i64, scratch_operands = 1 : i64, tpu.core_type = #tpu.core_type<tc>, window_params = [{transform_indices = @transform_0, window_bounds = array<i64: 1, 256, 8>}, {pipeline_mode = #tpu.pipeline_mode<synchronous>, transform_indices = @transform_1, window_bounds = array<i64: 9, 8, 8>}, {pipeline_mode = #tpu.pipeline_mode<synchronous>, transform_indices = @transform_2, window_bounds = array<i64: 1, 8>}, {pipeline_mode = #tpu.pipeline_mode<synchronous>, transform_indices = @transform_3, window_bounds = array<i64: 8, 128>}, {pipeline_mode = #tpu.pipeline_mode<synchronous>, transform_indices = @transform_4, window_bounds = array<i64: 1, 128>}, {transform_indices = @transform_5, window_bounds = array<i64: 1, 256, 128>}]} {
    %c0 = arith.constant 0 : index
    %c0_0 = arith.constant 0 : index
    %c0_1 = arith.constant 0 : index
    %0 = vector.load %arg1[%c0, %c0_0, %c0_1] : memref<1x256x8xbf16, #tpu.memory_space<vmem>>, vector<1x256x8xbf16>
    %1 = vector.shape_cast %0 : vector<1x256x8xbf16> to vector<256x8xbf16>
    %2 = tpu.iota {dimensions = array<i32: 0>} : vector<256x1xi32>
    %c16_i32 = arith.constant 16 : i32
    %c0_i32 = arith.constant 0 : i32
    %3 = arith.cmpi eq, %c16_i32, %c0_i32 : i32
    %c1_i32 = arith.constant 1 : i32
    %4 = arith.select %3, %c1_i32, %c16_i32 : i32
    %5 = vector.broadcast %4 : i32 to vector<256x1xi32>
    %6 = arith.remsi %2, %5 : vector<256x1xi32>
    %c0_i32_2 = arith.constant 0 : i32
    %7 = vector.broadcast %c0_i32_2 : i32 to vector<256x1xi32>
    %8 = arith.cmpi ne, %6, %7 : vector<256x1xi32>
    %c0_i32_3 = arith.constant 0 : i32
    %9 = vector.broadcast %c0_i32_3 : i32 to vector<256x1xi32>
    %10 = arith.cmpi slt, %6, %9 : vector<256x1xi32>
    %c0_i32_4 = arith.constant 0 : i32
    %11 = arith.cmpi slt, %4, %c0_i32_4 : i32
    %12 = vector.broadcast %11 : i1 to vector<256x1xi1>
    %13 = vector.broadcast %12 : vector<256x1xi1> to vector<256x1xi1>
    %14 = arith.xori %10, %13 : vector<256x1xi1>
    %15 = arith.andi %14, %8 : vector<256x1xi1>
    %16 = vector.broadcast %4 : i32 to vector<256x1xi32>
    %17 = arith.addi %6, %16 : vector<256x1xi32>
    %18 = arith.select %15, %17, %6 : vector<256x1xi1>, vector<256x1xi32>
    %c15_i32 = arith.constant 15 : i32
    %19 = vector.broadcast %c15_i32 : i32 to vector<256x1xi32>
    %20 = arith.cmpi ne, %18, %19 : vector<256x1xi32>
    %21 = arith.extui %20 : vector<256x1xi1> to vector<256x1xi32>
    %22 = arith.sitofp %21 : vector<256x1xi32> to vector<256x1xf32>
    %c0_i32_5 = arith.constant 0 : i32
    %23 = vector.broadcast %c0_i32_5 : i32 to vector<256x1xi32>
    %24 = arith.cmpi ne, %18, %23 : vector<256x1xi32>
    %25 = arith.extui %24 : vector<256x1xi1> to vector<256x1xi32>
    %26 = arith.sitofp %25 : vector<256x1xi32> to vector<256x1xf32>
    %c3 = arith.constant 3 : index
    %c0_6 = arith.constant 0 : index
    %c0_7 = arith.constant 0 : index
    %27 = vector.load %arg2[%c3, %c0_6, %c0_7] : memref<9x8x8xbf16, #tpu.memory_space<vmem>>, vector<1x8x8xbf16>
    %28 = vector.shape_cast %27 : vector<1x8x8xbf16> to vector<8x8xbf16>
    %cst = arith.constant dense<0.000000e+00> : vector<256x8xf32>
    %29 = tpu.matmul %1, %28, %cst {dimension_numbers = #tpu.dot_dimension_numbers<[1], [0], [0], [1], [0, 0, 1, 1], [], []>} : vector<256x8xbf16>, vector<8x8xbf16>, vector<256x8xf32> -> vector<256x8xf32>
    %c4 = arith.constant 4 : index
    %c0_8 = arith.constant 0 : index
    %c0_9 = arith.constant 0 : index
    %30 = vector.load %arg2[%c4, %c0_8, %c0_9] : memref<9x8x8xbf16, #tpu.memory_space<vmem>>, vector<1x8x8xbf16>
    %31 = vector.shape_cast %30 : vector<1x8x8xbf16> to vector<8x8xbf16>
    %cst_10 = arith.constant dense<0.000000e+00> : vector<256x8xf32>
    %32 = tpu.matmul %1, %31, %cst_10 {dimension_numbers = #tpu.dot_dimension_numbers<[1], [0], [0], [1], [0, 0, 1, 1], [], []>} : vector<256x8xbf16>, vector<8x8xbf16>, vector<256x8xf32> -> vector<256x8xf32>
    %c5 = arith.constant 5 : index
    %c0_11 = arith.constant 0 : index
    %c0_12 = arith.constant 0 : index
    %33 = vector.load %arg2[%c5, %c0_11, %c0_12] : memref<9x8x8xbf16, #tpu.memory_space<vmem>>, vector<1x8x8xbf16>
    %34 = vector.shape_cast %33 : vector<1x8x8xbf16> to vector<8x8xbf16>
    %cst_13 = arith.constant dense<0.000000e+00> : vector<256x8xf32>
    %35 = tpu.matmul %1, %34, %cst_13 {dimension_numbers = #tpu.dot_dimension_numbers<[1], [0], [0], [1], [0, 0, 1, 1], [], []>} : vector<256x8xbf16>, vector<8x8xbf16>, vector<256x8xf32> -> vector<256x8xf32>
    %36 = vector.broadcast %22 : vector<256x1xf32> to vector<256x8xf32>
    %37 = arith.mulf %36, %29 : vector<256x8xf32>
    %c1_i32_14 = arith.constant 1 : i32
    %38 = tpu.dynamic_rotate %37 by %c1_i32_14 dim 0 : vector<256x8xf32>, i32 -> vector<256x8xf32>
    %39 = arith.addf %32, %38 : vector<256x8xf32>
    %40 = vector.broadcast %26 : vector<256x1xf32> to vector<256x8xf32>
    %41 = arith.mulf %40, %35 : vector<256x8xf32>
    %c255_i32 = arith.constant 255 : i32
    %42 = tpu.dynamic_rotate %41 by %c255_i32 dim 0 : vector<256x8xf32>, i32 -> vector<256x8xf32>
    %43 = arith.addf %39, %42 : vector<256x8xf32>
    %c16 = arith.constant 16 : index
    %c0_15 = arith.constant 0 : index
    %44 = vector.load %arg7[%c16, %c0_15] : memref<288x8xf32, #tpu.memory_space<vmem>>, vector<256x8xf32>
    tpu.vector_store %arg7[%c16, %c0_15], %43 {strides = array<i32>} : memref<288x8xf32, #tpu.memory_space<vmem>>, vector<256x8xf32>,
    %c0_16 = arith.constant 0 : index
    %c0_17 = arith.constant 0 : index
    %c0_18 = arith.constant 0 : index
    %45 = vector.load %arg2[%c0_16, %c0_17, %c0_18] : memref<9x8x8xbf16, #tpu.memory_space<vmem>>, vector<1x8x8xbf16>
    %46 = vector.shape_cast %45 : vector<1x8x8xbf16> to vector<8x8xbf16>
    %cst_19 = arith.constant dense<0.000000e+00> : vector<256x8xf32>
    %47 = tpu.matmul %1, %46, %cst_19 {dimension_numbers = #tpu.dot_dimension_numbers<[1], [0], [0], [1], [0, 0, 1, 1], [], []>} : vector<256x8xbf16>, vector<8x8xbf16>, vector<256x8xf32> -> vector<256x8xf32>
    %c1 = arith.constant 1 : index
    %c0_20 = arith.constant 0 : index
    %c0_21 = arith.constant 0 : index
    %48 = vector.load %arg2[%c1, %c0_20, %c0_21] : memref<9x8x8xbf16, #tpu.memory_space<vmem>>, vector<1x8x8xbf16>
    %49 = vector.shape_cast %48 : vector<1x8x8xbf16> to vector<8x8xbf16>
    %cst_22 = arith.constant dense<0.000000e+00> : vector<256x8xf32>
    %50 = tpu.matmul %1, %49, %cst_22 {dimension_numbers = #tpu.dot_dimension_numbers<[1], [0], [0], [1], [0, 0, 1, 1], [], []>} : vector<256x8xbf16>, vector<8x8xbf16>, vector<256x8xf32> -> vector<256x8xf32>
    %c2 = arith.constant 2 : index
    %c0_23 = arith.constant 0 : index
    %c0_24 = arith.constant 0 : index
    %51 = vector.load %arg2[%c2, %c0_23, %c0_24] : memref<9x8x8xbf16, #tpu.memory_space<vmem>>, vector<1x8x8xbf16>
    %52 = vector.shape_cast %51 : vector<1x8x8xbf16> to vector<8x8xbf16>
    %cst_25 = arith.constant dense<0.000000e+00> : vector<256x8xf32>
    %53 = tpu.matmul %1, %52, %cst_25 {dimension_numbers = #tpu.dot_dimension_numbers<[1], [0], [0], [1], [0, 0, 1, 1], [], []>} : vector<256x8xbf16>, vector<8x8xbf16>, vector<256x8xf32> -> vector<256x8xf32>
    %54 = vector.broadcast %22 : vector<256x1xf32> to vector<256x8xf32>
    %55 = arith.mulf %54, %47 : vector<256x8xf32>
    %c1_i32_26 = arith.constant 1 : i32
    %56 = tpu.dynamic_rotate %55 by %c1_i32_26 dim 0 : vector<256x8xf32>, i32 -> vector<256x8xf32>
    %57 = arith.addf %50, %56 : vector<256x8xf32>
    %58 = vector.broadcast %26 : vector<256x1xf32> to vector<256x8xf32>
    %59 = arith.mulf %58, %53 : vector<256x8xf32>
    %c255_i32_27 = arith.constant 255 : i32
    %60 = tpu.dynamic_rotate %59 by %c255_i32_27 dim 0 : vector<256x8xf32>, i32 -> vector<256x8xf32>
    %61 = arith.addf %57, %60 : vector<256x8xf32>
    %c32 = arith.constant 32 : index
    %c0_28 = arith.constant 0 : index
    %62 = vector.load %arg7[%c32, %c0_28] : memref<288x8xf32, #tpu.memory_space<vmem>>, vector<256x8xf32>
    %63 = arith.addf %62, %61 : vector<256x8xf32>
    %c32_29 = arith.constant 32 : index
    %c0_30 = arith.constant 0 : index
    %64 = vector.load %arg7[%c32_29, %c0_30] : memref<288x8xf32, #tpu.memory_space<vmem>>, vector<256x8xf32>
    tpu.vector_store %arg7[%c32_29, %c0_30], %63 {strides = array<i32>} : memref<288x8xf32, #tpu.memory_space<vmem>>, vector<256x8xf32>,
    %c6 = arith.constant 6 : index
    %c0_31 = arith.constant 0 : index
    %c0_32 = arith.constant 0 : index
    %65 = vector.load %arg2[%c6, %c0_31, %c0_32] : memref<9x8x8xbf16, #tpu.memory_space<vmem>>, vector<1x8x8xbf16>
    %66 = vector.shape_cast %65 : vector<1x8x8xbf16> to vector<8x8xbf16>
    %cst_33 = arith.constant dense<0.000000e+00> : vector<256x8xf32>
    %67 = tpu.matmul %1, %66, %cst_33 {dimension_numbers = #tpu.dot_dimension_numbers<[1], [0], [0], [1], [0, 0, 1, 1], [], []>} : vector<256x8xbf16>, vector<8x8xbf16>, vector<256x8xf32> -> vector<256x8xf32>
    %c7 = arith.constant 7 : index
    %c0_34 = arith.constant 0 : index
    %c0_35 = arith.constant 0 : index
    %68 = vector.load %arg2[%c7, %c0_34, %c0_35] : memref<9x8x8xbf16, #tpu.memory_space<vmem>>, vector<1x8x8xbf16>
    %69 = vector.shape_cast %68 : vector<1x8x8xbf16> to vector<8x8xbf16>
    %cst_36 = arith.constant dense<0.000000e+00> : vector<256x8xf32>
    %70 = tpu.matmul %1, %69, %cst_36 {dimension_numbers = #tpu.dot_dimension_numbers<[1], [0], [0], [1], [0, 0, 1, 1], [], []>} : vector<256x8xbf16>, vector<8x8xbf16>, vector<256x8xf32> -> vector<256x8xf32>
    %c8 = arith.constant 8 : index
    %c0_37 = arith.constant 0 : index
    %c0_38 = arith.constant 0 : index
    %71 = vector.load %arg2[%c8, %c0_37, %c0_38] : memref<9x8x8xbf16, #tpu.memory_space<vmem>>, vector<1x8x8xbf16>
    %72 = vector.shape_cast %71 : vector<1x8x8xbf16> to vector<8x8xbf16>
    %cst_39 = arith.constant dense<0.000000e+00> : vector<256x8xf32>
    %73 = tpu.matmul %1, %72, %cst_39 {dimension_numbers = #tpu.dot_dimension_numbers<[1], [0], [0], [1], [0, 0, 1, 1], [], []>} : vector<256x8xbf16>, vector<8x8xbf16>, vector<256x8xf32> -> vector<256x8xf32>
    %74 = vector.broadcast %22 : vector<256x1xf32> to vector<256x8xf32>
    %75 = arith.mulf %74, %67 : vector<256x8xf32>
    %c1_i32_40 = arith.constant 1 : i32
    %76 = tpu.dynamic_rotate %75 by %c1_i32_40 dim 0 : vector<256x8xf32>, i32 -> vector<256x8xf32>
    %77 = arith.addf %70, %76 : vector<256x8xf32>
    %78 = vector.broadcast %26 : vector<256x1xf32> to vector<256x8xf32>
    %79 = arith.mulf %78, %73 : vector<256x8xf32>
    %c255_i32_41 = arith.constant 255 : i32
    %80 = tpu.dynamic_rotate %79 by %c255_i32_41 dim 0 : vector<256x8xf32>, i32 -> vector<256x8xf32>
    %81 = arith.addf %77, %80 : vector<256x8xf32>
    %c0_42 = arith.constant 0 : index
    %c0_43 = arith.constant 0 : index
    %82 = vector.load %arg7[%c0_42, %c0_43] : memref<288x8xf32, #tpu.memory_space<vmem>>, vector<256x8xf32>
    %83 = arith.addf %82, %81 : vector<256x8xf32>
    %c0_44 = arith.constant 0 : index
    %c0_45 = arith.constant 0 : index
    %84 = vector.load %arg7[%c0_44, %c0_45] : memref<288x8xf32, #tpu.memory_space<vmem>>, vector<256x8xf32>
    tpu.vector_store %arg7[%c0_44, %c0_45], %83 {strides = array<i32>} : memref<288x8xf32, #tpu.memory_space<vmem>>, vector<256x8xf32>,
    %c16_46 = arith.constant 16 : index
    %c0_47 = arith.constant 0 : index
    %85 = vector.load %arg7[%c16_46, %c0_47] : memref<288x8xf32, #tpu.memory_space<vmem>>, vector<256x8xf32>
    %c0_48 = arith.constant 0 : index
    %c0_49 = arith.constant 0 : index
    %86 = vector.load %arg3[%c0_48, %c0_49] : memref<1x8xf32, #tpu.memory_space<vmem>>, vector<1x8xf32>
    %87 = vector.broadcast %86 : vector<1x8xf32> to vector<256x8xf32>
    %88 = arith.addf %85, %87 : vector<256x8xf32>
    %cst_50 = arith.constant 0.000000e+00 : f32
    %89 = vector.broadcast %cst_50 : f32 to vector<256x8xf32>
    %90 = arith.maximumf %88, %89 : vector<256x8xf32>
    %91 = arith.truncf %90 : vector<256x8xf32> to vector<256x8xbf16>
    %c0_51 = arith.constant 0 : index
    %c0_52 = arith.constant 0 : index
    %92 = vector.load %arg4[%c0_51, %c0_52] : memref<8x128xbf16, #tpu.memory_space<vmem>>, vector<8x128xbf16>
    %cst_53 = arith.constant dense<0.000000e+00> : vector<256x128xf32>
    %93 = tpu.matmul %91, %92, %cst_53 {dimension_numbers = #tpu.dot_dimension_numbers<[1], [0], [0], [1], [0, 0, 1, 1], [], []>} : vector<256x8xbf16>, vector<8x128xbf16>, vector<256x128xf32> -> vector<256x128xf32>
    %c0_54 = arith.constant 0 : index
    %c0_55 = arith.constant 0 : index
    %94 = vector.load %arg5[%c0_54, %c0_55] : memref<1x128xf32, #tpu.memory_space<vmem>>, vector<1x128xf32>
    %95 = vector.broadcast %94 : vector<1x128xf32> to vector<256x128xf32>
    %96 = arith.addf %93, %95 : vector<256x128xf32>
    %c0_56 = arith.constant 0 : index
    %c0_57 = arith.constant 0 : index
    %c0_58 = arith.constant 0 : index
    %97 = vector.load %arg6[%c0_56, %c0_57, %c0_58] : memref<1x256x128xf32, #tpu.memory_space<vmem>>, vector<1x256x128xf32>
    %98 = vector.shape_cast %97 : vector<1x256x128xf32> to vector<256x128xf32>
    %99 = vector.shape_cast %96 : vector<256x128xf32> to vector<1x256x128xf32>
    tpu.vector_store %arg6[%c0_56, %c0_57, %c0_58], %99 {strides = array<i32>} : memref<1x256x128xf32, #tpu.memory_space<vmem>>, vector<1x256x128xf32>,
    return
  }
  func.func @transform_0(%arg0: i32) -> (i32, i32, i32) {
    %c0_i32 = arith.constant 0 : i32
    %c0_i32_0 = arith.constant 0 : i32
    %c0_i32_1 = arith.constant 0 : i32
    return %arg0, %c0_i32, %c0_i32_0 : i32, i32, i32
  }
  func.func @transform_1(%arg0: i32) -> (i32, i32, i32) {
    %c0_i32 = arith.constant 0 : i32
    %c0_i32_0 = arith.constant 0 : i32
    %c0_i32_1 = arith.constant 0 : i32
    %c0_i32_2 = arith.constant 0 : i32
    return %c0_i32, %c0_i32_0, %c0_i32_1 : i32, i32, i32
  }
  func.func @transform_2(%arg0: i32) -> (i32, i32) {
    %c0_i32 = arith.constant 0 : i32
    %c0_i32_0 = arith.constant 0 : i32
    %c0_i32_1 = arith.constant 0 : i32
    return %c0_i32, %c0_i32_0 : i32, i32
  }
  func.func @transform_3(%arg0: i32) -> (i32, i32) {
    %c0_i32 = arith.constant 0 : i32
    %c0_i32_0 = arith.constant 0 : i32
    %c0_i32_1 = arith.constant 0 : i32
    return %c0_i32, %c0_i32_0 : i32, i32
  }
  func.func @transform_4(%arg0: i32) -> (i32, i32) {
    %c0_i32 = arith.constant 0 : i32
    %c0_i32_0 = arith.constant 0 : i32
    %c0_i32_1 = arith.constant 0 : i32
    return %c0_i32, %c0_i32_0 : i32, i32
  }
  func.func @transform_5(%arg0: i32) -> (i32, i32, i32) {
    %c0_i32 = arith.constant 0 : i32
    %c0_i32_0 = arith.constant 0 : i32
    %c0_i32_1 = arith.constant 0 : i32
    return %arg0, %c0_i32, %c0_i32_0 : i32, i32, i32
  }
}

module attributes {stable_mosaic.version = 11 : i64} {
  func.func @_conv1_kernel(%arg0: i32, %arg1: memref<1x8x256xbf16, #tpu.memory_space<vmem>>, %arg2: memref<1x8x256xf32, #tpu.memory_space<vmem>>, %arg3: memref<8x4xbf16, #tpu.memory_space<vmem>>, %arg4: memref<9x8x8xbf16, #tpu.memory_space<vmem>>, %arg5: memref<9x4x8xbf16, #tpu.memory_space<vmem>>, %arg6: memref<1x4xf32, #tpu.memory_space<vmem>>, %arg7: memref<1x8xf32, #tpu.memory_space<vmem>>, %arg8: memref<1x256x8xbf16, #tpu.memory_space<vmem>>, %arg9: memref<288x8xf32, #tpu.memory_space<vmem>>) attributes {dimension_semantics = [#tpu.dimension_semantics<parallel>], iteration_bounds = array<i64: 2>, scalar_prefetch = 0 : i64, scratch_operands = 1 : i64, tpu.core_type = #tpu.core_type<tc>, window_params = [{transform_indices = @transform_0, window_bounds = array<i64: 1, 8, 256>}, {transform_indices = @transform_1, window_bounds = array<i64: 1, 8, 256>}, {pipeline_mode = #tpu.pipeline_mode<synchronous>, transform_indices = @transform_2, window_bounds = array<i64: 8, 4>}, {pipeline_mode = #tpu.pipeline_mode<synchronous>, transform_indices = @transform_3, window_bounds = array<i64: 9, 8, 8>}, {pipeline_mode = #tpu.pipeline_mode<synchronous>, transform_indices = @transform_4, window_bounds = array<i64: 9, 4, 8>}, {pipeline_mode = #tpu.pipeline_mode<synchronous>, transform_indices = @transform_5, window_bounds = array<i64: 1, 4>}, {pipeline_mode = #tpu.pipeline_mode<synchronous>, transform_indices = @transform_6, window_bounds = array<i64: 1, 8>}, {transform_indices = @transform_7, window_bounds = array<i64: 1, 256, 8>}]} {
    %c0 = arith.constant 0 : index
    %c0_0 = arith.constant 0 : index
    %c0_1 = arith.constant 0 : index
    %0 = vector.load %arg2[%c0, %c0_0, %c0_1] : memref<1x8x256xf32, #tpu.memory_space<vmem>>, vector<1x8x256xf32>
    %1 = vector.shape_cast %0 : vector<1x8x256xf32> to vector<8x256xf32>
    %2 = arith.truncf %1 : vector<8x256xf32> to vector<8x256xbf16>
    %c0_2 = arith.constant 0 : index
    %c0_3 = arith.constant 0 : index
    %3 = vector.load %arg3[%c0_2, %c0_3] : memref<8x4xbf16, #tpu.memory_space<vmem>>, vector<8x4xbf16>
    %cst = arith.constant dense<0.000000e+00> : vector<256x4xf32>
    %4 = tpu.matmul %2, %3, %cst {dimension_numbers = #tpu.dot_dimension_numbers<[0], [0], [1], [1], [0, 1, 1, 1], [], []>} : vector<8x256xbf16>, vector<8x4xbf16>, vector<256x4xf32> -> vector<256x4xf32>
    %c0_4 = arith.constant 0 : index
    %c0_5 = arith.constant 0 : index
    %5 = vector.load %arg6[%c0_4, %c0_5] : memref<1x4xf32, #tpu.memory_space<vmem>>, vector<1x4xf32>
    %6 = vector.broadcast %5 : vector<1x4xf32> to vector<256x4xf32>
    %7 = arith.addf %4, %6 : vector<256x4xf32>
    %cst_6 = arith.constant 0.000000e+00 : f32
    %8 = vector.broadcast %cst_6 : f32 to vector<256x4xf32>
    %9 = arith.maximumf %7, %8 : vector<256x4xf32>
    %10 = arith.truncf %9 : vector<256x4xf32> to vector<256x4xbf16>
    %c0_7 = arith.constant 0 : index
    %c0_8 = arith.constant 0 : index
    %c0_9 = arith.constant 0 : index
    %11 = vector.load %arg1[%c0_7, %c0_8, %c0_9] : memref<1x8x256xbf16, #tpu.memory_space<vmem>>, vector<1x8x256xbf16>
    %12 = vector.shape_cast %11 : vector<1x8x256xbf16> to vector<8x256xbf16>
    %13 = tpu.iota {dimensions = array<i32: 0>} : vector<256x1xi32>
    %c16_i32 = arith.constant 16 : i32
    %c0_i32 = arith.constant 0 : i32
    %14 = arith.cmpi eq, %c16_i32, %c0_i32 : i32
    %c1_i32 = arith.constant 1 : i32
    %15 = arith.select %14, %c1_i32, %c16_i32 : i32
    %16 = vector.broadcast %15 : i32 to vector<256x1xi32>
    %17 = arith.remsi %13, %16 : vector<256x1xi32>
    %c0_i32_10 = arith.constant 0 : i32
    %18 = vector.broadcast %c0_i32_10 : i32 to vector<256x1xi32>
    %19 = arith.cmpi ne, %17, %18 : vector<256x1xi32>
    %c0_i32_11 = arith.constant 0 : i32
    %20 = vector.broadcast %c0_i32_11 : i32 to vector<256x1xi32>
    %21 = arith.cmpi slt, %17, %20 : vector<256x1xi32>
    %c0_i32_12 = arith.constant 0 : i32
    %22 = arith.cmpi slt, %15, %c0_i32_12 : i32
    %23 = vector.broadcast %22 : i1 to vector<256x1xi1>
    %24 = vector.broadcast %23 : vector<256x1xi1> to vector<256x1xi1>
    %25 = arith.xori %21, %24 : vector<256x1xi1>
    %26 = arith.andi %25, %19 : vector<256x1xi1>
    %27 = vector.broadcast %15 : i32 to vector<256x1xi32>
    %28 = arith.addi %17, %27 : vector<256x1xi32>
    %29 = arith.select %26, %28, %17 : vector<256x1xi1>, vector<256x1xi32>
    %c15_i32 = arith.constant 15 : i32
    %30 = vector.broadcast %c15_i32 : i32 to vector<256x1xi32>
    %31 = arith.cmpi ne, %29, %30 : vector<256x1xi32>
    %32 = arith.extui %31 : vector<256x1xi1> to vector<256x1xi32>
    %33 = arith.sitofp %32 : vector<256x1xi32> to vector<256x1xf32>
    %c0_i32_13 = arith.constant 0 : i32
    %34 = vector.broadcast %c0_i32_13 : i32 to vector<256x1xi32>
    %35 = arith.cmpi ne, %29, %34 : vector<256x1xi32>
    %36 = arith.extui %35 : vector<256x1xi1> to vector<256x1xi32>
    %37 = arith.sitofp %36 : vector<256x1xi32> to vector<256x1xf32>
    %c3 = arith.constant 3 : index
    %c0_14 = arith.constant 0 : index
    %c0_15 = arith.constant 0 : index
    %38 = vector.load %arg4[%c3, %c0_14, %c0_15] : memref<9x8x8xbf16, #tpu.memory_space<vmem>>, vector<1x8x8xbf16>
    %39 = vector.shape_cast %38 : vector<1x8x8xbf16> to vector<8x8xbf16>
    %cst_16 = arith.constant dense<0.000000e+00> : vector<256x8xf32>
    %40 = tpu.matmul %12, %39, %cst_16 {dimension_numbers = #tpu.dot_dimension_numbers<[0], [0], [1], [1], [0, 1, 1, 1], [], []>} : vector<8x256xbf16>, vector<8x8xbf16>, vector<256x8xf32> -> vector<256x8xf32>
    %c3_17 = arith.constant 3 : index
    %c0_18 = arith.constant 0 : index
    %c0_19 = arith.constant 0 : index
    %41 = vector.load %arg5[%c3_17, %c0_18, %c0_19] : memref<9x4x8xbf16, #tpu.memory_space<vmem>>, vector<1x4x8xbf16>
    %42 = vector.shape_cast %41 : vector<1x4x8xbf16> to vector<4x8xbf16>
    %cst_20 = arith.constant dense<0.000000e+00> : vector<256x8xf32>
    %43 = tpu.matmul %10, %42, %cst_20 {dimension_numbers = #tpu.dot_dimension_numbers<[1], [0], [0], [1], [0, 0, 1, 1], [], []>} : vector<256x4xbf16>, vector<4x8xbf16>, vector<256x8xf32> -> vector<256x8xf32>
    %44 = arith.addf %40, %43 : vector<256x8xf32>
    %c4 = arith.constant 4 : index
    %c0_21 = arith.constant 0 : index
    %c0_22 = arith.constant 0 : index
    %45 = vector.load %arg4[%c4, %c0_21, %c0_22] : memref<9x8x8xbf16, #tpu.memory_space<vmem>>, vector<1x8x8xbf16>
    %46 = vector.shape_cast %45 : vector<1x8x8xbf16> to vector<8x8xbf16>
    %cst_23 = arith.constant dense<0.000000e+00> : vector<256x8xf32>
    %47 = tpu.matmul %12, %46, %cst_23 {dimension_numbers = #tpu.dot_dimension_numbers<[0], [0], [1], [1], [0, 1, 1, 1], [], []>} : vector<8x256xbf16>, vector<8x8xbf16>, vector<256x8xf32> -> vector<256x8xf32>
    %c4_24 = arith.constant 4 : index
    %c0_25 = arith.constant 0 : index
    %c0_26 = arith.constant 0 : index
    %48 = vector.load %arg5[%c4_24, %c0_25, %c0_26] : memref<9x4x8xbf16, #tpu.memory_space<vmem>>, vector<1x4x8xbf16>
    %49 = vector.shape_cast %48 : vector<1x4x8xbf16> to vector<4x8xbf16>
    %cst_27 = arith.constant dense<0.000000e+00> : vector<256x8xf32>
    %50 = tpu.matmul %10, %49, %cst_27 {dimension_numbers = #tpu.dot_dimension_numbers<[1], [0], [0], [1], [0, 0, 1, 1], [], []>} : vector<256x4xbf16>, vector<4x8xbf16>, vector<256x8xf32> -> vector<256x8xf32>
    %51 = arith.addf %47, %50 : vector<256x8xf32>
    %c5 = arith.constant 5 : index
    %c0_28 = arith.constant 0 : index
    %c0_29 = arith.constant 0 : index
    %52 = vector.load %arg4[%c5, %c0_28, %c0_29] : memref<9x8x8xbf16, #tpu.memory_space<vmem>>, vector<1x8x8xbf16>
    %53 = vector.shape_cast %52 : vector<1x8x8xbf16> to vector<8x8xbf16>
    %cst_30 = arith.constant dense<0.000000e+00> : vector<256x8xf32>
    %54 = tpu.matmul %12, %53, %cst_30 {dimension_numbers = #tpu.dot_dimension_numbers<[0], [0], [1], [1], [0, 1, 1, 1], [], []>} : vector<8x256xbf16>, vector<8x8xbf16>, vector<256x8xf32> -> vector<256x8xf32>
    %c5_31 = arith.constant 5 : index
    %c0_32 = arith.constant 0 : index
    %c0_33 = arith.constant 0 : index
    %55 = vector.load %arg5[%c5_31, %c0_32, %c0_33] : memref<9x4x8xbf16, #tpu.memory_space<vmem>>, vector<1x4x8xbf16>
    %56 = vector.shape_cast %55 : vector<1x4x8xbf16> to vector<4x8xbf16>
    %cst_34 = arith.constant dense<0.000000e+00> : vector<256x8xf32>
    %57 = tpu.matmul %10, %56, %cst_34 {dimension_numbers = #tpu.dot_dimension_numbers<[1], [0], [0], [1], [0, 0, 1, 1], [], []>} : vector<256x4xbf16>, vector<4x8xbf16>, vector<256x8xf32> -> vector<256x8xf32>
    %58 = arith.addf %54, %57 : vector<256x8xf32>
    %59 = vector.broadcast %33 : vector<256x1xf32> to vector<256x8xf32>
    %60 = arith.mulf %59, %44 : vector<256x8xf32>
    %c1_i32_35 = arith.constant 1 : i32
    %61 = tpu.dynamic_rotate %60 by %c1_i32_35 dim 0 : vector<256x8xf32>, i32 -> vector<256x8xf32>
    %62 = arith.addf %51, %61 : vector<256x8xf32>
    %63 = vector.broadcast %37 : vector<256x1xf32> to vector<256x8xf32>
    %64 = arith.mulf %63, %58 : vector<256x8xf32>
    %c255_i32 = arith.constant 255 : i32
    %65 = tpu.dynamic_rotate %64 by %c255_i32 dim 0 : vector<256x8xf32>, i32 -> vector<256x8xf32>
    %66 = arith.addf %62, %65 : vector<256x8xf32>
    %c16 = arith.constant 16 : index
    %c0_36 = arith.constant 0 : index
    %67 = vector.load %arg9[%c16, %c0_36] : memref<288x8xf32, #tpu.memory_space<vmem>>, vector<256x8xf32>
    tpu.vector_store %arg9[%c16, %c0_36], %66 {strides = array<i32>} : memref<288x8xf32, #tpu.memory_space<vmem>>, vector<256x8xf32>,
    %c0_37 = arith.constant 0 : index
    %c0_38 = arith.constant 0 : index
    %c0_39 = arith.constant 0 : index
    %68 = vector.load %arg4[%c0_37, %c0_38, %c0_39] : memref<9x8x8xbf16, #tpu.memory_space<vmem>>, vector<1x8x8xbf16>
    %69 = vector.shape_cast %68 : vector<1x8x8xbf16> to vector<8x8xbf16>
    %cst_40 = arith.constant dense<0.000000e+00> : vector<256x8xf32>
    %70 = tpu.matmul %12, %69, %cst_40 {dimension_numbers = #tpu.dot_dimension_numbers<[0], [0], [1], [1], [0, 1, 1, 1], [], []>} : vector<8x256xbf16>, vector<8x8xbf16>, vector<256x8xf32> -> vector<256x8xf32>
    %c0_41 = arith.constant 0 : index
    %c0_42 = arith.constant 0 : index
    %c0_43 = arith.constant 0 : index
    %71 = vector.load %arg5[%c0_41, %c0_42, %c0_43] : memref<9x4x8xbf16, #tpu.memory_space<vmem>>, vector<1x4x8xbf16>
    %72 = vector.shape_cast %71 : vector<1x4x8xbf16> to vector<4x8xbf16>
    %cst_44 = arith.constant dense<0.000000e+00> : vector<256x8xf32>
    %73 = tpu.matmul %10, %72, %cst_44 {dimension_numbers = #tpu.dot_dimension_numbers<[1], [0], [0], [1], [0, 0, 1, 1], [], []>} : vector<256x4xbf16>, vector<4x8xbf16>, vector<256x8xf32> -> vector<256x8xf32>
    %74 = arith.addf %70, %73 : vector<256x8xf32>
    %c1 = arith.constant 1 : index
    %c0_45 = arith.constant 0 : index
    %c0_46 = arith.constant 0 : index
    %75 = vector.load %arg4[%c1, %c0_45, %c0_46] : memref<9x8x8xbf16, #tpu.memory_space<vmem>>, vector<1x8x8xbf16>
    %76 = vector.shape_cast %75 : vector<1x8x8xbf16> to vector<8x8xbf16>
    %cst_47 = arith.constant dense<0.000000e+00> : vector<256x8xf32>
    %77 = tpu.matmul %12, %76, %cst_47 {dimension_numbers = #tpu.dot_dimension_numbers<[0], [0], [1], [1], [0, 1, 1, 1], [], []>} : vector<8x256xbf16>, vector<8x8xbf16>, vector<256x8xf32> -> vector<256x8xf32>
    %c1_48 = arith.constant 1 : index
    %c0_49 = arith.constant 0 : index
    %c0_50 = arith.constant 0 : index
    %78 = vector.load %arg5[%c1_48, %c0_49, %c0_50] : memref<9x4x8xbf16, #tpu.memory_space<vmem>>, vector<1x4x8xbf16>
    %79 = vector.shape_cast %78 : vector<1x4x8xbf16> to vector<4x8xbf16>
    %cst_51 = arith.constant dense<0.000000e+00> : vector<256x8xf32>
    %80 = tpu.matmul %10, %79, %cst_51 {dimension_numbers = #tpu.dot_dimension_numbers<[1], [0], [0], [1], [0, 0, 1, 1], [], []>} : vector<256x4xbf16>, vector<4x8xbf16>, vector<256x8xf32> -> vector<256x8xf32>
    %81 = arith.addf %77, %80 : vector<256x8xf32>
    %c2 = arith.constant 2 : index
    %c0_52 = arith.constant 0 : index
    %c0_53 = arith.constant 0 : index
    %82 = vector.load %arg4[%c2, %c0_52, %c0_53] : memref<9x8x8xbf16, #tpu.memory_space<vmem>>, vector<1x8x8xbf16>
    %83 = vector.shape_cast %82 : vector<1x8x8xbf16> to vector<8x8xbf16>
    %cst_54 = arith.constant dense<0.000000e+00> : vector<256x8xf32>
    %84 = tpu.matmul %12, %83, %cst_54 {dimension_numbers = #tpu.dot_dimension_numbers<[0], [0], [1], [1], [0, 1, 1, 1], [], []>} : vector<8x256xbf16>, vector<8x8xbf16>, vector<256x8xf32> -> vector<256x8xf32>
    %c2_55 = arith.constant 2 : index
    %c0_56 = arith.constant 0 : index
    %c0_57 = arith.constant 0 : index
    %85 = vector.load %arg5[%c2_55, %c0_56, %c0_57] : memref<9x4x8xbf16, #tpu.memory_space<vmem>>, vector<1x4x8xbf16>
    %86 = vector.shape_cast %85 : vector<1x4x8xbf16> to vector<4x8xbf16>
    %cst_58 = arith.constant dense<0.000000e+00> : vector<256x8xf32>
    %87 = tpu.matmul %10, %86, %cst_58 {dimension_numbers = #tpu.dot_dimension_numbers<[1], [0], [0], [1], [0, 0, 1, 1], [], []>} : vector<256x4xbf16>, vector<4x8xbf16>, vector<256x8xf32> -> vector<256x8xf32>
    %88 = arith.addf %84, %87 : vector<256x8xf32>
    %89 = vector.broadcast %33 : vector<256x1xf32> to vector<256x8xf32>
    %90 = arith.mulf %89, %74 : vector<256x8xf32>
    %c1_i32_59 = arith.constant 1 : i32
    %91 = tpu.dynamic_rotate %90 by %c1_i32_59 dim 0 : vector<256x8xf32>, i32 -> vector<256x8xf32>
    %92 = arith.addf %81, %91 : vector<256x8xf32>
    %93 = vector.broadcast %37 : vector<256x1xf32> to vector<256x8xf32>
    %94 = arith.mulf %93, %88 : vector<256x8xf32>
    %c255_i32_60 = arith.constant 255 : i32
    %95 = tpu.dynamic_rotate %94 by %c255_i32_60 dim 0 : vector<256x8xf32>, i32 -> vector<256x8xf32>
    %96 = arith.addf %92, %95 : vector<256x8xf32>
    %c32 = arith.constant 32 : index
    %c0_61 = arith.constant 0 : index
    %97 = vector.load %arg9[%c32, %c0_61] : memref<288x8xf32, #tpu.memory_space<vmem>>, vector<256x8xf32>
    %98 = arith.addf %97, %96 : vector<256x8xf32>
    %c32_62 = arith.constant 32 : index
    %c0_63 = arith.constant 0 : index
    %99 = vector.load %arg9[%c32_62, %c0_63] : memref<288x8xf32, #tpu.memory_space<vmem>>, vector<256x8xf32>
    tpu.vector_store %arg9[%c32_62, %c0_63], %98 {strides = array<i32>} : memref<288x8xf32, #tpu.memory_space<vmem>>, vector<256x8xf32>,
    %c6 = arith.constant 6 : index
    %c0_64 = arith.constant 0 : index
    %c0_65 = arith.constant 0 : index
    %100 = vector.load %arg4[%c6, %c0_64, %c0_65] : memref<9x8x8xbf16, #tpu.memory_space<vmem>>, vector<1x8x8xbf16>
    %101 = vector.shape_cast %100 : vector<1x8x8xbf16> to vector<8x8xbf16>
    %cst_66 = arith.constant dense<0.000000e+00> : vector<256x8xf32>
    %102 = tpu.matmul %12, %101, %cst_66 {dimension_numbers = #tpu.dot_dimension_numbers<[0], [0], [1], [1], [0, 1, 1, 1], [], []>} : vector<8x256xbf16>, vector<8x8xbf16>, vector<256x8xf32> -> vector<256x8xf32>
    %c6_67 = arith.constant 6 : index
    %c0_68 = arith.constant 0 : index
    %c0_69 = arith.constant 0 : index
    %103 = vector.load %arg5[%c6_67, %c0_68, %c0_69] : memref<9x4x8xbf16, #tpu.memory_space<vmem>>, vector<1x4x8xbf16>
    %104 = vector.shape_cast %103 : vector<1x4x8xbf16> to vector<4x8xbf16>
    %cst_70 = arith.constant dense<0.000000e+00> : vector<256x8xf32>
    %105 = tpu.matmul %10, %104, %cst_70 {dimension_numbers = #tpu.dot_dimension_numbers<[1], [0], [0], [1], [0, 0, 1, 1], [], []>} : vector<256x4xbf16>, vector<4x8xbf16>, vector<256x8xf32> -> vector<256x8xf32>
    %106 = arith.addf %102, %105 : vector<256x8xf32>
    %c7 = arith.constant 7 : index
    %c0_71 = arith.constant 0 : index
    %c0_72 = arith.constant 0 : index
    %107 = vector.load %arg4[%c7, %c0_71, %c0_72] : memref<9x8x8xbf16, #tpu.memory_space<vmem>>, vector<1x8x8xbf16>
    %108 = vector.shape_cast %107 : vector<1x8x8xbf16> to vector<8x8xbf16>
    %cst_73 = arith.constant dense<0.000000e+00> : vector<256x8xf32>
    %109 = tpu.matmul %12, %108, %cst_73 {dimension_numbers = #tpu.dot_dimension_numbers<[0], [0], [1], [1], [0, 1, 1, 1], [], []>} : vector<8x256xbf16>, vector<8x8xbf16>, vector<256x8xf32> -> vector<256x8xf32>
    %c7_74 = arith.constant 7 : index
    %c0_75 = arith.constant 0 : index
    %c0_76 = arith.constant 0 : index
    %110 = vector.load %arg5[%c7_74, %c0_75, %c0_76] : memref<9x4x8xbf16, #tpu.memory_space<vmem>>, vector<1x4x8xbf16>
    %111 = vector.shape_cast %110 : vector<1x4x8xbf16> to vector<4x8xbf16>
    %cst_77 = arith.constant dense<0.000000e+00> : vector<256x8xf32>
    %112 = tpu.matmul %10, %111, %cst_77 {dimension_numbers = #tpu.dot_dimension_numbers<[1], [0], [0], [1], [0, 0, 1, 1], [], []>} : vector<256x4xbf16>, vector<4x8xbf16>, vector<256x8xf32> -> vector<256x8xf32>
    %113 = arith.addf %109, %112 : vector<256x8xf32>
    %c8 = arith.constant 8 : index
    %c0_78 = arith.constant 0 : index
    %c0_79 = arith.constant 0 : index
    %114 = vector.load %arg4[%c8, %c0_78, %c0_79] : memref<9x8x8xbf16, #tpu.memory_space<vmem>>, vector<1x8x8xbf16>
    %115 = vector.shape_cast %114 : vector<1x8x8xbf16> to vector<8x8xbf16>
    %cst_80 = arith.constant dense<0.000000e+00> : vector<256x8xf32>
    %116 = tpu.matmul %12, %115, %cst_80 {dimension_numbers = #tpu.dot_dimension_numbers<[0], [0], [1], [1], [0, 1, 1, 1], [], []>} : vector<8x256xbf16>, vector<8x8xbf16>, vector<256x8xf32> -> vector<256x8xf32>
    %c8_81 = arith.constant 8 : index
    %c0_82 = arith.constant 0 : index
    %c0_83 = arith.constant 0 : index
    %117 = vector.load %arg5[%c8_81, %c0_82, %c0_83] : memref<9x4x8xbf16, #tpu.memory_space<vmem>>, vector<1x4x8xbf16>
    %118 = vector.shape_cast %117 : vector<1x4x8xbf16> to vector<4x8xbf16>
    %cst_84 = arith.constant dense<0.000000e+00> : vector<256x8xf32>
    %119 = tpu.matmul %10, %118, %cst_84 {dimension_numbers = #tpu.dot_dimension_numbers<[1], [0], [0], [1], [0, 0, 1, 1], [], []>} : vector<256x4xbf16>, vector<4x8xbf16>, vector<256x8xf32> -> vector<256x8xf32>
    %120 = arith.addf %116, %119 : vector<256x8xf32>
    %121 = vector.broadcast %33 : vector<256x1xf32> to vector<256x8xf32>
    %122 = arith.mulf %121, %106 : vector<256x8xf32>
    %c1_i32_85 = arith.constant 1 : i32
    %123 = tpu.dynamic_rotate %122 by %c1_i32_85 dim 0 : vector<256x8xf32>, i32 -> vector<256x8xf32>
    %124 = arith.addf %113, %123 : vector<256x8xf32>
    %125 = vector.broadcast %37 : vector<256x1xf32> to vector<256x8xf32>
    %126 = arith.mulf %125, %120 : vector<256x8xf32>
    %c255_i32_86 = arith.constant 255 : i32
    %127 = tpu.dynamic_rotate %126 by %c255_i32_86 dim 0 : vector<256x8xf32>, i32 -> vector<256x8xf32>
    %128 = arith.addf %124, %127 : vector<256x8xf32>
    %c0_87 = arith.constant 0 : index
    %c0_88 = arith.constant 0 : index
    %129 = vector.load %arg9[%c0_87, %c0_88] : memref<288x8xf32, #tpu.memory_space<vmem>>, vector<256x8xf32>
    %130 = arith.addf %129, %128 : vector<256x8xf32>
    %c0_89 = arith.constant 0 : index
    %c0_90 = arith.constant 0 : index
    %131 = vector.load %arg9[%c0_89, %c0_90] : memref<288x8xf32, #tpu.memory_space<vmem>>, vector<256x8xf32>
    tpu.vector_store %arg9[%c0_89, %c0_90], %130 {strides = array<i32>} : memref<288x8xf32, #tpu.memory_space<vmem>>, vector<256x8xf32>,
    %c16_91 = arith.constant 16 : index
    %c0_92 = arith.constant 0 : index
    %132 = vector.load %arg9[%c16_91, %c0_92] : memref<288x8xf32, #tpu.memory_space<vmem>>, vector<256x8xf32>
    %c0_93 = arith.constant 0 : index
    %c0_94 = arith.constant 0 : index
    %133 = vector.load %arg7[%c0_93, %c0_94] : memref<1x8xf32, #tpu.memory_space<vmem>>, vector<1x8xf32>
    %134 = vector.broadcast %133 : vector<1x8xf32> to vector<256x8xf32>
    %135 = arith.addf %132, %134 : vector<256x8xf32>
    %cst_95 = arith.constant 0.000000e+00 : f32
    %136 = vector.broadcast %cst_95 : f32 to vector<256x8xf32>
    %137 = arith.maximumf %135, %136 : vector<256x8xf32>
    %138 = arith.truncf %137 : vector<256x8xf32> to vector<256x8xbf16>
    %c0_96 = arith.constant 0 : index
    %c0_97 = arith.constant 0 : index
    %c0_98 = arith.constant 0 : index
    %139 = vector.load %arg8[%c0_96, %c0_97, %c0_98] : memref<1x256x8xbf16, #tpu.memory_space<vmem>>, vector<1x256x8xbf16>
    %140 = vector.shape_cast %139 : vector<1x256x8xbf16> to vector<256x8xbf16>
    %141 = vector.shape_cast %138 : vector<256x8xbf16> to vector<1x256x8xbf16>
    tpu.vector_store %arg8[%c0_96, %c0_97, %c0_98], %141 {strides = array<i32>} : memref<1x256x8xbf16, #tpu.memory_space<vmem>>, vector<1x256x8xbf16>,
    return
  }
  func.func @transform_0(%arg0: i32) -> (i32, i32, i32) {
    %c0_i32 = arith.constant 0 : i32
    %c0_i32_0 = arith.constant 0 : i32
    %c0_i32_1 = arith.constant 0 : i32
    return %arg0, %c0_i32, %c0_i32_0 : i32, i32, i32
  }
  func.func @transform_1(%arg0: i32) -> (i32, i32, i32) {
    %c0_i32 = arith.constant 0 : i32
    %c0_i32_0 = arith.constant 0 : i32
    %c0_i32_1 = arith.constant 0 : i32
    return %arg0, %c0_i32, %c0_i32_0 : i32, i32, i32
  }
  func.func @transform_2(%arg0: i32) -> (i32, i32) {
    %c0_i32 = arith.constant 0 : i32
    %c0_i32_0 = arith.constant 0 : i32
    %c0_i32_1 = arith.constant 0 : i32
    return %c0_i32, %c0_i32_0 : i32, i32
  }
  func.func @transform_3(%arg0: i32) -> (i32, i32, i32) {
    %c0_i32 = arith.constant 0 : i32
    %c0_i32_0 = arith.constant 0 : i32
    %c0_i32_1 = arith.constant 0 : i32
    %c0_i32_2 = arith.constant 0 : i32
    return %c0_i32, %c0_i32_0, %c0_i32_1 : i32, i32, i32
  }
  func.func @transform_4(%arg0: i32) -> (i32, i32, i32) {
    %c0_i32 = arith.constant 0 : i32
    %c0_i32_0 = arith.constant 0 : i32
    %c0_i32_1 = arith.constant 0 : i32
    %c0_i32_2 = arith.constant 0 : i32
    return %c0_i32, %c0_i32_0, %c0_i32_1 : i32, i32, i32
  }
  func.func @transform_5(%arg0: i32) -> (i32, i32) {
    %c0_i32 = arith.constant 0 : i32
    %c0_i32_0 = arith.constant 0 : i32
    %c0_i32_1 = arith.constant 0 : i32
    return %c0_i32, %c0_i32_0 : i32, i32
  }
  func.func @transform_6(%arg0: i32) -> (i32, i32) {
    %c0_i32 = arith.constant 0 : i32
    %c0_i32_0 = arith.constant 0 : i32
    %c0_i32_1 = arith.constant 0 : i32
    return %c0_i32, %c0_i32_0 : i32, i32
  }
  func.func @transform_7(%arg0: i32) -> (i32, i32, i32) {
    %c0_i32 = arith.constant 0 : i32
    %c0_i32_0 = arith.constant 0 : i32
    %c0_i32_1 = arith.constant 0 : i32
    return %arg0, %c0_i32, %c0_i32_0 : i32, i32, i32
  }
}

</mosaic_0001>

<llo_original>
// kernel: deeplabv3p_decoder_forward.3
$region0: #{deeplabv3p_decoder_forward.3}
  #allocation0 [shape = 'u32[]', space=smem, size = 0x4, offset = 0x4, fixed_abs, tag = 'smem constant byte address 0x4 - core index']
  #allocation1 [shape = 'u32[144,128]{1,0:T(1,128)}', space=vmem, size = 0x12000, scoped, tag = 'internal scratch']
  %s0 = inlined_call_operand.vmem [shape: f32[2,8,8,8], index: 0, kind: input, shape index: {}]
  %s1 = inlined_call_operand.vmem [shape: f32[8,16], index: 1, kind: input, shape index: {}]
  %s2 = inlined_call_operand.vmem [shape: f32[16,8], index: 2, kind: input, shape index: {}]
  %s3 = inlined_call_operand.vmem [shape: bf16[2,8,16,16], index: 3, kind: output, shape index: {}]
  %s4 = sld [smem:[#allocation0]]
  $region45: #{deeplabv3p_decoder_forward.3} parent=0
    _
  %s6 = ssub.s32 1, %s4
  %s7 = scalar_select 0, %s6, %s4
  loop: start=0, step=1, limit=4
  $region2: #{deeplabv3p_decoder_forward.3} parent=0 // loop_pre_header
    _
  $region3: #{deeplabv3p_decoder_forward.3} parent=0 // loop_header
    %s9 = sphi 0, %s13
    %p10 = scmp.ge.s32.totalorder %s9, 4
    %s16 = sphi 0, %s28
    %s17 = sphi 0, %s24
    %s18 = sphi 0, %s16
    %s19 = sphi 0, %s17
    %s20 = sphi 0, %s18
    %s21 = sphi 0, %s19
    %s33 = sphi 0, %s35
    %s36 = sphi 0, %s33
    %s37 = sphi 0, %s36
    %s53 = sphi 0, %s37
    %s57 = sphi 0, %s57
    %s59 = sphi 0, %s57
    %s60 = sphi 0, %s59
    %s74 = sphi 0, %s60
    %s78 = sphi 0, %s78
    %s80 = sphi 0, %s78
    %s81 = sphi 0, %s80
    %s95 = sphi 0, %s81
    %s103 = sphi 0, %s105
    %s106 = sphi 0, %s103
    %s107 = sphi 0, %s106
    %s123 = sphi 0, %s107
  $region4: #{deeplabv3p_decoder_forward.3} parent=0 // loop_header_branch
    %12 = sbr.rel (%p10) target = $region8
  $region5: #{deeplabv3p_decoder_forward.3} parent=0 // loop_body
    %s14 = ssub.s32 %s9, 1
    %s15 = ssub.s32 %s9, 2
    %s22 = sadd.s32 1, %s17
    %p23 = scmp.ge.s32.totalorder %s22, 1
    %s24 = scalar_select %p23, 0, %s22
    %s25 = sadd.s32 1, %s16
    %s26 = scalar_select %p23, %s25, %s16
    %p27 = scmp.ge.s32.totalorder %s26, 2
    %s28 = scalar_select %p27, 0, %s26
    %s29 = ssub.s32 %s16, %s28
    %s30 = ssub.s32 %s17, %s24
    %s31 = sor.u32 %s29, %s30
    %p32 = scmp.eq.s32.totalorder %s31, 0
    %s34 = sadd.s32 %s33, 1
    %s35 = scalar_select %p32, %s33, %s34
    %p38 = pneg %p32
    %p39 = scmp.eq.s32.totalorder %s9, 1
    %p40 = por %p38, %p39
    %p41 = scmp.ne.s32.totalorder %s33, %s36
    %p42 = scmp.eq.s32.totalorder %s9, 0
    %p43 = por %p41, %p42
    %p44 = scmp.ne.s32.totalorder %s33, %s36
    %p45 = scmp.eq.s32.totalorder %s14, 1
    %p46 = por %p44, %p45
    %p47 = scmp.ne.s32.totalorder %s36, %s37
    %p48 = scmp.eq.s32.totalorder %s14, 0
    %p49 = por %p47, %p48
    %p50 = scmp.ne.s32.totalorder %s36, %s37
    %p51 = scmp.eq.s32.totalorder %s15, 1
    %p52 = por %p50, %p51
    %p54 = scmp.ne.s32.totalorder %s37, %s53
    %p55 = scmp.eq.s32.totalorder %s15, 0
    %p56 = por %p54, %p55
    %s58 = sadd.s32 %s57, 1
    %p61 = scmp.eq.s32.totalorder %s9, 1
    %p62 = scmp.ne.s32.totalorder %s57, %s59
    %p63 = scmp.eq.s32.totalorder %s9, 0
    %p64 = por %p62, %p63
    %p65 = scmp.ne.s32.totalorder %s57, %s59
    %p66 = scmp.eq.s32.totalorder %s14, 1
    %p67 = por %p65, %p66
    %p68 = scmp.ne.s32.totalorder %s59, %s60
    %p69 = scmp.eq.s32.totalorder %s14, 0
    %p70 = por %p68, %p69
    %p71 = scmp.ne.s32.totalorder %s59, %s60
    %p72 = scmp.eq.s32.totalorder %s15, 1
    %p73 = por %p71, %p72
    %p75 = scmp.ne.s32.totalorder %s60, %s74
    %p76 = scmp.eq.s32.totalorder %s15, 0
    %p77 = por %p75, %p76
    %s79 = sadd.s32 %s78, 1
    %p82 = scmp.eq.s32.totalorder %s9, 1
    %p83 = scmp.ne.s32.totalorder %s78, %s80
    %p84 = scmp.eq.s32.totalorder %s9, 0
    %p85 = por %p83, %p84
    %p86 = scmp.ne.s32.totalorder %s78, %s80
    %p87 = scmp.eq.s32.totalorder %s14, 1
    %p88 = por %p86, %p87
    %p89 = scmp.ne.s32.totalorder %s80, %s81
    %p90 = scmp.eq.s32.totalorder %s14, 0
    %p91 = por %p89, %p90
    %p92 = scmp.ne.s32.totalorder %s80, %s81
    %p93 = scmp.eq.s32.totalorder %s15, 1
    %p94 = por %p92, %p93
    %p96 = scmp.ne.s32.totalorder %s81, %s95
    %p97 = scmp.eq.s32.totalorder %s15, 0
    %p98 = por %p96, %p97
    %s99 = ssub.s32 %s16, %s28
    %s100 = ssub.s32 %s17, %s24
    %s101 = sor.u32 %s99, %s100
    %p102 = scmp.eq.s32.totalorder %s101, 0
    %s104 = sadd.s32 %s103, 1
    %s105 = scalar_select %p102, %s103, %s104
    %p108 = pneg %p102
    %p109 = scmp.eq.s32.totalorder %s9, 1
    %p110 = por %p108, %p109
    %p111 = scmp.ne.s32.totalorder %s103, %s106
    %p112 = scmp.eq.s32.totalorder %s9, 0
    %p113 = por %p111, %p112
    %p114 = scmp.ne.s32.totalorder %s103, %s106
    %p115 = scmp.eq.s32.totalorder %s14, 1
    %p116 = por %p114, %p115
    %p117 = scmp.ne.s32.totalorder %s106, %s107
    %p118 = scmp.eq.s32.totalorder %s14, 0
    %p119 = por %p117, %p118
    %p120 = scmp.ne.s32.totalorder %s106, %s107
    %p121 = scmp.eq.s32.totalorder %s15, 1
    %p122 = por %p120, %p121
    %p124 = scmp.ne.s32.totalorder %s107, %s123
    %p125 = scmp.eq.s32.totalorder %s15, 0
    %p126 = por %p124, %p125
    %p127 = scmp.le.s32.totalorder 1, %s9
    %p128 = scmp.lt.s32.totalorder %s9, 3
    %p129 = pnand %p127, %p128
    %p130 = pneg %p129
    // Predicated region
    $region9: #{deeplabv3p_decoder_forward.3} parent=5 // pred_check
      _
    $region10: #{deeplabv3p_decoder_forward.3} parent=5 // pred_check_branch
      %132 = sbr.rel (%p129) target = $region12
    $region11: #{deeplabv3p_decoder_forward.3} parent=5 // pred_region
      %s133 = ssub.s32 %s9, 1
      // Predicated region
      $region13: #{deeplabv3p_decoder_forward.3} parent=11 // pred_check
        %p134 = pneg %p70
      $region14: #{deeplabv3p_decoder_forward.3} parent=11 // pred_check_branch
        %136 = sbr.rel (%p134) target = $region16
      $region15: #{deeplabv3p_decoder_forward.3} parent=11 // pred_region
        _
      $region16: #{deeplabv3p_decoder_forward.3} parent=11 // pred_fallthru
        _
      // Predicated region
      $region17: #{deeplabv3p_decoder_forward.3} parent=11 // pred_check
        %p137 = pneg %p91
      $region18: #{deeplabv3p_decoder_forward.3} parent=11 // pred_check_branch
        %139 = sbr.rel (%p137) target = $region20
      $region19: #{deeplabv3p_decoder_forward.3} parent=11 // pred_region
        _
      $region20: #{deeplabv3p_decoder_forward.3} parent=11 // pred_fallthru
        _
    $region12: #{deeplabv3p_decoder_forward.3} parent=5 // pred_fallthru
      _
    %p140 = scmp.lt.s32.totalorder %s9, 2
    // Predicated region
    $region21: #{deeplabv3p_decoder_forward.3} parent=5 // pred_check
      %p141 = pneg %p140
    $region22: #{deeplabv3p_decoder_forward.3} parent=5 // pred_check_branch
      %143 = sbr.rel (%p141) target = $region24
    $region23: #{deeplabv3p_decoder_forward.3} parent=5 // pred_region
      // Predicated region
      $region25: #{deeplabv3p_decoder_forward.3} parent=23 // pred_check
        %p144 = pneg %p43
      $region26: #{deeplabv3p_decoder_forward.3} parent=23 // pred_check_branch
        %146 = sbr.rel (%p144) target = $region28
      $region27: #{deeplabv3p_decoder_forward.3} parent=23 // pred_region
        %s147 = smul.u32 8, %s17
        %p148 = scmp.lt.s32.totalorder %s16, 1
        %s149 = scalar_select %p148, %s16, 1
        %p150 = scmp.lt.s32.totalorder %s147, 7
        %s151 = scalar_select %p150, %s147, 7
        %s152 = smul.addr %s149, 8
        %s153 = sadd.s32 %s151, %s152
        %s154 = smul.addr %s153, 8
        %s155 = scalar_lea.vmem %s0, %s154
        %s156 = smul.u32 8, %s17
      $region28: #{deeplabv3p_decoder_forward.3} parent=23 // pred_fallthru
        _
    $region24: #{deeplabv3p_decoder_forward.3} parent=5 // pred_fallthru
      _
    %p157 = scmp.le.s32.totalorder 1, %s9
    %p158 = scmp.lt.s32.totalorder %s9, 3
    %p159 = pnand %p157, %p158
    %p160 = pneg %p159
    // Predicated region
    $region29: #{deeplabv3p_decoder_forward.3} parent=5 // pred_check
      _
    $region30: #{deeplabv3p_decoder_forward.3} parent=5 // pred_check_branch
      %162 = sbr.rel (%p159) target = $region32
    $region31: #{deeplabv3p_decoder_forward.3} parent=5 // pred_region
      %s163 = ssub.s32 %s9, 1
      %s164 = smul.u32 8, %s19
      %p165 = scmp.lt.s32.totalorder %s18, 1
      %s166 = scalar_select %p165, %s18, 1
      %p167 = scmp.lt.s32.totalorder %s164, 7
      %s168 = scalar_select %p167, %s164, 7
      %s169 = smul.addr %s166, 8
      %s170 = sadd.s32 %s168, %s169
      %s171 = smul.addr %s170, 8
      %s172 = scalar_lea.vmem %s0, %s171
      %p173 = pneg %p49
      %p174 = pneg %p46
      %p175 = pneg %p70
      %p176 = pneg %p67
      %p177 = pneg %p91
      %p178 = pneg %p88
      %p179 = pneg %p119
      %p180 = pneg %p116
      %s181 = smul.u32 8, %s19
      %p182 = scmp.lt.s32.totalorder %s18, 1
      %s183 = scalar_select %p182, %s18, 1
      %p184 = scmp.lt.s32.totalorder %s181, 7
      %s185 = scalar_select %p184, %s181, 7
      %s186 = smul.addr %s185, 2
      %s187 = smul.addr %s183, 16
      %s188 = sadd.s32 %s186, %s187
      %s189 = smul.addr %s188, 4
      %s190 = scalar_lea.vmem %s3, %s189
      %s191 = smul.u32 8, %s19
      %p192 = scmp.lt.s32.totalorder %s18, 1
      %s193 = scalar_select %p192, %s18, 1
      %p194 = scmp.lt.s32.totalorder %s191, 7
      %s195 = scalar_select %p194, %s191, 7
      %s196 = smul.addr %s193, 8
      %s197 = sadd.s32 %s195, %s196
      %s198 = smul.addr %s197, 8
      %s199 = scalar_lea.vmem %s0, %s198
      %s200 = smul.u32 8, %s19
      %s201 = smul.u32 8, %s19
      %p202 = scmp.lt.s32.totalorder %s18, 1
      %s203 = scalar_select %p202, %s18, 1
      %p204 = scmp.lt.s32.totalorder %s201, 7
      %s205 = scalar_select %p204, %s201, 7
      %s206 = smul.addr %s205, 2
      %s207 = smul.addr %s203, 16
      %s208 = sadd.s32 %s206, %s207
      %s209 = smul.addr %s208, 4
      %s210 = scalar_lea.vmem %s3, %s209
      %s211 = smul.u32 8, %s19
      %v212 = vld [vmem:[%s199] sm:$0xff]
      %v213 = vld [vmem:[%s199 + $0x8] sm:$0xff]
      %v214 = vld [vmem:[%s199 + $0x10] sm:$0xff]
      %v215 = vld [vmem:[%s199 + $0x18] sm:$0xff]
      %v216 = vld [vmem:[%s199 + $0x20] sm:$0xff]
      %v217 = vld [vmem:[%s199 + $0x28] sm:$0xff]
      %v218 = vld [vmem:[%s199 + $0x30] sm:$0xff]
      %v219 = vld [vmem:[%s199 + $0x38] sm:$0xff]
      %v220 = vld [vmem:[%s1] sm:$0xff]
      %vm221 = vcmask 64512
      %v223 = vsel %vm221, %v212, 0
      %225 = vmatprep.subr.mxu0 0.0
      %226 = vmatpush1.msra.mxu0 %v220
      %227 = vmatprep.subr.mxu0 0.0
      %228 = vmatpush1.msra.mxu0 0.0
      %229 = vmatprep.subr.mxu0 0.0
      %230 = vmatpush1.msra.mxu0 0.0
      %231 = vmatprep.subr.mxu0 0.0
      %232 = vmatpush1.msra.mxu0 0.0
      %233 = vmatprep.subr.mxu0 0.0
      %234 = vmatpush1.msra.mxu0 0.0
      %235 = vmatprep.subr.mxu0 0.0
      %236 = vmatpush1.msra.mxu0 0.0
      %237 = vmatprep.subr.mxu0 0.0
      %238 = vmatpush1.msra.mxu0 0.0
      %239 = vmatprep.subr.mxu0 0.0
      %240 = vmatpush1.msra.mxu0 0.0
      %241 = vmatprep.subr.mxu0 0.0
      %242 = vmatpush1.msra.mxu0 0.0
      %243 = vmatprep.subr.mxu0 0.0
      %244 = vmatpush1.msra.mxu0 0.0
      %245 = vmatprep.subr.mxu0 0.0
      %246 = vmatpush1.msra.mxu0 0.0
      %247 = vmatprep.subr.mxu0 0.0
      %248 = vmatpush1.msra.mxu0 0.0
      %249 = vmatprep.subr.mxu0 0.0
      %250 = vmatpush1.msra.mxu0 0.0
      %251 = vmatprep.subr.mxu0 0.0
      %252 = vmatpush1.msra.mxu0 0.0
      %253 = vmatprep.subr.mxu0 0.0
      %254 = vmatpush1.msra.mxu0 0.0
      %255 = vmatprep.subr.mxu0 0.0
      %256 = vmatpush1.msra.mxu0 0.0
      %257 = vmatprep.subr.mxu0 0.0
      %258 = vmatpush1.msra.mxu0 0.0
      %259 = vmatprep.subr.mxu0 0.0
      %260 = vmatpush1.msra.mxu0 0.0
      %261 = vmatprep.subr.mxu0 0.0
      %262 = vmatpush1.msra.mxu0 0.0
      %263 = vmatprep.subr.mxu0 0.0
      %264 = vmatpush1.msra.mxu0 0.0
      %265 = vmatprep.subr.mxu0 0.0
      %266 = vmatpush1.msra.mxu0 0.0
      %267 = vmatprep.subr.mxu0 0.0
      %268 = vmatpush1.msra.mxu0 0.0
      %269 = vmatprep.subr.mxu0 0.0
      %270 = vmatpush1.msra.mxu0 0.0
      %271 = vmatprep.subr.mxu0 0.0
      %272 = vmatpush1.msra.mxu0 0.0
      %273 = vmatprep.subr.mxu0 0.0
      %274 = vmatpush1.msra.mxu0 0.0
      %275 = vmatprep.subr.mxu0 0.0
      %276 = vmatpush1.msra.mxu0 0.0
      %277 = vmatprep.subr.mxu0 0.0
      %278 = vmatpush1.msra.mxu0 0.0
      %279 = vmatprep.subr.mxu0 0.0
      %280 = vmatpush1.msra.mxu0 0.0
      %281 = vmatprep.subr.mxu0 0.0
      %282 = vmatpush1.msra.mxu0 0.0
      %283 = vmatprep.subr.mxu0 0.0
      %284 = vmatpush1.msra.mxu0 0.0
      %285 = vmatprep.subr.mxu0 0.0
      %286 = vmatpush1.msra.mxu0 0.0
      %287 = vmatprep.subr.mxu0 0.0
      %288 = vmatpush1.msra.mxu0 0.0
      %289 = vmatprep.mubr.f32.mxu0 0.0
      %290 = vmatmul.mubr.f32.gmra.mrb[0].mxu0 %v223
      %v291 = vpop.f32.mrb[0].mxu0
      %v292 = vadd.f32 0.0, %v291
      %v293 = vpop.f32.mrb[0].mxu0
      %294 = vdwg.mxu0
      %v296 = vsel %vm221, %v213, 0
      %298 = vmatprep.subr.mxu0 0.0
      %299 = vmatpush1.msra.mxu0 %v220
      %300 = vmatprep.subr.mxu0 0.0
      %301 = vmatpush1.msra.mxu0 0.0
      %302 = vmatprep.subr.mxu0 0.0
      %303 = vmatpush1.msra.mxu0 0.0
      %304 = vmatprep.subr.mxu0 0.0
      %305 = vmatpush1.msra.mxu0 0.0
      %306 = vmatprep.subr.mxu0 0.0
      %307 = vmatpush1.msra.mxu0 0.0
      %308 = vmatprep.subr.mxu0 0.0
      %309 = vmatpush1.msra.mxu0 0.0
      %310 = vmatprep.subr.mxu0 0.0
      %311 = vmatpush1.msra.mxu0 0.0
      %312 = vmatprep.subr.mxu0 0.0
      %313 = vmatpush1.msra.mxu0 0.0
      %314 = vmatprep.subr.mxu0 0.0
      %315 = vmatpush1.msra.mxu0 0.0
      %316 = vmatprep.subr.mxu0 0.0
      %317 = vmatpush1.msra.mxu0 0.0
      %318 = vmatprep.subr.mxu0 0.0
      %319 = vmatpush1.msra.mxu0 0.0
      %320 = vmatprep.subr.mxu0 0.0
      %321 = vmatpush1.msra.mxu0 0.0
      %322 = vmatprep.subr.mxu0 0.0
      %323 = vmatpush1.msra.mxu0 0.0
      %324 = vmatprep.subr.mxu0 0.0
      %325 = vmatpush1.msra.mxu0 0.0
      %326 = vmatprep.subr.mxu0 0.0
      %327 = vmatpush1.msra.mxu0 0.0
      %328 = vmatprep.subr.mxu0 0.0
      %329 = vmatpush1.msra.mxu0 0.0
      %330 = vmatprep.subr.mxu0 0.0
      %331 = vmatpush1.msra.mxu0 0.0
      %332 = vmatprep.subr.mxu0 0.0
      %333 = vmatpush1.msra.mxu0 0.0
      %334 = vmatprep.subr.mxu0 0.0
      %335 = vmatpush1.msra.mxu0 0.0
      %336 = vmatprep.subr.mxu0 0.0
      %337 = vmatpush1.msra.mxu0 0.0
      %338 = vmatprep.subr.mxu0 0.0
      %339 = vmatpush1.msra.mxu0 0.0
      %340 = vmatprep.subr.mxu0 0.0
      %341 = vmatpush1.msra.mxu0 0.0
      %342 = vmatprep.subr.mxu0 0.0
      %343 = vmatpush1.msra.mxu0 0.0
      %344 = vmatprep.subr.mxu0 0.0
      %345 = vmatpush1.msra.mxu0 0.0
      %346 = vmatprep.subr.mxu0 0.0
      %347 = vmatpush1.msra.mxu0 0.0
      %348 = vmatprep.subr.mxu0 0.0
      %349 = vmatpush1.msra.mxu0 0.0
      %350 = vmatprep.subr.mxu0 0.0
      %351 = vmatpush1.msra.mxu0 0.0
      %352 = vmatprep.subr.mxu0 0.0
      %353 = vmatpush1.msra.mxu0 0.0
      %354 = vmatprep.subr.mxu0 0.0
      %355 = vmatpush1.msra.mxu0 0.0
      %356 = vmatprep.subr.mxu0 0.0
      %357 = vmatpush1.msra.mxu0 0.0
      %358 = vmatprep.subr.mxu0 0.0
      %359 = vmatpush1.msra.mxu0 0.0
      %360 = vmatprep.subr.mxu0 0.0
      %361 = vmatpush1.msra.mxu0 0.0
      %362 = vmatprep.mubr.f32.mxu0 0.0
      %363 = vmatmul.mubr.f32.gmra.mrb[0].mxu0 %v296
      %v364 = vpop.f32.mrb[0].mxu0
      %v365 = vadd.f32 0.0, %v364
      %v366 = vpop.f32.mrb[0].mxu0
      %367 = vdwg.mxu0
      %v369 = vsel %vm221, %v214, 0
      %371 = vmatprep.subr.mxu0 0.0
      %372 = vmatpush1.msra.mxu0 %v220
      %373 = vmatprep.subr.mxu0 0.0
      %374 = vmatpush1.msra.mxu0 0.0
      %375 = vmatprep.subr.mxu0 0.0
      %376 = vmatpush1.msra.mxu0 0.0
      %377 = vmatprep.subr.mxu0 0.0
      %378 = vmatpush1.msra.mxu0 0.0
      %379 = vmatprep.subr.mxu0 0.0
      %380 = vmatpush1.msra.mxu0 0.0
      %381 = vmatprep.subr.mxu0 0.0
      %382 = vmatpush1.msra.mxu0 0.0
      %383 = vmatprep.subr.mxu0 0.0
      %384 = vmatpush1.msra.mxu0 0.0
      %385 = vmatprep.subr.mxu0 0.0
      %386 = vmatpush1.msra.mxu0 0.0
      %387 = vmatprep.subr.mxu0 0.0
      %388 = vmatpush1.msra.mxu0 0.0
      %389 = vmatprep.subr.mxu0 0.0
      %390 = vmatpush1.msra.mxu0 0.0
      %391 = vmatprep.subr.mxu0 0.0
      %392 = vmatpush1.msra.mxu0 0.0
      %393 = vmatprep.subr.mxu0 0.0
      %394 = vmatpush1.msra.mxu0 0.0
      %395 = vmatprep.subr.mxu0 0.0
      %396 = vmatpush1.msra.mxu0 0.0
      %397 = vmatprep.subr.mxu0 0.0
      %398 = vmatpush1.msra.mxu0 0.0
      %399 = vmatprep.subr.mxu0 0.0
      %400 = vmatpush1.msra.mxu0 0.0
      %401 = vmatprep.subr.mxu0 0.0
      %402 = vmatpush1.msra.mxu0 0.0
      %403 = vmatprep.subr.mxu0 0.0
      %404 = vmatpush1.msra.mxu0 0.0
      %405 = vmatprep.subr.mxu0 0.0
      %406 = vmatpush1.msra.mxu0 0.0
      %407 = vmatprep.subr.mxu0 0.0
      %408 = vmatpush1.msra.mxu0 0.0
      %409 = vmatprep.subr.mxu0 0.0
      %410 = vmatpush1.msra.mxu0 0.0
      %411 = vmatprep.subr.mxu0 0.0
      %412 = vmatpush1.msra.mxu0 0.0
      %413 = vmatprep.subr.mxu0 0.0
      %414 = vmatpush1.msra.mxu0 0.0
      %415 = vmatprep.subr.mxu0 0.0
      %416 = vmatpush1.msra.mxu0 0.0
      %417 = vmatprep.subr.mxu0 0.0
      %418 = vmatpush1.msra.mxu0 0.0
      %419 = vmatprep.subr.mxu0 0.0
      %420 = vmatpush1.msra.mxu0 0.0
      %421 = vmatprep.subr.mxu0 0.0
      %422 = vmatpush1.msra.mxu0 0.0
      %423 = vmatprep.subr.mxu0 0.0
      %424 = vmatpush1.msra.mxu0 0.0
      %425 = vmatprep.subr.mxu0 0.0
      %426 = vmatpush1.msra.mxu0 0.0
      %427 = vmatprep.subr.mxu0 0.0
      %428 = vmatpush1.msra.mxu0 0.0
      %429 = vmatprep.subr.mxu0 0.0
      %430 = vmatpush1.msra.mxu0 0.0
      %431 = vmatprep.subr.mxu0 0.0
      %432 = vmatpush1.msra.mxu0 0.0
      %433 = vmatprep.subr.mxu0 0.0
      %434 = vmatpush1.msra.mxu0 0.0
      %435 = vmatprep.mubr.f32.mxu0 0.0
      %436 = vmatmul.mubr.f32.gmra.mrb[0].mxu0 %v369
      %v437 = vpop.f32.mrb[0].mxu0
      %v438 = vadd.f32 0.0, %v437
      %v439 = vpop.f32.mrb[0].mxu0
      %440 = vdwg.mxu0
      %v442 = vsel %vm221, %v215, 0
      %444 = vmatprep.subr.mxu0 0.0
      %445 = vmatpush1.msra.mxu0 %v220
      %446 = vmatprep.subr.mxu0 0.0
      %447 = vmatpush1.msra.mxu0 0.0
      %448 = vmatprep.subr.mxu0 0.0
      %449 = vmatpush1.msra.mxu0 0.0
      %450 = vmatprep.subr.mxu0 0.0
      %451 = vmatpush1.msra.mxu0 0.0
      %452 = vmatprep.subr.mxu0 0.0
      %453 = vmatpush1.msra.mxu0 0.0
      %454 = vmatprep.subr.mxu0 0.0
      %455 = vmatpush1.msra.mxu0 0.0
      %456 = vmatprep.subr.mxu0 0.0
      %457 = vmatpush1.msra.mxu0 0.0
      %458 = vmatprep.subr.mxu0 0.0
      %459 = vmatpush1.msra.mxu0 0.0
      %460 = vmatprep.subr.mxu0 0.0
      %461 = vmatpush1.msra.mxu0 0.0
      %462 = vmatprep.subr.mxu0 0.0
      %463 = vmatpush1.msra.mxu0 0.0
      %464 = vmatprep.subr.mxu0 0.0
      %465 = vmatpush1.msra.mxu0 0.0
      %466 = vmatprep.subr.mxu0 0.0
      %467 = vmatpush1.msra.mxu0 0.0
      %468 = vmatprep.subr.mxu0 0.0
      %469 = vmatpush1.msra.mxu0 0.0
      %470 = vmatprep.subr.mxu0 0.0
      %471 = vmatpush1.msra.mxu0 0.0
      %472 = vmatprep.subr.mxu0 0.0
      %473 = vmatpush1.msra.mxu0 0.0
      %474 = vmatprep.subr.mxu0 0.0
      %475 = vmatpush1.msra.mxu0 0.0
      %476 = vmatprep.subr.mxu0 0.0
      %477 = vmatpush1.msra.mxu0 0.0
      %478 = vmatprep.subr.mxu0 0.0
      %479 = vmatpush1.msra.mxu0 0.0
      %480 = vmatprep.subr.mxu0 0.0
      %481 = vmatpush1.msra.mxu0 0.0
      %482 = vmatprep.subr.mxu0 0.0
      %483 = vmatpush1.msra.mxu0 0.0
      %484 = vmatprep.subr.mxu0 0.0
      %485 = vmatpush1.msra.mxu0 0.0
      %486 = vmatprep.subr.mxu0 0.0
      %487 = vmatpush1.msra.mxu0 0.0
      %488 = vmatprep.subr.mxu0 0.0
      %489 = vmatpush1.msra.mxu0 0.0
      %490 = vmatprep.subr.mxu0 0.0
      %491 = vmatpush1.msra.mxu0 0.0
      %492 = vmatprep.subr.mxu0 0.0
      %493 = vmatpush1.msra.mxu0 0.0
      %494 = vmatprep.subr.mxu0 0.0
      %495 = vmatpush1.msra.mxu0 0.0
      %496 = vmatprep.subr.mxu0 0.0
      %497 = vmatpush1.msra.mxu0 0.0
      %498 = vmatprep.subr.mxu0 0.0
      %499 = vmatpush1.msra.mxu0 0.0
      %500 = vmatprep.subr.mxu0 0.0
      %501 = vmatpush1.msra.mxu0 0.0
      %502 = vmatprep.subr.mxu0 0.0
      %503 = vmatpush1.msra.mxu0 0.0
      %504 = vmatprep.subr.mxu0 0.0
      %505 = vmatpush1.msra.mxu0 0.0
      %506 = vmatprep.subr.mxu0 0.0
      %507 = vmatpush1.msra.mxu0 0.0
      %508 = vmatprep.mubr.f32.mxu0 0.0
      %509 = vmatmul.mubr.f32.gmra.mrb[0].mxu0 %v442
      %v510 = vpop.f32.mrb[0].mxu0
      %v511 = vadd.f32 0.0, %v510
      %v512 = vpop.f32.mrb[0].mxu0
      %513 = vdwg.mxu0
      %v515 = vsel %vm221, %v216, 0
      %517 = vmatprep.subr.mxu0 0.0
      %518 = vmatpush1.msra.mxu0 %v220
      %519 = vmatprep.subr.mxu0 0.0
      %520 = vmatpush1.msra.mxu0 0.0
      %521 = vmatprep.subr.mxu0 0.0
      %522 = vmatpush1.msra.mxu0 0.0
      %523 = vmatprep.subr.mxu0 0.0
      %524 = vmatpush1.msra.mxu0 0.0
      %525 = vmatprep.subr.mxu0 0.0
      %526 = vmatpush1.msra.mxu0 0.0
      %527 = vmatprep.subr.mxu0 0.0
      %528 = vmatpush1.msra.mxu0 0.0
      %529 = vmatprep.subr.mxu0 0.0
      %530 = vmatpush1.msra.mxu0 0.0
      %531 = vmatprep.subr.mxu0 0.0
      %532 = vmatpush1.msra.mxu0 0.0
      %533 = vmatprep.subr.mxu0 0.0
      %534 = vmatpush1.msra.mxu0 0.0
      %535 = vmatprep.subr.mxu0 0.0
      %536 = vmatpush1.msra.mxu0 0.0
      %537 = vmatprep.subr.mxu0 0.0
      %538 = vmatpush1.msra.mxu0 0.0
      %539 = vmatprep.subr.mxu0 0.0
      %540 = vmatpush1.msra.mxu0 0.0
      %541 = vmatprep.subr.mxu0 0.0
      %542 = vmatpush1.msra.mxu0 0.0
      %543 = vmatprep.subr.mxu0 0.0
      %544 = vmatpush1.msra.mxu0 0.0
      %545 = vmatprep.subr.mxu0 0.0
      %546 = vmatpush1.msra.mxu0 0.0
      %547 = vmatprep.subr.mxu0 0.0
      %548 = vmatpush1.msra.mxu0 0.0
      %549 = vmatprep.subr.mxu0 0.0
      %550 = vmatpush1.msra.mxu0 0.0
      %551 = vmatprep.subr.mxu0 0.0
      %552 = vmatpush1.msra.mxu0 0.0
      %553 = vmatprep.subr.mxu0 0.0
      %554 = vmatpush1.msra.mxu0 0.0
      %555 = vmatprep.subr.mxu0 0.0
      %556 = vmatpush1.msra.mxu0 0.0
      %557 = vmatprep.subr.mxu0 0.0
      %558 = vmatpush1.msra.mxu0 0.0
      %559 = vmatprep.subr.mxu0 0.0
      %560 = vmatpush1.msra.mxu0 0.0
      %561 = vmatprep.subr.mxu0 0.0
      %562 = vmatpush1.msra.mxu0 0.0
      %563 = vmatprep.subr.mxu0 0.0
      %564 = vmatpush1.msra.mxu0 0.0
      %565 = vmatprep.subr.mxu0 0.0
      %566 = vmatpush1.msra.mxu0 0.0
      %567 = vmatprep.subr.mxu0 0.0
      %568 = vmatpush1.msra.mxu0 0.0
      %569 = vmatprep.subr.mxu0 0.0
      %570 = vmatpush1.msra.mxu0 0.0
      %571 = vmatprep.subr.mxu0 0.0
      %572 = vmatpush1.msra.mxu0 0.0
      %573 = vmatprep.subr.mxu0 0.0
      %574 = vmatpush1.msra.mxu0 0.0
      %575 = vmatprep.subr.mxu0 0.0
      %576 = vmatpush1.msra.mxu0 0.0
      %577 = vmatprep.subr.mxu0 0.0
      %578 = vmatpush1.msra.mxu0 0.0
      %579 = vmatprep.subr.mxu0 0.0
      %580 = vmatpush1.msra.mxu0 0.0
      %581 = vmatprep.mubr.f32.mxu0 0.0
      %582 = vmatmul.mubr.f32.gmra.mrb[0].mxu0 %v515
      %v583 = vpop.f32.mrb[0].mxu0
      %v584 = vadd.f32 0.0, %v583
      %v585 = vpop.f32.mrb[0].mxu0
      %586 = vdwg.mxu0
      %v588 = vsel %vm221, %v217, 0
      %590 = vmatprep.subr.mxu0 0.0
      %591 = vmatpush1.msra.mxu0 %v220
      %592 = vmatprep.subr.mxu0 0.0
      %593 = vmatpush1.msra.mxu0 0.0
      %594 = vmatprep.subr.mxu0 0.0
      %595 = vmatpush1.msra.mxu0 0.0
      %596 = vmatprep.subr.mxu0 0.0
      %597 = vmatpush1.msra.mxu0 0.0
      %598 = vmatprep.subr.mxu0 0.0
      %599 = vmatpush1.msra.mxu0 0.0
      %600 = vmatprep.subr.mxu0 0.0
      %601 = vmatpush1.msra.mxu0 0.0
      %602 = vmatprep.subr.mxu0 0.0
      %603 = vmatpush1.msra.mxu0 0.0
      %604 = vmatprep.subr.mxu0 0.0
      %605 = vmatpush1.msra.mxu0 0.0
      %606 = vmatprep.subr.mxu0 0.0
      %607 = vmatpush1.msra.mxu0 0.0
      %608 = vmatprep.subr.mxu0 0.0
      %609 = vmatpush1.msra.mxu0 0.0
      %610 = vmatprep.subr.mxu0 0.0
      %611 = vmatpush1.msra.mxu0 0.0
      %612 = vmatprep.subr.mxu0 0.0
      %613 = vmatpush1.msra.mxu0 0.0
      %614 = vmatprep.subr.mxu0 0.0
      %615 = vmatpush1.msra.mxu0 0.0
      %616 = vmatprep.subr.mxu0 0.0
      %617 = vmatpush1.msra.mxu0 0.0
      %618 = vmatprep.subr.mxu0 0.0
      %619 = vmatpush1.msra.mxu0 0.0
      %620 = vmatprep.subr.mxu0 0.0
      %621 = vmatpush1.msra.mxu0 0.0
      %622 = vmatprep.subr.mxu0 0.0
      %623 = vmatpush1.msra.mxu0 0.0
      %624 = vmatprep.subr.mxu0 0.0
      %625 = vmatpush1.msra.mxu0 0.0
      %626 = vmatprep.subr.mxu0 0.0
      %627 = vmatpush1.msra.mxu0 0.0
      %628 = vmatprep.subr.mxu0 0.0
      %629 = vmatpush1.msra.mxu0 0.0
      %630 = vmatprep.subr.mxu0 0.0
      %631 = vmatpush1.msra.mxu0 0.0
      %632 = vmatprep.subr.mxu0 0.0
      %633 = vmatpush1.msra.mxu0 0.0
      %634 = vmatprep.subr.mxu0 0.0
      %635 = vmatpush1.msra.mxu0 0.0
      %636 = vmatprep.subr.mxu0 0.0
      %637 = vmatpush1.msra.mxu0 0.0
      %638 = vmatprep.subr.mxu0 0.0
      %639 = vmatpush1.msra.mxu0 0.0
      %640 = vmatprep.subr.mxu0 0.0
      %641 = vmatpush1.msra.mxu0 0.0
      %642 = vmatprep.subr.mxu0 0.0
      %643 = vmatpush1.msra.mxu0 0.0
      %644 = vmatprep.subr.mxu0 0.0
      %645 = vmatpush1.msra.mxu0 0.0
      %646 = vmatprep.subr.mxu0 0.0
      %647 = vmatpush1.msra.mxu0 0.0
      %648 = vmatprep.subr.mxu0 0.0
      %649 = vmatpush1.msra.mxu0 0.0
      %650 = vmatprep.subr.mxu0 0.0
      %651 = vmatpush1.msra.mxu0 0.0
      %652 = vmatprep.subr.mxu0 0.0
      %653 = vmatpush1.msra.mxu0 0.0
      %654 = vmatprep.mubr.f32.mxu0 0.0
      %655 = vmatmul.mubr.f32.gmra.mrb[0].mxu0 %v588
      %v656 = vpop.f32.mrb[0].mxu0
      %v657 = vadd.f32 0.0, %v656
      %v658 = vpop.f32.mrb[0].mxu0
      %659 = vdwg.mxu0
      %v661 = vsel %vm221, %v218, 0
      %663 = vmatprep.subr.mxu0 0.0
      %664 = vmatpush1.msra.mxu0 %v220
      %665 = vmatprep.subr.mxu0 0.0
      %666 = vmatpush1.msra.mxu0 0.0
      %667 = vmatprep.subr.mxu0 0.0
      %668 = vmatpush1.msra.mxu0 0.0
      %669 = vmatprep.subr.mxu0 0.0
      %670 = vmatpush1.msra.mxu0 0.0
      %671 = vmatprep.subr.mxu0 0.0
      %672 = vmatpush1.msra.mxu0 0.0
      %673 = vmatprep.subr.mxu0 0.0
      %674 = vmatpush1.msra.mxu0 0.0
      %675 = vmatprep.subr.mxu0 0.0
      %676 = vmatpush1.msra.mxu0 0.0
      %677 = vmatprep.subr.mxu0 0.0
      %678 = vmatpush1.msra.mxu0 0.0
      %679 = vmatprep.subr.mxu0 0.0
      %680 = vmatpush1.msra.mxu0 0.0
      %681 = vmatprep.subr.mxu0 0.0
      %682 = vmatpush1.msra.mxu0 0.0
      %683 = vmatprep.subr.mxu0 0.0
      %684 = vmatpush1.msra.mxu0 0.0
      %685 = vmatprep.subr.mxu0 0.0
      %686 = vmatpush1.msra.mxu0 0.0
      %687 = vmatprep.subr.mxu0 0.0
      %688 = vmatpush1.msra.mxu0 0.0
      %689 = vmatprep.subr.mxu0 0.0
      %690 = vmatpush1.msra.mxu0 0.0
      %691 = vmatprep.subr.mxu0 0.0
      %692 = vmatpush1.msra.mxu0 0.0
      %693 = vmatprep.subr.mxu0 0.0
      %694 = vmatpush1.msra.mxu0 0.0
      %695 = vmatprep.subr.mxu0 0.0
      %696 = vmatpush1.msra.mxu0 0.0
      %697 = vmatprep.subr.mxu0 0.0
      %698 = vmatpush1.msra.mxu0 0.0
      %699 = vmatprep.subr.mxu0 0.0
      %700 = vmatpush1.msra.mxu0 0.0
      %701 = vmatprep.subr.mxu0 0.0
      %702 = vmatpush1.msra.mxu0 0.0
      %703 = vmatprep.subr.mxu0 0.0
      %704 = vmatpush1.msra.mxu0 0.0
      %705 = vmatprep.subr.mxu0 0.0
      %706 = vmatpush1.msra.mxu0 0.0
      %707 = vmatprep.subr.mxu0 0.0
      %708 = vmatpush1.msra.mxu0 0.0
      %709 = vmatprep.subr.mxu0 0.0
      %710 = vmatpush1.msra.mxu0 0.0
      %711 = vmatprep.subr.mxu0 0.0
      %712 = vmatpush1.msra.mxu0 0.0
      %713 = vmatprep.subr.mxu0 0.0
      %714 = vmatpush1.msra.mxu0 0.0
      %715 = vmatprep.subr.mxu0 0.0
      %716 = vmatpush1.msra.mxu0 0.0
      %717 = vmatprep.subr.mxu0 0.0
      %718 = vmatpush1.msra.mxu0 0.0
      %719 = vmatprep.subr.mxu0 0.0
      %720 = vmatpush1.msra.mxu0 0.0
      %721 = vmatprep.subr.mxu0 0.0
      %722 = vmatpush1.msra.mxu0 0.0
      %723 = vmatprep.subr.mxu0 0.0
      %724 = vmatpush1.msra.mxu0 0.0
      %725 = vmatprep.subr.mxu0 0.0
      %726 = vmatpush1.msra.mxu0 0.0
      %727 = vmatprep.mubr.f32.mxu0 0.0
      %728 = vmatmul.mubr.f32.gmra.mrb[0].mxu0 %v661
      %v729 = vpop.f32.mrb[0].mxu0
      %v730 = vadd.f32 0.0, %v729
      %v731 = vpop.f32.mrb[0].mxu0
      %732 = vdwg.mxu0
      %v734 = vsel %vm221, %v219, 0
      %736 = vmatprep.subr.mxu0 0.0
      %737 = vmatpush1.msra.mxu0 %v220
      %738 = vmatprep.subr.mxu0 0.0
      %739 = vmatpush1.msra.mxu0 0.0
      %740 = vmatprep.subr.mxu0 0.0
      %741 = vmatpush1.msra.mxu0 0.0
      %742 = vmatprep.subr.mxu0 0.0
      %743 = vmatpush1.msra.mxu0 0.0
      %744 = vmatprep.subr.mxu0 0.0
      %745 = vmatpush1.msra.mxu0 0.0
      %746 = vmatprep.subr.mxu0 0.0
      %747 = vmatpush1.msra.mxu0 0.0
      %748 = vmatprep.subr.mxu0 0.0
      %749 = vmatpush1.msra.mxu0 0.0
      %750 = vmatprep.subr.mxu0 0.0
      %751 = vmatpush1.msra.mxu0 0.0
      %752 = vmatprep.subr.mxu0 0.0
      %753 = vmatpush1.msra.mxu0 0.0
      %754 = vmatprep.subr.mxu0 0.0
      %755 = vmatpush1.msra.mxu0 0.0
      %756 = vmatprep.subr.mxu0 0.0
      %757 = vmatpush1.msra.mxu0 0.0
      %758 = vmatprep.subr.mxu0 0.0
      %759 = vmatpush1.msra.mxu0 0.0
      %760 = vmatprep.subr.mxu0 0.0
      %761 = vmatpush1.msra.mxu0 0.0
      %762 = vmatprep.subr.mxu0 0.0
      %763 = vmatpush1.msra.mxu0 0.0
      %764 = vmatprep.subr.mxu0 0.0
      %765 = vmatpush1.msra.mxu0 0.0
      %766 = vmatprep.subr.mxu0 0.0
      %767 = vmatpush1.msra.mxu0 0.0
      %768 = vmatprep.subr.mxu0 0.0
      %769 = vmatpush1.msra.mxu0 0.0
      %770 = vmatprep.subr.mxu0 0.0
      %771 = vmatpush1.msra.mxu0 0.0
      %772 = vmatprep.subr.mxu0 0.0
      %773 = vmatpush1.msra.mxu0 0.0
      %774 = vmatprep.subr.mxu0 0.0
      %775 = vmatpush1.msra.mxu0 0.0
      %776 = vmatprep.subr.mxu0 0.0
      %777 = vmatpush1.msra.mxu0 0.0
      %778 = vmatprep.subr.mxu0 0.0
      %779 = vmatpush1.msra.mxu0 0.0
      %780 = vmatprep.subr.mxu0 0.0
      %781 = vmatpush1.msra.mxu0 0.0
      %782 = vmatprep.subr.mxu0 0.0
      %783 = vmatpush1.msra.mxu0 0.0
      %784 = vmatprep.subr.mxu0 0.0
      %785 = vmatpush1.msra.mxu0 0.0
      %786 = vmatprep.subr.mxu0 0.0
      %787 = vmatpush1.msra.mxu0 0.0
      %788 = vmatprep.subr.mxu0 0.0
      %789 = vmatpush1.msra.mxu0 0.0
      %790 = vmatprep.subr.mxu0 0.0
      %791 = vmatpush1.msra.mxu0 0.0
      %792 = vmatprep.subr.mxu0 0.0
      %793 = vmatpush1.msra.mxu0 0.0
      %794 = vmatprep.subr.mxu0 0.0
      %795 = vmatpush1.msra.mxu0 0.0
      %796 = vmatprep.subr.mxu0 0.0
      %797 = vmatpush1.msra.mxu0 0.0
      %798 = vmatprep.subr.mxu0 0.0
      %799 = vmatpush1.msra.mxu0 0.0
      %800 = vmatprep.mubr.f32.mxu0 0.0
      %801 = vmatmul.mubr.f32.gmra.mrb[0].mxu0 %v734
      %v802 = vpop.f32.mrb[0].mxu0
      %v803 = vadd.f32 0.0, %v802
      %v804 = vpop.f32.mrb[0].mxu0
      %805 = vdwg.mxu0
      %v806 = vld [vmem:[%s2] sm:$0xff]
      %v807 = vld [vmem:[%s2 + $0x8] sm:$0xff]
      %v809 = vsel %vm221, %v806, 0
      %v812 = vsel %vm221, %v807, 0
      %814 = vmatprep.subr.mxu0 0.0
      %815 = vmatpush1.msra.mxu0 %v292
      %816 = vmatprep.subr.mxu0 0.0
      %817 = vmatpush1.msra.mxu0 0.0
      %818 = vmatprep.subr.mxu0 0.0
      %819 = vmatpush1.msra.mxu0 0.0
      %820 = vmatprep.subr.mxu0 0.0
      %821 = vmatpush1.msra.mxu0 0.0
      %822 = vmatprep.subr.mxu0 0.0
      %823 = vmatpush1.msra.mxu0 0.0
      %824 = vmatprep.subr.mxu0 0.0
      %825 = vmatpush1.msra.mxu0 0.0
      %826 = vmatprep.subr.mxu0 0.0
      %827 = vmatpush1.msra.mxu0 0.0
      %828 = vmatprep.subr.mxu0 0.0
      %829 = vmatpush1.msra.mxu0 0.0
      %830 = vmatprep.subr.mxu0 0.0
      %831 = vmatpush1.msra.mxu0 0.0
      %832 = vmatprep.subr.mxu0 0.0
      %833 = vmatpush1.msra.mxu0 0.0
      %834 = vmatprep.subr.mxu0 0.0
      %835 = vmatpush1.msra.mxu0 0.0
      %836 = vmatprep.subr.mxu0 0.0
      %837 = vmatpush1.msra.mxu0 0.0
      %838 = vmatprep.subr.mxu0 0.0
      %839 = vmatpush1.msra.mxu0 0.0
      %840 = vmatprep.subr.mxu0 0.0
      %841 = vmatpush1.msra.mxu0 0.0
      %842 = vmatprep.subr.mxu0 0.0
      %843 = vmatpush1.msra.mxu0 0.0
      %844 = vmatprep.subr.mxu0 0.0
      %845 = vmatpush1.msra.mxu0 0.0
      %846 = vmatprep.subr.mxu0 0.0
      %847 = vmatpush1.msra.mxu0 0.0
      %848 = vmatprep.subr.mxu0 0.0
      %849 = vmatpush1.msra.mxu0 0.0
      %850 = vmatprep.subr.mxu0 0.0
      %851 = vmatpush1.msra.mxu0 0.0
      %852 = vmatprep.subr.mxu0 0.0
      %853 = vmatpush1.msra.mxu0 0.0
      %854 = vmatprep.subr.mxu0 0.0
      %855 = vmatpush1.msra.mxu0 0.0
      %856 = vmatprep.subr.mxu0 0.0
      %857 = vmatpush1.msra.mxu0 0.0
      %858 = vmatprep.subr.mxu0 0.0
      %859 = vmatpush1.msra.mxu0 0.0
      %860 = vmatprep.subr.mxu0 0.0
      %861 = vmatpush1.msra.mxu0 0.0
      %862 = vmatprep.subr.mxu0 0.0
      %863 = vmatpush1.msra.mxu0 0.0
      %864 = vmatprep.subr.mxu0 0.0
      %865 = vmatpush1.msra.mxu0 0.0
      %866 = vmatprep.subr.mxu0 0.0
      %867 = vmatpush1.msra.mxu0 0.0
      %868 = vmatprep.subr.mxu0 0.0
      %869 = vmatpush1.msra.mxu0 0.0
      %870 = vmatprep.subr.mxu0 0.0
      %871 = vmatpush1.msra.mxu0 0.0
      %872 = vmatprep.subr.mxu0 0.0
      %873 = vmatpush1.msra.mxu0 0.0
      %874 = vmatprep.subr.mxu0 0.0
      %875 = vmatpush1.msra.mxu0 0.0
      %876 = vmatprep.subr.mxu0 0.0
      %877 = vmatpush1.msra.mxu0 0.0
      %878 = vmatprep.mubr.f32.mxu0 0.0
      %879 = vmatmul.mubr.f32.gmra.mrb[0].mxu0 %v809
      %v880 = vpop.f32.mrb[0].mxu0
      %v881 = vadd.f32 0.0, %v880
      %v882 = vpop.f32.mrb[0].mxu0
      %883 = vmatprep.mubr.f32.mxu0 0.0
      %884 = vmatmul.mubr.f32.gmra.mrb[0].mxu0 %v812
      %v885 = vpop.f32.mrb[0].mxu0
      %v886 = vadd.f32 0.0, %v885
      %v887 = vpop.f32.mrb[0].mxu0
      %888 = vdwg.mxu0
      %889 = vmatprep.subr.mxu0 0.0
      %890 = vmatpush1.msra.mxu0 %v365
      %891 = vmatprep.subr.mxu0 0.0
      %892 = vmatpush1.msra.mxu0 0.0
      %893 = vmatprep.subr.mxu0 0.0
      %894 = vmatpush1.msra.mxu0 0.0
      %895 = vmatprep.subr.mxu0 0.0
      %896 = vmatpush1.msra.mxu0 0.0
      %897 = vmatprep.subr.mxu0 0.0
      %898 = vmatpush1.msra.mxu0 0.0
      %899 = vmatprep.subr.mxu0 0.0
      %900 = vmatpush1.msra.mxu0 0.0
      %901 = vmatprep.subr.mxu0 0.0
      %902 = vmatpush1.msra.mxu0 0.0
      %903 = vmatprep.subr.mxu0 0.0
      %904 = vmatpush1.msra.mxu0 0.0
      %905 = vmatprep.subr.mxu0 0.0
      %906 = vmatpush1.msra.mxu0 0.0
      %907 = vmatprep.subr.mxu0 0.0
      %908 = vmatpush1.msra.mxu0 0.0
      %909 = vmatprep.subr.mxu0 0.0
      %910 = vmatpush1.msra.mxu0 0.0
      %911 = vmatprep.subr.mxu0 0.0
      %912 = vmatpush1.msra.mxu0 0.0
      %913 = vmatprep.subr.mxu0 0.0
      %914 = vmatpush1.msra.mxu0 0.0
      %915 = vmatprep.subr.mxu0 0.0
      %916 = vmatpush1.msra.mxu0 0.0
      %917 = vmatprep.subr.mxu0 0.0
      %918 = vmatpush1.msra.mxu0 0.0
      %919 = vmatprep.subr.mxu0 0.0
      %920 = vmatpush1.msra.mxu0 0.0
      %921 = vmatprep.subr.mxu0 0.0
      %922 = vmatpush1.msra.mxu0 0.0
      %923 = vmatprep.subr.mxu0 0.0
      %924 = vmatpush1.msra.mxu0 0.0
      %925 = vmatprep.subr.mxu0 0.0
      %926 = vmatpush1.msra.mxu0 0.0
      %927 = vmatprep.subr.mxu0 0.0
      %928 = vmatpush1.msra.mxu0 0.0
      %929 = vmatprep.subr.mxu0 0.0
      %930 = vmatpush1.msra.mxu0 0.0
      %931 = vmatprep.subr.mxu0 0.0
      %932 = vmatpush1.msra.mxu0 0.0
      %933 = vmatprep.subr.mxu0 0.0
      %934 = vmatpush1.msra.mxu0 0.0
      %935 = vmatprep.subr.mxu0 0.0
      %936 = vmatpush1.msra.mxu0 0.0
      %937 = vmatprep.subr.mxu0 0.0
      %938 = vmatpush1.msra.mxu0 0.0
      %939 = vmatprep.subr.mxu0 0.0
      %940 = vmatpush1.msra.mxu0 0.0
      %941 = vmatprep.subr.mxu0 0.0
      %942 = vmatpush1.msra.mxu0 0.0
      %943 = vmatprep.subr.mxu0 0.0
      %944 = vmatpush1.msra.mxu0 0.0
      %945 = vmatprep.subr.mxu0 0.0
      %946 = vmatpush1.msra.mxu0 0.0
      %947 = vmatprep.subr.mxu0 0.0
      %948 = vmatpush1.msra.mxu0 0.0
      %949 = vmatprep.subr.mxu0 0.0
      %950 = vmatpush1.msra.mxu0 0.0
      %951 = vmatprep.subr.mxu0 0.0
      %952 = vmatpush1.msra.mxu0 0.0
      %953 = vmatprep.mubr.f32.mxu0 0.0
      %954 = vmatmul.mubr.f32.gmra.mrb[0].mxu0 %v809
      %v955 = vpop.f32.mrb[0].mxu0
      %v956 = vadd.f32 0.0, %v955
      %v957 = vpop.f32.mrb[0].mxu0
      %958 = vmatprep.mubr.f32.mxu0 0.0
      %959 = vmatmul.mubr.f32.gmra.mrb[0].mxu0 %v812
      %v960 = vpop.f32.mrb[0].mxu0
      %v961 = vadd.f32 0.0, %v960
      %v962 = vpop.f32.mrb[0].mxu0
      %963 = vdwg.mxu0
      %964 = vmatprep.subr.mxu0 0.0
      %965 = vmatpush1.msra.mxu0 %v438
      %966 = vmatprep.subr.mxu0 0.0
      %967 = vmatpush1.msra.mxu0 0.0
      %968 = vmatprep.subr.mxu0 0.0
      %969 = vmatpush1.msra.mxu0 0.0
      %970 = vmatprep.subr.mxu0 0.0
      %971 = vmatpush1.msra.mxu0 0.0
      %972 = vmatprep.subr.mxu0 0.0
      %973 = vmatpush1.msra.mxu0 0.0
      %974 = vmatprep.subr.mxu0 0.0
      %975 = vmatpush1.msra.mxu0 0.0
      %976 = vmatprep.subr.mxu0 0.0
      %977 = vmatpush1.msra.mxu0 0.0
      %978 = vmatprep.subr.mxu0 0.0
      %979 = vmatpush1.msra.mxu0 0.0
      %980 = vmatprep.subr.mxu0 0.0
      %981 = vmatpush1.msra.mxu0 0.0
      %982 = vmatprep.subr.mxu0 0.0
      %983 = vmatpush1.msra.mxu0 0.0
      %984 = vmatprep.subr.mxu0 0.0
      %985 = vmatpush1.msra.mxu0 0.0
      %986 = vmatprep.subr.mxu0 0.0
      %987 = vmatpush1.msra.mxu0 0.0
      %988 = vmatprep.subr.mxu0 0.0
      %989 = vmatpush1.msra.mxu0 0.0
      %990 = vmatprep.subr.mxu0 0.0
      %991 = vmatpush1.msra.mxu0 0.0
      %992 = vmatprep.subr.mxu0 0.0
      %993 = vmatpush1.msra.mxu0 0.0
      %994 = vmatprep.subr.mxu0 0.0
      %995 = vmatpush1.msra.mxu0 0.0
      %996 = vmatprep.subr.mxu0 0.0
      %997 = vmatpush1.msra.mxu0 0.0
      %998 = vmatprep.subr.mxu0 0.0
      %999 = vmatpush1.msra.mxu0 0.0
      %1000 = vmatprep.subr.mxu0 0.0
      %1001 = vmatpush1.msra.mxu0 0.0
      %1002 = vmatprep.subr.mxu0 0.0
      %1003 = vmatpush1.msra.mxu0 0.0
      %1004 = vmatprep.subr.mxu0 0.0
      %1005 = vmatpush1.msra.mxu0 0.0
      %1006 = vmatprep.subr.mxu0 0.0
      %1007 = vmatpush1.msra.mxu0 0.0
      %1008 = vmatprep.subr.mxu0 0.0
      %1009 = vmatpush1.msra.mxu0 0.0
      %1010 = vmatprep.subr.mxu0 0.0
      %1011 = vmatpush1.msra.mxu0 0.0
      %1012 = vmatprep.subr.mxu0 0.0
      %1013 = vmatpush1.msra.mxu0 0.0
      %1014 = vmatprep.subr.mxu0 0.0
      %1015 = vmatpush1.msra.mxu0 0.0
      %1016 = vmatprep.subr.mxu0 0.0
      %1017 = vmatpush1.msra.mxu0 0.0
      %1018 = vmatprep.subr.mxu0 0.0
      %1019 = vmatpush1.msra.mxu0 0.0
      %1020 = vmatprep.subr.mxu0 0.0
      %1021 = vmatpush1.msra.mxu0 0.0
      %1022 = vmatprep.subr.mxu0 0.0
      %1023 = vmatpush1.msra.mxu0 0.0
      %1024 = vmatprep.subr.mxu0 0.0
      %1025 = vmatpush1.msra.mxu0 0.0
      %1026 = vmatprep.subr.mxu0 0.0
      %1027 = vmatpush1.msra.mxu0 0.0
      %1028 = vmatprep.mubr.f32.mxu0 0.0
      %1029 = vmatmul.mubr.f32.gmra.mrb[0].mxu0 %v809
      %v1030 = vpop.f32.mrb[0].mxu0
      %v1031 = vadd.f32 0.0, %v1030
      %v1032 = vpop.f32.mrb[0].mxu0
      %1033 = vmatprep.mubr.f32.mxu0 0.0
      %1034 = vmatmul.mubr.f32.gmra.mrb[0].mxu0 %v812
      %v1035 = vpop.f32.mrb[0].mxu0
      %v1036 = vadd.f32 0.0, %v1035
      %v1037 = vpop.f32.mrb[0].mxu0
      %1038 = vdwg.mxu0
      %1039 = vmatprep.subr.mxu0 0.0
      %1040 = vmatpush1.msra.mxu0 %v511
      %1041 = vmatprep.subr.mxu0 0.0
      %1042 = vmatpush1.msra.mxu0 0.0
      %1043 = vmatprep.subr.mxu0 0.0
      %1044 = vmatpush1.msra.mxu0 0.0
      %1045 = vmatprep.subr.mxu0 0.0
      %1046 = vmatpush1.msra.mxu0 0.0
      %1047 = vmatprep.subr.mxu0 0.0
      %1048 = vmatpush1.msra.mxu0 0.0
      %1049 = vmatprep.subr.mxu0 0.0
      %1050 = vmatpush1.msra.mxu0 0.0
      %1051 = vmatprep.subr.mxu0 0.0
      %1052 = vmatpush1.msra.mxu0 0.0
      %1053 = vmatprep.subr.mxu0 0.0
      %1054 = vmatpush1.msra.mxu0 0.0
      %1055 = vmatprep.subr.mxu0 0.0
      %1056 = vmatpush1.msra.mxu0 0.0
      %1057 = vmatprep.subr.mxu0 0.0
      %1058 = vmatpush1.msra.mxu0 0.0
      %1059 = vmatprep.subr.mxu0 0.0
      %1060 = vmatpush1.msra.mxu0 0.0
      %1061 = vmatprep.subr.mxu0 0.0
      %1062 = vmatpush1.msra.mxu0 0.0
      %1063 = vmatprep.subr.mxu0 0.0
      %1064 = vmatpush1.msra.mxu0 0.0
      %1065 = vmatprep.subr.mxu0 0.0
      %1066 = vmatpush1.msra.mxu0 0.0
      %1067 = vmatprep.subr.mxu0 0.0
      %1068 = vmatpush1.msra.mxu0 0.0
      %1069 = vmatprep.subr.mxu0 0.0
      %1070 = vmatpush1.msra.mxu0 0.0
      %1071 = vmatprep.subr.mxu0 0.0
      %1072 = vmatpush1.msra.mxu0 0.0
      %1073 = vmatprep.subr.mxu0 0.0
      %1074 = vmatpush1.msra.mxu0 0.0
      %1075 = vmatprep.subr.mxu0 0.0
      %1076 = vmatpush1.msra.mxu0 0.0
      %1077 = vmatprep.subr.mxu0 0.0
      %1078 = vmatpush1.msra.mxu0 0.0
      %1079 = vmatprep.subr.mxu0 0.0
      %1080 = vmatpush1.msra.mxu0 0.0
      %1081 = vmatprep.subr.mxu0 0.0
      %1082 = vmatpush1.msra.mxu0 0.0
      %1083 = vmatprep.subr.mxu0 0.0
      %1084 = vmatpush1.msra.mxu0 0.0
      %1085 = vmatprep.subr.mxu0 0.0
      %1086 = vmatpush1.msra.mxu0 0.0
      %1087 = vmatprep.subr.mxu0 0.0
      %1088 = vmatpush1.msra.mxu0 0.0
      %1089 = vmatprep.subr.mxu0 0.0
      %1090 = vmatpush1.msra.mxu0 0.0
      %1091 = vmatprep.subr.mxu0 0.0
      %1092 = vmatpush1.msra.mxu0 0.0
      %1093 = vmatprep.subr.mxu0 0.0
      %1094 = vmatpush1.msra.mxu0 0.0
      %1095 = vmatprep.subr.mxu0 0.0
      %1096 = vmatpush1.msra.mxu0 0.0
      %1097 = vmatprep.subr.mxu0 0.0
      %1098 = vmatpush1.msra.mxu0 0.0
      %1099 = vmatprep.subr.mxu0 0.0
      %1100 = vmatpush1.msra.mxu0 0.0
      %1101 = vmatprep.subr.mxu0 0.0
      %1102 = vmatpush1.msra.mxu0 0.0
      %1103 = vmatprep.mubr.f32.mxu0 0.0
      %1104 = vmatmul.mubr.f32.gmra.mrb[0].mxu0 %v809
      %v1105 = vpop.f32.mrb[0].mxu0
      %v1106 = vadd.f32 0.0, %v1105
      %v1107 = vpop.f32.mrb[0].mxu0
      %1108 = vmatprep.mubr.f32.mxu0 0.0
      %1109 = vmatmul.mubr.f32.gmra.mrb[0].mxu0 %v812
      %v1110 = vpop.f32.mrb[0].mxu0
      %v1111 = vadd.f32 0.0, %v1110
      %v1112 = vpop.f32.mrb[0].mxu0
      %1113 = vdwg.mxu0
      %1114 = vmatprep.subr.mxu0 0.0
      %1115 = vmatpush1.msra.mxu0 %v584
      %1116 = vmatprep.subr.mxu0 0.0
      %1117 = vmatpush1.msra.mxu0 0.0
      %1118 = vmatprep.subr.mxu0 0.0
      %1119 = vmatpush1.msra.mxu0 0.0
      %1120 = vmatprep.subr.mxu0 0.0
      %1121 = vmatpush1.msra.mxu0 0.0
      %1122 = vmatprep.subr.mxu0 0.0
      %1123 = vmatpush1.msra.mxu0 0.0
      %1124 = vmatprep.subr.mxu0 0.0
      %1125 = vmatpush1.msra.mxu0 0.0
      %1126 = vmatprep.subr.mxu0 0.0
      %1127 = vmatpush1.msra.mxu0 0.0
      %1128 = vmatprep.subr.mxu0 0.0
      %1129 = vmatpush1.msra.mxu0 0.0
      %1130 = vmatprep.subr.mxu0 0.0
      %1131 = vmatpush1.msra.mxu0 0.0
      %1132 = vmatprep.subr.mxu0 0.0
      %1133 = vmatpush1.msra.mxu0 0.0
      %1134 = vmatprep.subr.mxu0 0.0
      %1135 = vmatpush1.msra.mxu0 0.0
      %1136 = vmatprep.subr.mxu0 0.0
      %1137 = vmatpush1.msra.mxu0 0.0
      %1138 = vmatprep.subr.mxu0 0.0
      %1139 = vmatpush1.msra.mxu0 0.0
      %1140 = vmatprep.subr.mxu0 0.0
      %1141 = vmatpush1.msra.mxu0 0.0
      %1142 = vmatprep.subr.mxu0 0.0
      %1143 = vmatpush1.msra.mxu0 0.0
      %1144 = vmatprep.subr.mxu0 0.0
      %1145 = vmatpush1.msra.mxu0 0.0
      %1146 = vmatprep.subr.mxu0 0.0
      %1147 = vmatpush1.msra.mxu0 0.0
      %1148 = vmatprep.subr.mxu0 0.0
      %1149 = vmatpush1.msra.mxu0 0.0
      %1150 = vmatprep.subr.mxu0 0.0
      %1151 = vmatpush1.msra.mxu0 0.0
      %1152 = vmatprep.subr.mxu0 0.0
      %1153 = vmatpush1.msra.mxu0 0.0
      %1154 = vmatprep.subr.mxu0 0.0
      %1155 = vmatpush1.msra.mxu0 0.0
      %1156 = vmatprep.subr.mxu0 0.0
      %1157 = vmatpush1.msra.mxu0 0.0
      %1158 = vmatprep.subr.mxu0 0.0
      %1159 = vmatpush1.msra.mxu0 0.0
      %1160 = vmatprep.subr.mxu0 0.0
      %1161 = vmatpush1.msra.mxu0 0.0
      %1162 = vmatprep.subr.mxu0 0.0
      %1163 = vmatpush1.msra.mxu0 0.0
      %1164 = vmatprep.subr.mxu0 0.0
      %1165 = vmatpush1.msra.mxu0 0.0
      %1166 = vmatprep.subr.mxu0 0.0
      %1167 = vmatpush1.msra.mxu0 0.0
      %1168 = vmatprep.subr.mxu0 0.0
      %1169 = vmatpush1.msra.mxu0 0.0
      %1170 = vmatprep.subr.mxu0 0.0
      %1171 = vmatpush1.msra.mxu0 0.0
      %1172 = vmatprep.subr.mxu0 0.0
      %1173 = vmatpush1.msra.mxu0 0.0
      %1174 = vmatprep.subr.mxu0 0.0
      %1175 = vmatpush1.msra.mxu0 0.0
      %1176 = vmatprep.subr.mxu0 0.0
      %1177 = vmatpush1.msra.mxu0 0.0
      %1178 = vmatprep.mubr.f32.mxu0 0.0
      %1179 = vmatmul.mubr.f32.gmra.mrb[0].mxu0 %v809
      %v1180 = vpop.f32.mrb[0].mxu0
      %v1181 = vadd.f32 0.0, %v1180
      %v1182 = vpop.f32.mrb[0].mxu0
      %1183 = vmatprep.mubr.f32.mxu0 0.0
      %1184 = vmatmul.mubr.f32.gmra.mrb[0].mxu0 %v812
      %v1185 = vpop.f32.mrb[0].mxu0
      %v1186 = vadd.f32 0.0, %v1185
      %v1187 = vpop.f32.mrb[0].mxu0
      %1188 = vdwg.mxu0
      %1189 = vmatprep.subr.mxu0 0.0
      %1190 = vmatpush1.msra.mxu0 %v657
      %1191 = vmatprep.subr.mxu0 0.0
      %1192 = vmatpush1.msra.mxu0 0.0
      %1193 = vmatprep.subr.mxu0 0.0
      %1194 = vmatpush1.msra.mxu0 0.0
      %1195 = vmatprep.subr.mxu0 0.0
      %1196 = vmatpush1.msra.mxu0 0.0
      %1197 = vmatprep.subr.mxu0 0.0
      %1198 = vmatpush1.msra.mxu0 0.0
      %1199 = vmatprep.subr.mxu0 0.0
      %1200 = vmatpush1.msra.mxu0 0.0
      %1201 = vmatprep.subr.mxu0 0.0
      %1202 = vmatpush1.msra.mxu0 0.0
      %1203 = vmatprep.subr.mxu0 0.0
      %1204 = vmatpush1.msra.mxu0 0.0
      %1205 = vmatprep.subr.mxu0 0.0
      %1206 = vmatpush1.msra.mxu0 0.0
      %1207 = vmatprep.subr.mxu0 0.0
      %1208 = vmatpush1.msra.mxu0 0.0
      %1209 = vmatprep.subr.mxu0 0.0
      %1210 = vmatpush1.msra.mxu0 0.0
      %1211 = vmatprep.subr.mxu0 0.0
      %1212 = vmatpush1.msra.mxu0 0.0
      %1213 = vmatprep.subr.mxu0 0.0
      %1214 = vmatpush1.msra.mxu0 0.0
      %1215 = vmatprep.subr.mxu0 0.0
      %1216 = vmatpush1.msra.mxu0 0.0
      %1217 = vmatprep.subr.mxu0 0.0
      %1218 = vmatpush1.msra.mxu0 0.0
      %1219 = vmatprep.subr.mxu0 0.0
      %1220 = vmatpush1.msra.mxu0 0.0
      %1221 = vmatprep.subr.mxu0 0.0
      %1222 = vmatpush1.msra.mxu0 0.0
      %1223 = vmatprep.subr.mxu0 0.0
      %1224 = vmatpush1.msra.mxu0 0.0
      %1225 = vmatprep.subr.mxu0 0.0
      %1226 = vmatpush1.msra.mxu0 0.0
      %1227 = vmatprep.subr.mxu0 0.0
      %1228 = vmatpush1.msra.mxu0 0.0
      %1229 = vmatprep.subr.mxu0 0.0
      %1230 = vmatpush1.msra.mxu0 0.0
      %1231 = vmatprep.subr.mxu0 0.0
      %1232 = vmatpush1.msra.mxu0 0.0
      %1233 = vmatprep.subr.mxu0 0.0
      %1234 = vmatpush1.msra.mxu0 0.0
      %1235 = vmatprep.subr.mxu0 0.0
      %1236 = vmatpush1.msra.mxu0 0.0
      %1237 = vmatprep.subr.mxu0 0.0
      %1238 = vmatpush1.msra.mxu0 0.0
      %1239 = vmatprep.subr.mxu0 0.0
      %1240 = vmatpush1.msra.mxu0 0.0
      %1241 = vmatprep.subr.mxu0 0.0
      %1242 = vmatpush1.msra.mxu0 0.0
      %1243 = vmatprep.subr.mxu0 0.0
      %1244 = vmatpush1.msra.mxu0 0.0
      %1245 = vmatprep.subr.mxu0 0.0
      %1246 = vmatpush1.msra.mxu0 0.0
      %1247 = vmatprep.subr.mxu0 0.0
      %1248 = vmatpush1.msra.mxu0 0.0
      %1249 = vmatprep.subr.mxu0 0.0
      %1250 = vmatpush1.msra.mxu0 0.0
      %1251 = vmatprep.subr.mxu0 0.0
      %1252 = vmatpush1.msra.mxu0 0.0
      %1253 = vmatprep.mubr.f32.mxu0 0.0
      %1254 = vmatmul.mubr.f32.gmra.mrb[0].mxu0 %v809
      %v1255 = vpop.f32.mrb[0].mxu0
      %v1256 = vadd.f32 0.0, %v1255
      %v1257 = vpop.f32.mrb[0].mxu0
      %1258 = vmatprep.mubr.f32.mxu0 0.0
      %1259 = vmatmul.mubr.f32.gmra.mrb[0].mxu0 %v812
      %v1260 = vpop.f32.mrb[0].mxu0
      %v1261 = vadd.f32 0.0, %v1260
      %v1262 = vpop.f32.mrb[0].mxu0
      %1263 = vdwg.mxu0
      %1264 = vmatprep.subr.mxu0 0.0
      %1265 = vmatpush1.msra.mxu0 %v730
      %1266 = vmatprep.subr.mxu0 0.0
      %1267 = vmatpush1.msra.mxu0 0.0
      %1268 = vmatprep.subr.mxu0 0.0
      %1269 = vmatpush1.msra.mxu0 0.0
      %1270 = vmatprep.subr.mxu0 0.0
      %1271 = vmatpush1.msra.mxu0 0.0
      %1272 = vmatprep.subr.mxu0 0.0
      %1273 = vmatpush1.msra.mxu0 0.0
      %1274 = vmatprep.subr.mxu0 0.0
      %1275 = vmatpush1.msra.mxu0 0.0
      %1276 = vmatprep.subr.mxu0 0.0
      %1277 = vmatpush1.msra.mxu0 0.0
      %1278 = vmatprep.subr.mxu0 0.0
      %1279 = vmatpush1.msra.mxu0 0.0
      %1280 = vmatprep.subr.mxu0 0.0
      %1281 = vmatpush1.msra.mxu0 0.0
      %1282 = vmatprep.subr.mxu0 0.0
      %1283 = vmatpush1.msra.mxu0 0.0
      %1284 = vmatprep.subr.mxu0 0.0
      %1285 = vmatpush1.msra.mxu0 0.0
      %1286 = vmatprep.subr.mxu0 0.0
      %1287 = vmatpush1.msra.mxu0 0.0
      %1288 = vmatprep.subr.mxu0 0.0
      %1289 = vmatpush1.msra.mxu0 0.0
      %1290 = vmatprep.subr.mxu0 0.0
      %1291 = vmatpush1.msra.mxu0 0.0
      %1292 = vmatprep.subr.mxu0 0.0
      %1293 = vmatpush1.msra.mxu0 0.0
      %1294 = vmatprep.subr.mxu0 0.0
      %1295 = vmatpush1.msra.mxu0 0.0
      %1296 = vmatprep.subr.mxu0 0.0
      %1297 = vmatpush1.msra.mxu0 0.0
      %1298 = vmatprep.subr.mxu0 0.0
      %1299 = vmatpush1.msra.mxu0 0.0
      %1300 = vmatprep.subr.mxu0 0.0
      %1301 = vmatpush1.msra.mxu0 0.0
      %1302 = vmatprep.subr.mxu0 0.0
      %1303 = vmatpush1.msra.mxu0 0.0
      %1304 = vmatprep.subr.mxu0 0.0
      %1305 = vmatpush1.msra.mxu0 0.0
      %1306 = vmatprep.subr.mxu0 0.0
      %1307 = vmatpush1.msra.mxu0 0.0
      %1308 = vmatprep.subr.mxu0 0.0
      %1309 = vmatpush1.msra.mxu0 0.0
      %1310 = vmatprep.subr.mxu0 0.0
      %1311 = vmatpush1.msra.mxu0 0.0
      %1312 = vmatprep.subr.mxu0 0.0
      %1313 = vmatpush1.msra.mxu0 0.0
      %1314 = vmatprep.subr.mxu0 0.0
      %1315 = vmatpush1.msra.mxu0 0.0
      %1316 = vmatprep.subr.mxu0 0.0
      %1317 = vmatpush1.msra.mxu0 0.0
      %1318 = vmatprep.subr.mxu0 0.0
      %1319 = vmatpush1.msra.mxu0 0.0
      %1320 = vmatprep.subr.mxu0 0.0
      %1321 = vmatpush1.msra.mxu0 0.0
      %1322 = vmatprep.subr.mxu0 0.0
      %1323 = vmatpush1.msra.mxu0 0.0
      %1324 = vmatprep.subr.mxu0 0.0
      %1325 = vmatpush1.msra.mxu0 0.0
      %1326 = vmatprep.subr.mxu0 0.0
      %1327 = vmatpush1.msra.mxu0 0.0
      %1328 = vmatprep.mubr.f32.mxu0 0.0
      %1329 = vmatmul.mubr.f32.gmra.mrb[0].mxu0 %v809
      %v1330 = vpop.f32.mrb[0].mxu0
      %v1331 = vadd.f32 0.0, %v1330
      %v1332 = vpop.f32.mrb[0].mxu0
      %1333 = vmatprep.mubr.f32.mxu0 0.0
      %1334 = vmatmul.mubr.f32.gmra.mrb[0].mxu0 %v812
      %v1335 = vpop.f32.mrb[0].mxu0
      %v1336 = vadd.f32 0.0, %v1335
      %v1337 = vpop.f32.mrb[0].mxu0
      %1338 = vdwg.mxu0
      %1339 = vmatprep.subr.mxu0 0.0
      %1340 = vmatpush1.msra.mxu0 %v803
      %1341 = vmatprep.subr.mxu0 0.0
      %1342 = vmatpush1.msra.mxu0 0.0
      %1343 = vmatprep.subr.mxu0 0.0
      %1344 = vmatpush1.msra.mxu0 0.0
      %1345 = vmatprep.subr.mxu0 0.0
      %1346 = vmatpush1.msra.mxu0 0.0
      %1347 = vmatprep.subr.mxu0 0.0
      %1348 = vmatpush1.msra.mxu0 0.0
      %1349 = vmatprep.subr.mxu0 0.0
      %1350 = vmatpush1.msra.mxu0 0.0
      %1351 = vmatprep.subr.mxu0 0.0
      %1352 = vmatpush1.msra.mxu0 0.0
      %1353 = vmatprep.subr.mxu0 0.0
      %1354 = vmatpush1.msra.mxu0 0.0
      %1355 = vmatprep.subr.mxu0 0.0
      %1356 = vmatpush1.msra.mxu0 0.0
      %1357 = vmatprep.subr.mxu0 0.0
      %1358 = vmatpush1.msra.mxu0 0.0
      %1359 = vmatprep.subr.mxu0 0.0
      %1360 = vmatpush1.msra.mxu0 0.0
      %1361 = vmatprep.subr.mxu0 0.0
      %1362 = vmatpush1.msra.mxu0 0.0
      %1363 = vmatprep.subr.mxu0 0.0
      %1364 = vmatpush1.msra.mxu0 0.0
      %1365 = vmatprep.subr.mxu0 0.0
      %1366 = vmatpush1.msra.mxu0 0.0
      %1367 = vmatprep.subr.mxu0 0.0
      %1368 = vmatpush1.msra.mxu0 0.0
      %1369 = vmatprep.subr.mxu0 0.0
      %1370 = vmatpush1.msra.mxu0 0.0
      %1371 = vmatprep.subr.mxu0 0.0
      %1372 = vmatpush1.msra.mxu0 0.0
      %1373 = vmatprep.subr.mxu0 0.0
      %1374 = vmatpush1.msra.mxu0 0.0
      %1375 = vmatprep.subr.mxu0 0.0
      %1376 = vmatpush1.msra.mxu0 0.0
      %1377 = vmatprep.subr.mxu0 0.0
      %1378 = vmatpush1.msra.mxu0 0.0
      %1379 = vmatprep.subr.mxu0 0.0
      %1380 = vmatpush1.msra.mxu0 0.0
      %1381 = vmatprep.subr.mxu0 0.0
      %1382 = vmatpush1.msra.mxu0 0.0
      %1383 = vmatprep.subr.mxu0 0.0
      %1384 = vmatpush1.msra.mxu0 0.0
      %1385 = vmatprep.subr.mxu0 0.0
      %1386 = vmatpush1.msra.mxu0 0.0
      %1387 = vmatprep.subr.mxu0 0.0
      %1388 = vmatpush1.msra.mxu0 0.0
      %1389 = vmatprep.subr.mxu0 0.0
      %1390 = vmatpush1.msra.mxu0 0.0
      %1391 = vmatprep.subr.mxu0 0.0
      %1392 = vmatpush1.msra.mxu0 0.0
      %1393 = vmatprep.subr.mxu0 0.0
      %1394 = vmatpush1.msra.mxu0 0.0
      %1395 = vmatprep.subr.mxu0 0.0
      %1396 = vmatpush1.msra.mxu0 0.0
      %1397 = vmatprep.subr.mxu0 0.0
      %1398 = vmatpush1.msra.mxu0 0.0
      %1399 = vmatprep.subr.mxu0 0.0
      %1400 = vmatpush1.msra.mxu0 0.0
      %1401 = vmatprep.subr.mxu0 0.0
      %1402 = vmatpush1.msra.mxu0 0.0
      %1403 = vmatprep.mubr.f32.mxu0 0.0
      %1404 = vmatmul.mubr.f32.gmra.mrb[0].mxu0 %v809
      %v1405 = vpop.f32.mrb[0].mxu0
      %v1406 = vadd.f32 0.0, %v1405
      %v1407 = vpop.f32.mrb[0].mxu0
      %1408 = vmatprep.mubr.f32.mxu0 0.0
      %1409 = vmatmul.mubr.f32.gmra.mrb[0].mxu0 %v812
      %v1410 = vpop.f32.mrb[0].mxu0
      %v1411 = vadd.f32 0.0, %v1410
      %v1412 = vpop.f32.mrb[0].mxu0
      %1413 = vdwg.mxu0
      %v1414 = vpack.c.bf16 %v886, %v881
      %v1415 = vpack.c.bf16 %v961, %v956
      %v1416 = vpack.c.bf16 %v1036, %v1031
      %v1417 = vpack.c.bf16 %v1111, %v1106
      %v1418 = vpack.c.bf16 %v1186, %v1181
      %v1419 = vpack.c.bf16 %v1261, %v1256
      %v1420 = vpack.c.bf16 %v1336, %v1331
      %v1421 = vpack.c.bf16 %v1411, %v1406
      %v1430 = vunpack.c.l.b16 %v1414
      %v1431 = vunpack.c.h.b16 %v1414
      %v1432 = vunpack.c.l.b16 %v1415
      %v1433 = vunpack.c.h.b16 %v1415
      %v1434 = vunpack.c.l.b16 %v1416
      %v1435 = vunpack.c.h.b16 %v1416
      %v1436 = vunpack.c.l.b16 %v1417
      %v1437 = vunpack.c.h.b16 %v1417
      %v1438 = vunpack.c.l.b16 %v1418
      %v1439 = vunpack.c.h.b16 %v1418
      %v1440 = vunpack.c.l.b16 %v1419
      %v1441 = vunpack.c.h.b16 %v1419
      %v1442 = vunpack.c.l.b16 %v1420
      %v1443 = vunpack.c.h.b16 %v1420
      %v1444 = vunpack.c.l.b16 %v1421
      %v1445 = vunpack.c.h.b16 %v1421
      %v1446 = vpack.c.b16 %v1430, %v1430
      %v1447 = vpack.c.b16 %v1431, %v1431
      %v1448 = vpack.c.b16 %v1432, %v1432
      %v1449 = vpack.c.b16 %v1433, %v1433
      %v1450 = vpack.c.b16 %v1434, %v1434
      %v1451 = vpack.c.b16 %v1435, %v1435
      %v1452 = vpack.c.b16 %v1436, %v1436
      %v1453 = vpack.c.b16 %v1437, %v1437
      %v1454 = vpack.c.b16 %v1438, %v1438
      %v1455 = vpack.c.b16 %v1439, %v1439
      %v1456 = vpack.c.b16 %v1440, %v1440
      %v1457 = vpack.c.b16 %v1441, %v1441
      %v1458 = vpack.c.b16 %v1442, %v1442
      %v1459 = vpack.c.b16 %v1443, %v1443
      %v1460 = vpack.c.b16 %v1444, %v1444
      %v1461 = vpack.c.b16 %v1445, %v1445
      %vm1478 = vcmask 125952
      %1479 = vst.msk [vmem:[%s210] sm:$0xf] %vm1478, %v1446
      %1480 = vst.msk [vmem:[%s210 + $0x4] sm:$0xf] %vm1478, %v1447
      %1481 = vst.msk [vmem:[%s210 + $0x8] sm:$0xf] %vm1478, %v1448
      %1482 = vst.msk [vmem:[%s210 + $0xc] sm:$0xf] %vm1478, %v1449
      %1483 = vst.msk [vmem:[%s210 + $0x10] sm:$0xf] %vm1478, %v1450
      %1484 = vst.msk [vmem:[%s210 + $0x14] sm:$0xf] %vm1478, %v1451
      %1485 = vst.msk [vmem:[%s210 + $0x18] sm:$0xf] %vm1478, %v1452
      %1486 = vst.msk [vmem:[%s210 + $0x1c] sm:$0xf] %vm1478, %v1453
      %1487 = vst.msk [vmem:[%s210 + $0x20] sm:$0xf] %vm1478, %v1454
      %1488 = vst.msk [vmem:[%s210 + $0x24] sm:$0xf] %vm1478, %v1455
      %1489 = vst.msk [vmem:[%s210 + $0x28] sm:$0xf] %vm1478, %v1456
      %1490 = vst.msk [vmem:[%s210 + $0x2c] sm:$0xf] %vm1478, %v1457
      %1491 = vst.msk [vmem:[%s210 + $0x30] sm:$0xf] %vm1478, %v1458
      %1492 = vst.msk [vmem:[%s210 + $0x34] sm:$0xf] %vm1478, %v1459
      %1493 = vst.msk [vmem:[%s210 + $0x38] sm:$0xf] %vm1478, %v1460
      %1494 = vst.msk [vmem:[%s210 + $0x3c] sm:$0xf] %vm1478, %v1461
      %s1495 = smul.u32 8, %s19
      %p1496 = scmp.lt.s32.totalorder %s18, 1
      %s1497 = scalar_select %p1496, %s18, 1
      %p1498 = scmp.lt.s32.totalorder %s1495, 7
      %s1499 = scalar_select %p1498, %s1495, 7
      %s1500 = smul.addr %s1499, 2
      %s1501 = smul.addr %s1497, 16
      %s1502 = sadd.s32 %s1500, %s1501
      %s1503 = smul.addr %s1502, 4
      %s1504 = scalar_lea.vmem %s3, %s1503
      // Predicated region
      $region33: #{deeplabv3p_decoder_forward.3} parent=31 // pred_check
        %p1505 = pneg %p116
      $region34: #{deeplabv3p_decoder_forward.3} parent=31 // pred_check_branch
        %1507 = sbr.rel (%p1505) target = $region36
      $region35: #{deeplabv3p_decoder_forward.3} parent=31 // pred_region
        %s1508 = smul.u32 8, %s19
      $region36: #{deeplabv3p_decoder_forward.3} parent=31 // pred_fallthru
        _
    $region32: #{deeplabv3p_decoder_forward.3} parent=5 // pred_fallthru
      _
    %p1509 = scmp.le.s32.totalorder 2, %s9
    // Predicated region
    $region37: #{deeplabv3p_decoder_forward.3} parent=5 // pred_check
      %p1510 = pneg %p1509
    $region38: #{deeplabv3p_decoder_forward.3} parent=5 // pred_check_branch
      %1512 = sbr.rel (%p1510) target = $region40
    $region39: #{deeplabv3p_decoder_forward.3} parent=5 // pred_region
      %s1513 = ssub.s32 %s9, 2
      // Predicated region
      $region41: #{deeplabv3p_decoder_forward.3} parent=39 // pred_check
        %p1514 = pneg %p122
      $region42: #{deeplabv3p_decoder_forward.3} parent=39 // pred_check_branch
        %1516 = sbr.rel (%p1514) target = $region44
      $region43: #{deeplabv3p_decoder_forward.3} parent=39 // pred_region
        %s1517 = smul.u32 8, %s21
        %p1518 = scmp.lt.s32.totalorder %s20, 1
        %s1519 = scalar_select %p1518, %s20, 1
        %p1520 = scmp.lt.s32.totalorder %s1517, 7
        %s1521 = scalar_select %p1520, %s1517, 7
        %s1522 = smul.addr %s1521, 2
        %s1523 = smul.addr %s1519, 16
        %s1524 = sadd.s32 %s1522, %s1523
        %s1525 = smul.addr %s1524, 4
        %s1526 = scalar_lea.vmem %s3, %s1525
      $region44: #{deeplabv3p_decoder_forward.3} parent=39 // pred_fallthru
        _
    $region40: #{deeplabv3p_decoder_forward.3} parent=5 // pred_fallthru
      _
  $region6: #{deeplabv3p_decoder_forward.3} parent=0 // loop_footer
    %s13 = sadd.s32 1, %s9
  $region7: #{deeplabv3p_decoder_forward.3} parent=0 // loop_footer_branch
    %8 = sbr.rel target = $region3
  $region8: #{deeplabv3p_decoder_forward.3} parent=0 // loop_exit
    _

// kernel: deeplabv3p_decoder_forward.5
$region0: #{deeplabv3p_decoder_forward.5}
  #allocation0 [shape = 'u32[]', space=smem, size = 0x4, offset = 0x4, fixed_abs, tag = 'smem constant byte address 0x4 - core index']
  #allocation1 [shape = 'u32[144,128]{1,0:T(1,128)}', space=vmem, size = 0x12000, scoped, tag = 'internal scratch']
  #allocation2 [shape = 'f32[288,8]{1,0:T(8,128)}', space=vmem, size = 0x24000, scoped, tag = 'scratch operand']
  %s0 = inlined_call_operand.vmem [shape: bf16[2,256,8], index: 0, kind: input, shape index: {}]
  %s1 = inlined_call_operand.vmem [shape: bf16[9,8,8], index: 1, kind: input, shape index: {}]
  %s2 = inlined_call_operand.vmem [shape: f32[1,8], index: 2, kind: input, shape index: {}]
  %s3 = inlined_call_operand.vmem [shape: bf16[8,128], index: 3, kind: input, shape index: {}]
  %s4 = inlined_call_operand.vmem [shape: f32[1,128], index: 4, kind: input, shape index: {}]
  %s5 = inlined_call_operand.vmem [shape: f32[2,256,128], index: 5, kind: output, shape index: {}]
  %s6 = sld [smem:[#allocation0]]
  $region53: #{deeplabv3p_decoder_forward.5} parent=0
    _
  %s8 = ssub.s32 1, %s6
  %s9 = scalar_select 0, %s8, %s6
  loop: start=0, step=1, limit=4
  $region2: #{deeplabv3p_decoder_forward.5} parent=0 // loop_pre_header
    _
  $region3: #{deeplabv3p_decoder_forward.5} parent=0 // loop_header
    %s11 = sphi 0, %s15
    %p12 = scmp.ge.s32.totalorder %s11, 4
    %s21 = sphi 0, %s23
    %s24 = sphi 0, %s21
    %s25 = sphi 0, %s24
    %s41 = sphi 0, %s25
    %s45 = sphi 0, %s45
    %s47 = sphi 0, %s45
    %s48 = sphi 0, %s47
    %s62 = sphi 0, %s48
    %s66 = sphi 0, %s66
    %s68 = sphi 0, %s66
    %s69 = sphi 0, %s68
    %s83 = sphi 0, %s69
    %s87 = sphi 0, %s87
    %s89 = sphi 0, %s87
    %s90 = sphi 0, %s89
    %s104 = sphi 0, %s90
    %s108 = sphi 0, %s108
    %s110 = sphi 0, %s108
    %s111 = sphi 0, %s110
    %s125 = sphi 0, %s111
    %s131 = sphi 0, %s133
    %s134 = sphi 0, %s131
    %s135 = sphi 0, %s134
    %s151 = sphi 0, %s135
  $region4: #{deeplabv3p_decoder_forward.5} parent=0 // loop_header_branch
    %14 = sbr.rel (%p12) target = $region8
  $region5: #{deeplabv3p_decoder_forward.5} parent=0 // loop_body
    %s16 = ssub.s32 %s11, 1
    %s17 = ssub.s32 %s11, 2
    %s18 = sadd.s32 %s11, 1
    %s19 = ssub.s32 %s11, %s18
    %p20 = scmp.eq.s32.totalorder %s19, 0
    %s22 = sadd.s32 %s21, 1
    %s23 = scalar_select %p20, %s21, %s22
    %p26 = pneg %p20
    %p27 = scmp.eq.s32.totalorder %s11, 1
    %p28 = por %p26, %p27
    %p29 = scmp.ne.s32.totalorder %s21, %s24
    %p30 = scmp.eq.s32.totalorder %s11, 0
    %p31 = por %p29, %p30
    %p32 = scmp.ne.s32.totalorder %s21, %s24
    %p33 = scmp.eq.s32.totalorder %s16, 1
    %p34 = por %p32, %p33
    %p35 = scmp.ne.s32.totalorder %s24, %s25
    %p36 = scmp.eq.s32.totalorder %s16, 0
    %p37 = por %p35, %p36
    %p38 = scmp.ne.s32.totalorder %s24, %s25
    %p39 = scmp.eq.s32.totalorder %s17, 1
    %p40 = por %p38, %p39
    %p42 = scmp.ne.s32.totalorder %s25, %s41
    %p43 = scmp.eq.s32.totalorder %s17, 0
    %p44 = por %p42, %p43
    %s46 = sadd.s32 %s45, 1
    %p49 = scmp.eq.s32.totalorder %s11, 1
    %p50 = scmp.ne.s32.totalorder %s45, %s47
    %p51 = scmp.eq.s32.totalorder %s11, 0
    %p52 = por %p50, %p51
    %p53 = scmp.ne.s32.totalorder %s45, %s47
    %p54 = scmp.eq.s32.totalorder %s16, 1
    %p55 = por %p53, %p54
    %p56 = scmp.ne.s32.totalorder %s47, %s48
    %p57 = scmp.eq.s32.totalorder %s16, 0
    %p58 = por %p56, %p57
    %p59 = scmp.ne.s32.totalorder %s47, %s48
    %p60 = scmp.eq.s32.totalorder %s17, 1
    %p61 = por %p59, %p60
    %p63 = scmp.ne.s32.totalorder %s48, %s62
    %p64 = scmp.eq.s32.totalorder %s17, 0
    %p65 = por %p63, %p64
    %s67 = sadd.s32 %s66, 1
    %p70 = scmp.eq.s32.totalorder %s11, 1
    %p71 = scmp.ne.s32.totalorder %s66, %s68
    %p72 = scmp.eq.s32.totalorder %s11, 0
    %p73 = por %p71, %p72
    %p74 = scmp.ne.s32.totalorder %s66, %s68
    %p75 = scmp.eq.s32.totalorder %s16, 1
    %p76 = por %p74, %p75
    %p77 = scmp.ne.s32.totalorder %s68, %s69
    %p78 = scmp.eq.s32.totalorder %s16, 0
    %p79 = por %p77, %p78
    %p80 = scmp.ne.s32.totalorder %s68, %s69
    %p81 = scmp.eq.s32.totalorder %s17, 1
    %p82 = por %p80, %p81
    %p84 = scmp.ne.s32.totalorder %s69, %s83
    %p85 = scmp.eq.s32.totalorder %s17, 0
    %p86 = por %p84, %p85
    %s88 = sadd.s32 %s87, 1
    %p91 = scmp.eq.s32.totalorder %s11, 1
    %p92 = scmp.ne.s32.totalorder %s87, %s89
    %p93 = scmp.eq.s32.totalorder %s11, 0
    %p94 = por %p92, %p93
    %p95 = scmp.ne.s32.totalorder %s87, %s89
    %p96 = scmp.eq.s32.totalorder %s16, 1
    %p97 = por %p95, %p96
    %p98 = scmp.ne.s32.totalorder %s89, %s90
    %p99 = scmp.eq.s32.totalorder %s16, 0
    %p100 = por %p98, %p99
    %p101 = scmp.ne.s32.totalorder %s89, %s90
    %p102 = scmp.eq.s32.totalorder %s17, 1
    %p103 = por %p101, %p102
    %p105 = scmp.ne.s32.totalorder %s90, %s104
    %p106 = scmp.eq.s32.totalorder %s17, 0
    %p107 = por %p105, %p106
    %s109 = sadd.s32 %s108, 1
    %p112 = scmp.eq.s32.totalorder %s11, 1
    %p113 = scmp.ne.s32.totalorder %s108, %s110
    %p114 = scmp.eq.s32.totalorder %s11, 0
    %p115 = por %p113, %p114
    %p116 = scmp.ne.s32.totalorder %s108, %s110
    %p117 = scmp.eq.s32.totalorder %s16, 1
    %p118 = por %p116, %p117
    %p119 = scmp.ne.s32.totalorder %s110, %s111
    %p120 = scmp.eq.s32.totalorder %s16, 0
    %p121 = por %p119, %p120
    %p122 = scmp.ne.s32.totalorder %s110, %s111
    %p123 = scmp.eq.s32.totalorder %s17, 1
    %p124 = por %p122, %p123
    %p126 = scmp.ne.s32.totalorder %s111, %s125
    %p127 = scmp.eq.s32.totalorder %s17, 0
    %p128 = por %p126, %p127
    %s129 = ssub.s32 %s11, %s18
    %p130 = scmp.eq.s32.totalorder %s129, 0
    %s132 = sadd.s32 %s131, 1
    %s133 = scalar_select %p130, %s131, %s132
    %p136 = pneg %p130
    %p137 = scmp.eq.s32.totalorder %s11, 1
    %p138 = por %p136, %p137
    %p139 = scmp.ne.s32.totalorder %s131, %s134
    %p140 = scmp.eq.s32.totalorder %s11, 0
    %p141 = por %p139, %p140
    %p142 = scmp.ne.s32.totalorder %s131, %s134
    %p143 = scmp.eq.s32.totalorder %s16, 1
    %p144 = por %p142, %p143
    %p145 = scmp.ne.s32.totalorder %s134, %s135
    %p146 = scmp.eq.s32.totalorder %s16, 0
    %p147 = por %p145, %p146
    %p148 = scmp.ne.s32.totalorder %s134, %s135
    %p149 = scmp.eq.s32.totalorder %s17, 1
    %p150 = por %p148, %p149
    %p152 = scmp.ne.s32.totalorder %s135, %s151
    %p153 = scmp.eq.s32.totalorder %s17, 0
    %p154 = por %p152, %p153
    %p155 = scmp.le.s32.totalorder 1, %s11
    %p156 = scmp.lt.s32.totalorder %s11, 3
    %p157 = pnand %p155, %p156
    %p158 = pneg %p157
    // Predicated region
    $region9: #{deeplabv3p_decoder_forward.5} parent=5 // pred_check
      _
    $region10: #{deeplabv3p_decoder_forward.5} parent=5 // pred_check_branch
      %160 = sbr.rel (%p157) target = $region12
    $region11: #{deeplabv3p_decoder_forward.5} parent=5 // pred_region
      %s161 = ssub.s32 %s11, 1
      // Predicated region
      $region13: #{deeplabv3p_decoder_forward.5} parent=11 // pred_check
        %p162 = pneg %p58
      $region14: #{deeplabv3p_decoder_forward.5} parent=11 // pred_check_branch
        %164 = sbr.rel (%p162) target = $region16
      $region15: #{deeplabv3p_decoder_forward.5} parent=11 // pred_region
        _
      $region16: #{deeplabv3p_decoder_forward.5} parent=11 // pred_fallthru
        _
      // Predicated region
      $region17: #{deeplabv3p_decoder_forward.5} parent=11 // pred_check
        %p165 = pneg %p79
      $region18: #{deeplabv3p_decoder_forward.5} parent=11 // pred_check_branch
        %167 = sbr.rel (%p165) target = $region20
      $region19: #{deeplabv3p_decoder_forward.5} parent=11 // pred_region
        _
      $region20: #{deeplabv3p_decoder_forward.5} parent=11 // pred_fallthru
        _
      // Predicated region
      $region21: #{deeplabv3p_decoder_forward.5} parent=11 // pred_check
        %p168 = pneg %p100
      $region22: #{deeplabv3p_decoder_forward.5} parent=11 // pred_check_branch
        %170 = sbr.rel (%p168) target = $region24
      $region23: #{deeplabv3p_decoder_forward.5} parent=11 // pred_region
        _
      $region24: #{deeplabv3p_decoder_forward.5} parent=11 // pred_fallthru
        _
      // Predicated region
      $region25: #{deeplabv3p_decoder_forward.5} parent=11 // pred_check
        %p171 = pneg %p121
      $region26: #{deeplabv3p_decoder_forward.5} parent=11 // pred_check_branch
        %173 = sbr.rel (%p171) target = $region28
      $region27: #{deeplabv3p_decoder_forward.5} parent=11 // pred_region
        _
      $region28: #{deeplabv3p_decoder_forward.5} parent=11 // pred_fallthru
        _
    $region12: #{deeplabv3p_decoder_forward.5} parent=5 // pred_fallthru
      _
    %p174 = scmp.lt.s32.totalorder %s11, 2
    // Predicated region
    $region29: #{deeplabv3p_decoder_forward.5} parent=5 // pred_check
      %p175 = pneg %p174
    $region30: #{deeplabv3p_decoder_forward.5} parent=5 // pred_check_branch
      %177 = sbr.rel (%p175) target = $region32
    $region31: #{deeplabv3p_decoder_forward.5} parent=5 // pred_region
      // Predicated region
      $region33: #{deeplabv3p_decoder_forward.5} parent=31 // pred_check
        %p178 = pneg %p31
      $region34: #{deeplabv3p_decoder_forward.5} parent=31 // pred_check_branch
        %180 = sbr.rel (%p178) target = $region36
      $region35: #{deeplabv3p_decoder_forward.5} parent=31 // pred_region
        %p181 = scmp.lt.s32.totalorder %s11, 1
        %s182 = scalar_select %p181, %s11, 1
        %s183 = smul.addr %s182, 32
        %s184 = smul.addr %s183, 4
        %s185 = scalar_lea.vmem %s0, %s184
      $region36: #{deeplabv3p_decoder_forward.5} parent=31 // pred_fallthru
        _
    $region32: #{deeplabv3p_decoder_forward.5} parent=5 // pred_fallthru
      _
    %p186 = scmp.le.s32.totalorder 1, %s11
    %p187 = scmp.lt.s32.totalorder %s11, 3
    %p188 = pnand %p186, %p187
    %p189 = pneg %p188
    // Predicated region
    $region37: #{deeplabv3p_decoder_forward.5} parent=5 // pred_check
      _
    $region38: #{deeplabv3p_decoder_forward.5} parent=5 // pred_check_branch
      %191 = sbr.rel (%p188) target = $region40
    $region39: #{deeplabv3p_decoder_forward.5} parent=5 // pred_region
      %s192 = ssub.s32 %s11, 1
      %p193 = scmp.lt.s32.totalorder %s16, 1
      %s194 = scalar_select %p193, %s16, 1
      %s195 = smul.addr %s194, 32
      %s196 = smul.addr %s195, 4
      %s197 = scalar_lea.vmem %s0, %s196
      %p198 = pneg %p37
      %p199 = pneg %p34
      %p200 = pneg %p58
      %p201 = pneg %p55
      %p202 = pneg %p79
      %p203 = pneg %p76
      %p204 = pneg %p100
      %p205 = pneg %p97
      %p206 = pneg %p121
      %p207 = pneg %p118
      %p208 = pneg %p147
      %p209 = pneg %p144
      %p210 = scmp.lt.s32.totalorder %s16, 1
      %s211 = scalar_select %p210, %s16, 1
      %s212 = smul.addr %s211, 32
      %s213 = smul.addr %s212, 8
      %s214 = scalar_lea.vmem %s5, %s213
      %p215 = scmp.lt.s32.totalorder %s16, 1
      %s216 = scalar_select %p215, %s16, 1
      %s217 = smul.addr %s216, 32
      %s218 = smul.addr %s217, 4
      %s219 = scalar_lea.vmem %s0, %s218
      %p220 = scmp.lt.s32.totalorder %s16, 1
      %s221 = scalar_select %p220, %s16, 1
      %s222 = smul.addr %s221, 32
      %s223 = smul.addr %s222, 8
      %s224 = scalar_lea.vmem %s5, %s223
      %v226 = vld [vmem:[%s219] sm:$0xf]
      %v227 = vld [vmem:[%s219 + $0x4] sm:$0xf]
      %v228 = vld [vmem:[%s219 + $0x8] sm:$0xf]
      %v229 = vld [vmem:[%s219 + $0xc] sm:$0xf]
      %v230 = vld [vmem:[%s219 + $0x10] sm:$0xf]
      %v231 = vld [vmem:[%s219 + $0x14] sm:$0xf]
      %v232 = vld [vmem:[%s219 + $0x18] sm:$0xf]
      %v233 = vld [vmem:[%s219 + $0x1c] sm:$0xf]
      %v234 = vld [vmem:[%s219 + $0x20] sm:$0xf]
      %v235 = vld [vmem:[%s219 + $0x24] sm:$0xf]
      %v236 = vld [vmem:[%s219 + $0x28] sm:$0xf]
      %v237 = vld [vmem:[%s219 + $0x2c] sm:$0xf]
      %v238 = vld [vmem:[%s219 + $0x30] sm:$0xf]
      %v239 = vld [vmem:[%s219 + $0x34] sm:$0xf]
      %v240 = vld [vmem:[%s219 + $0x38] sm:$0xf]
      %v241 = vld [vmem:[%s219 + $0x3c] sm:$0xf]
      %v242 = vld [vmem:[%s219 + $0x40] sm:$0xf]
      %v243 = vld [vmem:[%s219 + $0x44] sm:$0xf]
      %v244 = vld [vmem:[%s219 + $0x48] sm:$0xf]
      %v245 = vld [vmem:[%s219 + $0x4c] sm:$0xf]
      %v246 = vld [vmem:[%s219 + $0x50] sm:$0xf]
      %v247 = vld [vmem:[%s219 + $0x54] sm:$0xf]
      %v248 = vld [vmem:[%s219 + $0x58] sm:$0xf]
      %v249 = vld [vmem:[%s219 + $0x5c] sm:$0xf]
      %v250 = vld [vmem:[%s219 + $0x60] sm:$0xf]
      %v251 = vld [vmem:[%s219 + $0x64] sm:$0xf]
      %v252 = vld [vmem:[%s219 + $0x68] sm:$0xf]
      %v253 = vld [vmem:[%s219 + $0x6c] sm:$0xf]
      %v254 = vld [vmem:[%s219 + $0x70] sm:$0xf]
      %v255 = vld [vmem:[%s219 + $0x74] sm:$0xf]
      %v256 = vld [vmem:[%s219 + $0x78] sm:$0xf]
      %v257 = vld [vmem:[%s219 + $0x7c] sm:$0xf]
      %v258 = vlaneseq
      %v259 = vshrl.u32 %v258, 7
      %v260 = vadd.s32 %v259, 8
      %v261 = vadd.s32 %v259, 16
      %v262 = vadd.s32 %v259, 24
      %v263 = vadd.s32 %v259, 32
      %v264 = vadd.s32 %v259, 40
      %v265 = vadd.s32 %v259, 48
      %v266 = vadd.s32 %v259, 56
      %v267 = vadd.s32 %v259, 64
      %v268 = vadd.s32 %v259, 72
      %v269 = vadd.s32 %v259, 80
      %v270 = vadd.s32 %v259, 88
      %v271 = vadd.s32 %v259, 96
      %v272 = vadd.s32 %v259, 104
      %v273 = vadd.s32 %v259, 112
      %v274 = vadd.s32 %v259, 120
      %v275 = vadd.s32 %v259, 128
      %v276 = vadd.s32 %v259, 136
      %v277 = vadd.s32 %v259, 144
      %v278 = vadd.s32 %v259, 152
      %v279 = vadd.s32 %v259, 160
      %v280 = vadd.s32 %v259, 168
      %v281 = vadd.s32 %v259, 176
      %v282 = vadd.s32 %v259, 184
      %v283 = vadd.s32 %v259, 192
      %v284 = vadd.s32 %v259, 200
      %v285 = vadd.s32 %v259, 208
      %v286 = vadd.s32 %v259, 216
      %v287 = vadd.s32 %v259, 224
      %v288 = vadd.s32 %v259, 232
      %v289 = vadd.s32 %v259, 240
      %v290 = vadd.s32 %v259, 248
      %vm291 = vcmp.lt.s32.totalorder %v259, 0
      %v292 = vsub.s32 0, %v259
      %v293 = vsel %vm291, %v292, %v259
      %v294 = vshrl.u32 %v293, 4
      %v295 = vand.u32 %v293, 15
      %v296 = vsub.s32 0, %v295
      %v297 = vsel %vm291, %v296, %v295
      %vm298 = vcmp.lt.s32.totalorder %v260, 0
      %v299 = vsub.s32 0, %v260
      %v300 = vsel %vm298, %v299, %v260
      %v301 = vshrl.u32 %v300, 4
      %v302 = vand.u32 %v300, 15
      %v303 = vsub.s32 0, %v302
      %v304 = vsel %vm298, %v303, %v302
      %vm305 = vcmp.lt.s32.totalorder %v261, 0
      %v306 = vsub.s32 0, %v261
      %v307 = vsel %vm305, %v306, %v261
      %v308 = vshrl.u32 %v307, 4
      %v309 = vand.u32 %v307, 15
      %v310 = vsub.s32 0, %v309
      %v311 = vsel %vm305, %v310, %v309
      %vm312 = vcmp.lt.s32.totalorder %v262, 0
      %v313 = vsub.s32 0, %v262
      %v314 = vsel %vm312, %v313, %v262
      %v315 = vshrl.u32 %v314, 4
      %v316 = vand.u32 %v314, 15
      %v317 = vsub.s32 0, %v316
      %v318 = vsel %vm312, %v317, %v316
      %vm319 = vcmp.lt.s32.totalorder %v263, 0
      %v320 = vsub.s32 0, %v263
      %v321 = vsel %vm319, %v320, %v263
      %v322 = vshrl.u32 %v321, 4
      %v323 = vand.u32 %v321, 15
      %v324 = vsub.s32 0, %v323
      %v325 = vsel %vm319, %v324, %v323
      %vm326 = vcmp.lt.s32.totalorder %v264, 0
      %v327 = vsub.s32 0, %v264
      %v328 = vsel %vm326, %v327, %v264
      %v329 = vshrl.u32 %v328, 4
      %v330 = vand.u32 %v328, 15
      %v331 = vsub.s32 0, %v330
      %v332 = vsel %vm326, %v331, %v330
      %vm333 = vcmp.lt.s32.totalorder %v265, 0
      %v334 = vsub.s32 0, %v265
      %v335 = vsel %vm333, %v334, %v265
      %v336 = vshrl.u32 %v335, 4
      %v337 = vand.u32 %v335, 15
      %v338 = vsub.s32 0, %v337
      %v339 = vsel %vm333, %v338, %v337
      %vm340 = vcmp.lt.s32.totalorder %v266, 0
      %v341 = vsub.s32 0, %v266
      %v342 = vsel %vm340, %v341, %v266
      %v343 = vshrl.u32 %v342, 4
      %v344 = vand.u32 %v342, 15
      %v345 = vsub.s32 0, %v344
      %v346 = vsel %vm340, %v345, %v344
      %vm347 = vcmp.lt.s32.totalorder %v267, 0
      %v348 = vsub.s32 0, %v267
      %v349 = vsel %vm347, %v348, %v267
      %v350 = vshrl.u32 %v349, 4
      %v351 = vand.u32 %v349, 15
      %v352 = vsub.s32 0, %v351
      %v353 = vsel %vm347, %v352, %v351
      %vm354 = vcmp.lt.s32.totalorder %v268, 0
      %v355 = vsub.s32 0, %v268
      %v356 = vsel %vm354, %v355, %v268
      %v357 = vshrl.u32 %v356, 4
      %v358 = vand.u32 %v356, 15
      %v359 = vsub.s32 0, %v358
      %v360 = vsel %vm354, %v359, %v358
      %vm361 = vcmp.lt.s32.totalorder %v269, 0
      %v362 = vsub.s32 0, %v269
      %v363 = vsel %vm361, %v362, %v269
      %v364 = vshrl.u32 %v363, 4
      %v365 = vand.u32 %v363, 15
      %v366 = vsub.s32 0, %v365
      %v367 = vsel %vm361, %v366, %v365
      %vm368 = vcmp.lt.s32.totalorder %v270, 0
      %v369 = vsub.s32 0, %v270
      %v370 = vsel %vm368, %v369, %v270
      %v371 = vshrl.u32 %v370, 4
      %v372 = vand.u32 %v370, 15
      %v373 = vsub.s32 0, %v372
      %v374 = vsel %vm368, %v373, %v372
      %vm375 = vcmp.lt.s32.totalorder %v271, 0
      %v376 = vsub.s32 0, %v271
      %v377 = vsel %vm375, %v376, %v271
      %v378 = vshrl.u32 %v377, 4
      %v379 = vand.u32 %v377, 15
      %v380 = vsub.s32 0, %v379
      %v381 = vsel %vm375, %v380, %v379
      %vm382 = vcmp.lt.s32.totalorder %v272, 0
      %v383 = vsub.s32 0, %v272
      %v384 = vsel %vm382, %v383, %v272
      %v385 = vshrl.u32 %v384, 4
      %v386 = vand.u32 %v384, 15
      %v387 = vsub.s32 0, %v386
      %v388 = vsel %vm382, %v387, %v386
      %vm389 = vcmp.lt.s32.totalorder %v273, 0
      %v390 = vsub.s32 0, %v273
      %v391 = vsel %vm389, %v390, %v273
      %v392 = vshrl.u32 %v391, 4
      %v393 = vand.u32 %v391, 15
      %v394 = vsub.s32 0, %v393
      %v395 = vsel %vm389, %v394, %v393
      %vm396 = vcmp.lt.s32.totalorder %v274, 0
      %v397 = vsub.s32 0, %v274
      %v398 = vsel %vm396, %v397, %v274
      %v399 = vshrl.u32 %v398, 4
      %v400 = vand.u32 %v398, 15
      %v401 = vsub.s32 0, %v400
      %v402 = vsel %vm396, %v401, %v400
      %vm403 = vcmp.lt.s32.totalorder %v275, 0
      %v404 = vsub.s32 0, %v275
      %v405 = vsel %vm403, %v404, %v275
      %v406 = vshrl.u32 %v405, 4
      %v407 = vand.u32 %v405, 15
      %v408 = vsub.s32 0, %v407
      %v409 = vsel %vm403, %v408, %v407
      %vm410 = vcmp.lt.s32.totalorder %v276, 0
      %v411 = vsub.s32 0, %v276
      %v412 = vsel %vm410, %v411, %v276
      %v413 = vshrl.u32 %v412, 4
      %v414 = vand.u32 %v412, 15
      %v415 = vsub.s32 0, %v414
      %v416 = vsel %vm410, %v415, %v414
      %vm417 = vcmp.lt.s32.totalorder %v277, 0
      %v418 = vsub.s32 0, %v277
      %v419 = vsel %vm417, %v418, %v277
      %v420 = vshrl.u32 %v419, 4
      %v421 = vand.u32 %v419, 15
      %v422 = vsub.s32 0, %v421
      %v423 = vsel %vm417, %v422, %v421
      %vm424 = vcmp.lt.s32.totalorder %v278, 0
      %v425 = vsub.s32 0, %v278
      %v426 = vsel %vm424, %v425, %v278
      %v427 = vshrl.u32 %v426, 4
      %v428 = vand.u32 %v426, 15
      %v429 = vsub.s32 0, %v428
      %v430 = vsel %vm424, %v429, %v428
      %vm431 = vcmp.lt.s32.totalorder %v279, 0
      %v432 = vsub.s32 0, %v279
      %v433 = vsel %vm431, %v432, %v279
      %v434 = vshrl.u32 %v433, 4
      %v435 = vand.u32 %v433, 15
      %v436 = vsub.s32 0, %v435
      %v437 = vsel %vm431, %v436, %v435
      %vm438 = vcmp.lt.s32.totalorder %v280, 0
      %v439 = vsub.s32 0, %v280
      %v440 = vsel %vm438, %v439, %v280
      %v441 = vshrl.u32 %v440, 4
      %v442 = vand.u32 %v440, 15
      %v443 = vsub.s32 0, %v442
      %v444 = vsel %vm438, %v443, %v442
      %vm445 = vcmp.lt.s32.totalorder %v281, 0
      %v446 = vsub.s32 0, %v281
      %v447 = vsel %vm445, %v446, %v281
      %v448 = vshrl.u32 %v447, 4
      %v449 = vand.u32 %v447, 15
      %v450 = vsub.s32 0, %v449
      %v451 = vsel %vm445, %v450, %v449
      %vm452 = vcmp.lt.s32.totalorder %v282, 0
      %v453 = vsub.s32 0, %v282
      %v454 = vsel %vm452, %v453, %v282
      %v455 = vshrl.u32 %v454, 4
      %v456 = vand.u32 %v454, 15
      %v457 = vsub.s32 0, %v456
      %v458 = vsel %vm452, %v457, %v456
      %vm459 = vcmp.lt.s32.totalorder %v283, 0
      %v460 = vsub.s32 0, %v283
      %v461 = vsel %vm459, %v460, %v283
      %v462 = vshrl.u32 %v461, 4
      %v463 = vand.u32 %v461, 15
      %v464 = vsub.s32 0, %v463
      %v465 = vsel %vm459, %v464, %v463
      %vm466 = vcmp.lt.s32.totalorder %v284, 0
      %v467 = vsub.s32 0, %v284
      %v468 = vsel %vm466, %v467, %v284
      %v469 = vshrl.u32 %v468, 4
      %v470 = vand.u32 %v468, 15
      %v471 = vsub.s32 0, %v470
      %v472 = vsel %vm466, %v471, %v470
      %vm473 = vcmp.lt.s32.totalorder %v285, 0
      %v474 = vsub.s32 0, %v285
      %v475 = vsel %vm473, %v474, %v285
      %v476 = vshrl.u32 %v475, 4
      %v477 = vand.u32 %v475, 15
      %v478 = vsub.s32 0, %v477
      %v479 = vsel %vm473, %v478, %v477
      %vm480 = vcmp.lt.s32.totalorder %v286, 0
      %v481 = vsub.s32 0, %v286
      %v482 = vsel %vm480, %v481, %v286
      %v483 = vshrl.u32 %v482, 4
      %v484 = vand.u32 %v482, 15
      %v485 = vsub.s32 0, %v484
      %v486 = vsel %vm480, %v485, %v484
      %vm487 = vcmp.lt.s32.totalorder %v287, 0
      %v488 = vsub.s32 0, %v287
      %v489 = vsel %vm487, %v488, %v287
      %v490 = vshrl.u32 %v489, 4
      %v491 = vand.u32 %v489, 15
      %v492 = vsub.s32 0, %v491
      %v493 = vsel %vm487, %v492, %v491
      %vm494 = vcmp.lt.s32.totalorder %v288, 0
      %v495 = vsub.s32 0, %v288
      %v496 = vsel %vm494, %v495, %v288
      %v497 = vshrl.u32 %v496, 4
      %v498 = vand.u32 %v496, 15
      %v499 = vsub.s32 0, %v498
      %v500 = vsel %vm494, %v499, %v498
      %vm501 = vcmp.lt.s32.totalorder %v289, 0
      %v502 = vsub.s32 0, %v289
      %v503 = vsel %vm501, %v502, %v289
      %v504 = vshrl.u32 %v503, 4
      %v505 = vand.u32 %v503, 15
      %v506 = vsub.s32 0, %v505
      %v507 = vsel %vm501, %v506, %v505
      %vm508 = vcmp.lt.s32.totalorder %v290, 0
      %v509 = vsub.s32 0, %v290
      %v510 = vsel %vm508, %v509, %v290
      %v511 = vshrl.u32 %v510, 4
      %v512 = vand.u32 %v510, 15
      %v513 = vsub.s32 0, %v512
      %v514 = vsel %vm508, %v513, %v512
      %vm515 = vcmp.ne.s32.totalorder %v297, 0
      %vm516 = vcmp.ne.s32.totalorder %v304, 0
      %vm517 = vcmp.ne.s32.totalorder %v311, 0
      %vm518 = vcmp.ne.s32.totalorder %v318, 0
      %vm519 = vcmp.ne.s32.totalorder %v325, 0
      %vm520 = vcmp.ne.s32.totalorder %v332, 0
      %vm521 = vcmp.ne.s32.totalorder %v339, 0
      %vm522 = vcmp.ne.s32.totalorder %v346, 0
      %vm523 = vcmp.ne.s32.totalorder %v353, 0
      %vm524 = vcmp.ne.s32.totalorder %v360, 0
      %vm525 = vcmp.ne.s32.totalorder %v367, 0
      %vm526 = vcmp.ne.s32.totalorder %v374, 0
      %vm527 = vcmp.ne.s32.totalorder %v381, 0
      %vm528 = vcmp.ne.s32.totalorder %v388, 0
      %vm529 = vcmp.ne.s32.totalorder %v395, 0
      %vm530 = vcmp.ne.s32.totalorder %v402, 0
      %vm531 = vcmp.ne.s32.totalorder %v409, 0
      %vm532 = vcmp.ne.s32.totalorder %v416, 0
      %vm533 = vcmp.ne.s32.totalorder %v423, 0
      %vm534 = vcmp.ne.s32.totalorder %v430, 0
      %vm535 = vcmp.ne.s32.totalorder %v437, 0
      %vm536 = vcmp.ne.s32.totalorder %v444, 0
      %vm537 = vcmp.ne.s32.totalorder %v451, 0
      %vm538 = vcmp.ne.s32.totalorder %v458, 0
      %vm539 = vcmp.ne.s32.totalorder %v465, 0
      %vm540 = vcmp.ne.s32.totalorder %v472, 0
      %vm541 = vcmp.ne.s32.totalorder %v479, 0
      %vm542 = vcmp.ne.s32.totalorder %v486, 0
      %vm543 = vcmp.ne.s32.totalorder %v493, 0
      %vm544 = vcmp.ne.s32.totalorder %v500, 0
      %vm545 = vcmp.ne.s32.totalorder %v507, 0
      %vm546 = vcmp.ne.s32.totalorder %v514, 0
      %vm547 = vcmp.lt.s32.totalorder %v297, 0
      %vm548 = vcmp.lt.s32.totalorder %v304, 0
      %vm549 = vcmp.lt.s32.totalorder %v311, 0
      %vm550 = vcmp.lt.s32.totalorder %v318, 0
      %vm551 = vcmp.lt.s32.totalorder %v325, 0
      %vm552 = vcmp.lt.s32.totalorder %v332, 0
      %vm553 = vcmp.lt.s32.totalorder %v339, 0
      %vm554 = vcmp.lt.s32.totalorder %v346, 0
      %vm555 = vcmp.lt.s32.totalorder %v353, 0
      %vm556 = vcmp.lt.s32.totalorder %v360, 0
      %vm557 = vcmp.lt.s32.totalorder %v367, 0
      %vm558 = vcmp.lt.s32.totalorder %v374, 0
      %vm559 = vcmp.lt.s32.totalorder %v381, 0
      %vm560 = vcmp.lt.s32.totalorder %v388, 0
      %vm561 = vcmp.lt.s32.totalorder %v395, 0
      %vm562 = vcmp.lt.s32.totalorder %v402, 0
      %vm563 = vcmp.lt.s32.totalorder %v409, 0
      %vm564 = vcmp.lt.s32.totalorder %v416, 0
      %vm565 = vcmp.lt.s32.totalorder %v423, 0
      %vm566 = vcmp.lt.s32.totalorder %v430, 0
      %vm567 = vcmp.lt.s32.totalorder %v437, 0
      %vm568 = vcmp.lt.s32.totalorder %v444, 0
      %vm569 = vcmp.lt.s32.totalorder %v451, 0
      %vm570 = vcmp.lt.s32.totalorder %v458, 0
      %vm571 = vcmp.lt.s32.totalorder %v465, 0
      %vm572 = vcmp.lt.s32.totalorder %v472, 0
      %vm573 = vcmp.lt.s32.totalorder %v479, 0
      %vm574 = vcmp.lt.s32.totalorder %v486, 0
      %vm575 = vcmp.lt.s32.totalorder %v493, 0
      %vm576 = vcmp.lt.s32.totalorder %v500, 0
      %vm577 = vcmp.lt.s32.totalorder %v507, 0
      %vm578 = vcmp.lt.s32.totalorder %v514, 0
      %vm579 = vmand %vm547, %vm515
      %vm580 = vmand %vm548, %vm516
      %vm581 = vmand %vm549, %vm517
      %vm582 = vmand %vm550, %vm518
      %vm583 = vmand %vm551, %vm519
      %vm584 = vmand %vm552, %vm520
      %vm585 = vmand %vm553, %vm521
      %vm586 = vmand %vm554, %vm522
      %vm587 = vmand %vm555, %vm523
      %vm588 = vmand %vm556, %vm524
      %vm589 = vmand %vm557, %vm525
      %vm590 = vmand %vm558, %vm526
      %vm591 = vmand %vm559, %vm527
      %vm592 = vmand %vm560, %vm528
      %vm593 = vmand %vm561, %vm529
      %vm594 = vmand %vm562, %vm530
      %vm595 = vmand %vm563, %vm531
      %vm596 = vmand %vm564, %vm532
      %vm597 = vmand %vm565, %vm533
      %vm598 = vmand %vm566, %vm534
      %vm599 = vmand %vm567, %vm535
      %vm600 = vmand %vm568, %vm536
      %vm601 = vmand %vm569, %vm537
      %vm602 = vmand %vm570, %vm538
      %vm603 = vmand %vm571, %vm539
      %vm604 = vmand %vm572, %vm540
      %vm605 = vmand %vm573, %vm541
      %vm606 = vmand %vm574, %vm542
      %vm607 = vmand %vm575, %vm543
      %vm608 = vmand %vm576, %vm544
      %vm609 = vmand %vm577, %vm545
      %vm610 = vmand %vm578, %vm546
      %v611 = vadd.s32 %v297, 16
      %v612 = vadd.s32 %v304, 16
      %v613 = vadd.s32 %v311, 16
      %v614 = vadd.s32 %v318, 16
      %v615 = vadd.s32 %v325, 16
      %v616 = vadd.s32 %v332, 16
      %v617 = vadd.s32 %v339, 16
      %v618 = vadd.s32 %v346, 16
      %v619 = vadd.s32 %v353, 16
      %v620 = vadd.s32 %v360, 16
      %v621 = vadd.s32 %v367, 16
      %v622 = vadd.s32 %v374, 16
      %v623 = vadd.s32 %v381, 16
      %v624 = vadd.s32 %v388, 16
      %v625 = vadd.s32 %v395, 16
      %v626 = vadd.s32 %v402, 16
      %v627 = vadd.s32 %v409, 16
      %v628 = vadd.s32 %v416, 16
      %v629 = vadd.s32 %v423, 16
      %v630 = vadd.s32 %v430, 16
      %v631 = vadd.s32 %v437, 16
      %v632 = vadd.s32 %v444, 16
      %v633 = vadd.s32 %v451, 16
      %v634 = vadd.s32 %v458, 16
      %v635 = vadd.s32 %v465, 16
      %v636 = vadd.s32 %v472, 16
      %v637 = vadd.s32 %v479, 16
      %v638 = vadd.s32 %v486, 16
      %v639 = vadd.s32 %v493, 16
      %v640 = vadd.s32 %v500, 16
      %v641 = vadd.s32 %v507, 16
      %v642 = vadd.s32 %v514, 16
      %v643 = vsel %vm579, %v611, %v297
      %v644 = vsel %vm580, %v612, %v304
      %v645 = vsel %vm581, %v613, %v311
      %v646 = vsel %vm582, %v614, %v318
      %v647 = vsel %vm583, %v615, %v325
      %v648 = vsel %vm584, %v616, %v332
      %v649 = vsel %vm585, %v617, %v339
      %v650 = vsel %vm586, %v618, %v346
      %v651 = vsel %vm587, %v619, %v353
      %v652 = vsel %vm588, %v620, %v360
      %v653 = vsel %vm589, %v621, %v367
      %v654 = vsel %vm590, %v622, %v374
      %v655 = vsel %vm591, %v623, %v381
      %v656 = vsel %vm592, %v624, %v388
      %v657 = vsel %vm593, %v625, %v395
      %v658 = vsel %vm594, %v626, %v402
      %v659 = vsel %vm595, %v627, %v409
      %v660 = vsel %vm596, %v628, %v416
      %v661 = vsel %vm597, %v629, %v423
      %v662 = vsel %vm598, %v630, %v430
      %v663 = vsel %vm599, %v631, %v437
      %v664 = vsel %vm600, %v632, %v444
      %v665 = vsel %vm601, %v633, %v451
      %v666 = vsel %vm602, %v634, %v458
      %v667 = vsel %vm603, %v635, %v465
      %v668 = vsel %vm604, %v636, %v472
      %v669 = vsel %vm605, %v637, %v479
      %v670 = vsel %vm606, %v638, %v486
      %v671 = vsel %vm607, %v639, %v493
      %v672 = vsel %vm608, %v640, %v500
      %v673 = vsel %vm609, %v641, %v507
      %v674 = vsel %vm610, %v642, %v514
      %vm675 = vcmp.ne.s32.totalorder %v643, 15
      %vm676 = vcmp.ne.s32.totalorder %v644, 15
      %vm677 = vcmp.ne.s32.totalorder %v645, 15
      %vm678 = vcmp.ne.s32.totalorder %v646, 15
      %vm679 = vcmp.ne.s32.totalorder %v647, 15
      %vm680 = vcmp.ne.s32.totalorder %v648, 15
      %vm681 = vcmp.ne.s32.totalorder %v649, 15
      %vm682 = vcmp.ne.s32.totalorder %v650, 15
      %vm683 = vcmp.ne.s32.totalorder %v651, 15
      %vm684 = vcmp.ne.s32.totalorder %v652, 15
      %vm685 = vcmp.ne.s32.totalorder %v653, 15
      %vm686 = vcmp.ne.s32.totalorder %v654, 15
      %vm687 = vcmp.ne.s32.totalorder %v655, 15
      %vm688 = vcmp.ne.s32.totalorder %v656, 15
      %vm689 = vcmp.ne.s32.totalorder %v657, 15
      %vm690 = vcmp.ne.s32.totalorder %v658, 15
      %vm691 = vcmp.ne.s32.totalorder %v659, 15
      %vm692 = vcmp.ne.s32.totalorder %v660, 15
      %vm693 = vcmp.ne.s32.totalorder %v661, 15
      %vm694 = vcmp.ne.s32.totalorder %v662, 15
      %vm695 = vcmp.ne.s32.totalorder %v663, 15
      %vm696 = vcmp.ne.s32.totalorder %v664, 15
      %vm697 = vcmp.ne.s32.totalorder %v665, 15
      %vm698 = vcmp.ne.s32.totalorder %v666, 15
      %vm699 = vcmp.ne.s32.totalorder %v667, 15
      %vm700 = vcmp.ne.s32.totalorder %v668, 15
      %vm701 = vcmp.ne.s32.totalorder %v669, 15
      %vm702 = vcmp.ne.s32.totalorder %v670, 15
      %vm703 = vcmp.ne.s32.totalorder %v671, 15
      %vm704 = vcmp.ne.s32.totalorder %v672, 15
      %vm705 = vcmp.ne.s32.totalorder %v673, 15
      %vm706 = vcmp.ne.s32.totalorder %v674, 15
      %v707 = vsel %vm675, 1, 0
      %v708 = vsel %vm676, 1, 0
      %v709 = vsel %vm677, 1, 0
      %v710 = vsel %vm678, 1, 0
      %v711 = vsel %vm679, 1, 0
      %v712 = vsel %vm680, 1, 0
      %v713 = vsel %vm681, 1, 0
      %v714 = vsel %vm682, 1, 0
      %v715 = vsel %vm683, 1, 0
      %v716 = vsel %vm684, 1, 0
      %v717 = vsel %vm685, 1, 0
      %v718 = vsel %vm686, 1, 0
      %v719 = vsel %vm687, 1, 0
      %v720 = vsel %vm688, 1, 0
      %v721 = vsel %vm689, 1, 0
      %v722 = vsel %vm690, 1, 0
      %v723 = vsel %vm691, 1, 0
      %v724 = vsel %vm692, 1, 0
      %v725 = vsel %vm693, 1, 0
      %v726 = vsel %vm694, 1, 0
      %v727 = vsel %vm695, 1, 0
      %v728 = vsel %vm696, 1, 0
      %v729 = vsel %vm697, 1, 0
      %v730 = vsel %vm698, 1, 0
      %v731 = vsel %vm699, 1, 0
      %v732 = vsel %vm700, 1, 0
      %v733 = vsel %vm701, 1, 0
      %v734 = vsel %vm702, 1, 0
      %v735 = vsel %vm703, 1, 0
      %v736 = vsel %vm704, 1, 0
      %v737 = vsel %vm705, 1, 0
      %v738 = vsel %vm706, 1, 0
      %v739 = vcvt.s32.f32 %v707
      %v740 = vcvt.s32.f32 %v708
      %v741 = vcvt.s32.f32 %v709
      %v742 = vcvt.s32.f32 %v710
      %v743 = vcvt.s32.f32 %v711
      %v744 = vcvt.s32.f32 %v712
      %v745 = vcvt.s32.f32 %v713
      %v746 = vcvt.s32.f32 %v714
      %v747 = vcvt.s32.f32 %v715
      %v748 = vcvt.s32.f32 %v716
      %v749 = vcvt.s32.f32 %v717
      %v750 = vcvt.s32.f32 %v718
      %v751 = vcvt.s32.f32 %v719
      %v752 = vcvt.s32.f32 %v720
      %v753 = vcvt.s32.f32 %v721
      %v754 = vcvt.s32.f32 %v722
      %v755 = vcvt.s32.f32 %v723
      %v756 = vcvt.s32.f32 %v724
      %v757 = vcvt.s32.f32 %v725
      %v758 = vcvt.s32.f32 %v726
      %v759 = vcvt.s32.f32 %v727
      %v760 = vcvt.s32.f32 %v728
      %v761 = vcvt.s32.f32 %v729
      %v762 = vcvt.s32.f32 %v730
      %v763 = vcvt.s32.f32 %v731
      %v764 = vcvt.s32.f32 %v732
      %v765 = vcvt.s32.f32 %v733
      %v766 = vcvt.s32.f32 %v734
      %v767 = vcvt.s32.f32 %v735
      %v768 = vcvt.s32.f32 %v736
      %v769 = vcvt.s32.f32 %v737
      %v770 = vcvt.s32.f32 %v738
      %vm771 = vcmp.ne.s32.totalorder %v643, 0
      %vm772 = vcmp.ne.s32.totalorder %v644, 0
      %vm773 = vcmp.ne.s32.totalorder %v645, 0
      %vm774 = vcmp.ne.s32.totalorder %v646, 0
      %vm775 = vcmp.ne.s32.totalorder %v647, 0
      %vm776 = vcmp.ne.s32.totalorder %v648, 0
      %vm777 = vcmp.ne.s32.totalorder %v649, 0
      %vm778 = vcmp.ne.s32.totalorder %v650, 0
      %vm779 = vcmp.ne.s32.totalorder %v651, 0
      %vm780 = vcmp.ne.s32.totalorder %v652, 0
      %vm781 = vcmp.ne.s32.totalorder %v653, 0
      %vm782 = vcmp.ne.s32.totalorder %v654, 0
      %vm783 = vcmp.ne.s32.totalorder %v655, 0
      %vm784 = vcmp.ne.s32.totalorder %v656, 0
      %vm785 = vcmp.ne.s32.totalorder %v657, 0
      %vm786 = vcmp.ne.s32.totalorder %v658, 0
      %vm787 = vcmp.ne.s32.totalorder %v659, 0
      %vm788 = vcmp.ne.s32.totalorder %v660, 0
      %vm789 = vcmp.ne.s32.totalorder %v661, 0
      %vm790 = vcmp.ne.s32.totalorder %v662, 0
      %vm791 = vcmp.ne.s32.totalorder %v663, 0
      %vm792 = vcmp.ne.s32.totalorder %v664, 0
      %vm793 = vcmp.ne.s32.totalorder %v665, 0
      %vm794 = vcmp.ne.s32.totalorder %v666, 0
      %vm795 = vcmp.ne.s32.totalorder %v667, 0
      %vm796 = vcmp.ne.s32.totalorder %v668, 0
      %vm797 = vcmp.ne.s32.totalorder %v669, 0
      %vm798 = vcmp.ne.s32.totalorder %v670, 0
      %vm799 = vcmp.ne.s32.totalorder %v671, 0
      %vm800 = vcmp.ne.s32.totalorder %v672, 0
      %vm801 = vcmp.ne.s32.totalorder %v673, 0
      %vm802 = vcmp.ne.s32.totalorder %v674, 0
      %v803 = vsel %vm771, 1, 0
      %v804 = vsel %vm772, 1, 0
      %v805 = vsel %vm773, 1, 0
      %v806 = vsel %vm774, 1, 0
      %v807 = vsel %vm775, 1, 0
      %v808 = vsel %vm776, 1, 0
      %v809 = vsel %vm777, 1, 0
      %v810 = vsel %vm778, 1, 0
      %v811 = vsel %vm779, 1, 0
      %v812 = vsel %vm780, 1, 0
      %v813 = vsel %vm781, 1, 0
      %v814 = vsel %vm782, 1, 0
      %v815 = vsel %vm783, 1, 0
      %v816 = vsel %vm784, 1, 0
      %v817 = vsel %vm785, 1, 0
      %v818 = vsel %vm786, 1, 0
      %v819 = vsel %vm787, 1, 0
      %v820 = vsel %vm788, 1, 0
      %v821 = vsel %vm789, 1, 0
      %v822 = vsel %vm790, 1, 0
      %v823 = vsel %vm791, 1, 0
      %v824 = vsel %vm792, 1, 0
      %v825 = vsel %vm793, 1, 0
      %v826 = vsel %vm794, 1, 0
      %v827 = vsel %vm795, 1, 0
      %v828 = vsel %vm796, 1, 0
      %v829 = vsel %vm797, 1, 0
      %v830 = vsel %vm798, 1, 0
      %v831 = vsel %vm799, 1, 0
      %v832 = vsel %vm800, 1, 0
      %v833 = vsel %vm801, 1, 0
      %v834 = vsel %vm802, 1, 0
      %v835 = vcvt.s32.f32 %v803
      %v836 = vcvt.s32.f32 %v804
      %v837 = vcvt.s32.f32 %v805
      %v838 = vcvt.s32.f32 %v806
      %v839 = vcvt.s32.f32 %v807
      %v840 = vcvt.s32.f32 %v808
      %v841 = vcvt.s32.f32 %v809
      %v842 = vcvt.s32.f32 %v810
      %v843 = vcvt.s32.f32 %v811
      %v844 = vcvt.s32.f32 %v812
      %v845 = vcvt.s32.f32 %v813
      %v846 = vcvt.s32.f32 %v814
      %v847 = vcvt.s32.f32 %v815
      %v848 = vcvt.s32.f32 %v816
      %v849 = vcvt.s32.f32 %v817
      %v850 = vcvt.s32.f32 %v818
      %v851 = vcvt.s32.f32 %v819
      %v852 = vcvt.s32.f32 %v820
      %v853 = vcvt.s32.f32 %v821
      %v854 = vcvt.s32.f32 %v822
      %v855 = vcvt.s32.f32 %v823
      %v856 = vcvt.s32.f32 %v824
      %v857 = vcvt.s32.f32 %v825
      %v858 = vcvt.s32.f32 %v826
      %v859 = vcvt.s32.f32 %v827
      %v860 = vcvt.s32.f32 %v828
      %v861 = vcvt.s32.f32 %v829
      %v862 = vcvt.s32.f32 %v830
      %v863 = vcvt.s32.f32 %v831
      %v864 = vcvt.s32.f32 %v832
      %v865 = vcvt.s32.f32 %v833
      %v866 = vcvt.s32.f32 %v834
      %s867 = scalar_lea.vmem %s1, 12
      %v868 = vld [vmem:[%s867] sm:$0xf]
      %v901 = vunpack.c.l.b16 %v226
      %v902 = vunpack.c.l.b16 %v227
      %v903 = vunpack.c.l.b16 %v228
      %v904 = vunpack.c.l.b16 %v229
      %v905 = vunpack.c.l.b16 %v230
      %v906 = vunpack.c.l.b16 %v231
      %v907 = vunpack.c.l.b16 %v232
      %v908 = vunpack.c.l.b16 %v233
      %v909 = vunpack.c.l.b16 %v234
      %v910 = vunpack.c.l.b16 %v235
      %v911 = vunpack.c.l.b16 %v236
      %v912 = vunpack.c.l.b16 %v237
      %v913 = vunpack.c.l.b16 %v238
      %v914 = vunpack.c.l.b16 %v239
      %v915 = vunpack.c.l.b16 %v240
      %v916 = vunpack.c.l.b16 %v241
      %v917 = vunpack.c.l.b16 %v242
      %v918 = vunpack.c.l.b16 %v243
      %v919 = vunpack.c.l.b16 %v244
      %v920 = vunpack.c.l.b16 %v245
      %v921 = vunpack.c.l.b16 %v246
      %v922 = vunpack.c.l.b16 %v247
      %v923 = vunpack.c.l.b16 %v248
      %v924 = vunpack.c.l.b16 %v249
      %v925 = vunpack.c.l.b16 %v250
      %v926 = vunpack.c.l.b16 %v251
      %v927 = vunpack.c.l.b16 %v252
      %v928 = vunpack.c.l.b16 %v253
      %v929 = vunpack.c.l.b16 %v254
      %v930 = vunpack.c.l.b16 %v255
      %v931 = vunpack.c.l.b16 %v256
      %v932 = vunpack.c.l.b16 %v257
      %v933 = vpack.c.b16 %v902, %v901
      %v934 = vpack.c.b16 %v904, %v903
      %v935 = vpack.c.b16 %v906, %v905
      %v936 = vpack.c.b16 %v908, %v907
      %v937 = vpack.c.b16 %v910, %v909
      %v938 = vpack.c.b16 %v912, %v911
      %v939 = vpack.c.b16 %v914, %v913
      %v940 = vpack.c.b16 %v916, %v915
      %v941 = vpack.c.b16 %v918, %v917
      %v942 = vpack.c.b16 %v920, %v919
      %v943 = vpack.c.b16 %v922, %v921
      %v944 = vpack.c.b16 %v924, %v923
      %v945 = vpack.c.b16 %v926, %v925
      %v946 = vpack.c.b16 %v928, %v927
      %v947 = vpack.c.b16 %v930, %v929
      %v948 = vpack.c.b16 %v932, %v931
      %vm949 = vcmask 64512
      %v951 = vsel %vm949, %v933, 0
      %v954 = vsel %vm949, %v934, 0
      %v957 = vsel %vm949, %v935, 0
      %v960 = vsel %vm949, %v936, 0
      %v963 = vsel %vm949, %v937, 0
      %v966 = vsel %vm949, %v938, 0
      %v969 = vsel %vm949, %v939, 0
      %v972 = vsel %vm949, %v940, 0
      %v975 = vsel %vm949, %v941, 0
      %v978 = vsel %vm949, %v942, 0
      %v981 = vsel %vm949, %v943, 0
      %v984 = vsel %vm949, %v944, 0
      %v987 = vsel %vm949, %v945, 0
      %v990 = vsel %vm949, %v946, 0
      %v993 = vsel %vm949, %v947, 0
      %v996 = vsel %vm949, %v948, 0
      %vm998 = vcmask 1043456
      %v1000 = vsel %vm998, %v868, 0
      %1002 = vmatprep.subr.bf16.mxu0 0
      %1003 = vmatpush1.bf16.msra.mxu0 %v1000
      %1004 = vmatprep.subr.bf16.mxu0 0
      %1005 = vmatpush1.bf16.msra.mxu0 0
      %1006 = vmatprep.subr.bf16.mxu0 0
      %1007 = vmatpush1.bf16.msra.mxu0 0
      %1008 = vmatprep.subr.bf16.mxu0 0
      %1009 = vmatpush1.bf16.msra.mxu0 0
      %1010 = vmatprep.subr.bf16.mxu0 0
      %1011 = vmatpush1.bf16.msra.mxu0 0
      %1012 = vmatprep.subr.bf16.mxu0 0
      %1013 = vmatpush1.bf16.msra.mxu0 0
      %1014 = vmatprep.subr.bf16.mxu0 0
      %1015 = vmatpush1.bf16.msra.mxu0 0
      %1016 = vmatprep.subr.bf16.mxu0 0
      %1017 = vmatpush1.bf16.msra.mxu0 0
      %1018 = vmatprep.subr.bf16.mxu0 0
      %1019 = vmatpush1.bf16.msra.mxu0 0
      %1020 = vmatprep.subr.bf16.mxu0 0
      %1021 = vmatpush1.bf16.msra.mxu0 0
      %1022 = vmatprep.subr.bf16.mxu0 0
      %1023 = vmatpush1.bf16.msra.mxu0 0
      %1024 = vmatprep.subr.bf16.mxu0 0
      %1025 = vmatpush1.bf16.msra.mxu0 0
      %1026 = vmatprep.subr.bf16.mxu0 0
      %1027 = vmatpush1.bf16.msra.mxu0 0
      %1028 = vmatprep.subr.bf16.mxu0 0
      %1029 = vmatpush1.bf16.msra.mxu0 0
      %1030 = vmatprep.subr.bf16.mxu0 0
      %1031 = vmatpush1.bf16.msra.mxu0 0
      %1032 = vmatprep.subr.bf16.mxu0 0
      %1033 = vmatpush1.bf16.msra.mxu0 0
      %1034 = vmatprep.mubr.bf16.mxu0 0
      %1035 = vmatmul.mubr.bf16.gmra.mrb[0].mxu0 %v951
      %v1036 = vpop.f32.mrb[0].mxu0
      %v1037 = vadd.f32 0.0, %v1036
      %v1038 = vpop.f32.mrb[0].mxu0
      %v1039 = vpop.f32.mrb[0].mxu0
      %v1040 = vadd.f32 0.0, %v1039
      %v1041 = vpop.f32.mrb[0].mxu0
      %1042 = vmatprep.mubr.bf16.mxu0 0
      %1043 = vmatmul.mubr.bf16.gmra.mrb[0].mxu0 %v954
      %v1044 = vpop.f32.mrb[0].mxu0
      %v1045 = vadd.f32 0.0, %v1044
      %v1046 = vpop.f32.mrb[0].mxu0
      %v1047 = vpop.f32.mrb[0].mxu0
      %v1048 = vadd.f32 0.0, %v1047
      %v1049 = vpop.f32.mrb[0].mxu0
      %1050 = vmatprep.mubr.bf16.mxu0 0
      %1051 = vmatmul.mubr.bf16.gmra.mrb[0].mxu0 %v957
      %v1052 = vpop.f32.mrb[0].mxu0
      %v1053 = vadd.f32 0.0, %v1052
      %v1054 = vpop.f32.mrb[0].mxu0
      %v1055 = vpop.f32.mrb[0].mxu0
      %v1056 = vadd.f32 0.0, %v1055
      %v1057 = vpop.f32.mrb[0].mxu0
      %1058 = vmatprep.mubr.bf16.mxu0 0
      %1059 = vmatmul.mubr.bf16.gmra.mrb[0].mxu0 %v960
      %v1060 = vpop.f32.mrb[0].mxu0
      %v1061 = vadd.f32 0.0, %v1060
      %v1062 = vpop.f32.mrb[0].mxu0
      %v1063 = vpop.f32.mrb[0].mxu0
      %v1064 = vadd.f32 0.0, %v1063
      %v1065 = vpop.f32.mrb[0].mxu0
      %1066 = vmatprep.mubr.bf16.mxu0 0
      %1067 = vmatmul.mubr.bf16.gmra.mrb[0].mxu0 %v963
      %v1068 = vpop.f32.mrb[0].mxu0
      %v1069 = vadd.f32 0.0, %v1068
      %v1070 = vpop.f32.mrb[0].mxu0
      %v1071 = vpop.f32.mrb[0].mxu0
      %v1072 = vadd.f32 0.0, %v1071
      %v1073 = vpop.f32.mrb[0].mxu0
      %1074 = vmatprep.mubr.bf16.mxu0 0
      %1075 = vmatmul.mubr.bf16.gmra.mrb[0].mxu0 %v966
      %v1076 = vpop.f32.mrb[0].mxu0
      %v1077 = vadd.f32 0.0, %v1076
      %v1078 = vpop.f32.mrb[0].mxu0
      %v1079 = vpop.f32.mrb[0].mxu0
      %v1080 = vadd.f32 0.0, %v1079
      %v1081 = vpop.f32.mrb[0].mxu0
      %1082 = vmatprep.mubr.bf16.mxu0 0
      %1083 = vmatmul.mubr.bf16.gmra.mrb[0].mxu0 %v969
      %v1084 = vpop.f32.mrb[0].mxu0
      %v1085 = vadd.f32 0.0, %v1084
      %v1086 = vpop.f32.mrb[0].mxu0
      %v1087 = vpop.f32.mrb[0].mxu0
      %v1088 = vadd.f32 0.0, %v1087
      %v1089 = vpop.f32.mrb[0].mxu0
      %1090 = vmatprep.mubr.bf16.mxu0 0
      %1091 = vmatmul.mubr.bf16.gmra.mrb[0].mxu0 %v972
      %v1092 = vpop.f32.mrb[0].mxu0
      %v1093 = vadd.f32 0.0, %v1092
      %v1094 = vpop.f32.mrb[0].mxu0
      %v1095 = vpop.f32.mrb[0].mxu0
      %v1096 = vadd.f32 0.0, %v1095
      %v1097 = vpop.f32.mrb[0].mxu0
      %1098 = vmatprep.mubr.bf16.mxu0 0
      %1099 = vmatmul.mubr.bf16.gmra.mrb[0].mxu0 %v975
      %v1100 = vpop.f32.mrb[0].mxu0
      %v1101 = vadd.f32 0.0, %v1100
      %v1102 = vpop.f32.mrb[0].mxu0
      %v1103 = vpop.f32.mrb[0].mxu0
      %v1104 = vadd.f32 0.0, %v1103
      %v1105 = vpop.f32.mrb[0].mxu0
      %1106 = vmatprep.mubr.bf16.mxu0 0
      %1107 = vmatmul.mubr.bf16.gmra.mrb[0].mxu0 %v978
      %v1108 = vpop.f32.mrb[0].mxu0
      %v1109 = vadd.f32 0.0, %v1108
      %v1110 = vpop.f32.mrb[0].mxu0
      %v1111 = vpop.f32.mrb[0].mxu0
      %v1112 = vadd.f32 0.0, %v1111
      %v1113 = vpop.f32.mrb[0].mxu0
      %1114 = vmatprep.mubr.bf16.mxu0 0
      %1115 = vmatmul.mubr.bf16.gmra.mrb[0].mxu0 %v981
      %v1116 = vpop.f32.mrb[0].mxu0
      %v1117 = vadd.f32 0.0, %v1116
      %v1118 = vpop.f32.mrb[0].mxu0
      %v1119 = vpop.f32.mrb[0].mxu0
      %v1120 = vadd.f32 0.0, %v1119
      %v1121 = vpop.f32.mrb[0].mxu0
      %1122 = vmatprep.mubr.bf16.mxu0 0
      %1123 = vmatmul.mubr.bf16.gmra.mrb[0].mxu0 %v984
      %v1124 = vpop.f32.mrb[0].mxu0
      %v1125 = vadd.f32 0.0, %v1124
      %v1126 = vpop.f32.mrb[0].mxu0
      %v1127 = vpop.f32.mrb[0].mxu0
      %v1128 = vadd.f32 0.0, %v1127
      %v1129 = vpop.f32.mrb[0].mxu0
      %1130 = vmatprep.mubr.bf16.mxu0 0
      %1131 = vmatmul.mubr.bf16.gmra.mrb[0].mxu0 %v987
      %v1132 = vpop.f32.mrb[0].mxu0
      %v1133 = vadd.f32 0.0, %v1132
      %v1134 = vpop.f32.mrb[0].mxu0
      %v1135 = vpop.f32.mrb[0].mxu0
      %v1136 = vadd.f32 0.0, %v1135
      %v1137 = vpop.f32.mrb[0].mxu0
      %1138 = vmatprep.mubr.bf16.mxu0 0
      %1139 = vmatmul.mubr.bf16.gmra.mrb[0].mxu0 %v990
      %v1140 = vpop.f32.mrb[0].mxu0
      %v1141 = vadd.f32 0.0, %v1140
      %v1142 = vpop.f32.mrb[0].mxu0
      %v1143 = vpop.f32.mrb[0].mxu0
      %v1144 = vadd.f32 0.0, %v1143
      %v1145 = vpop.f32.mrb[0].mxu0
      %1146 = vmatprep.mubr.bf16.mxu0 0
      %1147 = vmatmul.mubr.bf16.gmra.mrb[0].mxu0 %v993
      %v1148 = vpop.f32.mrb[0].mxu0
      %v1149 = vadd.f32 0.0, %v1148
      %v1150 = vpop.f32.mrb[0].mxu0
      %v1151 = vpop.f32.mrb[0].mxu0
      %v1152 = vadd.f32 0.0, %v1151
      %v1153 = vpop.f32.mrb[0].mxu0
      %1154 = vmatprep.mubr.bf16.mxu0 0
      %1155 = vmatmul.mubr.bf16.gmra.mrb[0].mxu0 %v996
      %v1156 = vpop.f32.mrb[0].mxu0
      %v1157 = vadd.f32 0.0, %v1156
      %v1158 = vpop.f32.mrb[0].mxu0
      %v1159 = vpop.f32.mrb[0].mxu0
      %v1160 = vadd.f32 0.0, %v1159
      %v1161 = vpop.f32.mrb[0].mxu0
      %1162 = vdwg.mxu0
      %s1163 = scalar_lea.vmem %s1, 16
      %v1164 = vld [vmem:[%s1163] sm:$0xf]
      %s1165 = scalar_lea.vmem %s1, 20
      %v1166 = vld [vmem:[%s1165] sm:$0xf]
      %v1168 = vsel %vm998, %v1166, 0
      %1170 = vmatprep.subr.bf16.mxu0 0
      %1171 = vmatpush1.bf16.msra.mxu0 %v1168
      %1172 = vmatprep.subr.bf16.mxu0 0
      %1173 = vmatpush1.bf16.msra.mxu0 0
      %1174 = vmatprep.subr.bf16.mxu0 0
      %1175 = vmatpush1.bf16.msra.mxu0 0
      %1176 = vmatprep.subr.bf16.mxu0 0
      %1177 = vmatpush1.bf16.msra.mxu0 0
      %1178 = vmatprep.subr.bf16.mxu0 0
      %1179 = vmatpush1.bf16.msra.mxu0 0
      %1180 = vmatprep.subr.bf16.mxu0 0
      %1181 = vmatpush1.bf16.msra.mxu0 0
      %1182 = vmatprep.subr.bf16.mxu0 0
      %1183 = vmatpush1.bf16.msra.mxu0 0
      %1184 = vmatprep.subr.bf16.mxu0 0
      %1185 = vmatpush1.bf16.msra.mxu0 0
      %1186 = vmatprep.subr.bf16.mxu0 0
      %1187 = vmatpush1.bf16.msra.mxu0 0
      %1188 = vmatprep.subr.bf16.mxu0 0
      %1189 = vmatpush1.bf16.msra.mxu0 0
      %1190 = vmatprep.subr.bf16.mxu0 0
      %1191 = vmatpush1.bf16.msra.mxu0 0
      %1192 = vmatprep.subr.bf16.mxu0 0
      %1193 = vmatpush1.bf16.msra.mxu0 0
      %1194 = vmatprep.subr.bf16.mxu0 0
      %1195 = vmatpush1.bf16.msra.mxu0 0
      %1196 = vmatprep.subr.bf16.mxu0 0
      %1197 = vmatpush1.bf16.msra.mxu0 0
      %1198 = vmatprep.subr.bf16.mxu0 0
      %1199 = vmatpush1.bf16.msra.mxu0 0
      %1200 = vmatprep.subr.bf16.mxu0 0
      %1201 = vmatpush1.bf16.msra.mxu0 0
      %1202 = vmatprep.mubr.bf16.mxu0 0
      %1203 = vmatmul.mubr.bf16.gmra.mrb[0].mxu0 %v951
      %v1204 = vpop.f32.mrb[0].mxu0
      %v1205 = vadd.f32 0.0, %v1204
      %v1206 = vpop.f32.mrb[0].mxu0
      %v1207 = vpop.f32.mrb[0].mxu0
      %v1208 = vadd.f32 0.0, %v1207
      %v1209 = vpop.f32.mrb[0].mxu0
      %1210 = vmatprep.mubr.bf16.mxu0 0
      %1211 = vmatmul.mubr.bf16.gmra.mrb[0].mxu0 %v954
      %v1212 = vpop.f32.mrb[0].mxu0
      %v1213 = vadd.f32 0.0, %v1212
      %v1214 = vpop.f32.mrb[0].mxu0
      %v1215 = vpop.f32.mrb[0].mxu0
      %v1216 = vadd.f32 0.0, %v1215
      %v1217 = vpop.f32.mrb[0].mxu0
      %1218 = vmatprep.mubr.bf16.mxu0 0
      %1219 = vmatmul.mubr.bf16.gmra.mrb[0].mxu0 %v957
      %v1220 = vpop.f32.mrb[0].mxu0
      %v1221 = vadd.f32 0.0, %v1220
      %v1222 = vpop.f32.mrb[0].mxu0
      %v1223 = vpop.f32.mrb[0].mxu0
      %v1224 = vadd.f32 0.0, %v1223
      %v1225 = vpop.f32.mrb[0].mxu0
      %1226 = vmatprep.mubr.bf16.mxu0 0
      %1227 = vmatmul.mubr.bf16.gmra.mrb[0].mxu0 %v960
      %v1228 = vpop.f32.mrb[0].mxu0
      %v1229 = vadd.f32 0.0, %v1228
      %v1230 = vpop.f32.mrb[0].mxu0
      %v1231 = vpop.f32.mrb[0].mxu0
      %v1232 = vadd.f32 0.0, %v1231
      %v1233 = vpop.f32.mrb[0].mxu0
      %1234 = vmatprep.mubr.bf16.mxu0 0
      %1235 = vmatmul.mubr.bf16.gmra.mrb[0].mxu0 %v963
      %v1236 = vpop.f32.mrb[0].mxu0
      %v1237 = vadd.f32 0.0, %v1236
      %v1238 = vpop.f32.mrb[0].mxu0
      %v1239 = vpop.f32.mrb[0].mxu0
      %v1240 = vadd.f32 0.0, %v1239
      %v1241 = vpop.f32.mrb[0].mxu0
      %1242 = vmatprep.mubr.bf16.mxu0 0
      %1243 = vmatmul.mubr.bf16.gmra.mrb[0].mxu0 %v966
      %v1244 = vpop.f32.mrb[0].mxu0
      %v1245 = vadd.f32 0.0, %v1244
      %v1246 = vpop.f32.mrb[0].mxu0
      %v1247 = vpop.f32.mrb[0].mxu0
      %v1248 = vadd.f32 0.0, %v1247
      %v1249 = vpop.f32.mrb[0].mxu0
      %1250 = vmatprep.mubr.bf16.mxu0 0
      %1251 = vmatmul.mubr.bf16.gmra.mrb[0].mxu0 %v969
      %v1252 = vpop.f32.mrb[0].mxu0
      %v1253 = vadd.f32 0.0, %v1252
      %v1254 = vpop.f32.mrb[0].mxu0
      %v1255 = vpop.f32.mrb[0].mxu0
      %v1256 = vadd.f32 0.0, %v1255
      %v1257 = vpop.f32.mrb[0].mxu0
      %1258 = vmatprep.mubr.bf16.mxu0 0
      %1259 = vmatmul.mubr.bf16.gmra.mrb[0].mxu0 %v972
      %v1260 = vpop.f32.mrb[0].mxu0
      %v1261 = vadd.f32 0.0, %v1260
      %v1262 = vpop.f32.mrb[0].mxu0
      %v1263 = vpop.f32.mrb[0].mxu0
      %v1264 = vadd.f32 0.0, %v1263
      %v1265 = vpop.f32.mrb[0].mxu0
      %1266 = vmatprep.mubr.bf16.mxu0 0
      %1267 = vmatmul.mubr.bf16.gmra.mrb[0].mxu0 %v975
      %v1268 = vpop.f32.mrb[0].mxu0
      %v1269 = vadd.f32 0.0, %v1268
      %v1270 = vpop.f32.mrb[0].mxu0
      %v1271 = vpop.f32.mrb[0].mxu0
      %v1272 = vadd.f32 0.0, %v1271
      %v1273 = vpop.f32.mrb[0].mxu0
      %1274 = vmatprep.mubr.bf16.mxu0 0
      %1275 = vmatmul.mubr.bf16.gmra.mrb[0].mxu0 %v978
      %v1276 = vpop.f32.mrb[0].mxu0
      %v1277 = vadd.f32 0.0, %v1276
      %v1278 = vpop.f32.mrb[0].mxu0
      %v1279 = vpop.f32.mrb[0].mxu0
      %v1280 = vadd.f32 0.0, %v1279
      %v1281 = vpop.f32.mrb[0].mxu0
      %1282 = vmatprep.mubr.bf16.mxu0 0
      %1283 = vmatmul.mubr.bf16.gmra.mrb[0].mxu0 %v981
      %v1284 = vpop.f32.mrb[0].mxu0
      %v1285 = vadd.f32 0.0, %v1284
      %v1286 = vpop.f32.mrb[0].mxu0
      %v1287 = vpop.f32.mrb[0].mxu0
      %v1288 = vadd.f32 0.0, %v1287
      %v1289 = vpop.f32.mrb[0].mxu0
      %1290 = vmatprep.mubr.bf16.mxu0 0
      %1291 = vmatmul.mubr.bf16.gmra.mrb[0].mxu0 %v984
      %v1292 = vpop.f32.mrb[0].mxu0
      %v1293 = vadd.f32 0.0, %v1292
      %v1294 = vpop.f32.mrb[0].mxu0
      %v1295 = vpop.f32.mrb[0].mxu0
      %v1296 = vadd.f32 0.0, %v1295
      %v1297 = vpop.f32.mrb[0].mxu0
      %1298 = vmatprep.mubr.bf16.mxu0 0
      %1299 = vmatmul.mubr.bf16.gmra.mrb[0].mxu0 %v987
      %v1300 = vpop.f32.mrb[0].mxu0
      %v1301 = vadd.f32 0.0, %v1300
      %v1302 = vpop.f32.mrb[0].mxu0
      %v1303 = vpop.f32.mrb[0].mxu0
      %v1304 = vadd.f32 0.0, %v1303
      %v1305 = vpop.f32.mrb[0].mxu0
      %1306 = vmatprep.mubr.bf16.mxu0 0
      %1307 = vmatmul.mubr.bf16.gmra.mrb[0].mxu0 %v990
      %v1308 = vpop.f32.mrb[0].mxu0
      %v1309 = vadd.f32 0.0, %v1308
      %v1310 = vpop.f32.mrb[0].mxu0
      %v1311 = vpop.f32.mrb[0].mxu0
      %v1312 = vadd.f32 0.0, %v1311
      %v1313 = vpop.f32.mrb[0].mxu0
      %1314 = vmatprep.mubr.bf16.mxu0 0
      %1315 = vmatmul.mubr.bf16.gmra.mrb[0].mxu0 %v993
      %v1316 = vpop.f32.mrb[0].mxu0
      %v1317 = vadd.f32 0.0, %v1316
      %v1318 = vpop.f32.mrb[0].mxu0
      %v1319 = vpop.f32.mrb[0].mxu0
      %v1320 = vadd.f32 0.0, %v1319
      %v1321 = vpop.f32.mrb[0].mxu0
      %1322 = vmatprep.mubr.bf16.mxu0 0
      %1323 = vmatmul.mubr.bf16.gmra.mrb[0].mxu0 %v996
      %v1324 = vpop.f32.mrb[0].mxu0
      %v1325 = vadd.f32 0.0, %v1324
      %v1326 = vpop.f32.mrb[0].mxu0
      %v1327 = vpop.f32.mrb[0].mxu0
      %v1328 = vadd.f32 0.0, %v1327
      %v1329 = vpop.f32.mrb[0].mxu0
      %1330 = vdwg.mxu0
      %v1331 = vmul.f32 %v739, %v1037
      %v1332 = vmul.f32 %v740, %v1040
      %v1333 = vmul.f32 %v741, %v1045
      %v1334 = vmul.f32 %v742, %v1048
      %v1335 = vmul.f32 %v743, %v1053
      %v1336 = vmul.f32 %v744, %v1056
      %v1337 = vmul.f32 %v745, %v1061
      %v1338 = vmul.f32 %v746, %v1064
      %v1339 = vmul.f32 %v747, %v1069
      %v1340 = vmul.f32 %v748, %v1072
      %v1341 = vmul.f32 %v749, %v1077
      %v1342 = vmul.f32 %v750, %v1080
      %v1343 = vmul.f32 %v751, %v1085
      %v1344 = vmul.f32 %v752, %v1088
      %v1345 = vmul.f32 %v753, %v1093
      %v1346 = vmul.f32 %v754, %v1096
      %v1347 = vmul.f32 %v755, %v1101
      %v1348 = vmul.f32 %v756, %v1104
      %v1349 = vmul.f32 %v757, %v1109
      %v1350 = vmul.f32 %v758, %v1112
      %v1351 = vmul.f32 %v759, %v1117
      %v1352 = vmul.f32 %v760, %v1120
      %v1353 = vmul.f32 %v761, %v1125
      %v1354 = vmul.f32 %v762, %v1128
      %v1355 = vmul.f32 %v763, %v1133
      %v1356 = vmul.f32 %v764, %v1136
      %v1357 = vmul.f32 %v765, %v1141
      %v1358 = vmul.f32 %v766, %v1144
      %v1359 = vmul.f32 %v767, %v1149
      %v1360 = vmul.f32 %v768, %v1152
      %v1361 = vmul.f32 %v769, %v1157
      %v1362 = vmul.f32 %v770, %v1160
      %v1363 = vrot.slane %v1331, 7
      %v1364 = vrot.slane %v1332, 7
      %v1365 = vrot.slane %v1333, 7
      %v1366 = vrot.slane %v1334, 7
      %v1367 = vrot.slane %v1335, 7
      %v1368 = vrot.slane %v1336, 7
      %v1369 = vrot.slane %v1337, 7
      %v1370 = vrot.slane %v1338, 7
      %v1371 = vrot.slane %v1339, 7
      %v1372 = vrot.slane %v1340, 7
      %v1373 = vrot.slane %v1341, 7
      %v1374 = vrot.slane %v1342, 7
      %v1375 = vrot.slane %v1343, 7
      %v1376 = vrot.slane %v1344, 7
      %v1377 = vrot.slane %v1345, 7
      %v1378 = vrot.slane %v1346, 7
      %v1379 = vrot.slane %v1347, 7
      %v1380 = vrot.slane %v1348, 7
      %v1381 = vrot.slane %v1349, 7
      %v1382 = vrot.slane %v1350, 7
      %v1383 = vrot.slane %v1351, 7
      %v1384 = vrot.slane %v1352, 7
      %v1385 = vrot.slane %v1353, 7
      %v1386 = vrot.slane %v1354, 7
      %v1387 = vrot.slane %v1355, 7
      %v1388 = vrot.slane %v1356, 7
      %v1389 = vrot.slane %v1357, 7
      %v1390 = vrot.slane %v1358, 7
      %v1391 = vrot.slane %v1359, 7
      %v1392 = vrot.slane %v1360, 7
      %v1393 = vrot.slane %v1361, 7
      %v1394 = vrot.slane %v1362, 7
      %vm1395 = vcmp.lt.s32.totalorder %v259, 1
      %v1396 = vsel %vm1395, %v1393, %v1394
      %v1397 = vsel %vm1395, %v1392, %v1393
      %v1398 = vsel %vm1395, %v1391, %v1392
      %v1399 = vsel %vm1395, %v1390, %v1391
      %v1400 = vsel %vm1395, %v1389, %v1390
      %v1401 = vsel %vm1395, %v1388, %v1389
      %v1402 = vsel %vm1395, %v1387, %v1388
      %v1403 = vsel %vm1395, %v1386, %v1387
      %v1404 = vsel %vm1395, %v1385, %v1386
      %v1405 = vsel %vm1395, %v1384, %v1385
      %v1406 = vsel %vm1395, %v1383, %v1384
      %v1407 = vsel %vm1395, %v1382, %v1383
      %v1408 = vsel %vm1395, %v1381, %v1382
      %v1409 = vsel %vm1395, %v1380, %v1381
      %v1410 = vsel %vm1395, %v1379, %v1380
      %v1411 = vsel %vm1395, %v1378, %v1379
      %v1412 = vsel %vm1395, %v1377, %v1378
      %v1413 = vsel %vm1395, %v1376, %v1377
      %v1414 = vsel %vm1395, %v1375, %v1376
      %v1415 = vsel %vm1395, %v1374, %v1375
      %v1416 = vsel %vm1395, %v1373, %v1374
      %v1417 = vsel %vm1395, %v1372, %v1373
      %v1418 = vsel %vm1395, %v1371, %v1372
      %v1419 = vsel %vm1395, %v1370, %v1371
      %v1420 = vsel %vm1395, %v1369, %v1370
      %v1421 = vsel %vm1395, %v1368, %v1369
      %v1422 = vsel %vm1395, %v1367, %v1368
      %v1423 = vsel %vm1395, %v1366, %v1367
      %v1424 = vsel %vm1395, %v1365, %v1366
      %v1425 = vsel %vm1395, %v1364, %v1365
      %v1426 = vsel %vm1395, %v1363, %v1364
      %v1427 = vsel %vm1395, %v1394, %v1363
      %v1429 = vsel %vm998, %v1164, 0
      %1431 = vmatprep.subr.bf16.mxu0 0
      %1432 = vmatpush1.bf16.msra.mxu0 %v1429
      %1433 = vmatprep.subr.bf16.mxu0 0
      %1434 = vmatpush1.bf16.msra.mxu0 0
      %1435 = vmatprep.subr.bf16.mxu0 0
      %1436 = vmatpush1.bf16.msra.mxu0 0
      %1437 = vmatprep.subr.bf16.mxu0 0
      %1438 = vmatpush1.bf16.msra.mxu0 0
      %1439 = vmatprep.subr.bf16.mxu0 0
      %1440 = vmatpush1.bf16.msra.mxu0 0
      %1441 = vmatprep.subr.bf16.mxu0 0
      %1442 = vmatpush1.bf16.msra.mxu0 0
      %1443 = vmatprep.subr.bf16.mxu0 0
      %1444 = vmatpush1.bf16.msra.mxu0 0
      %1445 = vmatprep.subr.bf16.mxu0 0
      %1446 = vmatpush1.bf16.msra.mxu0 0
      %1447 = vmatprep.subr.bf16.mxu0 0
      %1448 = vmatpush1.bf16.msra.mxu0 0
      %1449 = vmatprep.subr.bf16.mxu0 0
      %1450 = vmatpush1.bf16.msra.mxu0 0
      %1451 = vmatprep.subr.bf16.mxu0 0
      %1452 = vmatpush1.bf16.msra.mxu0 0
      %1453 = vmatprep.subr.bf16.mxu0 0
      %1454 = vmatpush1.bf16.msra.mxu0 0
      %1455 = vmatprep.subr.bf16.mxu0 0
      %1456 = vmatpush1.bf16.msra.mxu0 0
      %1457 = vmatprep.subr.bf16.mxu0 0
      %1458 = vmatpush1.bf16.msra.mxu0 0
      %1459 = vmatprep.subr.bf16.mxu0 0
      %1460 = vmatpush1.bf16.msra.mxu0 0
      %1461 = vmatprep.subr.bf16.mxu0 0
      %1462 = vmatpush1.bf16.msra.mxu0 0
      %1463 = vmatprep.mubr.bf16.mxu0 0
      %1464 = vmatmul.mubr.bf16.gmra.mrb[0].mxu0 %v951
      %v1465 = vpop.f32.mrb[0].mxu0
      %v1466 = vadd.f32 %v1427, %v1465
      %v1467 = vpop.f32.mrb[0].mxu0
      %v1468 = vpop.f32.mrb[0].mxu0
      %v1469 = vadd.f32 %v1426, %v1468
      %v1470 = vpop.f32.mrb[0].mxu0
      %1471 = vmatprep.mubr.bf16.mxu0 0
      %1472 = vmatmul.mubr.bf16.gmra.mrb[0].mxu0 %v954
      %v1473 = vpop.f32.mrb[0].mxu0
      %v1474 = vadd.f32 %v1425, %v1473
      %v1475 = vpop.f32.mrb[0].mxu0
      %v1476 = vpop.f32.mrb[0].mxu0
      %v1477 = vadd.f32 %v1424, %v1476
      %v1478 = vpop.f32.mrb[0].mxu0
      %1479 = vmatprep.mubr.bf16.mxu0 0
      %1480 = vmatmul.mubr.bf16.gmra.mrb[0].mxu0 %v957
      %v1481 = vpop.f32.mrb[0].mxu0
      %v1482 = vadd.f32 %v1423, %v1481
      %v1483 = vpop.f32.mrb[0].mxu0
      %v1484 = vpop.f32.mrb[0].mxu0
      %v1485 = vadd.f32 %v1422, %v1484
      %v1486 = vpop.f32.mrb[0].mxu0
      %1487 = vmatprep.mubr.bf16.mxu0 0
      %1488 = vmatmul.mubr.bf16.gmra.mrb[0].mxu0 %v960
      %v1489 = vpop.f32.mrb[0].mxu0
      %v1490 = vadd.f32 %v1421, %v1489
      %v1491 = vpop.f32.mrb[0].mxu0
      %v1492 = vpop.f32.mrb[0].mxu0
      %v1493 = vadd.f32 %v1420, %v1492
      %v1494 = vpop.f32.mrb[0].mxu0
      %1495 = vmatprep.mubr.bf16.mxu0 0
      %1496 = vmatmul.mubr.bf16.gmra.mrb[0].mxu0 %v963
      %v1497 = vpop.f32.mrb[0].mxu0
      %v1498 = vadd.f32 %v1419, %v1497
      %v1499 = vpop.f32.mrb[0].mxu0
      %v1500 = vpop.f32.mrb[0].mxu0
      %v1501 = vadd.f32 %v1418, %v1500
      %v1502 = vpop.f32.mrb[0].mxu0
      %1503 = vmatprep.mubr.bf16.mxu0 0
      %1504 = vmatmul.mubr.bf16.gmra.mrb[0].mxu0 %v966
      %v1505 = vpop.f32.mrb[0].mxu0
      %v1506 = vadd.f32 %v1417, %v1505
      %v1507 = vpop.f32.mrb[0].mxu0
      %v1508 = vpop.f32.mrb[0].mxu0
      %v1509 = vadd.f32 %v1416, %v1508
      %v1510 = vpop.f32.mrb[0].mxu0
      %1511 = vmatprep.mubr.bf16.mxu0 0
      %1512 = vmatmul.mubr.bf16.gmra.mrb[0].mxu0 %v969
      %v1513 = vpop.f32.mrb[0].mxu0
      %v1514 = vadd.f32 %v1415, %v1513
      %v1515 = vpop.f32.mrb[0].mxu0
      %v1516 = vpop.f32.mrb[0].mxu0
      %v1517 = vadd.f32 %v1414, %v1516
      %v1518 = vpop.f32.mrb[0].mxu0
      %1519 = vmatprep.mubr.bf16.mxu0 0
      %1520 = vmatmul.mubr.bf16.gmra.mrb[0].mxu0 %v972
      %v1521 = vpop.f32.mrb[0].mxu0
      %v1522 = vadd.f32 %v1413, %v1521
      %v1523 = vpop.f32.mrb[0].mxu0
      %v1524 = vpop.f32.mrb[0].mxu0
      %v1525 = vadd.f32 %v1412, %v1524
      %v1526 = vpop.f32.mrb[0].mxu0
      %1527 = vmatprep.mubr.bf16.mxu0 0
      %1528 = vmatmul.mubr.bf16.gmra.mrb[0].mxu0 %v975
      %v1529 = vpop.f32.mrb[0].mxu0
      %v1530 = vadd.f32 %v1411, %v1529
      %v1531 = vpop.f32.mrb[0].mxu0
      %v1532 = vpop.f32.mrb[0].mxu0
      %v1533 = vadd.f32 %v1410, %v1532
      %v1534 = vpop.f32.mrb[0].mxu0
      %1535 = vmatprep.mubr.bf16.mxu0 0
      %1536 = vmatmul.mubr.bf16.gmra.mrb[0].mxu0 %v978
      %v1537 = vpop.f32.mrb[0].mxu0
      %v1538 = vadd.f32 %v1409, %v1537
      %v1539 = vpop.f32.mrb[0].mxu0
      %v1540 = vpop.f32.mrb[0].mxu0
      %v1541 = vadd.f32 %v1408, %v1540
      %v1542 = vpop.f32.mrb[0].mxu0
      %1543 = vmatprep.mubr.bf16.mxu0 0
      %1544 = vmatmul.mubr.bf16.gmra.mrb[0].mxu0 %v981
      %v1545 = vpop.f32.mrb[0].mxu0
      %v1546 = vadd.f32 %v1407, %v1545
      %v1547 = vpop.f32.mrb[0].mxu0
      %v1548 = vpop.f32.mrb[0].mxu0
      %v1549 = vadd.f32 %v1406, %v1548
      %v1550 = vpop.f32.mrb[0].mxu0
      %1551 = vmatprep.mubr.bf16.mxu0 0
      %1552 = vmatmul.mubr.bf16.gmra.mrb[0].mxu0 %v984
      %v1553 = vpop.f32.mrb[0].mxu0
      %v1554 = vadd.f32 %v1405, %v1553
      %v1555 = vpop.f32.mrb[0].mxu0
      %v1556 = vpop.f32.mrb[0].mxu0
      %v1557 = vadd.f32 %v1404, %v1556
      %v1558 = vpop.f32.mrb[0].mxu0
      %1559 = vmatprep.mubr.bf16.mxu0 0
      %1560 = vmatmul.mubr.bf16.gmra.mrb[0].mxu0 %v987
      %v1561 = vpop.f32.mrb[0].mxu0
      %v1562 = vadd.f32 %v1403, %v1561
      %v1563 = vpop.f32.mrb[0].mxu0
      %v1564 = vpop.f32.mrb[0].mxu0
      %v1565 = vadd.f32 %v1402, %v1564
      %v1566 = vpop.f32.mrb[0].mxu0
      %1567 = vmatprep.mubr.bf16.mxu0 0
      %1568 = vmatmul.mubr.bf16.gmra.mrb[0].mxu0 %v990
      %v1569 = vpop.f32.mrb[0].mxu0
      %v1570 = vadd.f32 %v1401, %v1569
      %v1571 = vpop.f32.mrb[0].mxu0
      %v1572 = vpop.f32.mrb[0].mxu0
      %v1573 = vadd.f32 %v1400, %v1572
      %v1574 = vpop.f32.mrb[0].mxu0
      %1575 = vmatprep.mubr.bf16.mxu0 0
      %1576 = vmatmul.mubr.bf16.gmra.mrb[0].mxu0 %v993
      %v1577 = vpop.f32.mrb[0].mxu0
      %v1578 = vadd.f32 %v1399, %v1577
      %v1579 = vpop.f32.mrb[0].mxu0
      %v1580 = vpop.f32.mrb[0].mxu0
      %v1581 = vadd.f32 %v1398, %v1580
      %v1582 = vpop.f32.mrb[0].mxu0
      %1583 = vmatprep.mubr.bf16.mxu0 0
      %1584 = vmatmul.mubr.bf16.gmra.mrb[0].mxu0 %v996
      %v1585 = vpop.f32.mrb[0].mxu0
      %v1586 = vadd.f32 %v1397, %v1585
      %v1587 = vpop.f32.mrb[0].mxu0
      %v1588 = vpop.f32.mrb[0].mxu0
      %v1589 = vadd.f32 %v1396, %v1588
      %v1590 = vpop.f32.mrb[0].mxu0
      %1591 = vdwg.mxu0
      %v1592 = vmul.f32 %v835, %v1205
      %v1593 = vmul.f32 %v836, %v1208
      %v1594 = vmul.f32 %v837, %v1213
      %v1595 = vmul.f32 %v838, %v1216
      %v1596 = vmul.f32 %v839, %v1221
      %v1597 = vmul.f32 %v840, %v1224
      %v1598 = vmul.f32 %v841, %v1229
      %v1599 = vmul.f32 %v842, %v1232
      %v1600 = vmul.f32 %v843, %v1237
      %v1601 = vmul.f32 %v844, %v1240
      %v1602 = vmul.f32 %v845, %v1245
      %v1603 = vmul.f32 %v846, %v1248
      %v1604 = vmul.f32 %v847, %v1253
      %v1605 = vmul.f32 %v848, %v1256
      %v1606 = vmul.f32 %v849, %v1261
      %v1607 = vmul.f32 %v850, %v1264
      %v1608 = vmul.f32 %v851, %v1269
      %v1609 = vmul.f32 %v852, %v1272
      %v1610 = vmul.f32 %v853, %v1277
      %v1611 = vmul.f32 %v854, %v1280
      %v1612 = vmul.f32 %v855, %v1285
      %v1613 = vmul.f32 %v856, %v1288
      %v1614 = vmul.f32 %v857, %v1293
      %v1615 = vmul.f32 %v858, %v1296
      %v1616 = vmul.f32 %v859, %v1301
      %v1617 = vmul.f32 %v860, %v1304
      %v1618 = vmul.f32 %v861, %v1309
      %v1619 = vmul.f32 %v862, %v1312
      %v1620 = vmul.f32 %v863, %v1317
      %v1621 = vmul.f32 %v864, %v1320
      %v1622 = vmul.f32 %v865, %v1325
      %v1623 = vmul.f32 %v866, %v1328
      %v1624 = vrot.slane %v1592, 1
      %v1625 = vrot.slane %v1593, 1
      %v1626 = vrot.slane %v1594, 1
      %v1627 = vrot.slane %v1595, 1
      %v1628 = vrot.slane %v1596, 1
      %v1629 = vrot.slane %v1597, 1
      %v1630 = vrot.slane %v1598, 1
      %v1631 = vrot.slane %v1599, 1
      %v1632 = vrot.slane %v1600, 1
      %v1633 = vrot.slane %v1601, 1
      %v1634 = vrot.slane %v1602, 1
      %v1635 = vrot.slane %v1603, 1
      %v1636 = vrot.slane %v1604, 1
      %v1637 = vrot.slane %v1605, 1
      %v1638 = vrot.slane %v1606, 1
      %v1639 = vrot.slane %v1607, 1
      %v1640 = vrot.slane %v1608, 1
      %v1641 = vrot.slane %v1609, 1
      %v1642 = vrot.slane %v1610, 1
      %v1643 = vrot.slane %v1611, 1
      %v1644 = vrot.slane %v1612, 1
      %v1645 = vrot.slane %v1613, 1
      %v1646 = vrot.slane %v1614, 1
      %v1647 = vrot.slane %v1615, 1
      %v1648 = vrot.slane %v1616, 1
      %v1649 = vrot.slane %v1617, 1
      %v1650 = vrot.slane %v1618, 1
      %v1651 = vrot.slane %v1619, 1
      %v1652 = vrot.slane %v1620, 1
      %v1653 = vrot.slane %v1621, 1
      %v1654 = vrot.slane %v1622, 1
      %v1655 = vrot.slane %v1623, 1
      %vm1656 = vcmp.lt.s32.totalorder %v259, 7
      %v1657 = vsel %vm1656, %v1654, %v1655
      %v1658 = vsel %vm1656, %v1653, %v1654
      %v1659 = vsel %vm1656, %v1652, %v1653
      %v1660 = vsel %vm1656, %v1651, %v1652
      %v1661 = vsel %vm1656, %v1650, %v1651
      %v1662 = vsel %vm1656, %v1649, %v1650
      %v1663 = vsel %vm1656, %v1648, %v1649
      %v1664 = vsel %vm1656, %v1647, %v1648
      %v1665 = vsel %vm1656, %v1646, %v1647
      %v1666 = vsel %vm1656, %v1645, %v1646
      %v1667 = vsel %vm1656, %v1644, %v1645
      %v1668 = vsel %vm1656, %v1643, %v1644
      %v1669 = vsel %vm1656, %v1642, %v1643
      %v1670 = vsel %vm1656, %v1641, %v1642
      %v1671 = vsel %vm1656, %v1640, %v1641
      %v1672 = vsel %vm1656, %v1639, %v1640
      %v1673 = vsel %vm1656, %v1638, %v1639
      %v1674 = vsel %vm1656, %v1637, %v1638
      %v1675 = vsel %vm1656, %v1636, %v1637
      %v1676 = vsel %vm1656, %v1635, %v1636
      %v1677 = vsel %vm1656, %v1634, %v1635
      %v1678 = vsel %vm1656, %v1633, %v1634
      %v1679 = vsel %vm1656, %v1632, %v1633
      %v1680 = vsel %vm1656, %v1631, %v1632
      %v1681 = vsel %vm1656, %v1630, %v1631
      %v1682 = vsel %vm1656, %v1629, %v1630
      %v1683 = vsel %vm1656, %v1628, %v1629
      %v1684 = vsel %vm1656, %v1627, %v1628
      %v1685 = vsel %vm1656, %v1626, %v1627
      %v1686 = vsel %vm1656, %v1625, %v1626
      %v1687 = vsel %vm1656, %v1624, %v1625
      %v1688 = vsel %vm1656, %v1655, %v1624
      %v1689 = vadd.f32 %v1466, %v1687
      %v1690 = vadd.f32 %v1469, %v1686
      %v1691 = vadd.f32 %v1474, %v1685
      %v1692 = vadd.f32 %v1477, %v1684
      %v1693 = vadd.f32 %v1482, %v1683
      %v1694 = vadd.f32 %v1485, %v1682
      %v1695 = vadd.f32 %v1490, %v1681
      %v1696 = vadd.f32 %v1493, %v1680
      %v1697 = vadd.f32 %v1498, %v1679
      %v1698 = vadd.f32 %v1501, %v1678
      %v1699 = vadd.f32 %v1506, %v1677
      %v1700 = vadd.f32 %v1509, %v1676
      %v1701 = vadd.f32 %v1514, %v1675
      %v1702 = vadd.f32 %v1517, %v1674
      %v1703 = vadd.f32 %v1522, %v1673
      %v1704 = vadd.f32 %v1525, %v1672
      %v1705 = vadd.f32 %v1530, %v1671
      %v1706 = vadd.f32 %v1533, %v1670
      %v1707 = vadd.f32 %v1538, %v1669
      %v1708 = vadd.f32 %v1541, %v1668
      %v1709 = vadd.f32 %v1546, %v1667
      %v1710 = vadd.f32 %v1549, %v1666
      %v1711 = vadd.f32 %v1554, %v1665
      %v1712 = vadd.f32 %v1557, %v1664
      %v1713 = vadd.f32 %v1562, %v1663
      %v1714 = vadd.f32 %v1565, %v1662
      %v1715 = vadd.f32 %v1570, %v1661
      %v1716 = vadd.f32 %v1573, %v1660
      %v1717 = vadd.f32 %v1578, %v1659
      %v1718 = vadd.f32 %v1581, %v1658
      %v1719 = vadd.f32 %v1586, %v1657
      %v1720 = vadd.f32 %v1589, %v1688
      %1721 = vst.msk [vmem:[#allocation2 + $0x10] sm:$0xff] %vm949, %v1689
      %1722 = vst.msk [vmem:[#allocation2 + $0x18] sm:$0xff] %vm949, %v1690
      %1723 = vst.msk [vmem:[#allocation2 + $0x20] sm:$0xff] %vm949, %v1691
      %1724 = vst.msk [vmem:[#allocation2 + $0x28] sm:$0xff] %vm949, %v1692
      %1725 = vst.msk [vmem:[#allocation2 + $0x30] sm:$0xff] %vm949, %v1693
      %1726 = vst.msk [vmem:[#allocation2 + $0x38] sm:$0xff] %vm949, %v1694
      %1727 = vst.msk [vmem:[#allocation2 + $0x40] sm:$0xff] %vm949, %v1695
      %1728 = vst.msk [vmem:[#allocation2 + $0x48] sm:$0xff] %vm949, %v1696
      %1729 = vst.msk [vmem:[#allocation2 + $0x50] sm:$0xff] %vm949, %v1697
      %1730 = vst.msk [vmem:[#allocation2 + $0x58] sm:$0xff] %vm949, %v1698
      %1731 = vst.msk [vmem:[#allocation2 + $0x60] sm:$0xff] %vm949, %v1699
      %1732 = vst.msk [vmem:[#allocation2 + $0x68] sm:$0xff] %vm949, %v1700
      %1733 = vst.msk [vmem:[#allocation2 + $0x70] sm:$0xff] %vm949, %v1701
      %1734 = vst.msk [vmem:[#allocation2 + $0x78] sm:$0xff] %vm949, %v1702
      %1735 = vst.msk [vmem:[#allocation2 + $0x80] sm:$0xff] %vm949, %v1703
      %1736 = vst.msk [vmem:[#allocation2 + $0x88] sm:$0xff] %vm949, %v1704
      %1737 = vst.msk [vmem:[#allocation2 + $0x90] sm:$0xff] %vm949, %v1705
      %1738 = vst.msk [vmem:[#allocation2 + $0x98] sm:$0xff] %vm949, %v1706
      %1739 = vst.msk [vmem:[#allocation2 + $0xa0] sm:$0xff] %vm949, %v1707
      %1740 = vst.msk [vmem:[#allocation2 + $0xa8] sm:$0xff] %vm949, %v1708
      %1741 = vst.msk [vmem:[#allocation2 + $0xb0] sm:$0xff] %vm949, %v1709
      %1742 = vst.msk [vmem:[#allocation2 + $0xb8] sm:$0xff] %vm949, %v1710
      %1743 = vst.msk [vmem:[#allocation2 + $0xc0] sm:$0xff] %vm949, %v1711
      %1744 = vst.msk [vmem:[#allocation2 + $0xc8] sm:$0xff] %vm949, %v1712
      %1745 = vst.msk [vmem:[#allocation2 + $0xd0] sm:$0xff] %vm949, %v1713
      %1746 = vst.msk [vmem:[#allocation2 + $0xd8] sm:$0xff] %vm949, %v1714
      %1747 = vst.msk [vmem:[#allocation2 + $0xe0] sm:$0xff] %vm949, %v1715
      %1748 = vst.msk [vmem:[#allocation2 + $0xe8] sm:$0xff] %vm949, %v1716
      %1749 = vst.msk [vmem:[#allocation2 + $0xf0] sm:$0xff] %vm949, %v1717
      %1750 = vst.msk [vmem:[#allocation2 + $0xf8] sm:$0xff] %vm949, %v1718
      %1751 = vst.msk [vmem:[#allocation2 + $0x100] sm:$0xff] %vm949, %v1719
      %1752 = vst.msk [vmem:[#allocation2 + $0x108] sm:$0xff] %vm949, %v1720
      %v1753 = vld [vmem:[%s1] sm:$0xf]
      %v1755 = vsel %vm998, %v1753, 0
      %1757 = vmatprep.subr.bf16.mxu0 0
      %1758 = vmatpush1.bf16.msra.mxu0 %v1755
      %1759 = vmatprep.subr.bf16.mxu0 0
      %1760 = vmatpush1.bf16.msra.mxu0 0
      %1761 = vmatprep.subr.bf16.mxu0 0
      %1762 = vmatpush1.bf16.msra.mxu0 0
      %1763 = vmatprep.subr.bf16.mxu0 0
      %1764 = vmatpush1.bf16.msra.mxu0 0
      %1765 = vmatprep.subr.bf16.mxu0 0
      %1766 = vmatpush1.bf16.msra.mxu0 0
      %1767 = vmatprep.subr.bf16.mxu0 0
      %1768 = vmatpush1.bf16.msra.mxu0 0
      %1769 = vmatprep.subr.bf16.mxu0 0
      %1770 = vmatpush1.bf16.msra.mxu0 0
      %1771 = vmatprep.subr.bf16.mxu0 0
      %1772 = vmatpush1.bf16.msra.mxu0 0
      %1773 = vmatprep.subr.bf16.mxu0 0
      %1774 = vmatpush1.bf16.msra.mxu0 0
      %1775 = vmatprep.subr.bf16.mxu0 0
      %1776 = vmatpush1.bf16.msra.mxu0 0
      %1777 = vmatprep.subr.bf16.mxu0 0
      %1778 = vmatpush1.bf16.msra.mxu0 0
      %1779 = vmatprep.subr.bf16.mxu0 0
      %1780 = vmatpush1.bf16.msra.mxu0 0
      %1781 = vmatprep.subr.bf16.mxu0 0
      %1782 = vmatpush1.bf16.msra.mxu0 0
      %1783 = vmatprep.subr.bf16.mxu0 0
      %1784 = vmatpush1.bf16.msra.mxu0 0
      %1785 = vmatprep.subr.bf16.mxu0 0
      %1786 = vmatpush1.bf16.msra.mxu0 0
      %1787 = vmatprep.subr.bf16.mxu0 0
      %1788 = vmatpush1.bf16.msra.mxu0 0
      %1789 = vmatprep.mubr.bf16.mxu0 0
      %1790 = vmatmul.mubr.bf16.gmra.mrb[0].mxu0 %v951
      %v1791 = vpop.f32.mrb[0].mxu0
      %v1792 = vadd.f32 0.0, %v1791
      %v1793 = vpop.f32.mrb[0].mxu0
      %v1794 = vpop.f32.mrb[0].mxu0
      %v1795 = vadd.f32 0.0, %v1794
      %v1796 = vpop.f32.mrb[0].mxu0
      %1797 = vmatprep.mubr.bf16.mxu0 0
      %1798 = vmatmul.mubr.bf16.gmra.mrb[0].mxu0 %v954
      %v1799 = vpop.f32.mrb[0].mxu0
      %v1800 = vadd.f32 0.0, %v1799
      %v1801 = vpop.f32.mrb[0].mxu0
      %v1802 = vpop.f32.mrb[0].mxu0
      %v1803 = vadd.f32 0.0, %v1802
      %v1804 = vpop.f32.mrb[0].mxu0
      %1805 = vmatprep.mubr.bf16.mxu0 0
      %1806 = vmatmul.mubr.bf16.gmra.mrb[0].mxu0 %v957
      %v1807 = vpop.f32.mrb[0].mxu0
      %v1808 = vadd.f32 0.0, %v1807
      %v1809 = vpop.f32.mrb[0].mxu0
      %v1810 = vpop.f32.mrb[0].mxu0
      %v1811 = vadd.f32 0.0, %v1810
      %v1812 = vpop.f32.mrb[0].mxu0
      %1813 = vmatprep.mubr.bf16.mxu0 0
      %1814 = vmatmul.mubr.bf16.gmra.mrb[0].mxu0 %v960
      %v1815 = vpop.f32.mrb[0].mxu0
      %v1816 = vadd.f32 0.0, %v1815
      %v1817 = vpop.f32.mrb[0].mxu0
      %v1818 = vpop.f32.mrb[0].mxu0
      %v1819 = vadd.f32 0.0, %v1818
      %v1820 = vpop.f32.mrb[0].mxu0
      %1821 = vmatprep.mubr.bf16.mxu0 0
      %1822 = vmatmul.mubr.bf16.gmra.mrb[0].mxu0 %v963
      %v1823 = vpop.f32.mrb[0].mxu0
      %v1824 = vadd.f32 0.0, %v1823
      %v1825 = vpop.f32.mrb[0].mxu0
      %v1826 = vpop.f32.mrb[0].mxu0
      %v1827 = vadd.f32 0.0, %v1826
      %v1828 = vpop.f32.mrb[0].mxu0
      %1829 = vmatprep.mubr.bf16.mxu0 0
      %1830 = vmatmul.mubr.bf16.gmra.mrb[0].mxu0 %v966
      %v1831 = vpop.f32.mrb[0].mxu0
      %v1832 = vadd.f32 0.0, %v1831
      %v1833 = vpop.f32.mrb[0].mxu0
      %v1834 = vpop.f32.mrb[0].mxu0
      %v1835 = vadd.f32 0.0, %v1834
      %v1836 = vpop.f32.mrb[0].mxu0
      %1837 = vmatprep.mubr.bf16.mxu0 0
      %1838 = vmatmul.mubr.bf16.gmra.mrb[0].mxu0 %v969
      %v1839 = vpop.f32.mrb[0].mxu0
      %v1840 = vadd.f32 0.0, %v1839
      %v1841 = vpop.f32.mrb[0].mxu0
      %v1842 = vpop.f32.mrb[0].mxu0
      %v1843 = vadd.f32 0.0, %v1842
      %v1844 = vpop.f32.mrb[0].mxu0
      %1845 = vmatprep.mubr.bf16.mxu0 0
      %1846 = vmatmul.mubr.bf16.gmra.mrb[0].mxu0 %v972
      %v1847 = vpop.f32.mrb[0].mxu0
      %v1848 = vadd.f32 0.0, %v1847
      %v1849 = vpop.f32.mrb[0].mxu0
      %v1850 = vpop.f32.mrb[0].mxu0
      %v1851 = vadd.f32 0.0, %v1850
      %v1852 = vpop.f32.mrb[0].mxu0
      %1853 = vmatprep.mubr.bf16.mxu0 0
      %1854 = vmatmul.mubr.bf16.gmra.mrb[0].mxu0 %v975
      %v1855 = vpop.f32.mrb[0].mxu0
      %v1856 = vadd.f32 0.0, %v1855
      %v1857 = vpop.f32.mrb[0].mxu0
      %v1858 = vpop.f32.mrb[0].mxu0
      %v1859 = vadd.f32 0.0, %v1858
      %v1860 = vpop.f32.mrb[0].mxu0
      %1861 = vmatprep.mubr.bf16.mxu0 0
      %1862 = vmatmul.mubr.bf16.gmra.mrb[0].mxu0 %v978
      %v1863 = vpop.f32.mrb[0].mxu0
      %v1864 = vadd.f32 0.0, %v1863
      %v1865 = vpop.f32.mrb[0].mxu0
      %v1866 = vpop.f32.mrb[0].mxu0
      %v1867 = vadd.f32 0.0, %v1866
      %v1868 = vpop.f32.mrb[0].mxu0
      %1869 = vmatprep.mubr.bf16.mxu0 0
      %1870 = vmatmul.mubr.bf16.gmra.mrb[0].mxu0 %v981
      %v1871 = vpop.f32.mrb[0].mxu0
      %v1872 = vadd.f32 0.0, %v1871
      %v1873 = vpop.f32.mrb[0].mxu0
      %v1874 = vpop.f32.mrb[0].mxu0
      %v1875 = vadd.f32 0.0, %v1874
      %v1876 = vpop.f32.mrb[0].mxu0
      %1877 = vmatprep.mubr.bf16.mxu0 0
      %1878 = vmatmul.mubr.bf16.gmra.mrb[0].mxu0 %v984
      %v1879 = vpop.f32.mrb[0].mxu0
      %v1880 = vadd.f32 0.0, %v1879
      %v1881 = vpop.f32.mrb[0].mxu0
      %v1882 = vpop.f32.mrb[0].mxu0
      %v1883 = vadd.f32 0.0, %v1882
      %v1884 = vpop.f32.mrb[0].mxu0
      %1885 = vmatprep.mubr.bf16.mxu0 0
      %1886 = vmatmul.mubr.bf16.gmra.mrb[0].mxu0 %v987
      %v1887 = vpop.f32.mrb[0].mxu0
      %v1888 = vadd.f32 0.0, %v1887
      %v1889 = vpop.f32.mrb[0].mxu0
      %v1890 = vpop.f32.mrb[0].mxu0
      %v1891 = vadd.f32 0.0, %v1890
      %v1892 = vpop.f32.mrb[0].mxu0
      %1893 = vmatprep.mubr.bf16.mxu0 0
      %1894 = vmatmul.mubr.bf16.gmra.mrb[0].mxu0 %v990
      %v1895 = vpop.f32.mrb[0].mxu0
      %v1896 = vadd.f32 0.0, %v1895
      %v1897 = vpop.f32.mrb[0].mxu0
      %v1898 = vpop.f32.mrb[0].mxu0
      %v1899 = vadd.f32 0.0, %v1898
      %v1900 = vpop.f32.mrb[0].mxu0
      %1901 = vmatprep.mubr.bf16.mxu0 0
      %1902 = vmatmul.mubr.bf16.gmra.mrb[0].mxu0 %v993
      %v1903 = vpop.f32.mrb[0].mxu0
      %v1904 = vadd.f32 0.0, %v1903
      %v1905 = vpop.f32.mrb[0].mxu0
      %v1906 = vpop.f32.mrb[0].mxu0
      %v1907 = vadd.f32 0.0, %v1906
      %v1908 = vpop.f32.mrb[0].mxu0
      %1909 = vmatprep.mubr.bf16.mxu0 0
      %1910 = vmatmul.mubr.bf16.gmra.mrb[0].mxu0 %v996
      %v1911 = vpop.f32.mrb[0].mxu0
      %v1912 = vadd.f32 0.0, %v1911
      %v1913 = vpop.f32.mrb[0].mxu0
      %v1914 = vpop.f32.mrb[0].mxu0
      %v1915 = vadd.f32 0.0, %v1914
      %v1916 = vpop.f32.mrb[0].mxu0
      %1917 = vdwg.mxu0
      %s1918 = scalar_lea.vmem %s1, 4
      %v1919 = vld [vmem:[%s1918] sm:$0xf]
      %s1920 = scalar_lea.vmem %s1, 8
      %v1921 = vld [vmem:[%s1920] sm:$0xf]
      %v1923 = vsel %vm998, %v1921, 0
      %1925 = vmatprep.subr.bf16.mxu0 0
      %1926 = vmatpush1.bf16.msra.mxu0 %v1923
      %1927 = vmatprep.subr.bf16.mxu0 0
      %1928 = vmatpush1.bf16.msra.mxu0 0
      %1929 = vmatprep.subr.bf16.mxu0 0
      %1930 = vmatpush1.bf16.msra.mxu0 0
      %1931 = vmatprep.subr.bf16.mxu0 0
      %1932 = vmatpush1.bf16.msra.mxu0 0
      %1933 = vmatprep.subr.bf16.mxu0 0
      %1934 = vmatpush1.bf16.msra.mxu0 0
      %1935 = vmatprep.subr.bf16.mxu0 0
      %1936 = vmatpush1.bf16.msra.mxu0 0
      %1937 = vmatprep.subr.bf16.mxu0 0
      %1938 = vmatpush1.bf16.msra.mxu0 0
      %1939 = vmatprep.subr.bf16.mxu0 0
      %1940 = vmatpush1.bf16.msra.mxu0 0
      %1941 = vmatprep.subr.bf16.mxu0 0
      %1942 = vmatpush1.bf16.msra.mxu0 0
      %1943 = vmatprep.subr.bf16.mxu0 0
      %1944 = vmatpush1.bf16.msra.mxu0 0
      %1945 = vmatprep.subr.bf16.mxu0 0
      %1946 = vmatpush1.bf16.msra.mxu0 0
      %1947 = vmatprep.subr.bf16.mxu0 0
      %1948 = vmatpush1.bf16.msra.mxu0 0
      %1949 = vmatprep.subr.bf16.mxu0 0
      %1950 = vmatpush1.bf16.msra.mxu0 0
      %1951 = vmatprep.subr.bf16.mxu0 0
      %1952 = vmatpush1.bf16.msra.mxu0 0
      %1953 = vmatprep.subr.bf16.mxu0 0
      %1954 = vmatpush1.bf16.msra.mxu0 0
      %1955 = vmatprep.subr.bf16.mxu0 0
      %1956 = vmatpush1.bf16.msra.mxu0 0
      %1957 = vmatprep.mubr.bf16.mxu0 0
      %1958 = vmatmul.mubr.bf16.gmra.mrb[0].mxu0 %v951
      %v1959 = vpop.f32.mrb[0].mxu0
      %v1960 = vadd.f32 0.0, %v1959
      %v1961 = vpop.f32.mrb[0].mxu0
      %v1962 = vpop.f32.mrb[0].mxu0
      %v1963 = vadd.f32 0.0, %v1962
      %v1964 = vpop.f32.mrb[0].mxu0
      %1965 = vmatprep.mubr.bf16.mxu0 0
      %1966 = vmatmul.mubr.bf16.gmra.mrb[0].mxu0 %v954
      %v1967 = vpop.f32.mrb[0].mxu0
      %v1968 = vadd.f32 0.0, %v1967
      %v1969 = vpop.f32.mrb[0].mxu0
      %v1970 = vpop.f32.mrb[0].mxu0
      %v1971 = vadd.f32 0.0, %v1970
      %v1972 = vpop.f32.mrb[0].mxu0
      %1973 = vmatprep.mubr.bf16.mxu0 0
      %1974 = vmatmul.mubr.bf16.gmra.mrb[0].mxu0 %v957
      %v1975 = vpop.f32.mrb[0].mxu0
      %v1976 = vadd.f32 0.0, %v1975
      %v1977 = vpop.f32.mrb[0].mxu0
      %v1978 = vpop.f32.mrb[0].mxu0
      %v1979 = vadd.f32 0.0, %v1978
      %v1980 = vpop.f32.mrb[0].mxu0
      %1981 = vmatprep.mubr.bf16.mxu0 0
      %1982 = vmatmul.mubr.bf16.gmra.mrb[0].mxu0 %v960
      %v1983 = vpop.f32.mrb[0].mxu0
      %v1984 = vadd.f32 0.0, %v1983
      %v1985 = vpop.f32.mrb[0].mxu0
      %v1986 = vpop.f32.mrb[0].mxu0
      %v1987 = vadd.f32 0.0, %v1986
      %v1988 = vpop.f32.mrb[0].mxu0
      %1989 = vmatprep.mubr.bf16.mxu0 0
      %1990 = vmatmul.mubr.bf16.gmra.mrb[0].mxu0 %v963
      %v1991 = vpop.f32.mrb[0].mxu0
      %v1992 = vadd.f32 0.0, %v1991
      %v1993 = vpop.f32.mrb[0].mxu0
      %v1994 = vpop.f32.mrb[0].mxu0
      %v1995 = vadd.f32 0.0, %v1994
      %v1996 = vpop.f32.mrb[0].mxu0
      %1997 = vmatprep.mubr.bf16.mxu0 0
      %1998 = vmatmul.mubr.bf16.gmra.mrb[0].mxu0 %v966
      %v1999 = vpop.f32.mrb[0].mxu0
      %v2000 = vadd.f32 0.0, %v1999
      %v2001 = vpop.f32.mrb[0].mxu0
      %v2002 = vpop.f32.mrb[0].mxu0
      %v2003 = vadd.f32 0.0, %v2002
      %v2004 = vpop.f32.mrb[0].mxu0
      %2005 = vmatprep.mubr.bf16.mxu0 0
      %2006 = vmatmul.mubr.bf16.gmra.mrb[0].mxu0 %v969
      %v2007 = vpop.f32.mrb[0].mxu0
      %v2008 = vadd.f32 0.0, %v2007
      %v2009 = vpop.f32.mrb[0].mxu0
      %v2010 = vpop.f32.mrb[0].mxu0
      %v2011 = vadd.f32 0.0, %v2010
      %v2012 = vpop.f32.mrb[0].mxu0
      %2013 = vmatprep.mubr.bf16.mxu0 0
      %2014 = vmatmul.mubr.bf16.gmra.mrb[0].mxu0 %v972
      %v2015 = vpop.f32.mrb[0].mxu0
      %v2016 = vadd.f32 0.0, %v2015
      %v2017 = vpop.f32.mrb[0].mxu0
      %v2018 = vpop.f32.mrb[0].mxu0
      %v2019 = vadd.f32 0.0, %v2018
      %v2020 = vpop.f32.mrb[0].mxu0
      %2021 = vmatprep.mubr.bf16.mxu0 0
      %2022 = vmatmul.mubr.bf16.gmra.mrb[0].mxu0 %v975
      %v2023 = vpop.f32.mrb[0].mxu0
      %v2024 = vadd.f32 0.0, %v2023
      %v2025 = vpop.f32.mrb[0].mxu0
      %v2026 = vpop.f32.mrb[0].mxu0
      %v2027 = vadd.f32 0.0, %v2026
      %v2028 = vpop.f32.mrb[0].mxu0
      %2029 = vmatprep.mubr.bf16.mxu0 0
      %2030 = vmatmul.mubr.bf16.gmra.mrb[0].mxu0 %v978
      %v2031 = vpop.f32.mrb[0].mxu0
      %v2032 = vadd.f32 0.0, %v2031
      %v2033 = vpop.f32.mrb[0].mxu0
      %v2034 = vpop.f32.mrb[0].mxu0
      %v2035 = vadd.f32 0.0, %v2034
      %v2036 = vpop.f32.mrb[0].mxu0
      %2037 = vmatprep.mubr.bf16.mxu0 0
      %2038 = vmatmul.mubr.bf16.gmra.mrb[0].mxu0 %v981
      %v2039 = vpop.f32.mrb[0].mxu0
      %v2040 = vadd.f32 0.0, %v2039
      %v2041 = vpop.f32.mrb[0].mxu0
      %v2042 = vpop.f32.mrb[0].mxu0
      %v2043 = vadd.f32 0.0, %v2042
      %v2044 = vpop.f32.mrb[0].mxu0
      %2045 = vmatprep.mubr.bf16.mxu0 0
      %2046 = vmatmul.mubr.bf16.gmra.mrb[0].mxu0 %v984
      %v2047 = vpop.f32.mrb[0].mxu0
      %v2048 = vadd.f32 0.0, %v2047
      %v2049 = vpop.f32.mrb[0].mxu0
      %v2050 = vpop.f32.mrb[0].mxu0
      %v2051 = vadd.f32 0.0, %v2050
      %v2052 = vpop.f32.mrb[0].mxu0
      %2053 = vmatprep.mubr.bf16.mxu0 0
      %2054 = vmatmul.mubr.bf16.gmra.mrb[0].mxu0 %v987
      %v2055 = vpop.f32.mrb[0].mxu0
      %v2056 = vadd.f32 0.0, %v2055
      %v2057 = vpop.f32.mrb[0].mxu0
      %v2058 = vpop.f32.mrb[0].mxu0
      %v2059 = vadd.f32 0.0, %v2058
      %v2060 = vpop.f32.mrb[0].mxu0
      %2061 = vmatprep.mubr.bf16.mxu0 0
      %2062 = vmatmul.mubr.bf16.gmra.mrb[0].mxu0 %v990
      %v2063 = vpop.f32.mrb[0].mxu0
      %v2064 = vadd.f32 0.0, %v2063
      %v2065 = vpop.f32.mrb[0].mxu0
      %v2066 = vpop.f32.mrb[0].mxu0
      %v2067 = vadd.f32 0.0, %v2066
      %v2068 = vpop.f32.mrb[0].mxu0
      %2069 = vmatprep.mubr.bf16.mxu0 0
      %2070 = vmatmul.mubr.bf16.gmra.mrb[0].mxu0 %v993
      %v2071 = vpop.f32.mrb[0].mxu0
      %v2072 = vadd.f32 0.0, %v2071
      %v2073 = vpop.f32.mrb[0].mxu0
      %v2074 = vpop.f32.mrb[0].mxu0
      %v2075 = vadd.f32 0.0, %v2074
      %v2076 = vpop.f32.mrb[0].mxu0
      %2077 = vmatprep.mubr.bf16.mxu0 0
      %2078 = vmatmul.mubr.bf16.gmra.mrb[0].mxu0 %v996
      %v2079 = vpop.f32.mrb[0].mxu0
      %v2080 = vadd.f32 0.0, %v2079
      %v2081 = vpop.f32.mrb[0].mxu0
      %v2082 = vpop.f32.mrb[0].mxu0
      %v2083 = vadd.f32 0.0, %v2082
      %v2084 = vpop.f32.mrb[0].mxu0
      %2085 = vdwg.mxu0
      %v2086 = vmul.f32 %v739, %v1792
      %v2087 = vmul.f32 %v740, %v1795
      %v2088 = vmul.f32 %v741, %v1800
      %v2089 = vmul.f32 %v742, %v1803
      %v2090 = vmul.f32 %v743, %v1808
      %v2091 = vmul.f32 %v744, %v1811
      %v2092 = vmul.f32 %v745, %v1816
      %v2093 = vmul.f32 %v746, %v1819
      %v2094 = vmul.f32 %v747, %v1824
      %v2095 = vmul.f32 %v748, %v1827
      %v2096 = vmul.f32 %v749, %v1832
      %v2097 = vmul.f32 %v750, %v1835
      %v2098 = vmul.f32 %v751, %v1840
      %v2099 = vmul.f32 %v752, %v1843
      %v2100 = vmul.f32 %v753, %v1848
      %v2101 = vmul.f32 %v754, %v1851
      %v2102 = vmul.f32 %v755, %v1856
      %v2103 = vmul.f32 %v756, %v1859
      %v2104 = vmul.f32 %v757, %v1864
      %v2105 = vmul.f32 %v758, %v1867
      %v2106 = vmul.f32 %v759, %v1872
      %v2107 = vmul.f32 %v760, %v1875
      %v2108 = vmul.f32 %v761, %v1880
      %v2109 = vmul.f32 %v762, %v1883
      %v2110 = vmul.f32 %v763, %v1888
      %v2111 = vmul.f32 %v764, %v1891
      %v2112 = vmul.f32 %v765, %v1896
      %v2113 = vmul.f32 %v766, %v1899
      %v2114 = vmul.f32 %v767, %v1904
      %v2115 = vmul.f32 %v768, %v1907
      %v2116 = vmul.f32 %v769, %v1912
      %v2117 = vmul.f32 %v770, %v1915
      %v2118 = vrot.slane %v2086, 7
      %v2119 = vrot.slane %v2087, 7
      %v2120 = vrot.slane %v2088, 7
      %v2121 = vrot.slane %v2089, 7
      %v2122 = vrot.slane %v2090, 7
      %v2123 = vrot.slane %v2091, 7
      %v2124 = vrot.slane %v2092, 7
      %v2125 = vrot.slane %v2093, 7
      %v2126 = vrot.slane %v2094, 7
      %v2127 = vrot.slane %v2095, 7
      %v2128 = vrot.slane %v2096, 7
      %v2129 = vrot.slane %v2097, 7
      %v2130 = vrot.slane %v2098, 7
      %v2131 = vrot.slane %v2099, 7
      %v2132 = vrot.slane %v2100, 7
      %v2133 = vrot.slane %v2101, 7
      %v2134 = vrot.slane %v2102, 7
      %v2135 = vrot.slane %v2103, 7
      %v2136 = vrot.slane %v2104, 7
      %v2137 = vrot.slane %v2105, 7
      %v2138 = vrot.slane %v2106, 7
      %v2139 = vrot.slane %v2107, 7
      %v2140 = vrot.slane %v2108, 7
      %v2141 = vrot.slane %v2109, 7
      %v2142 = vrot.slane %v2110, 7
      %v2143 = vrot.slane %v2111, 7
      %v2144 = vrot.slane %v2112, 7
      %v2145 = vrot.slane %v2113, 7
      %v2146 = vrot.slane %v2114, 7
      %v2147 = vrot.slane %v2115, 7
      %v2148 = vrot.slane %v2116, 7
      %v2149 = vrot.slane %v2117, 7
      %v2150 = vsel %vm1395, %v2148, %v2149
      %v2151 = vsel %vm1395, %v2147, %v2148
      %v2152 = vsel %vm1395, %v2146, %v2147
      %v2153 = vsel %vm1395, %v2145, %v2146
      %v2154 = vsel %vm1395, %v2144, %v2145
      %v2155 = vsel %vm1395, %v2143, %v2144
      %v2156 = vsel %vm1395, %v2142, %v2143
      %v2157 = vsel %vm1395, %v2141, %v2142
      %v2158 = vsel %vm1395, %v2140, %v2141
      %v2159 = vsel %vm1395, %v2139, %v2140
      %v2160 = vsel %vm1395, %v2138, %v2139
      %v2161 = vsel %vm1395, %v2137, %v2138
      %v2162 = vsel %vm1395, %v2136, %v2137
      %v2163 = vsel %vm1395, %v2135, %v2136
      %v2164 = vsel %vm1395, %v2134, %v2135
      %v2165 = vsel %vm1395, %v2133, %v2134
      %v2166 = vsel %vm1395, %v2132, %v2133
      %v2167 = vsel %vm1395, %v2131, %v2132
      %v2168 = vsel %vm1395, %v2130, %v2131
      %v2169 = vsel %vm1395, %v2129, %v2130
      %v2170 = vsel %vm1395, %v2128, %v2129
      %v2171 = vsel %vm1395, %v2127, %v2128
      %v2172 = vsel %vm1395, %v2126, %v2127
      %v2173 = vsel %vm1395, %v2125, %v2126
      %v2174 = vsel %vm1395, %v2124, %v2125
      %v2175 = vsel %vm1395, %v2123, %v2124
      %v2176 = vsel %vm1395, %v2122, %v2123
      %v2177 = vsel %vm1395, %v2121, %v2122
      %v2178 = vsel %vm1395, %v2120, %v2121
      %v2179 = vsel %vm1395, %v2119, %v2120
      %v2180 = vsel %vm1395, %v2118, %v2119
      %v2181 = vsel %vm1395, %v2149, %v2118
      %v2183 = vsel %vm998, %v1919, 0
      %2185 = vmatprep.subr.bf16.mxu0 0
      %2186 = vmatpush1.bf16.msra.mxu0 %v2183
      %2187 = vmatprep.subr.bf16.mxu0 0
      %2188 = vmatpush1.bf16.msra.mxu0 0
      %2189 = vmatprep.subr.bf16.mxu0 0
      %2190 = vmatpush1.bf16.msra.mxu0 0
      %2191 = vmatprep.subr.bf16.mxu0 0
      %2192 = vmatpush1.bf16.msra.mxu0 0
      %2193 = vmatprep.subr.bf16.mxu0 0
      %2194 = vmatpush1.bf16.msra.mxu0 0
      %2195 = vmatprep.subr.bf16.mxu0 0
      %2196 = vmatpush1.bf16.msra.mxu0 0
      %2197 = vmatprep.subr.bf16.mxu0 0
      %2198 = vmatpush1.bf16.msra.mxu0 0
      %2199 = vmatprep.subr.bf16.mxu0 0
      %2200 = vmatpush1.bf16.msra.mxu0 0
      %2201 = vmatprep.subr.bf16.mxu0 0
      %2202 = vmatpush1.bf16.msra.mxu0 0
      %2203 = vmatprep.subr.bf16.mxu0 0
      %2204 = vmatpush1.bf16.msra.mxu0 0
      %2205 = vmatprep.subr.bf16.mxu0 0
      %2206 = vmatpush1.bf16.msra.mxu0 0
      %2207 = vmatprep.subr.bf16.mxu0 0
      %2208 = vmatpush1.bf16.msra.mxu0 0
      %2209 = vmatprep.subr.bf16.mxu0 0
      %2210 = vmatpush1.bf16.msra.mxu0 0
      %2211 = vmatprep.subr.bf16.mxu0 0
      %2212 = vmatpush1.bf16.msra.mxu0 0
      %2213 = vmatprep.subr.bf16.mxu0 0
      %2214 = vmatpush1.bf16.msra.mxu0 0
      %2215 = vmatprep.subr.bf16.mxu0 0
      %2216 = vmatpush1.bf16.msra.mxu0 0
      %2217 = vmatprep.mubr.bf16.mxu0 0
      %2218 = vmatmul.mubr.bf16.gmra.mrb[0].mxu0 %v951
      %v2219 = vpop.f32.mrb[0].mxu0
      %v2220 = vadd.f32 %v2181, %v2219
      %v2221 = vpop.f32.mrb[0].mxu0
      %v2222 = vpop.f32.mrb[0].mxu0
      %v2223 = vadd.f32 %v2180, %v2222
      %v2224 = vpop.f32.mrb[0].mxu0
      %2225 = vmatprep.mubr.bf16.mxu0 0
      %2226 = vmatmul.mubr.bf16.gmra.mrb[0].mxu0 %v954
      %v2227 = vpop.f32.mrb[0].mxu0
      %v2228 = vadd.f32 %v2179, %v2227
      %v2229 = vpop.f32.mrb[0].mxu0
      %v2230 = vpop.f32.mrb[0].mxu0
      %v2231 = vadd.f32 %v2178, %v2230
      %v2232 = vpop.f32.mrb[0].mxu0
      %2233 = vmatprep.mubr.bf16.mxu0 0
      %2234 = vmatmul.mubr.bf16.gmra.mrb[0].mxu0 %v957
      %v2235 = vpop.f32.mrb[0].mxu0
      %v2236 = vadd.f32 %v2177, %v2235
      %v2237 = vpop.f32.mrb[0].mxu0
      %v2238 = vpop.f32.mrb[0].mxu0
      %v2239 = vadd.f32 %v2176, %v2238
      %v2240 = vpop.f32.mrb[0].mxu0
      %2241 = vmatprep.mubr.bf16.mxu0 0
      %2242 = vmatmul.mubr.bf16.gmra.mrb[0].mxu0 %v960
      %v2243 = vpop.f32.mrb[0].mxu0
      %v2244 = vadd.f32 %v2175, %v2243
      %v2245 = vpop.f32.mrb[0].mxu0
      %v2246 = vpop.f32.mrb[0].mxu0
      %v2247 = vadd.f32 %v2174, %v2246
      %v2248 = vpop.f32.mrb[0].mxu0
      %2249 = vmatprep.mubr.bf16.mxu0 0
      %2250 = vmatmul.mubr.bf16.gmra.mrb[0].mxu0 %v963
      %v2251 = vpop.f32.mrb[0].mxu0
      %v2252 = vadd.f32 %v2173, %v2251
      %v2253 = vpop.f32.mrb[0].mxu0
      %v2254 = vpop.f32.mrb[0].mxu0
      %v2255 = vadd.f32 %v2172, %v2254
      %v2256 = vpop.f32.mrb[0].mxu0
      %2257 = vmatprep.mubr.bf16.mxu0 0
      %2258 = vmatmul.mubr.bf16.gmra.mrb[0].mxu0 %v966
      %v2259 = vpop.f32.mrb[0].mxu0
      %v2260 = vadd.f32 %v2171, %v2259
      %v2261 = vpop.f32.mrb[0].mxu0
      %v2262 = vpop.f32.mrb[0].mxu0
      %v2263 = vadd.f32 %v2170, %v2262
      %v2264 = vpop.f32.mrb[0].mxu0
      %2265 = vmatprep.mubr.bf16.mxu0 0
      %2266 = vmatmul.mubr.bf16.gmra.mrb[0].mxu0 %v969
      %v2267 = vpop.f32.mrb[0].mxu0
      %v2268 = vadd.f32 %v2169, %v2267
      %v2269 = vpop.f32.mrb[0].mxu0
      %v2270 = vpop.f32.mrb[0].mxu0
      %v2271 = vadd.f32 %v2168, %v2270
      %v2272 = vpop.f32.mrb[0].mxu0
      %2273 = vmatprep.mubr.bf16.mxu0 0
      %2274 = vmatmul.mubr.bf16.gmra.mrb[0].mxu0 %v972
      %v2275 = vpop.f32.mrb[0].mxu0
      %v2276 = vadd.f32 %v2167, %v2275
      %v2277 = vpop.f32.mrb[0].mxu0
      %v2278 = vpop.f32.mrb[0].mxu0
      %v2279 = vadd.f32 %v2166, %v2278
      %v2280 = vpop.f32.mrb[0].mxu0
      %2281 = vmatprep.mubr.bf16.mxu0 0
      %2282 = vmatmul.mubr.bf16.gmra.mrb[0].mxu0 %v975
      %v2283 = vpop.f32.mrb[0].mxu0
      %v2284 = vadd.f32 %v2165, %v2283
      %v2285 = vpop.f32.mrb[0].mxu0
      %v2286 = vpop.f32.mrb[0].mxu0
      %v2287 = vadd.f32 %v2164, %v2286
      %v2288 = vpop.f32.mrb[0].mxu0
      %2289 = vmatprep.mubr.bf16.mxu0 0
      %2290 = vmatmul.mubr.bf16.gmra.mrb[0].mxu0 %v978
      %v2291 = vpop.f32.mrb[0].mxu0
      %v2292 = vadd.f32 %v2163, %v2291
      %v2293 = vpop.f32.mrb[0].mxu0
      %v2294 = vpop.f32.mrb[0].mxu0
      %v2295 = vadd.f32 %v2162, %v2294
      %v2296 = vpop.f32.mrb[0].mxu0
      %2297 = vmatprep.mubr.bf16.mxu0 0
      %2298 = vmatmul.mubr.bf16.gmra.mrb[0].mxu0 %v981
      %v2299 = vpop.f32.mrb[0].mxu0
      %v2300 = vadd.f32 %v2161, %v2299
      %v2301 = vpop.f32.mrb[0].mxu0
      %v2302 = vpop.f32.mrb[0].mxu0
      %v2303 = vadd.f32 %v2160, %v2302
      %v2304 = vpop.f32.mrb[0].mxu0
      %2305 = vmatprep.mubr.bf16.mxu0 0
      %2306 = vmatmul.mubr.bf16.gmra.mrb[0].mxu0 %v984
      %v2307 = vpop.f32.mrb[0].mxu0
      %v2308 = vadd.f32 %v2159, %v2307
      %v2309 = vpop.f32.mrb[0].mxu0
      %v2310 = vpop.f32.mrb[0].mxu0
      %v2311 = vadd.f32 %v2158, %v2310
      %v2312 = vpop.f32.mrb[0].mxu0
      %2313 = vmatprep.mubr.bf16.mxu0 0
      %2314 = vmatmul.mubr.bf16.gmra.mrb[0].mxu0 %v987
      %v2315 = vpop.f32.mrb[0].mxu0
      %v2316 = vadd.f32 %v2157, %v2315
      %v2317 = vpop.f32.mrb[0].mxu0
      %v2318 = vpop.f32.mrb[0].mxu0
      %v2319 = vadd.f32 %v2156, %v2318
      %v2320 = vpop.f32.mrb[0].mxu0
      %2321 = vmatprep.mubr.bf16.mxu0 0
      %2322 = vmatmul.mubr.bf16.gmra.mrb[0].mxu0 %v990
      %v2323 = vpop.f32.mrb[0].mxu0
      %v2324 = vadd.f32 %v2155, %v2323
      %v2325 = vpop.f32.mrb[0].mxu0
      %v2326 = vpop.f32.mrb[0].mxu0
      %v2327 = vadd.f32 %v2154, %v2326
      %v2328 = vpop.f32.mrb[0].mxu0
      %2329 = vmatprep.mubr.bf16.mxu0 0
      %2330 = vmatmul.mubr.bf16.gmra.mrb[0].mxu0 %v993
      %v2331 = vpop.f32.mrb[0].mxu0
      %v2332 = vadd.f32 %v2153, %v2331
      %v2333 = vpop.f32.mrb[0].mxu0
      %v2334 = vpop.f32.mrb[0].mxu0
      %v2335 = vadd.f32 %v2152, %v2334
      %v2336 = vpop.f32.mrb[0].mxu0
      %2337 = vmatprep.mubr.bf16.mxu0 0
      %2338 = vmatmul.mubr.bf16.gmra.mrb[0].mxu0 %v996
      %v2339 = vpop.f32.mrb[0].mxu0
      %v2340 = vadd.f32 %v2151, %v2339
      %v2341 = vpop.f32.mrb[0].mxu0
      %v2342 = vpop.f32.mrb[0].mxu0
      %v2343 = vadd.f32 %v2150, %v2342
      %v2344 = vpop.f32.mrb[0].mxu0
      %2345 = vdwg.mxu0
      %v2346 = vmul.f32 %v835, %v1960
      %v2347 = vmul.f32 %v836, %v1963
      %v2348 = vmul.f32 %v837, %v1968
      %v2349 = vmul.f32 %v838, %v1971
      %v2350 = vmul.f32 %v839, %v1976
      %v2351 = vmul.f32 %v840, %v1979
      %v2352 = vmul.f32 %v841, %v1984
      %v2353 = vmul.f32 %v842, %v1987
      %v2354 = vmul.f32 %v843, %v1992
      %v2355 = vmul.f32 %v844, %v1995
      %v2356 = vmul.f32 %v845, %v2000
      %v2357 = vmul.f32 %v846, %v2003
      %v2358 = vmul.f32 %v847, %v2008
      %v2359 = vmul.f32 %v848, %v2011
      %v2360 = vmul.f32 %v849, %v2016
      %v2361 = vmul.f32 %v850, %v2019
      %v2362 = vmul.f32 %v851, %v2024
      %v2363 = vmul.f32 %v852, %v2027
      %v2364 = vmul.f32 %v853, %v2032
      %v2365 = vmul.f32 %v854, %v2035
      %v2366 = vmul.f32 %v855, %v2040
      %v2367 = vmul.f32 %v856, %v2043
      %v2368 = vmul.f32 %v857, %v2048
      %v2369 = vmul.f32 %v858, %v2051
      %v2370 = vmul.f32 %v859, %v2056
      %v2371 = vmul.f32 %v860, %v2059
      %v2372 = vmul.f32 %v861, %v2064
      %v2373 = vmul.f32 %v862, %v2067
      %v2374 = vmul.f32 %v863, %v2072
      %v2375 = vmul.f32 %v864, %v2075
      %v2376 = vmul.f32 %v865, %v2080
      %v2377 = vmul.f32 %v866, %v2083
      %v2378 = vrot.slane %v2346, 1
      %v2379 = vrot.slane %v2347, 1
      %v2380 = vrot.slane %v2348, 1
      %v2381 = vrot.slane %v2349, 1
      %v2382 = vrot.slane %v2350, 1
      %v2383 = vrot.slane %v2351, 1
      %v2384 = vrot.slane %v2352, 1
      %v2385 = vrot.slane %v2353, 1
      %v2386 = vrot.slane %v2354, 1
      %v2387 = vrot.slane %v2355, 1
      %v2388 = vrot.slane %v2356, 1
      %v2389 = vrot.slane %v2357, 1
      %v2390 = vrot.slane %v2358, 1
      %v2391 = vrot.slane %v2359, 1
      %v2392 = vrot.slane %v2360, 1
      %v2393 = vrot.slane %v2361, 1
      %v2394 = vrot.slane %v2362, 1
      %v2395 = vrot.slane %v2363, 1
      %v2396 = vrot.slane %v2364, 1
      %v2397 = vrot.slane %v2365, 1
      %v2398 = vrot.slane %v2366, 1
      %v2399 = vrot.slane %v2367, 1
      %v2400 = vrot.slane %v2368, 1
      %v2401 = vrot.slane %v2369, 1
      %v2402 = vrot.slane %v2370, 1
      %v2403 = vrot.slane %v2371, 1
      %v2404 = vrot.slane %v2372, 1
      %v2405 = vrot.slane %v2373, 1
      %v2406 = vrot.slane %v2374, 1
      %v2407 = vrot.slane %v2375, 1
      %v2408 = vrot.slane %v2376, 1
      %v2409 = vrot.slane %v2377, 1
      %v2410 = vsel %vm1656, %v2408, %v2409
      %v2411 = vsel %vm1656, %v2407, %v2408
      %v2412 = vsel %vm1656, %v2406, %v2407
      %v2413 = vsel %vm1656, %v2405, %v2406
      %v2414 = vsel %vm1656, %v2404, %v2405
      %v2415 = vsel %vm1656, %v2403, %v2404
      %v2416 = vsel %vm1656, %v2402, %v2403
      %v2417 = vsel %vm1656, %v2401, %v2402
      %v2418 = vsel %vm1656, %v2400, %v2401
      %v2419 = vsel %vm1656, %v2399, %v2400
      %v2420 = vsel %vm1656, %v2398, %v2399
      %v2421 = vsel %vm1656, %v2397, %v2398
      %v2422 = vsel %vm1656, %v2396, %v2397
      %v2423 = vsel %vm1656, %v2395, %v2396
      %v2424 = vsel %vm1656, %v2394, %v2395
      %v2425 = vsel %vm1656, %v2393, %v2394
      %v2426 = vsel %vm1656, %v2392, %v2393
      %v2427 = vsel %vm1656, %v2391, %v2392
      %v2428 = vsel %vm1656, %v2390, %v2391
      %v2429 = vsel %vm1656, %v2389, %v2390
      %v2430 = vsel %vm1656, %v2388, %v2389
      %v2431 = vsel %vm1656, %v2387, %v2388
      %v2432 = vsel %vm1656, %v2386, %v2387
      %v2433 = vsel %vm1656, %v2385, %v2386
      %v2434 = vsel %vm1656, %v2384, %v2385
      %v2435 = vsel %vm1656, %v2383, %v2384
      %v2436 = vsel %vm1656, %v2382, %v2383
      %v2437 = vsel %vm1656, %v2381, %v2382
      %v2438 = vsel %vm1656, %v2380, %v2381
      %v2439 = vsel %vm1656, %v2379, %v2380
      %v2440 = vsel %vm1656, %v2378, %v2379
      %v2441 = vsel %vm1656, %v2409, %v2378
      %v2442 = vadd.f32 %v2220, %v2440
      %v2443 = vadd.f32 %v2223, %v2439
      %v2444 = vadd.f32 %v2228, %v2438
      %v2445 = vadd.f32 %v2231, %v2437
      %v2446 = vadd.f32 %v2236, %v2436
      %v2447 = vadd.f32 %v2239, %v2435
      %v2448 = vadd.f32 %v2244, %v2434
      %v2449 = vadd.f32 %v2247, %v2433
      %v2450 = vadd.f32 %v2252, %v2432
      %v2451 = vadd.f32 %v2255, %v2431
      %v2452 = vadd.f32 %v2260, %v2430
      %v2453 = vadd.f32 %v2263, %v2429
      %v2454 = vadd.f32 %v2268, %v2428
      %v2455 = vadd.f32 %v2271, %v2427
      %v2456 = vadd.f32 %v2276, %v2426
      %v2457 = vadd.f32 %v2279, %v2425
      %v2458 = vadd.f32 %v2284, %v2424
      %v2459 = vadd.f32 %v2287, %v2423
      %v2460 = vadd.f32 %v2292, %v2422
      %v2461 = vadd.f32 %v2295, %v2421
      %v2462 = vadd.f32 %v2300, %v2420
      %v2463 = vadd.f32 %v2303, %v2419
      %v2464 = vadd.f32 %v2308, %v2418
      %v2465 = vadd.f32 %v2311, %v2417
      %v2466 = vadd.f32 %v2316, %v2416
      %v2467 = vadd.f32 %v2319, %v2415
      %v2468 = vadd.f32 %v2324, %v2414
      %v2469 = vadd.f32 %v2327, %v2413
      %v2470 = vadd.f32 %v2332, %v2412
      %v2471 = vadd.f32 %v2335, %v2411
      %v2472 = vadd.f32 %v2340, %v2410
      %v2473 = vadd.f32 %v2343, %v2441
      %v2474 = vld [vmem:[#allocation2 + $0x20] sm:$0xff]
      %v2475 = vld [vmem:[#allocation2 + $0x28] sm:$0xff]
      %v2476 = vld [vmem:[#allocation2 + $0x30] sm:$0xff]
      %v2477 = vld [vmem:[#allocation2 + $0x38] sm:$0xff]
      %v2478 = vld [vmem:[#allocation2 + $0x40] sm:$0xff]
      %v2479 = vld [vmem:[#allocation2 + $0x48] sm:$0xff]
      %v2480 = vld [vmem:[#allocation2 + $0x50] sm:$0xff]
      %v2481 = vld [vmem:[#allocation2 + $0x58] sm:$0xff]
      %v2482 = vld [vmem:[#allocation2 + $0x60] sm:$0xff]
      %v2483 = vld [vmem:[#allocation2 + $0x68] sm:$0xff]
      %v2484 = vld [vmem:[#allocation2 + $0x70] sm:$0xff]
      %v2485 = vld [vmem:[#allocation2 + $0x78] sm:$0xff]
      %v2486 = vld [vmem:[#allocation2 + $0x80] sm:$0xff]
      %v2487 = vld [vmem:[#allocation2 + $0x88] sm:$0xff]
      %v2488 = vld [vmem:[#allocation2 + $0x90] sm:$0xff]
      %v2489 = vld [vmem:[#allocation2 + $0x98] sm:$0xff]
      %v2490 = vld [vmem:[#allocation2 + $0xa0] sm:$0xff]
      %v2491 = vld [vmem:[#allocation2 + $0xa8] sm:$0xff]
      %v2492 = vld [vmem:[#allocation2 + $0xb0] sm:$0xff]
      %v2493 = vld [vmem:[#allocation2 + $0xb8] sm:$0xff]
      %v2494 = vld [vmem:[#allocation2 + $0xc0] sm:$0xff]
      %v2495 = vld [vmem:[#allocation2 + $0xc8] sm:$0xff]
      %v2496 = vld [vmem:[#allocation2 + $0xd0] sm:$0xff]
      %v2497 = vld [vmem:[#allocation2 + $0xd8] sm:$0xff]
      %v2498 = vld [vmem:[#allocation2 + $0xe0] sm:$0xff]
      %v2499 = vld [vmem:[#allocation2 + $0xe8] sm:$0xff]
      %v2500 = vld [vmem:[#allocation2 + $0xf0] sm:$0xff]
      %v2501 = vld [vmem:[#allocation2 + $0xf8] sm:$0xff]
      %v2502 = vld [vmem:[#allocation2 + $0x100] sm:$0xff]
      %v2503 = vld [vmem:[#allocation2 + $0x108] sm:$0xff]
      %v2504 = vld [vmem:[#allocation2 + $0x110] sm:$0xff]
      %v2505 = vld [vmem:[#allocation2 + $0x118] sm:$0xff]
      %v2506 = vadd.f32 %v2474, %v2442
      %v2507 = vadd.f32 %v2475, %v2443
      %v2508 = vadd.f32 %v2476, %v2444
      %v2509 = vadd.f32 %v2477, %v2445
      %v2510 = vadd.f32 %v2478, %v2446
      %v2511 = vadd.f32 %v2479, %v2447
      %v2512 = vadd.f32 %v2480, %v2448
      %v2513 = vadd.f32 %v2481, %v2449
      %v2514 = vadd.f32 %v2482, %v2450
      %v2515 = vadd.f32 %v2483, %v2451
      %v2516 = vadd.f32 %v2484, %v2452
      %v2517 = vadd.f32 %v2485, %v2453
      %v2518 = vadd.f32 %v2486, %v2454
      %v2519 = vadd.f32 %v2487, %v2455
      %v2520 = vadd.f32 %v2488, %v2456
      %v2521 = vadd.f32 %v2489, %v2457
      %v2522 = vadd.f32 %v2490, %v2458
      %v2523 = vadd.f32 %v2491, %v2459
      %v2524 = vadd.f32 %v2492, %v2460
      %v2525 = vadd.f32 %v2493, %v2461
      %v2526 = vadd.f32 %v2494, %v2462
      %v2527 = vadd.f32 %v2495, %v2463
      %v2528 = vadd.f32 %v2496, %v2464
      %v2529 = vadd.f32 %v2497, %v2465
      %v2530 = vadd.f32 %v2498, %v2466
      %v2531 = vadd.f32 %v2499, %v2467
      %v2532 = vadd.f32 %v2500, %v2468
      %v2533 = vadd.f32 %v2501, %v2469
      %v2534 = vadd.f32 %v2502, %v2470
      %v2535 = vadd.f32 %v2503, %v2471
      %v2536 = vadd.f32 %v2504, %v2472
      %v2537 = vadd.f32 %v2505, %v2473
      %2538 = vst.msk [vmem:[#allocation2 + $0x20] sm:$0xff] %vm949, %v2506
      %2539 = vst.msk [vmem:[#allocation2 + $0x28] sm:$0xff] %vm949, %v2507
      %2540 = vst.msk [vmem:[#allocation2 + $0x30] sm:$0xff] %vm949, %v2508
      %2541 = vst.msk [vmem:[#allocation2 + $0x38] sm:$0xff] %vm949, %v2509
      %2542 = vst.msk [vmem:[#allocation2 + $0x40] sm:$0xff] %vm949, %v2510
      %2543 = vst.msk [vmem:[#allocation2 + $0x48] sm:$0xff] %vm949, %v2511
      %2544 = vst.msk [vmem:[#allocation2 + $0x50] sm:$0xff] %vm949, %v2512
      %2545 = vst.msk [vmem:[#allocation2 + $0x58] sm:$0xff] %vm949, %v2513
      %2546 = vst.msk [vmem:[#allocation2 + $0x60] sm:$0xff] %vm949, %v2514
      %2547 = vst.msk [vmem:[#allocation2 + $0x68] sm:$0xff] %vm949, %v2515
      %2548 = vst.msk [vmem:[#allocation2 + $0x70] sm:$0xff] %vm949, %v2516
      %2549 = vst.msk [vmem:[#allocation2 + $0x78] sm:$0xff] %vm949, %v2517
      %2550 = vst.msk [vmem:[#allocation2 + $0x80] sm:$0xff] %vm949, %v2518
      %2551 = vst.msk [vmem:[#allocation2 + $0x88] sm:$0xff] %vm949, %v2519
      %2552 = vst.msk [vmem:[#allocation2 + $0x90] sm:$0xff] %vm949, %v2520
      %2553 = vst.msk [vmem:[#allocation2 + $0x98] sm:$0xff] %vm949, %v2521
      %2554 = vst.msk [vmem:[#allocation2 + $0xa0] sm:$0xff] %vm949, %v2522
      %2555 = vst.msk [vmem:[#allocation2 + $0xa8] sm:$0xff] %vm949, %v2523
      %2556 = vst.msk [vmem:[#allocation2 + $0xb0] sm:$0xff] %vm949, %v2524
      %2557 = vst.msk [vmem:[#allocation2 + $0xb8] sm:$0xff] %vm949, %v2525
      %2558 = vst.msk [vmem:[#allocation2 + $0xc0] sm:$0xff] %vm949, %v2526
      %2559 = vst.msk [vmem:[#allocation2 + $0xc8] sm:$0xff] %vm949, %v2527
      %2560 = vst.msk [vmem:[#allocation2 + $0xd0] sm:$0xff] %vm949, %v2528
      %2561 = vst.msk [vmem:[#allocation2 + $0xd8] sm:$0xff] %vm949, %v2529
      %2562 = vst.msk [vmem:[#allocation2 + $0xe0] sm:$0xff] %vm949, %v2530
      %2563 = vst.msk [vmem:[#allocation2 + $0xe8] sm:$0xff] %vm949, %v2531
      %2564 = vst.msk [vmem:[#allocation2 + $0xf0] sm:$0xff] %vm949, %v2532
      %2565 = vst.msk [vmem:[#allocation2 + $0xf8] sm:$0xff] %vm949, %v2533
      %2566 = vst.msk [vmem:[#allocation2 + $0x100] sm:$0xff] %vm949, %v2534
      %2567 = vst.msk [vmem:[#allocation2 + $0x108] sm:$0xff] %vm949, %v2535
      %2568 = vst.msk [vmem:[#allocation2 + $0x110] sm:$0xff] %vm949, %v2536
      %2569 = vst.msk [vmem:[#allocation2 + $0x118] sm:$0xff] %vm949, %v2537
      %s2570 = scalar_lea.vmem %s1, 24
      %v2571 = vld [vmem:[%s2570] sm:$0xf]
      %v2573 = vsel %vm998, %v2571, 0
      %2575 = vmatprep.subr.bf16.mxu0 0
      %2576 = vmatpush1.bf16.msra.mxu0 %v2573
      %2577 = vmatprep.subr.bf16.mxu0 0
      %2578 = vmatpush1.bf16.msra.mxu0 0
      %2579 = vmatprep.subr.bf16.mxu0 0
      %2580 = vmatpush1.bf16.msra.mxu0 0
      %2581 = vmatprep.subr.bf16.mxu0 0
      %2582 = vmatpush1.bf16.msra.mxu0 0
      %2583 = vmatprep.subr.bf16.mxu0 0
      %2584 = vmatpush1.bf16.msra.mxu0 0
      %2585 = vmatprep.subr.bf16.mxu0 0
      %2586 = vmatpush1.bf16.msra.mxu0 0
      %2587 = vmatprep.subr.bf16.mxu0 0
      %2588 = vmatpush1.bf16.msra.mxu0 0
      %2589 = vmatprep.subr.bf16.mxu0 0
      %2590 = vmatpush1.bf16.msra.mxu0 0
      %2591 = vmatprep.subr.bf16.mxu0 0
      %2592 = vmatpush1.bf16.msra.mxu0 0
      %2593 = vmatprep.subr.bf16.mxu0 0
      %2594 = vmatpush1.bf16.msra.mxu0 0
      %2595 = vmatprep.subr.bf16.mxu0 0
      %2596 = vmatpush1.bf16.msra.mxu0 0
      %2597 = vmatprep.subr.bf16.mxu0 0
      %2598 = vmatpush1.bf16.msra.mxu0 0
      %2599 = vmatprep.subr.bf16.mxu0 0
      %2600 = vmatpush1.bf16.msra.mxu0 0
      %2601 = vmatprep.subr.bf16.mxu0 0
      %2602 = vmatpush1.bf16.msra.mxu0 0
      %2603 = vmatprep.subr.bf16.mxu0 0
      %2604 = vmatpush1.bf16.msra.mxu0 0
      %2605 = vmatprep.subr.bf16.mxu0 0
      %2606 = vmatpush1.bf16.msra.mxu0 0
      %2607 = vmatprep.mubr.bf16.mxu0 0
      %2608 = vmatmul.mubr.bf16.gmra.mrb[0].mxu0 %v951
      %v2609 = vpop.f32.mrb[0].mxu0
      %v2610 = vadd.f32 0.0, %v2609
      %v2611 = vpop.f32.mrb[0].mxu0
      %v2612 = vpop.f32.mrb[0].mxu0
      %v2613 = vadd.f32 0.0, %v2612
      %v2614 = vpop.f32.mrb[0].mxu0
      %2615 = vmatprep.mubr.bf16.mxu0 0
      %2616 = vmatmul.mubr.bf16.gmra.mrb[0].mxu0 %v954
      %v2617 = vpop.f32.mrb[0].mxu0
      %v2618 = vadd.f32 0.0, %v2617
      %v2619 = vpop.f32.mrb[0].mxu0
      %v2620 = vpop.f32.mrb[0].mxu0
      %v2621 = vadd.f32 0.0, %v2620
      %v2622 = vpop.f32.mrb[0].mxu0
      %2623 = vmatprep.mubr.bf16.mxu0 0
      %2624 = vmatmul.mubr.bf16.gmra.mrb[0].mxu0 %v957
      %v2625 = vpop.f32.mrb[0].mxu0
      %v2626 = vadd.f32 0.0, %v2625
      %v2627 = vpop.f32.mrb[0].mxu0
      %v2628 = vpop.f32.mrb[0].mxu0
      %v2629 = vadd.f32 0.0, %v2628
      %v2630 = vpop.f32.mrb[0].mxu0
      %2631 = vmatprep.mubr.bf16.mxu0 0
      %2632 = vmatmul.mubr.bf16.gmra.mrb[0].mxu0 %v960
      %v2633 = vpop.f32.mrb[0].mxu0
      %v2634 = vadd.f32 0.0, %v2633
      %v2635 = vpop.f32.mrb[0].mxu0
      %v2636 = vpop.f32.mrb[0].mxu0
      %v2637 = vadd.f32 0.0, %v2636
      %v2638 = vpop.f32.mrb[0].mxu0
      %2639 = vmatprep.mubr.bf16.mxu0 0
      %2640 = vmatmul.mubr.bf16.gmra.mrb[0].mxu0 %v963
      %v2641 = vpop.f32.mrb[0].mxu0
      %v2642 = vadd.f32 0.0, %v2641
      %v2643 = vpop.f32.mrb[0].mxu0
      %v2644 = vpop.f32.mrb[0].mxu0
      %v2645 = vadd.f32 0.0, %v2644
      %v2646 = vpop.f32.mrb[0].mxu0
      %2647 = vmatprep.mubr.bf16.mxu0 0
      %2648 = vmatmul.mubr.bf16.gmra.mrb[0].mxu0 %v966
      %v2649 = vpop.f32.mrb[0].mxu0
      %v2650 = vadd.f32 0.0, %v2649
      %v2651 = vpop.f32.mrb[0].mxu0
      %v2652 = vpop.f32.mrb[0].mxu0
      %v2653 = vadd.f32 0.0, %v2652
      %v2654 = vpop.f32.mrb[0].mxu0
      %2655 = vmatprep.mubr.bf16.mxu0 0
      %2656 = vmatmul.mubr.bf16.gmra.mrb[0].mxu0 %v969
      %v2657 = vpop.f32.mrb[0].mxu0
      %v2658 = vadd.f32 0.0, %v2657
      %v2659 = vpop.f32.mrb[0].mxu0
      %v2660 = vpop.f32.mrb[0].mxu0
      %v2661 = vadd.f32 0.0, %v2660
      %v2662 = vpop.f32.mrb[0].mxu0
      %2663 = vmatprep.mubr.bf16.mxu0 0
      %2664 = vmatmul.mubr.bf16.gmra.mrb[0].mxu0 %v972
      %v2665 = vpop.f32.mrb[0].mxu0
      %v2666 = vadd.f32 0.0, %v2665
      %v2667 = vpop.f32.mrb[0].mxu0
      %v2668 = vpop.f32.mrb[0].mxu0
      %v2669 = vadd.f32 0.0, %v2668
      %v2670 = vpop.f32.mrb[0].mxu0
      %2671 = vmatprep.mubr.bf16.mxu0 0
      %2672 = vmatmul.mubr.bf16.gmra.mrb[0].mxu0 %v975
      %v2673 = vpop.f32.mrb[0].mxu0
      %v2674 = vadd.f32 0.0, %v2673
      %v2675 = vpop.f32.mrb[0].mxu0
      %v2676 = vpop.f32.mrb[0].mxu0
      %v2677 = vadd.f32 0.0, %v2676
      %v2678 = vpop.f32.mrb[0].mxu0
      %2679 = vmatprep.mubr.bf16.mxu0 0
      %2680 = vmatmul.mubr.bf16.gmra.mrb[0].mxu0 %v978
      %v2681 = vpop.f32.mrb[0].mxu0
      %v2682 = vadd.f32 0.0, %v2681
      %v2683 = vpop.f32.mrb[0].mxu0
      %v2684 = vpop.f32.mrb[0].mxu0
      %v2685 = vadd.f32 0.0, %v2684
      %v2686 = vpop.f32.mrb[0].mxu0
      %2687 = vmatprep.mubr.bf16.mxu0 0
      %2688 = vmatmul.mubr.bf16.gmra.mrb[0].mxu0 %v981
      %v2689 = vpop.f32.mrb[0].mxu0
      %v2690 = vadd.f32 0.0, %v2689
      %v2691 = vpop.f32.mrb[0].mxu0
      %v2692 = vpop.f32.mrb[0].mxu0
      %v2693 = vadd.f32 0.0, %v2692
      %v2694 = vpop.f32.mrb[0].mxu0
      %2695 = vmatprep.mubr.bf16.mxu0 0
      %2696 = vmatmul.mubr.bf16.gmra.mrb[0].mxu0 %v984
      %v2697 = vpop.f32.mrb[0].mxu0
      %v2698 = vadd.f32 0.0, %v2697
      %v2699 = vpop.f32.mrb[0].mxu0
      %v2700 = vpop.f32.mrb[0].mxu0
      %v2701 = vadd.f32 0.0, %v2700
      %v2702 = vpop.f32.mrb[0].mxu0
      %2703 = vmatprep.mubr.bf16.mxu0 0
      %2704 = vmatmul.mubr.bf16.gmra.mrb[0].mxu0 %v987
      %v2705 = vpop.f32.mrb[0].mxu0
      %v2706 = vadd.f32 0.0, %v2705
      %v2707 = vpop.f32.mrb[0].mxu0
      %v2708 = vpop.f32.mrb[0].mxu0
      %v2709 = vadd.f32 0.0, %v2708
      %v2710 = vpop.f32.mrb[0].mxu0
      %2711 = vmatprep.mubr.bf16.mxu0 0
      %2712 = vmatmul.mubr.bf16.gmra.mrb[0].mxu0 %v990
      %v2713 = vpop.f32.mrb[0].mxu0
      %v2714 = vadd.f32 0.0, %v2713
      %v2715 = vpop.f32.mrb[0].mxu0
      %v2716 = vpop.f32.mrb[0].mxu0
      %v2717 = vadd.f32 0.0, %v2716
      %v2718 = vpop.f32.mrb[0].mxu0
      %2719 = vmatprep.mubr.bf16.mxu0 0
      %2720 = vmatmul.mubr.bf16.gmra.mrb[0].mxu0 %v993
      %v2721 = vpop.f32.mrb[0].mxu0
      %v2722 = vadd.f32 0.0, %v2721
      %v2723 = vpop.f32.mrb[0].mxu0
      %v2724 = vpop.f32.mrb[0].mxu0
      %v2725 = vadd.f32 0.0, %v2724
      %v2726 = vpop.f32.mrb[0].mxu0
      %2727 = vmatprep.mubr.bf16.mxu0 0
      %2728 = vmatmul.mubr.bf16.gmra.mrb[0].mxu0 %v996
      %v2729 = vpop.f32.mrb[0].mxu0
      %v2730 = vadd.f32 0.0, %v2729
      %v2731 = vpop.f32.mrb[0].mxu0
      %v2732 = vpop.f32.mrb[0].mxu0
      %v2733 = vadd.f32 0.0, %v2732
      %v2734 = vpop.f32.mrb[0].mxu0
      %2735 = vdwg.mxu0
      %s2736 = scalar_lea.vmem %s1, 28
      %v2737 = vld [vmem:[%s2736] sm:$0xf]
      %s2738 = scalar_lea.vmem %s1, 32
      %v2739 = vld [vmem:[%s2738] sm:$0xf]
      %v2741 = vsel %vm998, %v2739, 0
      %2743 = vmatprep.subr.bf16.mxu0 0
      %2744 = vmatpush1.bf16.msra.mxu0 %v2741
      %2745 = vmatprep.subr.bf16.mxu0 0
      %2746 = vmatpush1.bf16.msra.mxu0 0
      %2747 = vmatprep.subr.bf16.mxu0 0
      %2748 = vmatpush1.bf16.msra.mxu0 0
      %2749 = vmatprep.subr.bf16.mxu0 0
      %2750 = vmatpush1.bf16.msra.mxu0 0
      %2751 = vmatprep.subr.bf16.mxu0 0
      %2752 = vmatpush1.bf16.msra.mxu0 0
      %2753 = vmatprep.subr.bf16.mxu0 0
      %2754 = vmatpush1.bf16.msra.mxu0 0
      %2755 = vmatprep.subr.bf16.mxu0 0
      %2756 = vmatpush1.bf16.msra.mxu0 0
      %2757 = vmatprep.subr.bf16.mxu0 0
      %2758 = vmatpush1.bf16.msra.mxu0 0
      %2759 = vmatprep.subr.bf16.mxu0 0
      %2760 = vmatpush1.bf16.msra.mxu0 0
      %2761 = vmatprep.subr.bf16.mxu0 0
      %2762 = vmatpush1.bf16.msra.mxu0 0
      %2763 = vmatprep.subr.bf16.mxu0 0
      %2764 = vmatpush1.bf16.msra.mxu0 0
      %2765 = vmatprep.subr.bf16.mxu0 0
      %2766 = vmatpush1.bf16.msra.mxu0 0
      %2767 = vmatprep.subr.bf16.mxu0 0
      %2768 = vmatpush1.bf16.msra.mxu0 0
      %2769 = vmatprep.subr.bf16.mxu0 0
      %2770 = vmatpush1.bf16.msra.mxu0 0
      %2771 = vmatprep.subr.bf16.mxu0 0
      %2772 = vmatpush1.bf16.msra.mxu0 0
      %2773 = vmatprep.subr.bf16.mxu0 0
      %2774 = vmatpush1.bf16.msra.mxu0 0
      %2775 = vmatprep.mubr.bf16.mxu0 0
      %2776 = vmatmul.mubr.bf16.gmra.mrb[0].mxu0 %v951
      %v2777 = vpop.f32.mrb[0].mxu0
      %v2778 = vadd.f32 0.0, %v2777
      %v2779 = vpop.f32.mrb[0].mxu0
      %v2780 = vpop.f32.mrb[0].mxu0
      %v2781 = vadd.f32 0.0, %v2780
      %v2782 = vpop.f32.mrb[0].mxu0
      %2783 = vmatprep.mubr.bf16.mxu0 0
      %2784 = vmatmul.mubr.bf16.gmra.mrb[0].mxu0 %v954
      %v2785 = vpop.f32.mrb[0].mxu0
      %v2786 = vadd.f32 0.0, %v2785
      %v2787 = vpop.f32.mrb[0].mxu0
      %v2788 = vpop.f32.mrb[0].mxu0
      %v2789 = vadd.f32 0.0, %v2788
      %v2790 = vpop.f32.mrb[0].mxu0
      %2791 = vmatprep.mubr.bf16.mxu0 0
      %2792 = vmatmul.mubr.bf16.gmra.mrb[0].mxu0 %v957
      %v2793 = vpop.f32.mrb[0].mxu0
      %v2794 = vadd.f32 0.0, %v2793
      %v2795 = vpop.f32.mrb[0].mxu0
      %v2796 = vpop.f32.mrb[0].mxu0
      %v2797 = vadd.f32 0.0, %v2796
      %v2798 = vpop.f32.mrb[0].mxu0
      %2799 = vmatprep.mubr.bf16.mxu0 0
      %2800 = vmatmul.mubr.bf16.gmra.mrb[0].mxu0 %v960
      %v2801 = vpop.f32.mrb[0].mxu0
      %v2802 = vadd.f32 0.0, %v2801
      %v2803 = vpop.f32.mrb[0].mxu0
      %v2804 = vpop.f32.mrb[0].mxu0
      %v2805 = vadd.f32 0.0, %v2804
      %v2806 = vpop.f32.mrb[0].mxu0
      %2807 = vmatprep.mubr.bf16.mxu0 0
      %2808 = vmatmul.mubr.bf16.gmra.mrb[0].mxu0 %v963
      %v2809 = vpop.f32.mrb[0].mxu0
      %v2810 = vadd.f32 0.0, %v2809
      %v2811 = vpop.f32.mrb[0].mxu0
      %v2812 = vpop.f32.mrb[0].mxu0
      %v2813 = vadd.f32 0.0, %v2812
      %v2814 = vpop.f32.mrb[0].mxu0
      %2815 = vmatprep.mubr.bf16.mxu0 0
      %2816 = vmatmul.mubr.bf16.gmra.mrb[0].mxu0 %v966
      %v2817 = vpop.f32.mrb[0].mxu0
      %v2818 = vadd.f32 0.0, %v2817
      %v2819 = vpop.f32.mrb[0].mxu0
      %v2820 = vpop.f32.mrb[0].mxu0
      %v2821 = vadd.f32 0.0, %v2820
      %v2822 = vpop.f32.mrb[0].mxu0
      %2823 = vmatprep.mubr.bf16.mxu0 0
      %2824 = vmatmul.mubr.bf16.gmra.mrb[0].mxu0 %v969
      %v2825 = vpop.f32.mrb[0].mxu0
      %v2826 = vadd.f32 0.0, %v2825
      %v2827 = vpop.f32.mrb[0].mxu0
      %v2828 = vpop.f32.mrb[0].mxu0
      %v2829 = vadd.f32 0.0, %v2828
      %v2830 = vpop.f32.mrb[0].mxu0
      %2831 = vmatprep.mubr.bf16.mxu0 0
      %2832 = vmatmul.mubr.bf16.gmra.mrb[0].mxu0 %v972
      %v2833 = vpop.f32.mrb[0].mxu0
      %v2834 = vadd.f32 0.0, %v2833
      %v2835 = vpop.f32.mrb[0].mxu0
      %v2836 = vpop.f32.mrb[0].mxu0
      %v2837 = vadd.f32 0.0, %v2836
      %v2838 = vpop.f32.mrb[0].mxu0
      %2839 = vmatprep.mubr.bf16.mxu0 0
      %2840 = vmatmul.mubr.bf16.gmra.mrb[0].mxu0 %v975
      %v2841 = vpop.f32.mrb[0].mxu0
      %v2842 = vadd.f32 0.0, %v2841
      %v2843 = vpop.f32.mrb[0].mxu0
      %v2844 = vpop.f32.mrb[0].mxu0
      %v2845 = vadd.f32 0.0, %v2844
      %v2846 = vpop.f32.mrb[0].mxu0
      %2847 = vmatprep.mubr.bf16.mxu0 0
      %2848 = vmatmul.mubr.bf16.gmra.mrb[0].mxu0 %v978
      %v2849 = vpop.f32.mrb[0].mxu0
      %v2850 = vadd.f32 0.0, %v2849
      %v2851 = vpop.f32.mrb[0].mxu0
      %v2852 = vpop.f32.mrb[0].mxu0
      %v2853 = vadd.f32 0.0, %v2852
      %v2854 = vpop.f32.mrb[0].mxu0
      %2855 = vmatprep.mubr.bf16.mxu0 0
      %2856 = vmatmul.mubr.bf16.gmra.mrb[0].mxu0 %v981
      %v2857 = vpop.f32.mrb[0].mxu0
      %v2858 = vadd.f32 0.0, %v2857
      %v2859 = vpop.f32.mrb[0].mxu0
      %v2860 = vpop.f32.mrb[0].mxu0
      %v2861 = vadd.f32 0.0, %v2860
      %v2862 = vpop.f32.mrb[0].mxu0
      %2863 = vmatprep.mubr.bf16.mxu0 0
      %2864 = vmatmul.mubr.bf16.gmra.mrb[0].mxu0 %v984
      %v2865 = vpop.f32.mrb[0].mxu0
      %v2866 = vadd.f32 0.0, %v2865
      %v2867 = vpop.f32.mrb[0].mxu0
      %v2868 = vpop.f32.mrb[0].mxu0
      %v2869 = vadd.f32 0.0, %v2868
      %v2870 = vpop.f32.mrb[0].mxu0
      %2871 = vmatprep.mubr.bf16.mxu0 0
      %2872 = vmatmul.mubr.bf16.gmra.mrb[0].mxu0 %v987
      %v2873 = vpop.f32.mrb[0].mxu0
      %v2874 = vadd.f32 0.0, %v2873
      %v2875 = vpop.f32.mrb[0].mxu0
      %v2876 = vpop.f32.mrb[0].mxu0
      %v2877 = vadd.f32 0.0, %v2876
      %v2878 = vpop.f32.mrb[0].mxu0
      %2879 = vmatprep.mubr.bf16.mxu0 0
      %2880 = vmatmul.mubr.bf16.gmra.mrb[0].mxu0 %v990
      %v2881 = vpop.f32.mrb[0].mxu0
      %v2882 = vadd.f32 0.0, %v2881
      %v2883 = vpop.f32.mrb[0].mxu0
      %v2884 = vpop.f32.mrb[0].mxu0
      %v2885 = vadd.f32 0.0, %v2884
      %v2886 = vpop.f32.mrb[0].mxu0
      %2887 = vmatprep.mubr.bf16.mxu0 0
      %2888 = vmatmul.mubr.bf16.gmra.mrb[0].mxu0 %v993
      %v2889 = vpop.f32.mrb[0].mxu0
      %v2890 = vadd.f32 0.0, %v2889
      %v2891 = vpop.f32.mrb[0].mxu0
      %v2892 = vpop.f32.mrb[0].mxu0
      %v2893 = vadd.f32 0.0, %v2892
      %v2894 = vpop.f32.mrb[0].mxu0
      %2895 = vmatprep.mubr.bf16.mxu0 0
      %2896 = vmatmul.mubr.bf16.gmra.mrb[0].mxu0 %v996
      %v2897 = vpop.f32.mrb[0].mxu0
      %v2898 = vadd.f32 0.0, %v2897
      %v2899 = vpop.f32.mrb[0].mxu0
      %v2900 = vpop.f32.mrb[0].mxu0
      %v2901 = vadd.f32 0.0, %v2900
      %v2902 = vpop.f32.mrb[0].mxu0
      %2903 = vdwg.mxu0
      %v2904 = vmul.f32 %v739, %v2610
      %v2905 = vmul.f32 %v740, %v2613
      %v2906 = vmul.f32 %v741, %v2618
      %v2907 = vmul.f32 %v742, %v2621
      %v2908 = vmul.f32 %v743, %v2626
      %v2909 = vmul.f32 %v744, %v2629
      %v2910 = vmul.f32 %v745, %v2634
      %v2911 = vmul.f32 %v746, %v2637
      %v2912 = vmul.f32 %v747, %v2642
      %v2913 = vmul.f32 %v748, %v2645
      %v2914 = vmul.f32 %v749, %v2650
      %v2915 = vmul.f32 %v750, %v2653
      %v2916 = vmul.f32 %v751, %v2658
      %v2917 = vmul.f32 %v752, %v2661
      %v2918 = vmul.f32 %v753, %v2666
      %v2919 = vmul.f32 %v754, %v2669
      %v2920 = vmul.f32 %v755, %v2674
      %v2921 = vmul.f32 %v756, %v2677
      %v2922 = vmul.f32 %v757, %v2682
      %v2923 = vmul.f32 %v758, %v2685
      %v2924 = vmul.f32 %v759, %v2690
      %v2925 = vmul.f32 %v760, %v2693
      %v2926 = vmul.f32 %v761, %v2698
      %v2927 = vmul.f32 %v762, %v2701
      %v2928 = vmul.f32 %v763, %v2706
      %v2929 = vmul.f32 %v764, %v2709
      %v2930 = vmul.f32 %v765, %v2714
      %v2931 = vmul.f32 %v766, %v2717
      %v2932 = vmul.f32 %v767, %v2722
      %v2933 = vmul.f32 %v768, %v2725
      %v2934 = vmul.f32 %v769, %v2730
      %v2935 = vmul.f32 %v770, %v2733
      %v2936 = vrot.slane %v2904, 7
      %v2937 = vrot.slane %v2905, 7
      %v2938 = vrot.slane %v2906, 7
      %v2939 = vrot.slane %v2907, 7
      %v2940 = vrot.slane %v2908, 7
      %v2941 = vrot.slane %v2909, 7
      %v2942 = vrot.slane %v2910, 7
      %v2943 = vrot.slane %v2911, 7
      %v2944 = vrot.slane %v2912, 7
      %v2945 = vrot.slane %v2913, 7
      %v2946 = vrot.slane %v2914, 7
      %v2947 = vrot.slane %v2915, 7
      %v2948 = vrot.slane %v2916, 7
      %v2949 = vrot.slane %v2917, 7
      %v2950 = vrot.slane %v2918, 7
      %v2951 = vrot.slane %v2919, 7
      %v2952 = vrot.slane %v2920, 7
      %v2953 = vrot.slane %v2921, 7
      %v2954 = vrot.slane %v2922, 7
      %v2955 = vrot.slane %v2923, 7
      %v2956 = vrot.slane %v2924, 7
      %v2957 = vrot.slane %v2925, 7
      %v2958 = vrot.slane %v2926, 7
      %v2959 = vrot.slane %v2927, 7
      %v2960 = vrot.slane %v2928, 7
      %v2961 = vrot.slane %v2929, 7
      %v2962 = vrot.slane %v2930, 7
      %v2963 = vrot.slane %v2931, 7
      %v2964 = vrot.slane %v2932, 7
      %v2965 = vrot.slane %v2933, 7
      %v2966 = vrot.slane %v2934, 7
      %v2967 = vrot.slane %v2935, 7
      %v2968 = vsel %vm1395, %v2966, %v2967
      %v2969 = vsel %vm1395, %v2965, %v2966
      %v2970 = vsel %vm1395, %v2964, %v2965
      %v2971 = vsel %vm1395, %v2963, %v2964
      %v2972 = vsel %vm1395, %v2962, %v2963
      %v2973 = vsel %vm1395, %v2961, %v2962
      %v2974 = vsel %vm1395, %v2960, %v2961
      %v2975 = vsel %vm1395, %v2959, %v2960
      %v2976 = vsel %vm1395, %v2958, %v2959
      %v2977 = vsel %vm1395, %v2957, %v2958
      %v2978 = vsel %vm1395, %v2956, %v2957
      %v2979 = vsel %vm1395, %v2955, %v2956
      %v2980 = vsel %vm1395, %v2954, %v2955
      %v2981 = vsel %vm1395, %v2953, %v2954
      %v2982 = vsel %vm1395, %v2952, %v2953
      %v2983 = vsel %vm1395, %v2951, %v2952
      %v2984 = vsel %vm1395, %v2950, %v2951
      %v2985 = vsel %vm1395, %v2949, %v2950
      %v2986 = vsel %vm1395, %v2948, %v2949
      %v2987 = vsel %vm1395, %v2947, %v2948
      %v2988 = vsel %vm1395, %v2946, %v2947
      %v2989 = vsel %vm1395, %v2945, %v2946
      %v2990 = vsel %vm1395, %v2944, %v2945
      %v2991 = vsel %vm1395, %v2943, %v2944
      %v2992 = vsel %vm1395, %v2942, %v2943
      %v2993 = vsel %vm1395, %v2941, %v2942
      %v2994 = vsel %vm1395, %v2940, %v2941
      %v2995 = vsel %vm1395, %v2939, %v2940
      %v2996 = vsel %vm1395, %v2938, %v2939
      %v2997 = vsel %vm1395, %v2937, %v2938
      %v2998 = vsel %vm1395, %v2936, %v2937
      %v2999 = vsel %vm1395, %v2967, %v2936
      %v3001 = vsel %vm998, %v2737, 0
      %3003 = vmatprep.subr.bf16.mxu0 0
      %3004 = vmatpush1.bf16.msra.mxu0 %v3001
      %3005 = vmatprep.subr.bf16.mxu0 0
      %3006 = vmatpush1.bf16.msra.mxu0 0
      %3007 = vmatprep.subr.bf16.mxu0 0
      %3008 = vmatpush1.bf16.msra.mxu0 0
      %3009 = vmatprep.subr.bf16.mxu0 0
      %3010 = vmatpush1.bf16.msra.mxu0 0
      %3011 = vmatprep.subr.bf16.mxu0 0
      %3012 = vmatpush1.bf16.msra.mxu0 0
      %3013 = vmatprep.subr.bf16.mxu0 0
      %3014 = vmatpush1.bf16.msra.mxu0 0
      %3015 = vmatprep.subr.bf16.mxu0 0
      %3016 = vmatpush1.bf16.msra.mxu0 0
      %3017 = vmatprep.subr.bf16.mxu0 0
      %3018 = vmatpush1.bf16.msra.mxu0 0
      %3019 = vmatprep.subr.bf16.mxu0 0
      %3020 = vmatpush1.bf16.msra.mxu0 0
      %3021 = vmatprep.subr.bf16.mxu0 0
      %3022 = vmatpush1.bf16.msra.mxu0 0
      %3023 = vmatprep.subr.bf16.mxu0 0
      %3024 = vmatpush1.bf16.msra.mxu0 0
      %3025 = vmatprep.subr.bf16.mxu0 0
      %3026 = vmatpush1.bf16.msra.mxu0 0
      %3027 = vmatprep.subr.bf16.mxu0 0
      %3028 = vmatpush1.bf16.msra.mxu0 0
      %3029 = vmatprep.subr.bf16.mxu0 0
      %3030 = vmatpush1.bf16.msra.mxu0 0
      %3031 = vmatprep.subr.bf16.mxu0 0
      %3032 = vmatpush1.bf16.msra.mxu0 0
      %3033 = vmatprep.subr.bf16.mxu0 0
      %3034 = vmatpush1.bf16.msra.mxu0 0
      %3035 = vmatprep.mubr.bf16.mxu0 0
      %3036 = vmatmul.mubr.bf16.gmra.mrb[0].mxu0 %v951
      %v3037 = vpop.f32.mrb[0].mxu0
      %v3038 = vadd.f32 %v2999, %v3037
      %v3039 = vpop.f32.mrb[0].mxu0
      %v3040 = vpop.f32.mrb[0].mxu0
      %v3041 = vadd.f32 %v2998, %v3040
      %v3042 = vpop.f32.mrb[0].mxu0
      %3043 = vmatprep.mubr.bf16.mxu0 0
      %3044 = vmatmul.mubr.bf16.gmra.mrb[0].mxu0 %v954
      %v3045 = vpop.f32.mrb[0].mxu0
      %v3046 = vadd.f32 %v2997, %v3045
      %v3047 = vpop.f32.mrb[0].mxu0
      %v3048 = vpop.f32.mrb[0].mxu0
      %v3049 = vadd.f32 %v2996, %v3048
      %v3050 = vpop.f32.mrb[0].mxu0
      %3051 = vmatprep.mubr.bf16.mxu0 0
      %3052 = vmatmul.mubr.bf16.gmra.mrb[0].mxu0 %v957
      %v3053 = vpop.f32.mrb[0].mxu0
      %v3054 = vadd.f32 %v2995, %v3053
      %v3055 = vpop.f32.mrb[0].mxu0
      %v3056 = vpop.f32.mrb[0].mxu0
      %v3057 = vadd.f32 %v2994, %v3056
      %v3058 = vpop.f32.mrb[0].mxu0
      %3059 = vmatprep.mubr.bf16.mxu0 0
      %3060 = vmatmul.mubr.bf16.gmra.mrb[0].mxu0 %v960
      %v3061 = vpop.f32.mrb[0].mxu0
      %v3062 = vadd.f32 %v2993, %v3061
      %v3063 = vpop.f32.mrb[0].mxu0
      %v3064 = vpop.f32.mrb[0].mxu0
      %v3065 = vadd.f32 %v2992, %v3064
      %v3066 = vpop.f32.mrb[0].mxu0
      %3067 = vmatprep.mubr.bf16.mxu0 0
      %3068 = vmatmul.mubr.bf16.gmra.mrb[0].mxu0 %v963
      %v3069 = vpop.f32.mrb[0].mxu0
      %v3070 = vadd.f32 %v2991, %v3069
      %v3071 = vpop.f32.mrb[0].mxu0
      %v3072 = vpop.f32.mrb[0].mxu0
      %v3073 = vadd.f32 %v2990, %v3072
      %v3074 = vpop.f32.mrb[0].mxu0
      %3075 = vmatprep.mubr.bf16.mxu0 0
      %3076 = vmatmul.mubr.bf16.gmra.mrb[0].mxu0 %v966
      %v3077 = vpop.f32.mrb[0].mxu0
      %v3078 = vadd.f32 %v2989, %v3077
      %v3079 = vpop.f32.mrb[0].mxu0
      %v3080 = vpop.f32.mrb[0].mxu0
      %v3081 = vadd.f32 %v2988, %v3080
      %v3082 = vpop.f32.mrb[0].mxu0
      %3083 = vmatprep.mubr.bf16.mxu0 0
      %3084 = vmatmul.mubr.bf16.gmra.mrb[0].mxu0 %v969
      %v3085 = vpop.f32.mrb[0].mxu0
      %v3086 = vadd.f32 %v2987, %v3085
      %v3087 = vpop.f32.mrb[0].mxu0
      %v3088 = vpop.f32.mrb[0].mxu0
      %v3089 = vadd.f32 %v2986, %v3088
      %v3090 = vpop.f32.mrb[0].mxu0
      %3091 = vmatprep.mubr.bf16.mxu0 0
      %3092 = vmatmul.mubr.bf16.gmra.mrb[0].mxu0 %v972
      %v3093 = vpop.f32.mrb[0].mxu0
      %v3094 = vadd.f32 %v2985, %v3093
      %v3095 = vpop.f32.mrb[0].mxu0
      %v3096 = vpop.f32.mrb[0].mxu0
      %v3097 = vadd.f32 %v2984, %v3096
      %v3098 = vpop.f32.mrb[0].mxu0
      %3099 = vmatprep.mubr.bf16.mxu0 0
      %3100 = vmatmul.mubr.bf16.gmra.mrb[0].mxu0 %v975
      %v3101 = vpop.f32.mrb[0].mxu0
      %v3102 = vadd.f32 %v2983, %v3101
      %v3103 = vpop.f32.mrb[0].mxu0
      %v3104 = vpop.f32.mrb[0].mxu0
      %v3105 = vadd.f32 %v2982, %v3104
      %v3106 = vpop.f32.mrb[0].mxu0
      %3107 = vmatprep.mubr.bf16.mxu0 0
      %3108 = vmatmul.mubr.bf16.gmra.mrb[0].mxu0 %v978
      %v3109 = vpop.f32.mrb[0].mxu0
      %v3110 = vadd.f32 %v2981, %v3109
      %v3111 = vpop.f32.mrb[0].mxu0
      %v3112 = vpop.f32.mrb[0].mxu0
      %v3113 = vadd.f32 %v2980, %v3112
      %v3114 = vpop.f32.mrb[0].mxu0
      %3115 = vmatprep.mubr.bf16.mxu0 0
      %3116 = vmatmul.mubr.bf16.gmra.mrb[0].mxu0 %v981
      %v3117 = vpop.f32.mrb[0].mxu0
      %v3118 = vadd.f32 %v2979, %v3117
      %v3119 = vpop.f32.mrb[0].mxu0
      %v3120 = vpop.f32.mrb[0].mxu0
      %v3121 = vadd.f32 %v2978, %v3120
      %v3122 = vpop.f32.mrb[0].mxu0
      %3123 = vmatprep.mubr.bf16.mxu0 0
      %3124 = vmatmul.mubr.bf16.gmra.mrb[0].mxu0 %v984
      %v3125 = vpop.f32.mrb[0].mxu0
      %v3126 = vadd.f32 %v2977, %v3125
      %v3127 = vpop.f32.mrb[0].mxu0
      %v3128 = vpop.f32.mrb[0].mxu0
      %v3129 = vadd.f32 %v2976, %v3128
      %v3130 = vpop.f32.mrb[0].mxu0
      %3131 = vmatprep.mubr.bf16.mxu0 0
      %3132 = vmatmul.mubr.bf16.gmra.mrb[0].mxu0 %v987
      %v3133 = vpop.f32.mrb[0].mxu0
      %v3134 = vadd.f32 %v2975, %v3133
      %v3135 = vpop.f32.mrb[0].mxu0
      %v3136 = vpop.f32.mrb[0].mxu0
      %v3137 = vadd.f32 %v2974, %v3136
      %v3138 = vpop.f32.mrb[0].mxu0
      %3139 = vmatprep.mubr.bf16.mxu0 0
      %3140 = vmatmul.mubr.bf16.gmra.mrb[0].mxu0 %v990
      %v3141 = vpop.f32.mrb[0].mxu0
      %v3142 = vadd.f32 %v2973, %v3141
      %v3143 = vpop.f32.mrb[0].mxu0
      %v3144 = vpop.f32.mrb[0].mxu0
      %v3145 = vadd.f32 %v2972, %v3144
      %v3146 = vpop.f32.mrb[0].mxu0
      %3147 = vmatprep.mubr.bf16.mxu0 0
      %3148 = vmatmul.mubr.bf16.gmra.mrb[0].mxu0 %v993
      %v3149 = vpop.f32.mrb[0].mxu0
      %v3150 = vadd.f32 %v2971, %v3149
      %v3151 = vpop.f32.mrb[0].mxu0
      %v3152 = vpop.f32.mrb[0].mxu0
      %v3153 = vadd.f32 %v2970, %v3152
      %v3154 = vpop.f32.mrb[0].mxu0
      %3155 = vmatprep.mubr.bf16.mxu0 0
      %3156 = vmatmul.mubr.bf16.gmra.mrb[0].mxu0 %v996
      %v3157 = vpop.f32.mrb[0].mxu0
      %v3158 = vadd.f32 %v2969, %v3157
      %v3159 = vpop.f32.mrb[0].mxu0
      %v3160 = vpop.f32.mrb[0].mxu0
      %v3161 = vadd.f32 %v2968, %v3160
      %v3162 = vpop.f32.mrb[0].mxu0
      %3163 = vdwg.mxu0
      %v3164 = vmul.f32 %v835, %v2778
      %v3165 = vmul.f32 %v836, %v2781
      %v3166 = vmul.f32 %v837, %v2786
      %v3167 = vmul.f32 %v838, %v2789
      %v3168 = vmul.f32 %v839, %v2794
      %v3169 = vmul.f32 %v840, %v2797
      %v3170 = vmul.f32 %v841, %v2802
      %v3171 = vmul.f32 %v842, %v2805
      %v3172 = vmul.f32 %v843, %v2810
      %v3173 = vmul.f32 %v844, %v2813
      %v3174 = vmul.f32 %v845, %v2818
      %v3175 = vmul.f32 %v846, %v2821
      %v3176 = vmul.f32 %v847, %v2826
      %v3177 = vmul.f32 %v848, %v2829
      %v3178 = vmul.f32 %v849, %v2834
      %v3179 = vmul.f32 %v850, %v2837
      %v3180 = vmul.f32 %v851, %v2842
      %v3181 = vmul.f32 %v852, %v2845
      %v3182 = vmul.f32 %v853, %v2850
      %v3183 = vmul.f32 %v854, %v2853
      %v3184 = vmul.f32 %v855, %v2858
      %v3185 = vmul.f32 %v856, %v2861
      %v3186 = vmul.f32 %v857, %v2866
      %v3187 = vmul.f32 %v858, %v2869
      %v3188 = vmul.f32 %v859, %v2874
      %v3189 = vmul.f32 %v860, %v2877
      %v3190 = vmul.f32 %v861, %v2882
      %v3191 = vmul.f32 %v862, %v2885
      %v3192 = vmul.f32 %v863, %v2890
      %v3193 = vmul.f32 %v864, %v2893
      %v3194 = vmul.f32 %v865, %v2898
      %v3195 = vmul.f32 %v866, %v2901
      %v3196 = vrot.slane %v3164, 1
      %v3197 = vrot.slane %v3165, 1
      %v3198 = vrot.slane %v3166, 1
      %v3199 = vrot.slane %v3167, 1
      %v3200 = vrot.slane %v3168, 1
      %v3201 = vrot.slane %v3169, 1
      %v3202 = vrot.slane %v3170, 1
      %v3203 = vrot.slane %v3171, 1
      %v3204 = vrot.slane %v3172, 1
      %v3205 = vrot.slane %v3173, 1
      %v3206 = vrot.slane %v3174, 1
      %v3207 = vrot.slane %v3175, 1
      %v3208 = vrot.slane %v3176, 1
      %v3209 = vrot.slane %v3177, 1
      %v3210 = vrot.slane %v3178, 1
      %v3211 = vrot.slane %v3179, 1
      %v3212 = vrot.slane %v3180, 1
      %v3213 = vrot.slane %v3181, 1
      %v3214 = vrot.slane %v3182, 1
      %v3215 = vrot.slane %v3183, 1
      %v3216 = vrot.slane %v3184, 1
      %v3217 = vrot.slane %v3185, 1
      %v3218 = vrot.slane %v3186, 1
      %v3219 = vrot.slane %v3187, 1
      %v3220 = vrot.slane %v3188, 1
      %v3221 = vrot.slane %v3189, 1
      %v3222 = vrot.slane %v3190, 1
      %v3223 = vrot.slane %v3191, 1
      %v3224 = vrot.slane %v3192, 1
      %v3225 = vrot.slane %v3193, 1
      %v3226 = vrot.slane %v3194, 1
      %v3227 = vrot.slane %v3195, 1
      %v3228 = vsel %vm1656, %v3226, %v3227
      %v3229 = vsel %vm1656, %v3225, %v3226
      %v3230 = vsel %vm1656, %v3224, %v3225
      %v3231 = vsel %vm1656, %v3223, %v3224
      %v3232 = vsel %vm1656, %v3222, %v3223
      %v3233 = vsel %vm1656, %v3221, %v3222
      %v3234 = vsel %vm1656, %v3220, %v3221
      %v3235 = vsel %vm1656, %v3219, %v3220
      %v3236 = vsel %vm1656, %v3218, %v3219
      %v3237 = vsel %vm1656, %v3217, %v3218
      %v3238 = vsel %vm1656, %v3216, %v3217
      %v3239 = vsel %vm1656, %v3215, %v3216
      %v3240 = vsel %vm1656, %v3214, %v3215
      %v3241 = vsel %vm1656, %v3213, %v3214
      %v3242 = vsel %vm1656, %v3212, %v3213
      %v3243 = vsel %vm1656, %v3211, %v3212
      %v3244 = vsel %vm1656, %v3210, %v3211
      %v3245 = vsel %vm1656, %v3209, %v3210
      %v3246 = vsel %vm1656, %v3208, %v3209
      %v3247 = vsel %vm1656, %v3207, %v3208
      %v3248 = vsel %vm1656, %v3206, %v3207
      %v3249 = vsel %vm1656, %v3205, %v3206
      %v3250 = vsel %vm1656, %v3204, %v3205
      %v3251 = vsel %vm1656, %v3203, %v3204
      %v3252 = vsel %vm1656, %v3202, %v3203
      %v3253 = vsel %vm1656, %v3201, %v3202
      %v3254 = vsel %vm1656, %v3200, %v3201
      %v3255 = vsel %vm1656, %v3199, %v3200
      %v3256 = vsel %vm1656, %v3198, %v3199
      %v3257 = vsel %vm1656, %v3197, %v3198
      %v3258 = vsel %vm1656, %v3196, %v3197
      %v3259 = vsel %vm1656, %v3227, %v3196
      %v3260 = vadd.f32 %v3038, %v3258
      %v3261 = vadd.f32 %v3041, %v3257
      %v3262 = vadd.f32 %v3046, %v3256
      %v3263 = vadd.f32 %v3049, %v3255
      %v3264 = vadd.f32 %v3054, %v3254
      %v3265 = vadd.f32 %v3057, %v3253
      %v3266 = vadd.f32 %v3062, %v3252
      %v3267 = vadd.f32 %v3065, %v3251
      %v3268 = vadd.f32 %v3070, %v3250
      %v3269 = vadd.f32 %v3073, %v3249
      %v3270 = vadd.f32 %v3078, %v3248
      %v3271 = vadd.f32 %v3081, %v3247
      %v3272 = vadd.f32 %v3086, %v3246
      %v3273 = vadd.f32 %v3089, %v3245
      %v3274 = vadd.f32 %v3094, %v3244
      %v3275 = vadd.f32 %v3097, %v3243
      %v3276 = vadd.f32 %v3102, %v3242
      %v3277 = vadd.f32 %v3105, %v3241
      %v3278 = vadd.f32 %v3110, %v3240
      %v3279 = vadd.f32 %v3113, %v3239
      %v3280 = vadd.f32 %v3118, %v3238
      %v3281 = vadd.f32 %v3121, %v3237
      %v3282 = vadd.f32 %v3126, %v3236
      %v3283 = vadd.f32 %v3129, %v3235
      %v3284 = vadd.f32 %v3134, %v3234
      %v3285 = vadd.f32 %v3137, %v3233
      %v3286 = vadd.f32 %v3142, %v3232
      %v3287 = vadd.f32 %v3145, %v3231
      %v3288 = vadd.f32 %v3150, %v3230
      %v3289 = vadd.f32 %v3153, %v3229
      %v3290 = vadd.f32 %v3158, %v3228
      %v3291 = vadd.f32 %v3161, %v3259
      %v3292 = vld [vmem:[#allocation2] sm:$0xff]
      %v3293 = vld [vmem:[#allocation2 + $0x8] sm:$0xff]
      %v3294 = vld [vmem:[#allocation2 + $0x10] sm:$0xff]
      %v3295 = vld [vmem:[#allocation2 + $0x18] sm:$0xff]
      %v3296 = vld [vmem:[#allocation2 + $0x20] sm:$0xff]
      %v3297 = vld [vmem:[#allocation2 + $0x28] sm:$0xff]
      %v3298 = vld [vmem:[#allocation2 + $0x30] sm:$0xff]
      %v3299 = vld [vmem:[#allocation2 + $0x38] sm:$0xff]
      %v3300 = vld [vmem:[#allocation2 + $0x40] sm:$0xff]
      %v3301 = vld [vmem:[#allocation2 + $0x48] sm:$0xff]
      %v3302 = vld [vmem:[#allocation2 + $0x50] sm:$0xff]
      %v3303 = vld [vmem:[#allocation2 + $0x58] sm:$0xff]
      %v3304 = vld [vmem:[#allocation2 + $0x60] sm:$0xff]
      %v3305 = vld [vmem:[#allocation2 + $0x68] sm:$0xff]
      %v3306 = vld [vmem:[#allocation2 + $0x70] sm:$0xff]
      %v3307 = vld [vmem:[#allocation2 + $0x78] sm:$0xff]
      %v3308 = vld [vmem:[#allocation2 + $0x80] sm:$0xff]
      %v3309 = vld [vmem:[#allocation2 + $0x88] sm:$0xff]
      %v3310 = vld [vmem:[#allocation2 + $0x90] sm:$0xff]
      %v3311 = vld [vmem:[#allocation2 + $0x98] sm:$0xff]
      %v3312 = vld [vmem:[#allocation2 + $0xa0] sm:$0xff]
      %v3313 = vld [vmem:[#allocation2 + $0xa8] sm:$0xff]
      %v3314 = vld [vmem:[#allocation2 + $0xb0] sm:$0xff]
      %v3315 = vld [vmem:[#allocation2 + $0xb8] sm:$0xff]
      %v3316 = vld [vmem:[#allocation2 + $0xc0] sm:$0xff]
      %v3317 = vld [vmem:[#allocation2 + $0xc8] sm:$0xff]
      %v3318 = vld [vmem:[#allocation2 + $0xd0] sm:$0xff]
      %v3319 = vld [vmem:[#allocation2 + $0xd8] sm:$0xff]
      %v3320 = vld [vmem:[#allocation2 + $0xe0] sm:$0xff]
      %v3321 = vld [vmem:[#allocation2 + $0xe8] sm:$0xff]
      %v3322 = vld [vmem:[#allocation2 + $0xf0] sm:$0xff]
      %v3323 = vld [vmem:[#allocation2 + $0xf8] sm:$0xff]
      %v3324 = vadd.f32 %v3292, %v3260
      %v3325 = vadd.f32 %v3293, %v3261
      %v3326 = vadd.f32 %v3294, %v3262
      %v3327 = vadd.f32 %v3295, %v3263
      %v3328 = vadd.f32 %v3296, %v3264
      %v3329 = vadd.f32 %v3297, %v3265
      %v3330 = vadd.f32 %v3298, %v3266
      %v3331 = vadd.f32 %v3299, %v3267
      %v3332 = vadd.f32 %v3300, %v3268
      %v3333 = vadd.f32 %v3301, %v3269
      %v3334 = vadd.f32 %v3302, %v3270
      %v3335 = vadd.f32 %v3303, %v3271
      %v3336 = vadd.f32 %v3304, %v3272
      %v3337 = vadd.f32 %v3305, %v3273
      %v3338 = vadd.f32 %v3306, %v3274
      %v3339 = vadd.f32 %v3307, %v3275
      %v3340 = vadd.f32 %v3308, %v3276
      %v3341 = vadd.f32 %v3309, %v3277
      %v3342 = vadd.f32 %v3310, %v3278
      %v3343 = vadd.f32 %v3311, %v3279
      %v3344 = vadd.f32 %v3312, %v3280
      %v3345 = vadd.f32 %v3313, %v3281
      %v3346 = vadd.f32 %v3314, %v3282
      %v3347 = vadd.f32 %v3315, %v3283
      %v3348 = vadd.f32 %v3316, %v3284
      %v3349 = vadd.f32 %v3317, %v3285
      %v3350 = vadd.f32 %v3318, %v3286
      %v3351 = vadd.f32 %v3319, %v3287
      %v3352 = vadd.f32 %v3320, %v3288
      %v3353 = vadd.f32 %v3321, %v3289
      %v3354 = vadd.f32 %v3322, %v3290
      %v3355 = vadd.f32 %v3323, %v3291
      %3356 = vst.msk [vmem:[#allocation2] sm:$0xff] %vm949, %v3324
      %3357 = vst.msk [vmem:[#allocation2 + $0x8] sm:$0xff] %vm949, %v3325
      %3358 = vst.msk [vmem:[#allocation2 + $0x10] sm:$0xff] %vm949, %v3326
      %3359 = vst.msk [vmem:[#allocation2 + $0x18] sm:$0xff] %vm949, %v3327
      %3360 = vst.msk [vmem:[#allocation2 + $0x20] sm:$0xff] %vm949, %v3328
      %3361 = vst.msk [vmem:[#allocation2 + $0x28] sm:$0xff] %vm949, %v3329
      %3362 = vst.msk [vmem:[#allocation2 + $0x30] sm:$0xff] %vm949, %v3330
      %3363 = vst.msk [vmem:[#allocation2 + $0x38] sm:$0xff] %vm949, %v3331
      %3364 = vst.msk [vmem:[#allocation2 + $0x40] sm:$0xff] %vm949, %v3332
      %3365 = vst.msk [vmem:[#allocation2 + $0x48] sm:$0xff] %vm949, %v3333
      %3366 = vst.msk [vmem:[#allocation2 + $0x50] sm:$0xff] %vm949, %v3334
      %3367 = vst.msk [vmem:[#allocation2 + $0x58] sm:$0xff] %vm949, %v3335
      %3368 = vst.msk [vmem:[#allocation2 + $0x60] sm:$0xff] %vm949, %v3336
      %3369 = vst.msk [vmem:[#allocation2 + $0x68] sm:$0xff] %vm949, %v3337
      %3370 = vst.msk [vmem:[#allocation2 + $0x70] sm:$0xff] %vm949, %v3338
      %3371 = vst.msk [vmem:[#allocation2 + $0x78] sm:$0xff] %vm949, %v3339
      %3372 = vst.msk [vmem:[#allocation2 + $0x80] sm:$0xff] %vm949, %v3340
      %3373 = vst.msk [vmem:[#allocation2 + $0x88] sm:$0xff] %vm949, %v3341
      %3374 = vst.msk [vmem:[#allocation2 + $0x90] sm:$0xff] %vm949, %v3342
      %3375 = vst.msk [vmem:[#allocation2 + $0x98] sm:$0xff] %vm949, %v3343
      %3376 = vst.msk [vmem:[#allocation2 + $0xa0] sm:$0xff] %vm949, %v3344
      %3377 = vst.msk [vmem:[#allocation2 + $0xa8] sm:$0xff] %vm949, %v3345
      %3378 = vst.msk [vmem:[#allocation2 + $0xb0] sm:$0xff] %vm949, %v3346
      %3379 = vst.msk [vmem:[#allocation2 + $0xb8] sm:$0xff] %vm949, %v3347
      %3380 = vst.msk [vmem:[#allocation2 + $0xc0] sm:$0xff] %vm949, %v3348
      %3381 = vst.msk [vmem:[#allocation2 + $0xc8] sm:$0xff] %vm949, %v3349
      %3382 = vst.msk [vmem:[#allocation2 + $0xd0] sm:$0xff] %vm949, %v3350
      %3383 = vst.msk [vmem:[#allocation2 + $0xd8] sm:$0xff] %vm949, %v3351
      %3384 = vst.msk [vmem:[#allocation2 + $0xe0] sm:$0xff] %vm949, %v3352
      %3385 = vst.msk [vmem:[#allocation2 + $0xe8] sm:$0xff] %vm949, %v3353
      %3386 = vst.msk [vmem:[#allocation2 + $0xf0] sm:$0xff] %vm949, %v3354
      %3387 = vst.msk [vmem:[#allocation2 + $0xf8] sm:$0xff] %vm949, %v3355
      %v3388 = vld [vmem:[#allocation2 + $0x10] sm:$0xff]
      %v3389 = vld [vmem:[#allocation2 + $0x18] sm:$0xff]
      %v3390 = vld [vmem:[#allocation2 + $0x20] sm:$0xff]
      %v3391 = vld [vmem:[#allocation2 + $0x28] sm:$0xff]
      %v3392 = vld [vmem:[#allocation2 + $0x30] sm:$0xff]
      %v3393 = vld [vmem:[#allocation2 + $0x38] sm:$0xff]
      %v3394 = vld [vmem:[#allocation2 + $0x40] sm:$0xff]
      %v3395 = vld [vmem:[#allocation2 + $0x48] sm:$0xff]
      %v3396 = vld [vmem:[#allocation2 + $0x50] sm:$0xff]
      %v3397 = vld [vmem:[#allocation2 + $0x58] sm:$0xff]
      %v3398 = vld [vmem:[#allocation2 + $0x60] sm:$0xff]
      %v3399 = vld [vmem:[#allocation2 + $0x68] sm:$0xff]
      %v3400 = vld [vmem:[#allocation2 + $0x70] sm:$0xff]
      %v3401 = vld [vmem:[#allocation2 + $0x78] sm:$0xff]
      %v3402 = vld [vmem:[#allocation2 + $0x80] sm:$0xff]
      %v3403 = vld [vmem:[#allocation2 + $0x88] sm:$0xff]
      %v3404 = vld [vmem:[#allocation2 + $0x90] sm:$0xff]
      %v3405 = vld [vmem:[#allocation2 + $0x98] sm:$0xff]
      %v3406 = vld [vmem:[#allocation2 + $0xa0] sm:$0xff]
      %v3407 = vld [vmem:[#allocation2 + $0xa8] sm:$0xff]
      %v3408 = vld [vmem:[#allocation2 + $0xb0] sm:$0xff]
      %v3409 = vld [vmem:[#allocation2 + $0xb8] sm:$0xff]
      %v3410 = vld [vmem:[#allocation2 + $0xc0] sm:$0xff]
      %v3411 = vld [vmem:[#allocation2 + $0xc8] sm:$0xff]
      %v3412 = vld [vmem:[#allocation2 + $0xd0] sm:$0xff]
      %v3413 = vld [vmem:[#allocation2 + $0xd8] sm:$0xff]
      %v3414 = vld [vmem:[#allocation2 + $0xe0] sm:$0xff]
      %v3415 = vld [vmem:[#allocation2 + $0xe8] sm:$0xff]
      %v3416 = vld [vmem:[#allocation2 + $0xf0] sm:$0xff]
      %v3417 = vld [vmem:[#allocation2 + $0xf8] sm:$0xff]
      %v3418 = vld [vmem:[#allocation2 + $0x100] sm:$0xff]
      %v3419 = vld [vmem:[#allocation2 + $0x108] sm:$0xff]
      %v3420 = vld [vmem:[%s2] sm:$0x1]
      %v3422 = vlaneseq
      %v3423 = vshrl.u32 %v3422, 7
      %v3424 = vsub.s32 0, %v3423
      %v3425 = vrot.slane %v3420, %v3424
      %v3427 = vadd.f32 %v3388, %v3425
      %v3428 = vadd.f32 %v3389, %v3425
      %v3429 = vadd.f32 %v3390, %v3425
      %v3430 = vadd.f32 %v3391, %v3425
      %v3431 = vadd.f32 %v3392, %v3425
      %v3432 = vadd.f32 %v3393, %v3425
      %v3433 = vadd.f32 %v3394, %v3425
      %v3434 = vadd.f32 %v3395, %v3425
      %v3435 = vadd.f32 %v3396, %v3425
      %v3436 = vadd.f32 %v3397, %v3425
      %v3437 = vadd.f32 %v3398, %v3425
      %v3438 = vadd.f32 %v3399, %v3425
      %v3439 = vadd.f32 %v3400, %v3425
      %v3440 = vadd.f32 %v3401, %v3425
      %v3441 = vadd.f32 %v3402, %v3425
      %v3442 = vadd.f32 %v3403, %v3425
      %v3443 = vadd.f32 %v3404, %v3425
      %v3444 = vadd.f32 %v3405, %v3425
      %v3445 = vadd.f32 %v3406, %v3425
      %v3446 = vadd.f32 %v3407, %v3425
      %v3447 = vadd.f32 %v3408, %v3425
      %v3448 = vadd.f32 %v3409, %v3425
      %v3449 = vadd.f32 %v3410, %v3425
      %v3450 = vadd.f32 %v3411, %v3425
      %v3451 = vadd.f32 %v3412, %v3425
      %v3452 = vadd.f32 %v3413, %v3425
      %v3453 = vadd.f32 %v3414, %v3425
      %v3454 = vadd.f32 %v3415, %v3425
      %v3455 = vadd.f32 %v3416, %v3425
      %v3456 = vadd.f32 %v3417, %v3425
      %v3457 = vadd.f32 %v3418, %v3425
      %v3458 = vadd.f32 %v3419, %v3425
      %v3459 = vmax.f32 %v3427, 0.0
      %v3460 = vmax.f32 %v3428, 0.0
      %v3461 = vmax.f32 %v3429, 0.0
      %v3462 = vmax.f32 %v3430, 0.0
      %v3463 = vmax.f32 %v3431, 0.0
      %v3464 = vmax.f32 %v3432, 0.0
      %v3465 = vmax.f32 %v3433, 0.0
      %v3466 = vmax.f32 %v3434, 0.0
      %v3467 = vmax.f32 %v3435, 0.0
      %v3468 = vmax.f32 %v3436, 0.0
      %v3469 = vmax.f32 %v3437, 0.0
      %v3470 = vmax.f32 %v3438, 0.0
      %v3471 = vmax.f32 %v3439, 0.0
      %v3472 = vmax.f32 %v3440, 0.0
      %v3473 = vmax.f32 %v3441, 0.0
      %v3474 = vmax.f32 %v3442, 0.0
      %v3475 = vmax.f32 %v3443, 0.0
      %v3476 = vmax.f32 %v3444, 0.0
      %v3477 = vmax.f32 %v3445, 0.0
      %v3478 = vmax.f32 %v3446, 0.0
      %v3479 = vmax.f32 %v3447, 0.0
      %v3480 = vmax.f32 %v3448, 0.0
      %v3481 = vmax.f32 %v3449, 0.0
      %v3482 = vmax.f32 %v3450, 0.0
      %v3483 = vmax.f32 %v3451, 0.0
      %v3484 = vmax.f32 %v3452, 0.0
      %v3485 = vmax.f32 %v3453, 0.0
      %v3486 = vmax.f32 %v3454, 0.0
      %v3487 = vmax.f32 %v3455, 0.0
      %v3488 = vmax.f32 %v3456, 0.0
      %v3489 = vmax.f32 %v3457, 0.0
      %v3490 = vmax.f32 %v3458, 0.0
      %v3491 = vpack.c.bf16 %v3460, %v3459
      %v3492 = vpack.c.bf16 %v3462, %v3461
      %v3493 = vpack.c.bf16 %v3464, %v3463
      %v3494 = vpack.c.bf16 %v3466, %v3465
      %v3495 = vpack.c.bf16 %v3468, %v3467
      %v3496 = vpack.c.bf16 %v3470, %v3469
      %v3497 = vpack.c.bf16 %v3472, %v3471
      %v3498 = vpack.c.bf16 %v3474, %v3473
      %v3499 = vpack.c.bf16 %v3476, %v3475
      %v3500 = vpack.c.bf16 %v3478, %v3477
      %v3501 = vpack.c.bf16 %v3480, %v3479
      %v3502 = vpack.c.bf16 %v3482, %v3481
      %v3503 = vpack.c.bf16 %v3484, %v3483
      %v3504 = vpack.c.bf16 %v3486, %v3485
      %v3505 = vpack.c.bf16 %v3488, %v3487
      %v3506 = vpack.c.bf16 %v3490, %v3489
      %v3507 = vld [vmem:[%s3] sm:$0xf]
      %v3508 = vld [vmem:[%s4] sm:$0x1]
      %v3510 = vlaneseq
      %v3511 = vshrl.u32 %v3510, 7
      %v3512 = vsub.s32 0, %v3511
      %v3513 = vrot.slane %v3508, %v3512
      %v3516 = vsel %vm949, %v3491, 0
      %v3519 = vsel %vm949, %v3492, 0
      %v3522 = vsel %vm949, %v3493, 0
      %v3525 = vsel %vm949, %v3494, 0
      %v3528 = vsel %vm949, %v3495, 0
      %v3531 = vsel %vm949, %v3496, 0
      %v3534 = vsel %vm949, %v3497, 0
      %v3537 = vsel %vm949, %v3498, 0
      %v3540 = vsel %vm949, %v3499, 0
      %v3543 = vsel %vm949, %v3500, 0
      %v3546 = vsel %vm949, %v3501, 0
      %v3549 = vsel %vm949, %v3502, 0
      %v3552 = vsel %vm949, %v3503, 0
      %v3555 = vsel %vm949, %v3504, 0
      %v3558 = vsel %vm949, %v3505, 0
      %v3561 = vsel %vm949, %v3506, 0
      %v3564 = vsel %vm998, %v3507, 0
      %3566 = vmatprep.subr.bf16.mxu0 0
      %3567 = vmatpush1.bf16.msra.mxu0 %v3564
      %3568 = vmatprep.subr.bf16.mxu0 0
      %3569 = vmatpush1.bf16.msra.mxu0 0
      %3570 = vmatprep.subr.bf16.mxu0 0
      %3571 = vmatpush1.bf16.msra.mxu0 0
      %3572 = vmatprep.subr.bf16.mxu0 0
      %3573 = vmatpush1.bf16.msra.mxu0 0
      %3574 = vmatprep.subr.bf16.mxu0 0
      %3575 = vmatpush1.bf16.msra.mxu0 0
      %3576 = vmatprep.subr.bf16.mxu0 0
      %3577 = vmatpush1.bf16.msra.mxu0 0
      %3578 = vmatprep.subr.bf16.mxu0 0
      %3579 = vmatpush1.bf16.msra.mxu0 0
      %3580 = vmatprep.subr.bf16.mxu0 0
      %3581 = vmatpush1.bf16.msra.mxu0 0
      %3582 = vmatprep.subr.bf16.mxu0 0
      %3583 = vmatpush1.bf16.msra.mxu0 0
      %3584 = vmatprep.subr.bf16.mxu0 0
      %3585 = vmatpush1.bf16.msra.mxu0 0
      %3586 = vmatprep.subr.bf16.mxu0 0
      %3587 = vmatpush1.bf16.msra.mxu0 0
      %3588 = vmatprep.subr.bf16.mxu0 0
      %3589 = vmatpush1.bf16.msra.mxu0 0
      %3590 = vmatprep.subr.bf16.mxu0 0
      %3591 = vmatpush1.bf16.msra.mxu0 0
      %3592 = vmatprep.subr.bf16.mxu0 0
      %3593 = vmatpush1.bf16.msra.mxu0 0
      %3594 = vmatprep.subr.bf16.mxu0 0
      %3595 = vmatpush1.bf16.msra.mxu0 0
      %3596 = vmatprep.subr.bf16.mxu0 0
      %3597 = vmatpush1.bf16.msra.mxu0 0
      %3598 = vmatprep.mubr.bf16.mxu0 0
      %3599 = vmatmul.mubr.bf16.gmra.mrb[0].mxu0 %v3516
      %v3600 = vpop.f32.mrb[0].mxu0
      %v3601 = vadd.f32 %v3513, %v3600
      %v3602 = vpop.f32.mrb[0].mxu0
      %v3603 = vpop.f32.mrb[0].mxu0
      %v3604 = vadd.f32 %v3513, %v3603
      %v3605 = vpop.f32.mrb[0].mxu0
      %3606 = vmatprep.mubr.bf16.mxu0 0
      %3607 = vmatmul.mubr.bf16.gmra.mrb[0].mxu0 %v3519
      %v3608 = vpop.f32.mrb[0].mxu0
      %v3609 = vadd.f32 %v3513, %v3608
      %v3610 = vpop.f32.mrb[0].mxu0
      %v3611 = vpop.f32.mrb[0].mxu0
      %v3612 = vadd.f32 %v3513, %v3611
      %v3613 = vpop.f32.mrb[0].mxu0
      %3614 = vmatprep.mubr.bf16.mxu0 0
      %3615 = vmatmul.mubr.bf16.gmra.mrb[0].mxu0 %v3522
      %v3616 = vpop.f32.mrb[0].mxu0
      %v3617 = vadd.f32 %v3513, %v3616
      %v3618 = vpop.f32.mrb[0].mxu0
      %v3619 = vpop.f32.mrb[0].mxu0
      %v3620 = vadd.f32 %v3513, %v3619
      %v3621 = vpop.f32.mrb[0].mxu0
      %3622 = vmatprep.mubr.bf16.mxu0 0
      %3623 = vmatmul.mubr.bf16.gmra.mrb[0].mxu0 %v3525
      %v3624 = vpop.f32.mrb[0].mxu0
      %v3625 = vadd.f32 %v3513, %v3624
      %v3626 = vpop.f32.mrb[0].mxu0
      %v3627 = vpop.f32.mrb[0].mxu0
      %v3628 = vadd.f32 %v3513, %v3627
      %v3629 = vpop.f32.mrb[0].mxu0
      %3630 = vmatprep.mubr.bf16.mxu0 0
      %3631 = vmatmul.mubr.bf16.gmra.mrb[0].mxu0 %v3528
      %v3632 = vpop.f32.mrb[0].mxu0
      %v3633 = vadd.f32 %v3513, %v3632
      %v3634 = vpop.f32.mrb[0].mxu0
      %v3635 = vpop.f32.mrb[0].mxu0
      %v3636 = vadd.f32 %v3513, %v3635
      %v3637 = vpop.f32.mrb[0].mxu0
      %3638 = vmatprep.mubr.bf16.mxu0 0
      %3639 = vmatmul.mubr.bf16.gmra.mrb[0].mxu0 %v3531
      %v3640 = vpop.f32.mrb[0].mxu0
      %v3641 = vadd.f32 %v3513, %v3640
      %v3642 = vpop.f32.mrb[0].mxu0
      %v3643 = vpop.f32.mrb[0].mxu0
      %v3644 = vadd.f32 %v3513, %v3643
      %v3645 = vpop.f32.mrb[0].mxu0
      %3646 = vmatprep.mubr.bf16.mxu0 0
      %3647 = vmatmul.mubr.bf16.gmra.mrb[0].mxu0 %v3534
      %v3648 = vpop.f32.mrb[0].mxu0
      %v3649 = vadd.f32 %v3513, %v3648
      %v3650 = vpop.f32.mrb[0].mxu0
      %v3651 = vpop.f32.mrb[0].mxu0
      %v3652 = vadd.f32 %v3513, %v3651
      %v3653 = vpop.f32.mrb[0].mxu0
      %3654 = vmatprep.mubr.bf16.mxu0 0
      %3655 = vmatmul.mubr.bf16.gmra.mrb[0].mxu0 %v3537
      %v3656 = vpop.f32.mrb[0].mxu0
      %v3657 = vadd.f32 %v3513, %v3656
      %v3658 = vpop.f32.mrb[0].mxu0
      %v3659 = vpop.f32.mrb[0].mxu0
      %v3660 = vadd.f32 %v3513, %v3659
      %v3661 = vpop.f32.mrb[0].mxu0
      %3662 = vmatprep.mubr.bf16.mxu0 0
      %3663 = vmatmul.mubr.bf16.gmra.mrb[0].mxu0 %v3540
      %v3664 = vpop.f32.mrb[0].mxu0
      %v3665 = vadd.f32 %v3513, %v3664
      %v3666 = vpop.f32.mrb[0].mxu0
      %v3667 = vpop.f32.mrb[0].mxu0
      %v3668 = vadd.f32 %v3513, %v3667
      %v3669 = vpop.f32.mrb[0].mxu0
      %3670 = vmatprep.mubr.bf16.mxu0 0
      %3671 = vmatmul.mubr.bf16.gmra.mrb[0].mxu0 %v3543
      %v3672 = vpop.f32.mrb[0].mxu0
      %v3673 = vadd.f32 %v3513, %v3672
      %v3674 = vpop.f32.mrb[0].mxu0
      %v3675 = vpop.f32.mrb[0].mxu0
      %v3676 = vadd.f32 %v3513, %v3675
      %v3677 = vpop.f32.mrb[0].mxu0
      %3678 = vmatprep.mubr.bf16.mxu0 0
      %3679 = vmatmul.mubr.bf16.gmra.mrb[0].mxu0 %v3546
      %v3680 = vpop.f32.mrb[0].mxu0
      %v3681 = vadd.f32 %v3513, %v3680
      %v3682 = vpop.f32.mrb[0].mxu0
      %v3683 = vpop.f32.mrb[0].mxu0
      %v3684 = vadd.f32 %v3513, %v3683
      %v3685 = vpop.f32.mrb[0].mxu0
      %3686 = vmatprep.mubr.bf16.mxu0 0
      %3687 = vmatmul.mubr.bf16.gmra.mrb[0].mxu0 %v3549
      %v3688 = vpop.f32.mrb[0].mxu0
      %v3689 = vadd.f32 %v3513, %v3688
      %v3690 = vpop.f32.mrb[0].mxu0
      %v3691 = vpop.f32.mrb[0].mxu0
      %v3692 = vadd.f32 %v3513, %v3691
      %v3693 = vpop.f32.mrb[0].mxu0
      %3694 = vmatprep.mubr.bf16.mxu0 0
      %3695 = vmatmul.mubr.bf16.gmra.mrb[0].mxu0 %v3552
      %v3696 = vpop.f32.mrb[0].mxu0
      %v3697 = vadd.f32 %v3513, %v3696
      %v3698 = vpop.f32.mrb[0].mxu0
      %v3699 = vpop.f32.mrb[0].mxu0
      %v3700 = vadd.f32 %v3513, %v3699
      %v3701 = vpop.f32.mrb[0].mxu0
      %3702 = vmatprep.mubr.bf16.mxu0 0
      %3703 = vmatmul.mubr.bf16.gmra.mrb[0].mxu0 %v3555
      %v3704 = vpop.f32.mrb[0].mxu0
      %v3705 = vadd.f32 %v3513, %v3704
      %v3706 = vpop.f32.mrb[0].mxu0
      %v3707 = vpop.f32.mrb[0].mxu0
      %v3708 = vadd.f32 %v3513, %v3707
      %v3709 = vpop.f32.mrb[0].mxu0
      %3710 = vmatprep.mubr.bf16.mxu0 0
      %3711 = vmatmul.mubr.bf16.gmra.mrb[0].mxu0 %v3558
      %v3712 = vpop.f32.mrb[0].mxu0
      %v3713 = vadd.f32 %v3513, %v3712
      %v3714 = vpop.f32.mrb[0].mxu0
      %v3715 = vpop.f32.mrb[0].mxu0
      %v3716 = vadd.f32 %v3513, %v3715
      %v3717 = vpop.f32.mrb[0].mxu0
      %3718 = vmatprep.mubr.bf16.mxu0 0
      %3719 = vmatmul.mubr.bf16.gmra.mrb[0].mxu0 %v3561
      %v3720 = vpop.f32.mrb[0].mxu0
      %v3721 = vadd.f32 %v3513, %v3720
      %v3722 = vpop.f32.mrb[0].mxu0
      %v3723 = vpop.f32.mrb[0].mxu0
      %v3724 = vadd.f32 %v3513, %v3723
      %v3725 = vpop.f32.mrb[0].mxu0
      %3726 = vdwg.mxu0
      %3727 = vst [vmem:[%s224] sm:$0xff] %v3601
      %3728 = vst [vmem:[%s224 + $0x8] sm:$0xff] %v3604
      %3729 = vst [vmem:[%s224 + $0x10] sm:$0xff] %v3609
      %3730 = vst [vmem:[%s224 + $0x18] sm:$0xff] %v3612
      %3731 = vst [vmem:[%s224 + $0x20] sm:$0xff] %v3617
      %3732 = vst [vmem:[%s224 + $0x28] sm:$0xff] %v3620
      %3733 = vst [vmem:[%s224 + $0x30] sm:$0xff] %v3625
      %3734 = vst [vmem:[%s224 + $0x38] sm:$0xff] %v3628
      %3735 = vst [vmem:[%s224 + $0x40] sm:$0xff] %v3633
      %3736 = vst [vmem:[%s224 + $0x48] sm:$0xff] %v3636
      %3737 = vst [vmem:[%s224 + $0x50] sm:$0xff] %v3641
      %3738 = vst [vmem:[%s224 + $0x58] sm:$0xff] %v3644
      %3739 = vst [vmem:[%s224 + $0x60] sm:$0xff] %v3649
      %3740 = vst [vmem:[%s224 + $0x68] sm:$0xff] %v3652
      %3741 = vst [vmem:[%s224 + $0x70] sm:$0xff] %v3657
      %3742 = vst [vmem:[%s224 + $0x78] sm:$0xff] %v3660
      %3743 = vst [vmem:[%s224 + $0x80] sm:$0xff] %v3665
      %3744 = vst [vmem:[%s224 + $0x88] sm:$0xff] %v3668
      %3745 = vst [vmem:[%s224 + $0x90] sm:$0xff] %v3673
      %3746 = vst [vmem:[%s224 + $0x98] sm:$0xff] %v3676
      %3747 = vst [vmem:[%s224 + $0xa0] sm:$0xff] %v3681
      %3748 = vst [vmem:[%s224 + $0xa8] sm:$0xff] %v3684
      %3749 = vst [vmem:[%s224 + $0xb0] sm:$0xff] %v3689
      %3750 = vst [vmem:[%s224 + $0xb8] sm:$0xff] %v3692
      %3751 = vst [vmem:[%s224 + $0xc0] sm:$0xff] %v3697
      %3752 = vst [vmem:[%s224 + $0xc8] sm:$0xff] %v3700
      %3753 = vst [vmem:[%s224 + $0xd0] sm:$0xff] %v3705
      %3754 = vst [vmem:[%s224 + $0xd8] sm:$0xff] %v3708
      %3755 = vst [vmem:[%s224 + $0xe0] sm:$0xff] %v3713
      %3756 = vst [vmem:[%s224 + $0xe8] sm:$0xff] %v3716
      %3757 = vst [vmem:[%s224 + $0xf0] sm:$0xff] %v3721
      %3758 = vst [vmem:[%s224 + $0xf8] sm:$0xff] %v3724
      %p3759 = scmp.lt.s32.totalorder %s16, 1
      %s3760 = scalar_select %p3759, %s16, 1
      %s3761 = smul.addr %s3760, 32
      %s3762 = smul.addr %s3761, 8
      %s3763 = scalar_lea.vmem %s5, %s3762
      // Predicated region
      $region41: #{deeplabv3p_decoder_forward.5} parent=39 // pred_check
        %p3764 = pneg %p144
      $region42: #{deeplabv3p_decoder_forward.5} parent=39 // pred_check_branch
        %3766 = sbr.rel (%p3764) target = $region44
      $region43: #{deeplabv3p_decoder_forward.5} parent=39 // pred_region
        _
      $region44: #{deeplabv3p_decoder_forward.5} parent=39 // pred_fallthru
        _
    $region40: #{deeplabv3p_decoder_forward.5} parent=5 // pred_fallthru
      _
    %p3767 = scmp.le.s32.totalorder 2, %s11
    // Predicated region
    $region45: #{deeplabv3p_decoder_forward.5} parent=5 // pred_check
      %p3768 = pneg %p3767
    $region46: #{deeplabv3p_decoder_forward.5} parent=5 // pred_check_branch
      %3770 = sbr.rel (%p3768) target = $region48
    $region47: #{deeplabv3p_decoder_forward.5} parent=5 // pred_region
      %s3771 = ssub.s32 %s11, 2
      // Predicated region
      $region49: #{deeplabv3p_decoder_forward.5} parent=47 // pred_check
        %p3772 = pneg %p150
      $region50: #{deeplabv3p_decoder_forward.5} parent=47 // pred_check_branch
        %3774 = sbr.rel (%p3772) target = $region52
      $region51: #{deeplabv3p_decoder_forward.5} parent=47 // pred_region
        %p3775 = scmp.lt.s32.totalorder %s17, 1
        %s3776 = scalar_select %p3775, %s17, 1
        %s3777 = smul.addr %s3776, 32
        %s3778 = smul.addr %s3777, 8
        %s3779 = scalar_lea.vmem %s5, %s3778
      $region52: #{deeplabv3p_decoder_forward.5} parent=47 // pred_fallthru
        _
    $region48: #{deeplabv3p_decoder_forward.5} parent=5 // pred_fallthru
      _
  $region6: #{deeplabv3p_decoder_forward.5} parent=0 // loop_footer
    %s15 = sadd.s32 1, %s11
  $region7: #{deeplabv3p_decoder_forward.5} parent=0 // loop_footer_branch
    %10 = sbr.rel target = $region3
  $region8: #{deeplabv3p_decoder_forward.5} parent=0 // loop_exit
    _

// kernel: deeplabv3p_decoder_forward.4
$region0: #{deeplabv3p_decoder_forward.4}
  #allocation0 [shape = 'u32[]', space=smem, size = 0x4, offset = 0x4, fixed_abs, tag = 'smem constant byte address 0x4 - core index']
  #allocation1 [shape = 'u32[144,128]{1,0:T(1,128)}', space=vmem, size = 0x12000, scoped, tag = 'internal scratch']
  #allocation2 [shape = 'f32[288,8]{1,0:T(8,128)}', space=vmem, size = 0x24000, scoped, tag = 'scratch operand']
  %s0 = inlined_call_operand.vmem [shape: bf16[2,8,256], index: 0, kind: input, shape index: {}]
  %s1 = inlined_call_operand.vmem [shape: f32[2,8,256], index: 1, kind: input, shape index: {}]
  %s2 = inlined_call_operand.vmem [shape: bf16[8,4], index: 2, kind: input, shape index: {}]
  %s3 = inlined_call_operand.vmem [shape: bf16[9,8,8], index: 3, kind: input, shape index: {}]
  %s4 = inlined_call_operand.vmem [shape: bf16[9,4,8], index: 4, kind: input, shape index: {}]
  %s5 = inlined_call_operand.vmem [shape: f32[1,4], index: 5, kind: input, shape index: {}]
  %s6 = inlined_call_operand.vmem [shape: f32[1,8], index: 6, kind: input, shape index: {}]
  %s7 = inlined_call_operand.vmem [shape: bf16[2,256,8], index: 7, kind: output, shape index: {}]
  %s8 = sld [smem:[#allocation0]]
  $region61: #{deeplabv3p_decoder_forward.4} parent=0
    _
  %s10 = ssub.s32 1, %s8
  %s11 = scalar_select 0, %s10, %s8
  loop: start=0, step=1, limit=4
  $region2: #{deeplabv3p_decoder_forward.4} parent=0 // loop_pre_header
    _
  $region3: #{deeplabv3p_decoder_forward.4} parent=0 // loop_header
    %s13 = sphi 0, %s17
    %p14 = scmp.ge.s32.totalorder %s13, 4
    %s23 = sphi 0, %s25
    %s26 = sphi 0, %s23
    %s27 = sphi 0, %s26
    %s43 = sphi 0, %s27
    %s49 = sphi 0, %s51
    %s52 = sphi 0, %s49
    %s53 = sphi 0, %s52
    %s69 = sphi 0, %s53
    %s73 = sphi 0, %s73
    %s75 = sphi 0, %s73
    %s76 = sphi 0, %s75
    %s90 = sphi 0, %s76
    %s94 = sphi 0, %s94
    %s96 = sphi 0, %s94
    %s97 = sphi 0, %s96
    %s111 = sphi 0, %s97
    %s115 = sphi 0, %s115
    %s117 = sphi 0, %s115
    %s118 = sphi 0, %s117
    %s132 = sphi 0, %s118
    %s136 = sphi 0, %s136
    %s138 = sphi 0, %s136
    %s139 = sphi 0, %s138
    %s153 = sphi 0, %s139
    %s157 = sphi 0, %s157
    %s159 = sphi 0, %s157
    %s160 = sphi 0, %s159
    %s174 = sphi 0, %s160
    %s180 = sphi 0, %s182
    %s183 = sphi 0, %s180
    %s184 = sphi 0, %s183
    %s200 = sphi 0, %s184
  $region4: #{deeplabv3p_decoder_forward.4} parent=0 // loop_header_branch
    %16 = sbr.rel (%p14) target = $region8
  $region5: #{deeplabv3p_decoder_forward.4} parent=0 // loop_body
    %s18 = ssub.s32 %s13, 1
    %s19 = ssub.s32 %s13, 2
    %s20 = sadd.s32 %s13, 1
    %s21 = ssub.s32 %s13, %s20
    %p22 = scmp.eq.s32.totalorder %s21, 0
    %s24 = sadd.s32 %s23, 1
    %s25 = scalar_select %p22, %s23, %s24
    %p28 = pneg %p22
    %p29 = scmp.eq.s32.totalorder %s13, 1
    %p30 = por %p28, %p29
    %p31 = scmp.ne.s32.totalorder %s23, %s26
    %p32 = scmp.eq.s32.totalorder %s13, 0
    %p33 = por %p31, %p32
    %p34 = scmp.ne.s32.totalorder %s23, %s26
    %p35 = scmp.eq.s32.totalorder %s18, 1
    %p36 = por %p34, %p35
    %p37 = scmp.ne.s32.totalorder %s26, %s27
    %p38 = scmp.eq.s32.totalorder %s18, 0
    %p39 = por %p37, %p38
    %p40 = scmp.ne.s32.totalorder %s26, %s27
    %p41 = scmp.eq.s32.totalorder %s19, 1
    %p42 = por %p40, %p41
    %p44 = scmp.ne.s32.totalorder %s27, %s43
    %p45 = scmp.eq.s32.totalorder %s19, 0
    %p46 = por %p44, %p45
    %s47 = ssub.s32 %s13, %s20
    %p48 = scmp.eq.s32.totalorder %s47, 0
    %s50 = sadd.s32 %s49, 1
    %s51 = scalar_select %p48, %s49, %s50
    %p54 = pneg %p48
    %p55 = scmp.eq.s32.totalorder %s13, 1
    %p56 = por %p54, %p55
    %p57 = scmp.ne.s32.totalorder %s49, %s52
    %p58 = scmp.eq.s32.totalorder %s13, 0
    %p59 = por %p57, %p58
    %p60 = scmp.ne.s32.totalorder %s49, %s52
    %p61 = scmp.eq.s32.totalorder %s18, 1
    %p62 = por %p60, %p61
    %p63 = scmp.ne.s32.totalorder %s52, %s53
    %p64 = scmp.eq.s32.totalorder %s18, 0
    %p65 = por %p63, %p64
    %p66 = scmp.ne.s32.totalorder %s52, %s53
    %p67 = scmp.eq.s32.totalorder %s19, 1
    %p68 = por %p66, %p67
    %p70 = scmp.ne.s32.totalorder %s53, %s69
    %p71 = scmp.eq.s32.totalorder %s19, 0
    %p72 = por %p70, %p71
    %s74 = sadd.s32 %s73, 1
    %p77 = scmp.eq.s32.totalorder %s13, 1
    %p78 = scmp.ne.s32.totalorder %s73, %s75
    %p79 = scmp.eq.s32.totalorder %s13, 0
    %p80 = por %p78, %p79
    %p81 = scmp.ne.s32.totalorder %s73, %s75
    %p82 = scmp.eq.s32.totalorder %s18, 1
    %p83 = por %p81, %p82
    %p84 = scmp.ne.s32.totalorder %s75, %s76
    %p85 = scmp.eq.s32.totalorder %s18, 0
    %p86 = por %p84, %p85
    %p87 = scmp.ne.s32.totalorder %s75, %s76
    %p88 = scmp.eq.s32.totalorder %s19, 1
    %p89 = por %p87, %p88
    %p91 = scmp.ne.s32.totalorder %s76, %s90
    %p92 = scmp.eq.s32.totalorder %s19, 0
    %p93 = por %p91, %p92
    %s95 = sadd.s32 %s94, 1
    %p98 = scmp.eq.s32.totalorder %s13, 1
    %p99 = scmp.ne.s32.totalorder %s94, %s96
    %p100 = scmp.eq.s32.totalorder %s13, 0
    %p101 = por %p99, %p100
    %p102 = scmp.ne.s32.totalorder %s94, %s96
    %p103 = scmp.eq.s32.totalorder %s18, 1
    %p104 = por %p102, %p103
    %p105 = scmp.ne.s32.totalorder %s96, %s97
    %p106 = scmp.eq.s32.totalorder %s18, 0
    %p107 = por %p105, %p106
    %p108 = scmp.ne.s32.totalorder %s96, %s97
    %p109 = scmp.eq.s32.totalorder %s19, 1
    %p110 = por %p108, %p109
    %p112 = scmp.ne.s32.totalorder %s97, %s111
    %p113 = scmp.eq.s32.totalorder %s19, 0
    %p114 = por %p112, %p113
    %s116 = sadd.s32 %s115, 1
    %p119 = scmp.eq.s32.totalorder %s13, 1
    %p120 = scmp.ne.s32.totalorder %s115, %s117
    %p121 = scmp.eq.s32.totalorder %s13, 0
    %p122 = por %p120, %p121
    %p123 = scmp.ne.s32.totalorder %s115, %s117
    %p124 = scmp.eq.s32.totalorder %s18, 1
    %p125 = por %p123, %p124
    %p126 = scmp.ne.s32.totalorder %s117, %s118
    %p127 = scmp.eq.s32.totalorder %s18, 0
    %p128 = por %p126, %p127
    %p129 = scmp.ne.s32.totalorder %s117, %s118
    %p130 = scmp.eq.s32.totalorder %s19, 1
    %p131 = por %p129, %p130
    %p133 = scmp.ne.s32.totalorder %s118, %s132
    %p134 = scmp.eq.s32.totalorder %s19, 0
    %p135 = por %p133, %p134
    %s137 = sadd.s32 %s136, 1
    %p140 = scmp.eq.s32.totalorder %s13, 1
    %p141 = scmp.ne.s32.totalorder %s136, %s138
    %p142 = scmp.eq.s32.totalorder %s13, 0
    %p143 = por %p141, %p142
    %p144 = scmp.ne.s32.totalorder %s136, %s138
    %p145 = scmp.eq.s32.totalorder %s18, 1
    %p146 = por %p144, %p145
    %p147 = scmp.ne.s32.totalorder %s138, %s139
    %p148 = scmp.eq.s32.totalorder %s18, 0
    %p149 = por %p147, %p148
    %p150 = scmp.ne.s32.totalorder %s138, %s139
    %p151 = scmp.eq.s32.totalorder %s19, 1
    %p152 = por %p150, %p151
    %p154 = scmp.ne.s32.totalorder %s139, %s153
    %p155 = scmp.eq.s32.totalorder %s19, 0
    %p156 = por %p154, %p155
    %s158 = sadd.s32 %s157, 1
    %p161 = scmp.eq.s32.totalorder %s13, 1
    %p162 = scmp.ne.s32.totalorder %s157, %s159
    %p163 = scmp.eq.s32.totalorder %s13, 0
    %p164 = por %p162, %p163
    %p165 = scmp.ne.s32.totalorder %s157, %s159
    %p166 = scmp.eq.s32.totalorder %s18, 1
    %p167 = por %p165, %p166
    %p168 = scmp.ne.s32.totalorder %s159, %s160
    %p169 = scmp.eq.s32.totalorder %s18, 0
    %p170 = por %p168, %p169
    %p171 = scmp.ne.s32.totalorder %s159, %s160
    %p172 = scmp.eq.s32.totalorder %s19, 1
    %p173 = por %p171, %p172
    %p175 = scmp.ne.s32.totalorder %s160, %s174
    %p176 = scmp.eq.s32.totalorder %s19, 0
    %p177 = por %p175, %p176
    %s178 = ssub.s32 %s13, %s20
    %p179 = scmp.eq.s32.totalorder %s178, 0
    %s181 = sadd.s32 %s180, 1
    %s182 = scalar_select %p179, %s180, %s181
    %p185 = pneg %p179
    %p186 = scmp.eq.s32.totalorder %s13, 1
    %p187 = por %p185, %p186
    %p188 = scmp.ne.s32.totalorder %s180, %s183
    %p189 = scmp.eq.s32.totalorder %s13, 0
    %p190 = por %p188, %p189
    %p191 = scmp.ne.s32.totalorder %s180, %s183
    %p192 = scmp.eq.s32.totalorder %s18, 1
    %p193 = por %p191, %p192
    %p194 = scmp.ne.s32.totalorder %s183, %s184
    %p195 = scmp.eq.s32.totalorder %s18, 0
    %p196 = por %p194, %p195
    %p197 = scmp.ne.s32.totalorder %s183, %s184
    %p198 = scmp.eq.s32.totalorder %s19, 1
    %p199 = por %p197, %p198
    %p201 = scmp.ne.s32.totalorder %s184, %s200
    %p202 = scmp.eq.s32.totalorder %s19, 0
    %p203 = por %p201, %p202
    %p204 = scmp.le.s32.totalorder 1, %s13
    %p205 = scmp.lt.s32.totalorder %s13, 3
    %p206 = pnand %p204, %p205
    %p207 = pneg %p206
    // Predicated region
    $region9: #{deeplabv3p_decoder_forward.4} parent=5 // pred_check
      _
    $region10: #{deeplabv3p_decoder_forward.4} parent=5 // pred_check_branch
      %209 = sbr.rel (%p206) target = $region12
    $region11: #{deeplabv3p_decoder_forward.4} parent=5 // pred_region
      %s210 = ssub.s32 %s13, 1
      // Predicated region
      $region13: #{deeplabv3p_decoder_forward.4} parent=11 // pred_check
        %p211 = pneg %p86
      $region14: #{deeplabv3p_decoder_forward.4} parent=11 // pred_check_branch
        %213 = sbr.rel (%p211) target = $region16
      $region15: #{deeplabv3p_decoder_forward.4} parent=11 // pred_region
        _
      $region16: #{deeplabv3p_decoder_forward.4} parent=11 // pred_fallthru
        _
      // Predicated region
      $region17: #{deeplabv3p_decoder_forward.4} parent=11 // pred_check
        %p214 = pneg %p107
      $region18: #{deeplabv3p_decoder_forward.4} parent=11 // pred_check_branch
        %216 = sbr.rel (%p214) target = $region20
      $region19: #{deeplabv3p_decoder_forward.4} parent=11 // pred_region
        _
      $region20: #{deeplabv3p_decoder_forward.4} parent=11 // pred_fallthru
        _
      // Predicated region
      $region21: #{deeplabv3p_decoder_forward.4} parent=11 // pred_check
        %p217 = pneg %p128
      $region22: #{deeplabv3p_decoder_forward.4} parent=11 // pred_check_branch
        %219 = sbr.rel (%p217) target = $region24
      $region23: #{deeplabv3p_decoder_forward.4} parent=11 // pred_region
        _
      $region24: #{deeplabv3p_decoder_forward.4} parent=11 // pred_fallthru
        _
      // Predicated region
      $region25: #{deeplabv3p_decoder_forward.4} parent=11 // pred_check
        %p220 = pneg %p149
      $region26: #{deeplabv3p_decoder_forward.4} parent=11 // pred_check_branch
        %222 = sbr.rel (%p220) target = $region28
      $region27: #{deeplabv3p_decoder_forward.4} parent=11 // pred_region
        _
      $region28: #{deeplabv3p_decoder_forward.4} parent=11 // pred_fallthru
        _
      // Predicated region
      $region29: #{deeplabv3p_decoder_forward.4} parent=11 // pred_check
        %p223 = pneg %p170
      $region30: #{deeplabv3p_decoder_forward.4} parent=11 // pred_check_branch
        %225 = sbr.rel (%p223) target = $region32
      $region31: #{deeplabv3p_decoder_forward.4} parent=11 // pred_region
        _
      $region32: #{deeplabv3p_decoder_forward.4} parent=11 // pred_fallthru
        _
    $region12: #{deeplabv3p_decoder_forward.4} parent=5 // pred_fallthru
      _
    %p226 = scmp.lt.s32.totalorder %s13, 2
    // Predicated region
    $region33: #{deeplabv3p_decoder_forward.4} parent=5 // pred_check
      %p227 = pneg %p226
    $region34: #{deeplabv3p_decoder_forward.4} parent=5 // pred_check_branch
      %229 = sbr.rel (%p227) target = $region36
    $region35: #{deeplabv3p_decoder_forward.4} parent=5 // pred_region
      // Predicated region
      $region37: #{deeplabv3p_decoder_forward.4} parent=35 // pred_check
        %p230 = pneg %p33
      $region38: #{deeplabv3p_decoder_forward.4} parent=35 // pred_check_branch
        %232 = sbr.rel (%p230) target = $region40
      $region39: #{deeplabv3p_decoder_forward.4} parent=35 // pred_region
        %p233 = scmp.lt.s32.totalorder %s13, 1
        %s234 = scalar_select %p233, %s13, 1
        %s235 = smul.addr %s234, 2
        %s236 = smul.addr %s235, 4
        %s237 = scalar_lea.vmem %s0, %s236
      $region40: #{deeplabv3p_decoder_forward.4} parent=35 // pred_fallthru
        _
      // Predicated region
      $region41: #{deeplabv3p_decoder_forward.4} parent=35 // pred_check
        %p238 = pneg %p59
      $region42: #{deeplabv3p_decoder_forward.4} parent=35 // pred_check_branch
        %240 = sbr.rel (%p238) target = $region44
      $region43: #{deeplabv3p_decoder_forward.4} parent=35 // pred_region
        %p241 = scmp.lt.s32.totalorder %s13, 1
        %s242 = scalar_select %p241, %s13, 1
        %s243 = smul.addr %s242, 2
        %s244 = smul.addr %s243, 8
        %s245 = scalar_lea.vmem %s1, %s244
      $region44: #{deeplabv3p_decoder_forward.4} parent=35 // pred_fallthru
        _
    $region36: #{deeplabv3p_decoder_forward.4} parent=5 // pred_fallthru
      _
    %p246 = scmp.le.s32.totalorder 1, %s13
    %p247 = scmp.lt.s32.totalorder %s13, 3
    %p248 = pnand %p246, %p247
    %p249 = pneg %p248
    // Predicated region
    $region45: #{deeplabv3p_decoder_forward.4} parent=5 // pred_check
      _
    $region46: #{deeplabv3p_decoder_forward.4} parent=5 // pred_check_branch
      %251 = sbr.rel (%p248) target = $region48
    $region47: #{deeplabv3p_decoder_forward.4} parent=5 // pred_region
      %s252 = ssub.s32 %s13, 1
      %p253 = scmp.lt.s32.totalorder %s18, 1
      %s254 = scalar_select %p253, %s18, 1
      %s255 = smul.addr %s254, 2
      %s256 = smul.addr %s255, 4
      %s257 = scalar_lea.vmem %s0, %s256
      %p258 = pneg %p39
      %p259 = pneg %p36
      %p260 = scmp.lt.s32.totalorder %s18, 1
      %s261 = scalar_select %p260, %s18, 1
      %s262 = smul.addr %s261, 2
      %s263 = smul.addr %s262, 8
      %s264 = scalar_lea.vmem %s1, %s263
      %p265 = pneg %p65
      %p266 = pneg %p62
      %p267 = pneg %p86
      %p268 = pneg %p83
      %p269 = pneg %p107
      %p270 = pneg %p104
      %p271 = pneg %p128
      %p272 = pneg %p125
      %p273 = pneg %p149
      %p274 = pneg %p146
      %p275 = pneg %p170
      %p276 = pneg %p167
      %p277 = pneg %p196
      %p278 = pneg %p193
      %p279 = scmp.lt.s32.totalorder %s18, 1
      %s280 = scalar_select %p279, %s18, 1
      %s281 = smul.addr %s280, 32
      %s282 = smul.addr %s281, 4
      %s283 = scalar_lea.vmem %s7, %s282
      %p284 = scmp.lt.s32.totalorder %s18, 1
      %s285 = scalar_select %p284, %s18, 1
      %s286 = smul.addr %s285, 2
      %s287 = smul.addr %s286, 4
      %s288 = scalar_lea.vmem %s0, %s287
      %p289 = scmp.lt.s32.totalorder %s18, 1
      %s290 = scalar_select %p289, %s18, 1
      %s291 = smul.addr %s290, 2
      %s292 = smul.addr %s291, 8
      %s293 = scalar_lea.vmem %s1, %s292
      %p294 = scmp.lt.s32.totalorder %s18, 1
      %s295 = scalar_select %p294, %s18, 1
      %s296 = smul.addr %s295, 32
      %s297 = smul.addr %s296, 4
      %s298 = scalar_lea.vmem %s7, %s297
      %v300 = vld [vmem:[%s293] sm:$0xff]
      %v301 = vld [vmem:[%s293 + $0x8] sm:$0xff]
      %v302 = vpack.c.bf16 %v300, %v300
      %v303 = vpack.c.bf16 %v301, %v301
      %v304 = vld [vmem:[%s2] sm:$0xf]
      %v305 = vld [vmem:[%s5] sm:$0x1]
      %v307 = vlaneseq
      %v308 = vshrl.u32 %v307, 7
      %v309 = vsub.s32 0, %v308
      %v310 = vrot.slane %v305, %v309
      %312 = vxpose.xlu0.c.b16.start [1/8] %v302, 128
      %313 = vxpose.xlu0.c.b16.cont [2/8] 0, 128
      %314 = vxpose.xlu0.c.b16.cont [3/8] 0, 128
      %315 = vxpose.xlu0.c.b16.cont [4/8] 0, 128
      %316 = vxpose.xlu0.c.b16.cont [5/8] 0, 128
      %317 = vxpose.xlu0.c.b16.cont [6/8] 0, 128
      %318 = vxpose.xlu0.c.b16.cont [7/8] 0, 128
      %319 = vxpose.xlu0.c.b16.end [8/8] 0, 128
      %v320 = vpop.trf.xlu0
      %v321 = vpop.trf.xlu0
      %v322 = vpop.trf.xlu0
      %v323 = vpop.trf.xlu0
      %v324 = vpop.trf.xlu0
      %v325 = vpop.trf.xlu0
      %v326 = vpop.trf.xlu0
      %v327 = vpop.trf.xlu0
      %328 = vxpose.xlu0.c.b16.start [1/8] %v303, 128
      %329 = vxpose.xlu0.c.b16.cont [2/8] 0, 128
      %330 = vxpose.xlu0.c.b16.cont [3/8] 0, 128
      %331 = vxpose.xlu0.c.b16.cont [4/8] 0, 128
      %332 = vxpose.xlu0.c.b16.cont [5/8] 0, 128
      %333 = vxpose.xlu0.c.b16.cont [6/8] 0, 128
      %334 = vxpose.xlu0.c.b16.cont [7/8] 0, 128
      %335 = vxpose.xlu0.c.b16.end [8/8] 0, 128
      %v336 = vpop.trf.xlu0
      %v337 = vpop.trf.xlu0
      %v338 = vpop.trf.xlu0
      %v339 = vpop.trf.xlu0
      %v340 = vpop.trf.xlu0
      %v341 = vpop.trf.xlu0
      %v342 = vpop.trf.xlu0
      %v343 = vpop.trf.xlu0
      %vm344 = vcmask 64512
      %v346 = vsel %vm344, %v320, 0
      %v349 = vsel %vm344, %v321, 0
      %v352 = vsel %vm344, %v322, 0
      %v355 = vsel %vm344, %v323, 0
      %v358 = vsel %vm344, %v324, 0
      %v361 = vsel %vm344, %v325, 0
      %v364 = vsel %vm344, %v326, 0
      %v367 = vsel %vm344, %v327, 0
      %v370 = vsel %vm344, %v336, 0
      %v373 = vsel %vm344, %v337, 0
      %v376 = vsel %vm344, %v338, 0
      %v379 = vsel %vm344, %v339, 0
      %v382 = vsel %vm344, %v340, 0
      %v385 = vsel %vm344, %v341, 0
      %v388 = vsel %vm344, %v342, 0
      %v391 = vsel %vm344, %v343, 0
      %vm393 = vcmask 1043456
      %v395 = vsel %vm393, %v304, 0
      %397 = vmatprep.subr.bf16.mxu0 0
      %398 = vmatpush1.bf16.msra.mxu0 %v395
      %399 = vmatprep.subr.bf16.mxu0 0
      %400 = vmatpush1.bf16.msra.mxu0 0
      %401 = vmatprep.subr.bf16.mxu0 0
      %402 = vmatpush1.bf16.msra.mxu0 0
      %403 = vmatprep.subr.bf16.mxu0 0
      %404 = vmatpush1.bf16.msra.mxu0 0
      %405 = vmatprep.subr.bf16.mxu0 0
      %406 = vmatpush1.bf16.msra.mxu0 0
      %407 = vmatprep.subr.bf16.mxu0 0
      %408 = vmatpush1.bf16.msra.mxu0 0
      %409 = vmatprep.subr.bf16.mxu0 0
      %410 = vmatpush1.bf16.msra.mxu0 0
      %411 = vmatprep.subr.bf16.mxu0 0
      %412 = vmatpush1.bf16.msra.mxu0 0
      %413 = vmatprep.subr.bf16.mxu0 0
      %414 = vmatpush1.bf16.msra.mxu0 0
      %415 = vmatprep.subr.bf16.mxu0 0
      %416 = vmatpush1.bf16.msra.mxu0 0
      %417 = vmatprep.subr.bf16.mxu0 0
      %418 = vmatpush1.bf16.msra.mxu0 0
      %419 = vmatprep.subr.bf16.mxu0 0
      %420 = vmatpush1.bf16.msra.mxu0 0
      %421 = vmatprep.subr.bf16.mxu0 0
      %422 = vmatpush1.bf16.msra.mxu0 0
      %423 = vmatprep.subr.bf16.mxu0 0
      %424 = vmatpush1.bf16.msra.mxu0 0
      %425 = vmatprep.subr.bf16.mxu0 0
      %426 = vmatpush1.bf16.msra.mxu0 0
      %427 = vmatprep.subr.bf16.mxu0 0
      %428 = vmatpush1.bf16.msra.mxu0 0
      %429 = vmatprep.mubr.bf16.mxu0 0
      %430 = vmatmul.mubr.bf16.gmra.mrb[0].mxu0 %v346
      %v431 = vpop.f32.mrb[0].mxu0
      %v432 = vadd.f32 %v310, %v431
      %v433 = vpop.f32.mrb[0].mxu0
      %v434 = vpop.f32.mrb[0].mxu0
      %v435 = vadd.f32 %v310, %v434
      %v436 = vpop.f32.mrb[0].mxu0
      %437 = vmatprep.mubr.bf16.mxu0 0
      %438 = vmatmul.mubr.bf16.gmra.mrb[0].mxu0 %v349
      %v439 = vpop.f32.mrb[0].mxu0
      %v440 = vadd.f32 %v310, %v439
      %v441 = vpop.f32.mrb[0].mxu0
      %v442 = vpop.f32.mrb[0].mxu0
      %v443 = vadd.f32 %v310, %v442
      %v444 = vpop.f32.mrb[0].mxu0
      %445 = vmatprep.mubr.bf16.mxu0 0
      %446 = vmatmul.mubr.bf16.gmra.mrb[0].mxu0 %v352
      %v447 = vpop.f32.mrb[0].mxu0
      %v448 = vadd.f32 %v310, %v447
      %v449 = vpop.f32.mrb[0].mxu0
      %v450 = vpop.f32.mrb[0].mxu0
      %v451 = vadd.f32 %v310, %v450
      %v452 = vpop.f32.mrb[0].mxu0
      %453 = vmatprep.mubr.bf16.mxu0 0
      %454 = vmatmul.mubr.bf16.gmra.mrb[0].mxu0 %v355
      %v455 = vpop.f32.mrb[0].mxu0
      %v456 = vadd.f32 %v310, %v455
      %v457 = vpop.f32.mrb[0].mxu0
      %v458 = vpop.f32.mrb[0].mxu0
      %v459 = vadd.f32 %v310, %v458
      %v460 = vpop.f32.mrb[0].mxu0
      %461 = vmatprep.mubr.bf16.mxu0 0
      %462 = vmatmul.mubr.bf16.gmra.mrb[0].mxu0 %v358
      %v463 = vpop.f32.mrb[0].mxu0
      %v464 = vadd.f32 %v310, %v463
      %v465 = vpop.f32.mrb[0].mxu0
      %v466 = vpop.f32.mrb[0].mxu0
      %v467 = vadd.f32 %v310, %v466
      %v468 = vpop.f32.mrb[0].mxu0
      %469 = vmatprep.mubr.bf16.mxu0 0
      %470 = vmatmul.mubr.bf16.gmra.mrb[0].mxu0 %v361
      %v471 = vpop.f32.mrb[0].mxu0
      %v472 = vadd.f32 %v310, %v471
      %v473 = vpop.f32.mrb[0].mxu0
      %v474 = vpop.f32.mrb[0].mxu0
      %v475 = vadd.f32 %v310, %v474
      %v476 = vpop.f32.mrb[0].mxu0
      %477 = vmatprep.mubr.bf16.mxu0 0
      %478 = vmatmul.mubr.bf16.gmra.mrb[0].mxu0 %v364
      %v479 = vpop.f32.mrb[0].mxu0
      %v480 = vadd.f32 %v310, %v479
      %v481 = vpop.f32.mrb[0].mxu0
      %v482 = vpop.f32.mrb[0].mxu0
      %v483 = vadd.f32 %v310, %v482
      %v484 = vpop.f32.mrb[0].mxu0
      %485 = vmatprep.mubr.bf16.mxu0 0
      %486 = vmatmul.mubr.bf16.gmra.mrb[0].mxu0 %v367
      %v487 = vpop.f32.mrb[0].mxu0
      %v488 = vadd.f32 %v310, %v487
      %v489 = vpop.f32.mrb[0].mxu0
      %v490 = vpop.f32.mrb[0].mxu0
      %v491 = vadd.f32 %v310, %v490
      %v492 = vpop.f32.mrb[0].mxu0
      %493 = vmatprep.mubr.bf16.mxu0 0
      %494 = vmatmul.mubr.bf16.gmra.mrb[0].mxu0 %v370
      %v495 = vpop.f32.mrb[0].mxu0
      %v496 = vadd.f32 %v310, %v495
      %v497 = vpop.f32.mrb[0].mxu0
      %v498 = vpop.f32.mrb[0].mxu0
      %v499 = vadd.f32 %v310, %v498
      %v500 = vpop.f32.mrb[0].mxu0
      %501 = vmatprep.mubr.bf16.mxu0 0
      %502 = vmatmul.mubr.bf16.gmra.mrb[0].mxu0 %v373
      %v503 = vpop.f32.mrb[0].mxu0
      %v504 = vadd.f32 %v310, %v503
      %v505 = vpop.f32.mrb[0].mxu0
      %v506 = vpop.f32.mrb[0].mxu0
      %v507 = vadd.f32 %v310, %v506
      %v508 = vpop.f32.mrb[0].mxu0
      %509 = vmatprep.mubr.bf16.mxu0 0
      %510 = vmatmul.mubr.bf16.gmra.mrb[0].mxu0 %v376
      %v511 = vpop.f32.mrb[0].mxu0
      %v512 = vadd.f32 %v310, %v511
      %v513 = vpop.f32.mrb[0].mxu0
      %v514 = vpop.f32.mrb[0].mxu0
      %v515 = vadd.f32 %v310, %v514
      %v516 = vpop.f32.mrb[0].mxu0
      %517 = vmatprep.mubr.bf16.mxu0 0
      %518 = vmatmul.mubr.bf16.gmra.mrb[0].mxu0 %v379
      %v519 = vpop.f32.mrb[0].mxu0
      %v520 = vadd.f32 %v310, %v519
      %v521 = vpop.f32.mrb[0].mxu0
      %v522 = vpop.f32.mrb[0].mxu0
      %v523 = vadd.f32 %v310, %v522
      %v524 = vpop.f32.mrb[0].mxu0
      %525 = vmatprep.mubr.bf16.mxu0 0
      %526 = vmatmul.mubr.bf16.gmra.mrb[0].mxu0 %v382
      %v527 = vpop.f32.mrb[0].mxu0
      %v528 = vadd.f32 %v310, %v527
      %v529 = vpop.f32.mrb[0].mxu0
      %v530 = vpop.f32.mrb[0].mxu0
      %v531 = vadd.f32 %v310, %v530
      %v532 = vpop.f32.mrb[0].mxu0
      %533 = vmatprep.mubr.bf16.mxu0 0
      %534 = vmatmul.mubr.bf16.gmra.mrb[0].mxu0 %v385
      %v535 = vpop.f32.mrb[0].mxu0
      %v536 = vadd.f32 %v310, %v535
      %v537 = vpop.f32.mrb[0].mxu0
      %v538 = vpop.f32.mrb[0].mxu0
      %v539 = vadd.f32 %v310, %v538
      %v540 = vpop.f32.mrb[0].mxu0
      %541 = vmatprep.mubr.bf16.mxu0 0
      %542 = vmatmul.mubr.bf16.gmra.mrb[0].mxu0 %v388
      %v543 = vpop.f32.mrb[0].mxu0
      %v544 = vadd.f32 %v310, %v543
      %v545 = vpop.f32.mrb[0].mxu0
      %v546 = vpop.f32.mrb[0].mxu0
      %v547 = vadd.f32 %v310, %v546
      %v548 = vpop.f32.mrb[0].mxu0
      %549 = vmatprep.mubr.bf16.mxu0 0
      %550 = vmatmul.mubr.bf16.gmra.mrb[0].mxu0 %v391
      %v551 = vpop.f32.mrb[0].mxu0
      %v552 = vadd.f32 %v310, %v551
      %v553 = vpop.f32.mrb[0].mxu0
      %v554 = vpop.f32.mrb[0].mxu0
      %v555 = vadd.f32 %v310, %v554
      %v556 = vpop.f32.mrb[0].mxu0
      %557 = vdwg.mxu0
      %v558 = vmax.f32 %v432, 0.0
      %v559 = vmax.f32 %v435, 0.0
      %v560 = vmax.f32 %v440, 0.0
      %v561 = vmax.f32 %v443, 0.0
      %v562 = vmax.f32 %v448, 0.0
      %v563 = vmax.f32 %v451, 0.0
      %v564 = vmax.f32 %v456, 0.0
      %v565 = vmax.f32 %v459, 0.0
      %v566 = vmax.f32 %v464, 0.0
      %v567 = vmax.f32 %v467, 0.0
      %v568 = vmax.f32 %v472, 0.0
      %v569 = vmax.f32 %v475, 0.0
      %v570 = vmax.f32 %v480, 0.0
      %v571 = vmax.f32 %v483, 0.0
      %v572 = vmax.f32 %v488, 0.0
      %v573 = vmax.f32 %v491, 0.0
      %v574 = vmax.f32 %v496, 0.0
      %v575 = vmax.f32 %v499, 0.0
      %v576 = vmax.f32 %v504, 0.0
      %v577 = vmax.f32 %v507, 0.0
      %v578 = vmax.f32 %v512, 0.0
      %v579 = vmax.f32 %v515, 0.0
      %v580 = vmax.f32 %v520, 0.0
      %v581 = vmax.f32 %v523, 0.0
      %v582 = vmax.f32 %v528, 0.0
      %v583 = vmax.f32 %v531, 0.0
      %v584 = vmax.f32 %v536, 0.0
      %v585 = vmax.f32 %v539, 0.0
      %v586 = vmax.f32 %v544, 0.0
      %v587 = vmax.f32 %v547, 0.0
      %v588 = vmax.f32 %v552, 0.0
      %v589 = vmax.f32 %v555, 0.0
      %v590 = vpack.c.bf16 %v559, %v558
      %v591 = vpack.c.bf16 %v561, %v560
      %v592 = vpack.c.bf16 %v563, %v562
      %v593 = vpack.c.bf16 %v565, %v564
      %v594 = vpack.c.bf16 %v567, %v566
      %v595 = vpack.c.bf16 %v569, %v568
      %v596 = vpack.c.bf16 %v571, %v570
      %v597 = vpack.c.bf16 %v573, %v572
      %v598 = vpack.c.bf16 %v575, %v574
      %v599 = vpack.c.bf16 %v577, %v576
      %v600 = vpack.c.bf16 %v579, %v578
      %v601 = vpack.c.bf16 %v581, %v580
      %v602 = vpack.c.bf16 %v583, %v582
      %v603 = vpack.c.bf16 %v585, %v584
      %v604 = vpack.c.bf16 %v587, %v586
      %v605 = vpack.c.bf16 %v589, %v588
      %v606 = vld [vmem:[%s288] sm:$0xff]
      %v607 = vlaneseq
      %v608 = vshrl.u32 %v607, 7
      %v609 = vadd.s32 %v608, 8
      %v610 = vadd.s32 %v608, 16
      %v611 = vadd.s32 %v608, 24
      %v612 = vadd.s32 %v608, 32
      %v613 = vadd.s32 %v608, 40
      %v614 = vadd.s32 %v608, 48
      %v615 = vadd.s32 %v608, 56
      %v616 = vadd.s32 %v608, 64
      %v617 = vadd.s32 %v608, 72
      %v618 = vadd.s32 %v608, 80
      %v619 = vadd.s32 %v608, 88
      %v620 = vadd.s32 %v608, 96
      %v621 = vadd.s32 %v608, 104
      %v622 = vadd.s32 %v608, 112
      %v623 = vadd.s32 %v608, 120
      %v624 = vadd.s32 %v608, 128
      %v625 = vadd.s32 %v608, 136
      %v626 = vadd.s32 %v608, 144
      %v627 = vadd.s32 %v608, 152
      %v628 = vadd.s32 %v608, 160
      %v629 = vadd.s32 %v608, 168
      %v630 = vadd.s32 %v608, 176
      %v631 = vadd.s32 %v608, 184
      %v632 = vadd.s32 %v608, 192
      %v633 = vadd.s32 %v608, 200
      %v634 = vadd.s32 %v608, 208
      %v635 = vadd.s32 %v608, 216
      %v636 = vadd.s32 %v608, 224
      %v637 = vadd.s32 %v608, 232
      %v638 = vadd.s32 %v608, 240
      %v639 = vadd.s32 %v608, 248
      %vm640 = vcmp.lt.s32.totalorder %v608, 0
      %v641 = vsub.s32 0, %v608
      %v642 = vsel %vm640, %v641, %v608
      %v643 = vshrl.u32 %v642, 4
      %v644 = vand.u32 %v642, 15
      %v645 = vsub.s32 0, %v644
      %v646 = vsel %vm640, %v645, %v644
      %vm647 = vcmp.lt.s32.totalorder %v609, 0
      %v648 = vsub.s32 0, %v609
      %v649 = vsel %vm647, %v648, %v609
      %v650 = vshrl.u32 %v649, 4
      %v651 = vand.u32 %v649, 15
      %v652 = vsub.s32 0, %v651
      %v653 = vsel %vm647, %v652, %v651
      %vm654 = vcmp.lt.s32.totalorder %v610, 0
      %v655 = vsub.s32 0, %v610
      %v656 = vsel %vm654, %v655, %v610
      %v657 = vshrl.u32 %v656, 4
      %v658 = vand.u32 %v656, 15
      %v659 = vsub.s32 0, %v658
      %v660 = vsel %vm654, %v659, %v658
      %vm661 = vcmp.lt.s32.totalorder %v611, 0
      %v662 = vsub.s32 0, %v611
      %v663 = vsel %vm661, %v662, %v611
      %v664 = vshrl.u32 %v663, 4
      %v665 = vand.u32 %v663, 15
      %v666 = vsub.s32 0, %v665
      %v667 = vsel %vm661, %v666, %v665
      %vm668 = vcmp.lt.s32.totalorder %v612, 0
      %v669 = vsub.s32 0, %v612
      %v670 = vsel %vm668, %v669, %v612
      %v671 = vshrl.u32 %v670, 4
      %v672 = vand.u32 %v670, 15
      %v673 = vsub.s32 0, %v672
      %v674 = vsel %vm668, %v673, %v672
      %vm675 = vcmp.lt.s32.totalorder %v613, 0
      %v676 = vsub.s32 0, %v613
      %v677 = vsel %vm675, %v676, %v613
      %v678 = vshrl.u32 %v677, 4
      %v679 = vand.u32 %v677, 15
      %v680 = vsub.s32 0, %v679
      %v681 = vsel %vm675, %v680, %v679
      %vm682 = vcmp.lt.s32.totalorder %v614, 0
      %v683 = vsub.s32 0, %v614
      %v684 = vsel %vm682, %v683, %v614
      %v685 = vshrl.u32 %v684, 4
      %v686 = vand.u32 %v684, 15
      %v687 = vsub.s32 0, %v686
      %v688 = vsel %vm682, %v687, %v686
      %vm689 = vcmp.lt.s32.totalorder %v615, 0
      %v690 = vsub.s32 0, %v615
      %v691 = vsel %vm689, %v690, %v615
      %v692 = vshrl.u32 %v691, 4
      %v693 = vand.u32 %v691, 15
      %v694 = vsub.s32 0, %v693
      %v695 = vsel %vm689, %v694, %v693
      %vm696 = vcmp.lt.s32.totalorder %v616, 0
      %v697 = vsub.s32 0, %v616
      %v698 = vsel %vm696, %v697, %v616
      %v699 = vshrl.u32 %v698, 4
      %v700 = vand.u32 %v698, 15
      %v701 = vsub.s32 0, %v700
      %v702 = vsel %vm696, %v701, %v700
      %vm703 = vcmp.lt.s32.totalorder %v617, 0
      %v704 = vsub.s32 0, %v617
      %v705 = vsel %vm703, %v704, %v617
      %v706 = vshrl.u32 %v705, 4
      %v707 = vand.u32 %v705, 15
      %v708 = vsub.s32 0, %v707
      %v709 = vsel %vm703, %v708, %v707
      %vm710 = vcmp.lt.s32.totalorder %v618, 0
      %v711 = vsub.s32 0, %v618
      %v712 = vsel %vm710, %v711, %v618
      %v713 = vshrl.u32 %v712, 4
      %v714 = vand.u32 %v712, 15
      %v715 = vsub.s32 0, %v714
      %v716 = vsel %vm710, %v715, %v714
      %vm717 = vcmp.lt.s32.totalorder %v619, 0
      %v718 = vsub.s32 0, %v619
      %v719 = vsel %vm717, %v718, %v619
      %v720 = vshrl.u32 %v719, 4
      %v721 = vand.u32 %v719, 15
      %v722 = vsub.s32 0, %v721
      %v723 = vsel %vm717, %v722, %v721
      %vm724 = vcmp.lt.s32.totalorder %v620, 0
      %v725 = vsub.s32 0, %v620
      %v726 = vsel %vm724, %v725, %v620
      %v727 = vshrl.u32 %v726, 4
      %v728 = vand.u32 %v726, 15
      %v729 = vsub.s32 0, %v728
      %v730 = vsel %vm724, %v729, %v728
      %vm731 = vcmp.lt.s32.totalorder %v621, 0
      %v732 = vsub.s32 0, %v621
      %v733 = vsel %vm731, %v732, %v621
      %v734 = vshrl.u32 %v733, 4
      %v735 = vand.u32 %v733, 15
      %v736 = vsub.s32 0, %v735
      %v737 = vsel %vm731, %v736, %v735
      %vm738 = vcmp.lt.s32.totalorder %v622, 0
      %v739 = vsub.s32 0, %v622
      %v740 = vsel %vm738, %v739, %v622
      %v741 = vshrl.u32 %v740, 4
      %v742 = vand.u32 %v740, 15
      %v743 = vsub.s32 0, %v742
      %v744 = vsel %vm738, %v743, %v742
      %vm745 = vcmp.lt.s32.totalorder %v623, 0
      %v746 = vsub.s32 0, %v623
      %v747 = vsel %vm745, %v746, %v623
      %v748 = vshrl.u32 %v747, 4
      %v749 = vand.u32 %v747, 15
      %v750 = vsub.s32 0, %v749
      %v751 = vsel %vm745, %v750, %v749
      %vm752 = vcmp.lt.s32.totalorder %v624, 0
      %v753 = vsub.s32 0, %v624
      %v754 = vsel %vm752, %v753, %v624
      %v755 = vshrl.u32 %v754, 4
      %v756 = vand.u32 %v754, 15
      %v757 = vsub.s32 0, %v756
      %v758 = vsel %vm752, %v757, %v756
      %vm759 = vcmp.lt.s32.totalorder %v625, 0
      %v760 = vsub.s32 0, %v625
      %v761 = vsel %vm759, %v760, %v625
      %v762 = vshrl.u32 %v761, 4
      %v763 = vand.u32 %v761, 15
      %v764 = vsub.s32 0, %v763
      %v765 = vsel %vm759, %v764, %v763
      %vm766 = vcmp.lt.s32.totalorder %v626, 0
      %v767 = vsub.s32 0, %v626
      %v768 = vsel %vm766, %v767, %v626
      %v769 = vshrl.u32 %v768, 4
      %v770 = vand.u32 %v768, 15
      %v771 = vsub.s32 0, %v770
      %v772 = vsel %vm766, %v771, %v770
      %vm773 = vcmp.lt.s32.totalorder %v627, 0
      %v774 = vsub.s32 0, %v627
      %v775 = vsel %vm773, %v774, %v627
      %v776 = vshrl.u32 %v775, 4
      %v777 = vand.u32 %v775, 15
      %v778 = vsub.s32 0, %v777
      %v779 = vsel %vm773, %v778, %v777
      %vm780 = vcmp.lt.s32.totalorder %v628, 0
      %v781 = vsub.s32 0, %v628
      %v782 = vsel %vm780, %v781, %v628
      %v783 = vshrl.u32 %v782, 4
      %v784 = vand.u32 %v782, 15
      %v785 = vsub.s32 0, %v784
      %v786 = vsel %vm780, %v785, %v784
      %vm787 = vcmp.lt.s32.totalorder %v629, 0
      %v788 = vsub.s32 0, %v629
      %v789 = vsel %vm787, %v788, %v629
      %v790 = vshrl.u32 %v789, 4
      %v791 = vand.u32 %v789, 15
      %v792 = vsub.s32 0, %v791
      %v793 = vsel %vm787, %v792, %v791
      %vm794 = vcmp.lt.s32.totalorder %v630, 0
      %v795 = vsub.s32 0, %v630
      %v796 = vsel %vm794, %v795, %v630
      %v797 = vshrl.u32 %v796, 4
      %v798 = vand.u32 %v796, 15
      %v799 = vsub.s32 0, %v798
      %v800 = vsel %vm794, %v799, %v798
      %vm801 = vcmp.lt.s32.totalorder %v631, 0
      %v802 = vsub.s32 0, %v631
      %v803 = vsel %vm801, %v802, %v631
      %v804 = vshrl.u32 %v803, 4
      %v805 = vand.u32 %v803, 15
      %v806 = vsub.s32 0, %v805
      %v807 = vsel %vm801, %v806, %v805
      %vm808 = vcmp.lt.s32.totalorder %v632, 0
      %v809 = vsub.s32 0, %v632
      %v810 = vsel %vm808, %v809, %v632
      %v811 = vshrl.u32 %v810, 4
      %v812 = vand.u32 %v810, 15
      %v813 = vsub.s32 0, %v812
      %v814 = vsel %vm808, %v813, %v812
      %vm815 = vcmp.lt.s32.totalorder %v633, 0
      %v816 = vsub.s32 0, %v633
      %v817 = vsel %vm815, %v816, %v633
      %v818 = vshrl.u32 %v817, 4
      %v819 = vand.u32 %v817, 15
      %v820 = vsub.s32 0, %v819
      %v821 = vsel %vm815, %v820, %v819
      %vm822 = vcmp.lt.s32.totalorder %v634, 0
      %v823 = vsub.s32 0, %v634
      %v824 = vsel %vm822, %v823, %v634
      %v825 = vshrl.u32 %v824, 4
      %v826 = vand.u32 %v824, 15
      %v827 = vsub.s32 0, %v826
      %v828 = vsel %vm822, %v827, %v826
      %vm829 = vcmp.lt.s32.totalorder %v635, 0
      %v830 = vsub.s32 0, %v635
      %v831 = vsel %vm829, %v830, %v635
      %v832 = vshrl.u32 %v831, 4
      %v833 = vand.u32 %v831, 15
      %v834 = vsub.s32 0, %v833
      %v835 = vsel %vm829, %v834, %v833
      %vm836 = vcmp.lt.s32.totalorder %v636, 0
      %v837 = vsub.s32 0, %v636
      %v838 = vsel %vm836, %v837, %v636
      %v839 = vshrl.u32 %v838, 4
      %v840 = vand.u32 %v838, 15
      %v841 = vsub.s32 0, %v840
      %v842 = vsel %vm836, %v841, %v840
      %vm843 = vcmp.lt.s32.totalorder %v637, 0
      %v844 = vsub.s32 0, %v637
      %v845 = vsel %vm843, %v844, %v637
      %v846 = vshrl.u32 %v845, 4
      %v847 = vand.u32 %v845, 15
      %v848 = vsub.s32 0, %v847
      %v849 = vsel %vm843, %v848, %v847
      %vm850 = vcmp.lt.s32.totalorder %v638, 0
      %v851 = vsub.s32 0, %v638
      %v852 = vsel %vm850, %v851, %v638
      %v853 = vshrl.u32 %v852, 4
      %v854 = vand.u32 %v852, 15
      %v855 = vsub.s32 0, %v854
      %v856 = vsel %vm850, %v855, %v854
      %vm857 = vcmp.lt.s32.totalorder %v639, 0
      %v858 = vsub.s32 0, %v639
      %v859 = vsel %vm857, %v858, %v639
      %v860 = vshrl.u32 %v859, 4
      %v861 = vand.u32 %v859, 15
      %v862 = vsub.s32 0, %v861
      %v863 = vsel %vm857, %v862, %v861
      %vm864 = vcmp.ne.s32.totalorder %v646, 0
      %vm865 = vcmp.ne.s32.totalorder %v653, 0
      %vm866 = vcmp.ne.s32.totalorder %v660, 0
      %vm867 = vcmp.ne.s32.totalorder %v667, 0
      %vm868 = vcmp.ne.s32.totalorder %v674, 0
      %vm869 = vcmp.ne.s32.totalorder %v681, 0
      %vm870 = vcmp.ne.s32.totalorder %v688, 0
      %vm871 = vcmp.ne.s32.totalorder %v695, 0
      %vm872 = vcmp.ne.s32.totalorder %v702, 0
      %vm873 = vcmp.ne.s32.totalorder %v709, 0
      %vm874 = vcmp.ne.s32.totalorder %v716, 0
      %vm875 = vcmp.ne.s32.totalorder %v723, 0
      %vm876 = vcmp.ne.s32.totalorder %v730, 0
      %vm877 = vcmp.ne.s32.totalorder %v737, 0
      %vm878 = vcmp.ne.s32.totalorder %v744, 0
      %vm879 = vcmp.ne.s32.totalorder %v751, 0
      %vm880 = vcmp.ne.s32.totalorder %v758, 0
      %vm881 = vcmp.ne.s32.totalorder %v765, 0
      %vm882 = vcmp.ne.s32.totalorder %v772, 0
      %vm883 = vcmp.ne.s32.totalorder %v779, 0
      %vm884 = vcmp.ne.s32.totalorder %v786, 0
      %vm885 = vcmp.ne.s32.totalorder %v793, 0
      %vm886 = vcmp.ne.s32.totalorder %v800, 0
      %vm887 = vcmp.ne.s32.totalorder %v807, 0
      %vm888 = vcmp.ne.s32.totalorder %v814, 0
      %vm889 = vcmp.ne.s32.totalorder %v821, 0
      %vm890 = vcmp.ne.s32.totalorder %v828, 0
      %vm891 = vcmp.ne.s32.totalorder %v835, 0
      %vm892 = vcmp.ne.s32.totalorder %v842, 0
      %vm893 = vcmp.ne.s32.totalorder %v849, 0
      %vm894 = vcmp.ne.s32.totalorder %v856, 0
      %vm895 = vcmp.ne.s32.totalorder %v863, 0
      %vm896 = vcmp.lt.s32.totalorder %v646, 0
      %vm897 = vcmp.lt.s32.totalorder %v653, 0
      %vm898 = vcmp.lt.s32.totalorder %v660, 0
      %vm899 = vcmp.lt.s32.totalorder %v667, 0
      %vm900 = vcmp.lt.s32.totalorder %v674, 0
      %vm901 = vcmp.lt.s32.totalorder %v681, 0
      %vm902 = vcmp.lt.s32.totalorder %v688, 0
      %vm903 = vcmp.lt.s32.totalorder %v695, 0
      %vm904 = vcmp.lt.s32.totalorder %v702, 0
      %vm905 = vcmp.lt.s32.totalorder %v709, 0
      %vm906 = vcmp.lt.s32.totalorder %v716, 0
      %vm907 = vcmp.lt.s32.totalorder %v723, 0
      %vm908 = vcmp.lt.s32.totalorder %v730, 0
      %vm909 = vcmp.lt.s32.totalorder %v737, 0
      %vm910 = vcmp.lt.s32.totalorder %v744, 0
      %vm911 = vcmp.lt.s32.totalorder %v751, 0
      %vm912 = vcmp.lt.s32.totalorder %v758, 0
      %vm913 = vcmp.lt.s32.totalorder %v765, 0
      %vm914 = vcmp.lt.s32.totalorder %v772, 0
      %vm915 = vcmp.lt.s32.totalorder %v779, 0
      %vm916 = vcmp.lt.s32.totalorder %v786, 0
      %vm917 = vcmp.lt.s32.totalorder %v793, 0
      %vm918 = vcmp.lt.s32.totalorder %v800, 0
      %vm919 = vcmp.lt.s32.totalorder %v807, 0
      %vm920 = vcmp.lt.s32.totalorder %v814, 0
      %vm921 = vcmp.lt.s32.totalorder %v821, 0
      %vm922 = vcmp.lt.s32.totalorder %v828, 0
      %vm923 = vcmp.lt.s32.totalorder %v835, 0
      %vm924 = vcmp.lt.s32.totalorder %v842, 0
      %vm925 = vcmp.lt.s32.totalorder %v849, 0
      %vm926 = vcmp.lt.s32.totalorder %v856, 0
      %vm927 = vcmp.lt.s32.totalorder %v863, 0
      %vm928 = vmand %vm896, %vm864
      %vm929 = vmand %vm897, %vm865
      %vm930 = vmand %vm898, %vm866
      %vm931 = vmand %vm899, %vm867
      %vm932 = vmand %vm900, %vm868
      %vm933 = vmand %vm901, %vm869
      %vm934 = vmand %vm902, %vm870
      %vm935 = vmand %vm903, %vm871
      %vm936 = vmand %vm904, %vm872
      %vm937 = vmand %vm905, %vm873
      %vm938 = vmand %vm906, %vm874
      %vm939 = vmand %vm907, %vm875
      %vm940 = vmand %vm908, %vm876
      %vm941 = vmand %vm909, %vm877
      %vm942 = vmand %vm910, %vm878
      %vm943 = vmand %vm911, %vm879
      %vm944 = vmand %vm912, %vm880
      %vm945 = vmand %vm913, %vm881
      %vm946 = vmand %vm914, %vm882
      %vm947 = vmand %vm915, %vm883
      %vm948 = vmand %vm916, %vm884
      %vm949 = vmand %vm917, %vm885
      %vm950 = vmand %vm918, %vm886
      %vm951 = vmand %vm919, %vm887
      %vm952 = vmand %vm920, %vm888
      %vm953 = vmand %vm921, %vm889
      %vm954 = vmand %vm922, %vm890
      %vm955 = vmand %vm923, %vm891
      %vm956 = vmand %vm924, %vm892
      %vm957 = vmand %vm925, %vm893
      %vm958 = vmand %vm926, %vm894
      %vm959 = vmand %vm927, %vm895
      %v960 = vadd.s32 %v646, 16
      %v961 = vadd.s32 %v653, 16
      %v962 = vadd.s32 %v660, 16
      %v963 = vadd.s32 %v667, 16
      %v964 = vadd.s32 %v674, 16
      %v965 = vadd.s32 %v681, 16
      %v966 = vadd.s32 %v688, 16
      %v967 = vadd.s32 %v695, 16
      %v968 = vadd.s32 %v702, 16
      %v969 = vadd.s32 %v709, 16
      %v970 = vadd.s32 %v716, 16
      %v971 = vadd.s32 %v723, 16
      %v972 = vadd.s32 %v730, 16
      %v973 = vadd.s32 %v737, 16
      %v974 = vadd.s32 %v744, 16
      %v975 = vadd.s32 %v751, 16
      %v976 = vadd.s32 %v758, 16
      %v977 = vadd.s32 %v765, 16
      %v978 = vadd.s32 %v772, 16
      %v979 = vadd.s32 %v779, 16
      %v980 = vadd.s32 %v786, 16
      %v981 = vadd.s32 %v793, 16
      %v982 = vadd.s32 %v800, 16
      %v983 = vadd.s32 %v807, 16
      %v984 = vadd.s32 %v814, 16
      %v985 = vadd.s32 %v821, 16
      %v986 = vadd.s32 %v828, 16
      %v987 = vadd.s32 %v835, 16
      %v988 = vadd.s32 %v842, 16
      %v989 = vadd.s32 %v849, 16
      %v990 = vadd.s32 %v856, 16
      %v991 = vadd.s32 %v863, 16
      %v992 = vsel %vm928, %v960, %v646
      %v993 = vsel %vm929, %v961, %v653
      %v994 = vsel %vm930, %v962, %v660
      %v995 = vsel %vm931, %v963, %v667
      %v996 = vsel %vm932, %v964, %v674
      %v997 = vsel %vm933, %v965, %v681
      %v998 = vsel %vm934, %v966, %v688
      %v999 = vsel %vm935, %v967, %v695
      %v1000 = vsel %vm936, %v968, %v702
      %v1001 = vsel %vm937, %v969, %v709
      %v1002 = vsel %vm938, %v970, %v716
      %v1003 = vsel %vm939, %v971, %v723
      %v1004 = vsel %vm940, %v972, %v730
      %v1005 = vsel %vm941, %v973, %v737
      %v1006 = vsel %vm942, %v974, %v744
      %v1007 = vsel %vm943, %v975, %v751
      %v1008 = vsel %vm944, %v976, %v758
      %v1009 = vsel %vm945, %v977, %v765
      %v1010 = vsel %vm946, %v978, %v772
      %v1011 = vsel %vm947, %v979, %v779
      %v1012 = vsel %vm948, %v980, %v786
      %v1013 = vsel %vm949, %v981, %v793
      %v1014 = vsel %vm950, %v982, %v800
      %v1015 = vsel %vm951, %v983, %v807
      %v1016 = vsel %vm952, %v984, %v814
      %v1017 = vsel %vm953, %v985, %v821
      %v1018 = vsel %vm954, %v986, %v828
      %v1019 = vsel %vm955, %v987, %v835
      %v1020 = vsel %vm956, %v988, %v842
      %v1021 = vsel %vm957, %v989, %v849
      %v1022 = vsel %vm958, %v990, %v856
      %v1023 = vsel %vm959, %v991, %v863
      %vm1024 = vcmp.ne.s32.totalorder %v992, 15
      %vm1025 = vcmp.ne.s32.totalorder %v993, 15
      %vm1026 = vcmp.ne.s32.totalorder %v994, 15
      %vm1027 = vcmp.ne.s32.totalorder %v995, 15
      %vm1028 = vcmp.ne.s32.totalorder %v996, 15
      %vm1029 = vcmp.ne.s32.totalorder %v997, 15
      %vm1030 = vcmp.ne.s32.totalorder %v998, 15
      %vm1031 = vcmp.ne.s32.totalorder %v999, 15
      %vm1032 = vcmp.ne.s32.totalorder %v1000, 15
      %vm1033 = vcmp.ne.s32.totalorder %v1001, 15
      %vm1034 = vcmp.ne.s32.totalorder %v1002, 15
      %vm1035 = vcmp.ne.s32.totalorder %v1003, 15
      %vm1036 = vcmp.ne.s32.totalorder %v1004, 15
      %vm1037 = vcmp.ne.s32.totalorder %v1005, 15
      %vm1038 = vcmp.ne.s32.totalorder %v1006, 15
      %vm1039 = vcmp.ne.s32.totalorder %v1007, 15
      %vm1040 = vcmp.ne.s32.totalorder %v1008, 15
      %vm1041 = vcmp.ne.s32.totalorder %v1009, 15
      %vm1042 = vcmp.ne.s32.totalorder %v1010, 15
      %vm1043 = vcmp.ne.s32.totalorder %v1011, 15
      %vm1044 = vcmp.ne.s32.totalorder %v1012, 15
      %vm1045 = vcmp.ne.s32.totalorder %v1013, 15
      %vm1046 = vcmp.ne.s32.totalorder %v1014, 15
      %vm1047 = vcmp.ne.s32.totalorder %v1015, 15
      %vm1048 = vcmp.ne.s32.totalorder %v1016, 15
      %vm1049 = vcmp.ne.s32.totalorder %v1017, 15
      %vm1050 = vcmp.ne.s32.totalorder %v1018, 15
      %vm1051 = vcmp.ne.s32.totalorder %v1019, 15
      %vm1052 = vcmp.ne.s32.totalorder %v1020, 15
      %vm1053 = vcmp.ne.s32.totalorder %v1021, 15
      %vm1054 = vcmp.ne.s32.totalorder %v1022, 15
      %vm1055 = vcmp.ne.s32.totalorder %v1023, 15
      %v1056 = vsel %vm1024, 1, 0
      %v1057 = vsel %vm1025, 1, 0
      %v1058 = vsel %vm1026, 1, 0
      %v1059 = vsel %vm1027, 1, 0
      %v1060 = vsel %vm1028, 1, 0
      %v1061 = vsel %vm1029, 1, 0
      %v1062 = vsel %vm1030, 1, 0
      %v1063 = vsel %vm1031, 1, 0
      %v1064 = vsel %vm1032, 1, 0
      %v1065 = vsel %vm1033, 1, 0
      %v1066 = vsel %vm1034, 1, 0
      %v1067 = vsel %vm1035, 1, 0
      %v1068 = vsel %vm1036, 1, 0
      %v1069 = vsel %vm1037, 1, 0
      %v1070 = vsel %vm1038, 1, 0
      %v1071 = vsel %vm1039, 1, 0
      %v1072 = vsel %vm1040, 1, 0
      %v1073 = vsel %vm1041, 1, 0
      %v1074 = vsel %vm1042, 1, 0
      %v1075 = vsel %vm1043, 1, 0
      %v1076 = vsel %vm1044, 1, 0
      %v1077 = vsel %vm1045, 1, 0
      %v1078 = vsel %vm1046, 1, 0
      %v1079 = vsel %vm1047, 1, 0
      %v1080 = vsel %vm1048, 1, 0
      %v1081 = vsel %vm1049, 1, 0
      %v1082 = vsel %vm1050, 1, 0
      %v1083 = vsel %vm1051, 1, 0
      %v1084 = vsel %vm1052, 1, 0
      %v1085 = vsel %vm1053, 1, 0
      %v1086 = vsel %vm1054, 1, 0
      %v1087 = vsel %vm1055, 1, 0
      %v1088 = vcvt.s32.f32 %v1056
      %v1089 = vcvt.s32.f32 %v1057
      %v1090 = vcvt.s32.f32 %v1058
      %v1091 = vcvt.s32.f32 %v1059
      %v1092 = vcvt.s32.f32 %v1060
      %v1093 = vcvt.s32.f32 %v1061
      %v1094 = vcvt.s32.f32 %v1062
      %v1095 = vcvt.s32.f32 %v1063
      %v1096 = vcvt.s32.f32 %v1064
      %v1097 = vcvt.s32.f32 %v1065
      %v1098 = vcvt.s32.f32 %v1066
      %v1099 = vcvt.s32.f32 %v1067
      %v1100 = vcvt.s32.f32 %v1068
      %v1101 = vcvt.s32.f32 %v1069
      %v1102 = vcvt.s32.f32 %v1070
      %v1103 = vcvt.s32.f32 %v1071
      %v1104 = vcvt.s32.f32 %v1072
      %v1105 = vcvt.s32.f32 %v1073
      %v1106 = vcvt.s32.f32 %v1074
      %v1107 = vcvt.s32.f32 %v1075
      %v1108 = vcvt.s32.f32 %v1076
      %v1109 = vcvt.s32.f32 %v1077
      %v1110 = vcvt.s32.f32 %v1078
      %v1111 = vcvt.s32.f32 %v1079
      %v1112 = vcvt.s32.f32 %v1080
      %v1113 = vcvt.s32.f32 %v1081
      %v1114 = vcvt.s32.f32 %v1082
      %v1115 = vcvt.s32.f32 %v1083
      %v1116 = vcvt.s32.f32 %v1084
      %v1117 = vcvt.s32.f32 %v1085
      %v1118 = vcvt.s32.f32 %v1086
      %v1119 = vcvt.s32.f32 %v1087
      %vm1120 = vcmp.ne.s32.totalorder %v992, 0
      %vm1121 = vcmp.ne.s32.totalorder %v993, 0
      %vm1122 = vcmp.ne.s32.totalorder %v994, 0
      %vm1123 = vcmp.ne.s32.totalorder %v995, 0
      %vm1124 = vcmp.ne.s32.totalorder %v996, 0
      %vm1125 = vcmp.ne.s32.totalorder %v997, 0
      %vm1126 = vcmp.ne.s32.totalorder %v998, 0
      %vm1127 = vcmp.ne.s32.totalorder %v999, 0
      %vm1128 = vcmp.ne.s32.totalorder %v1000, 0
      %vm1129 = vcmp.ne.s32.totalorder %v1001, 0
      %vm1130 = vcmp.ne.s32.totalorder %v1002, 0
      %vm1131 = vcmp.ne.s32.totalorder %v1003, 0
      %vm1132 = vcmp.ne.s32.totalorder %v1004, 0
      %vm1133 = vcmp.ne.s32.totalorder %v1005, 0
      %vm1134 = vcmp.ne.s32.totalorder %v1006, 0
      %vm1135 = vcmp.ne.s32.totalorder %v1007, 0
      %vm1136 = vcmp.ne.s32.totalorder %v1008, 0
      %vm1137 = vcmp.ne.s32.totalorder %v1009, 0
      %vm1138 = vcmp.ne.s32.totalorder %v1010, 0
      %vm1139 = vcmp.ne.s32.totalorder %v1011, 0
      %vm1140 = vcmp.ne.s32.totalorder %v1012, 0
      %vm1141 = vcmp.ne.s32.totalorder %v1013, 0
      %vm1142 = vcmp.ne.s32.totalorder %v1014, 0
      %vm1143 = vcmp.ne.s32.totalorder %v1015, 0
      %vm1144 = vcmp.ne.s32.totalorder %v1016, 0
      %vm1145 = vcmp.ne.s32.totalorder %v1017, 0
      %vm1146 = vcmp.ne.s32.totalorder %v1018, 0
      %vm1147 = vcmp.ne.s32.totalorder %v1019, 0
      %vm1148 = vcmp.ne.s32.totalorder %v1020, 0
      %vm1149 = vcmp.ne.s32.totalorder %v1021, 0
      %vm1150 = vcmp.ne.s32.totalorder %v1022, 0
      %vm1151 = vcmp.ne.s32.totalorder %v1023, 0
      %v1152 = vsel %vm1120, 1, 0
      %v1153 = vsel %vm1121, 1, 0
      %v1154 = vsel %vm1122, 1, 0
      %v1155 = vsel %vm1123, 1, 0
      %v1156 = vsel %vm1124, 1, 0
      %v1157 = vsel %vm1125, 1, 0
      %v1158 = vsel %vm1126, 1, 0
      %v1159 = vsel %vm1127, 1, 0
      %v1160 = vsel %vm1128, 1, 0
      %v1161 = vsel %vm1129, 1, 0
      %v1162 = vsel %vm1130, 1, 0
      %v1163 = vsel %vm1131, 1, 0
      %v1164 = vsel %vm1132, 1, 0
      %v1165 = vsel %vm1133, 1, 0
      %v1166 = vsel %vm1134, 1, 0
      %v1167 = vsel %vm1135, 1, 0
      %v1168 = vsel %vm1136, 1, 0
      %v1169 = vsel %vm1137, 1, 0
      %v1170 = vsel %vm1138, 1, 0
      %v1171 = vsel %vm1139, 1, 0
      %v1172 = vsel %vm1140, 1, 0
      %v1173 = vsel %vm1141, 1, 0
      %v1174 = vsel %vm1142, 1, 0
      %v1175 = vsel %vm1143, 1, 0
      %v1176 = vsel %vm1144, 1, 0
      %v1177 = vsel %vm1145, 1, 0
      %v1178 = vsel %vm1146, 1, 0
      %v1179 = vsel %vm1147, 1, 0
      %v1180 = vsel %vm1148, 1, 0
      %v1181 = vsel %vm1149, 1, 0
      %v1182 = vsel %vm1150, 1, 0
      %v1183 = vsel %vm1151, 1, 0
      %v1184 = vcvt.s32.f32 %v1152
      %v1185 = vcvt.s32.f32 %v1153
      %v1186 = vcvt.s32.f32 %v1154
      %v1187 = vcvt.s32.f32 %v1155
      %v1188 = vcvt.s32.f32 %v1156
      %v1189 = vcvt.s32.f32 %v1157
      %v1190 = vcvt.s32.f32 %v1158
      %v1191 = vcvt.s32.f32 %v1159
      %v1192 = vcvt.s32.f32 %v1160
      %v1193 = vcvt.s32.f32 %v1161
      %v1194 = vcvt.s32.f32 %v1162
      %v1195 = vcvt.s32.f32 %v1163
      %v1196 = vcvt.s32.f32 %v1164
      %v1197 = vcvt.s32.f32 %v1165
      %v1198 = vcvt.s32.f32 %v1166
      %v1199 = vcvt.s32.f32 %v1167
      %v1200 = vcvt.s32.f32 %v1168
      %v1201 = vcvt.s32.f32 %v1169
      %v1202 = vcvt.s32.f32 %v1170
      %v1203 = vcvt.s32.f32 %v1171
      %v1204 = vcvt.s32.f32 %v1172
      %v1205 = vcvt.s32.f32 %v1173
      %v1206 = vcvt.s32.f32 %v1174
      %v1207 = vcvt.s32.f32 %v1175
      %v1208 = vcvt.s32.f32 %v1176
      %v1209 = vcvt.s32.f32 %v1177
      %v1210 = vcvt.s32.f32 %v1178
      %v1211 = vcvt.s32.f32 %v1179
      %v1212 = vcvt.s32.f32 %v1180
      %v1213 = vcvt.s32.f32 %v1181
      %v1214 = vcvt.s32.f32 %v1182
      %v1215 = vcvt.s32.f32 %v1183
      %s1216 = scalar_lea.vmem %s3, 12
      %v1217 = vld [vmem:[%s1216] sm:$0xf]
      %s1218 = scalar_lea.vmem %s4, 6
      %v1219 = vld [vmem:[%s1218] sm:$0x3]
      %vm1220 = vcmask 31744
      %v1222 = vsel %vm1220, %v590, 0
      %v1225 = vsel %vm1220, %v591, 0
      %v1228 = vsel %vm1220, %v592, 0
      %v1231 = vsel %vm1220, %v593, 0
      %v1234 = vsel %vm1220, %v594, 0
      %v1237 = vsel %vm1220, %v595, 0
      %v1240 = vsel %vm1220, %v596, 0
      %v1243 = vsel %vm1220, %v597, 0
      %v1246 = vsel %vm1220, %v598, 0
      %v1249 = vsel %vm1220, %v599, 0
      %v1252 = vsel %vm1220, %v600, 0
      %v1255 = vsel %vm1220, %v601, 0
      %v1258 = vsel %vm1220, %v602, 0
      %v1261 = vsel %vm1220, %v603, 0
      %v1264 = vsel %vm1220, %v604, 0
      %v1267 = vsel %vm1220, %v605, 0
      %vm1269 = vcmask 1041408
      %v1271 = vsel %vm1269, %v1219, 0
      %1273 = vmatprep.subr.bf16.mxu0 0
      %1274 = vmatpush1.bf16.msra.mxu0 %v1271
      %1275 = vmatprep.subr.bf16.mxu0 0
      %1276 = vmatpush1.bf16.msra.mxu0 0
      %1277 = vmatprep.subr.bf16.mxu0 0
      %1278 = vmatpush1.bf16.msra.mxu0 0
      %1279 = vmatprep.subr.bf16.mxu0 0
      %1280 = vmatpush1.bf16.msra.mxu0 0
      %1281 = vmatprep.subr.bf16.mxu0 0
      %1282 = vmatpush1.bf16.msra.mxu0 0
      %1283 = vmatprep.subr.bf16.mxu0 0
      %1284 = vmatpush1.bf16.msra.mxu0 0
      %1285 = vmatprep.subr.bf16.mxu0 0
      %1286 = vmatpush1.bf16.msra.mxu0 0
      %1287 = vmatprep.subr.bf16.mxu0 0
      %1288 = vmatpush1.bf16.msra.mxu0 0
      %1289 = vmatprep.subr.bf16.mxu0 0
      %1290 = vmatpush1.bf16.msra.mxu0 0
      %1291 = vmatprep.subr.bf16.mxu0 0
      %1292 = vmatpush1.bf16.msra.mxu0 0
      %1293 = vmatprep.subr.bf16.mxu0 0
      %1294 = vmatpush1.bf16.msra.mxu0 0
      %1295 = vmatprep.subr.bf16.mxu0 0
      %1296 = vmatpush1.bf16.msra.mxu0 0
      %1297 = vmatprep.subr.bf16.mxu0 0
      %1298 = vmatpush1.bf16.msra.mxu0 0
      %1299 = vmatprep.subr.bf16.mxu0 0
      %1300 = vmatpush1.bf16.msra.mxu0 0
      %1301 = vmatprep.subr.bf16.mxu0 0
      %1302 = vmatpush1.bf16.msra.mxu0 0
      %1303 = vmatprep.subr.bf16.mxu0 0
      %1304 = vmatpush1.bf16.msra.mxu0 0
      %1305 = vmatprep.mubr.bf16.mxu0 0
      %1306 = vmatmul.mubr.bf16.gmra.mrb[0].mxu0 %v1222
      %v1307 = vpop.f32.mrb[0].mxu0
      %v1308 = vadd.f32 0.0, %v1307
      %v1309 = vpop.f32.mrb[0].mxu0
      %v1310 = vpop.f32.mrb[0].mxu0
      %v1311 = vadd.f32 0.0, %v1310
      %v1312 = vpop.f32.mrb[0].mxu0
      %1313 = vmatprep.mubr.bf16.mxu0 0
      %1314 = vmatmul.mubr.bf16.gmra.mrb[0].mxu0 %v1225
      %v1315 = vpop.f32.mrb[0].mxu0
      %v1316 = vadd.f32 0.0, %v1315
      %v1317 = vpop.f32.mrb[0].mxu0
      %v1318 = vpop.f32.mrb[0].mxu0
      %v1319 = vadd.f32 0.0, %v1318
      %v1320 = vpop.f32.mrb[0].mxu0
      %1321 = vmatprep.mubr.bf16.mxu0 0
      %1322 = vmatmul.mubr.bf16.gmra.mrb[0].mxu0 %v1228
      %v1323 = vpop.f32.mrb[0].mxu0
      %v1324 = vadd.f32 0.0, %v1323
      %v1325 = vpop.f32.mrb[0].mxu0
      %v1326 = vpop.f32.mrb[0].mxu0
      %v1327 = vadd.f32 0.0, %v1326
      %v1328 = vpop.f32.mrb[0].mxu0
      %1329 = vmatprep.mubr.bf16.mxu0 0
      %1330 = vmatmul.mubr.bf16.gmra.mrb[0].mxu0 %v1231
      %v1331 = vpop.f32.mrb[0].mxu0
      %v1332 = vadd.f32 0.0, %v1331
      %v1333 = vpop.f32.mrb[0].mxu0
      %v1334 = vpop.f32.mrb[0].mxu0
      %v1335 = vadd.f32 0.0, %v1334
      %v1336 = vpop.f32.mrb[0].mxu0
      %1337 = vmatprep.mubr.bf16.mxu0 0
      %1338 = vmatmul.mubr.bf16.gmra.mrb[0].mxu0 %v1234
      %v1339 = vpop.f32.mrb[0].mxu0
      %v1340 = vadd.f32 0.0, %v1339
      %v1341 = vpop.f32.mrb[0].mxu0
      %v1342 = vpop.f32.mrb[0].mxu0
      %v1343 = vadd.f32 0.0, %v1342
      %v1344 = vpop.f32.mrb[0].mxu0
      %1345 = vmatprep.mubr.bf16.mxu0 0
      %1346 = vmatmul.mubr.bf16.gmra.mrb[0].mxu0 %v1237
      %v1347 = vpop.f32.mrb[0].mxu0
      %v1348 = vadd.f32 0.0, %v1347
      %v1349 = vpop.f32.mrb[0].mxu0
      %v1350 = vpop.f32.mrb[0].mxu0
      %v1351 = vadd.f32 0.0, %v1350
      %v1352 = vpop.f32.mrb[0].mxu0
      %1353 = vmatprep.mubr.bf16.mxu0 0
      %1354 = vmatmul.mubr.bf16.gmra.mrb[0].mxu0 %v1240
      %v1355 = vpop.f32.mrb[0].mxu0
      %v1356 = vadd.f32 0.0, %v1355
      %v1357 = vpop.f32.mrb[0].mxu0
      %v1358 = vpop.f32.mrb[0].mxu0
      %v1359 = vadd.f32 0.0, %v1358
      %v1360 = vpop.f32.mrb[0].mxu0
      %1361 = vmatprep.mubr.bf16.mxu0 0
      %1362 = vmatmul.mubr.bf16.gmra.mrb[0].mxu0 %v1243
      %v1363 = vpop.f32.mrb[0].mxu0
      %v1364 = vadd.f32 0.0, %v1363
      %v1365 = vpop.f32.mrb[0].mxu0
      %v1366 = vpop.f32.mrb[0].mxu0
      %v1367 = vadd.f32 0.0, %v1366
      %v1368 = vpop.f32.mrb[0].mxu0
      %1369 = vmatprep.mubr.bf16.mxu0 0
      %1370 = vmatmul.mubr.bf16.gmra.mrb[0].mxu0 %v1246
      %v1371 = vpop.f32.mrb[0].mxu0
      %v1372 = vadd.f32 0.0, %v1371
      %v1373 = vpop.f32.mrb[0].mxu0
      %v1374 = vpop.f32.mrb[0].mxu0
      %v1375 = vadd.f32 0.0, %v1374
      %v1376 = vpop.f32.mrb[0].mxu0
      %1377 = vmatprep.mubr.bf16.mxu0 0
      %1378 = vmatmul.mubr.bf16.gmra.mrb[0].mxu0 %v1249
      %v1379 = vpop.f32.mrb[0].mxu0
      %v1380 = vadd.f32 0.0, %v1379
      %v1381 = vpop.f32.mrb[0].mxu0
      %v1382 = vpop.f32.mrb[0].mxu0
      %v1383 = vadd.f32 0.0, %v1382
      %v1384 = vpop.f32.mrb[0].mxu0
      %1385 = vmatprep.mubr.bf16.mxu0 0
      %1386 = vmatmul.mubr.bf16.gmra.mrb[0].mxu0 %v1252
      %v1387 = vpop.f32.mrb[0].mxu0
      %v1388 = vadd.f32 0.0, %v1387
      %v1389 = vpop.f32.mrb[0].mxu0
      %v1390 = vpop.f32.mrb[0].mxu0
      %v1391 = vadd.f32 0.0, %v1390
      %v1392 = vpop.f32.mrb[0].mxu0
      %1393 = vmatprep.mubr.bf16.mxu0 0
      %1394 = vmatmul.mubr.bf16.gmra.mrb[0].mxu0 %v1255
      %v1395 = vpop.f32.mrb[0].mxu0
      %v1396 = vadd.f32 0.0, %v1395
      %v1397 = vpop.f32.mrb[0].mxu0
      %v1398 = vpop.f32.mrb[0].mxu0
      %v1399 = vadd.f32 0.0, %v1398
      %v1400 = vpop.f32.mrb[0].mxu0
      %1401 = vmatprep.mubr.bf16.mxu0 0
      %1402 = vmatmul.mubr.bf16.gmra.mrb[0].mxu0 %v1258
      %v1403 = vpop.f32.mrb[0].mxu0
      %v1404 = vadd.f32 0.0, %v1403
      %v1405 = vpop.f32.mrb[0].mxu0
      %v1406 = vpop.f32.mrb[0].mxu0
      %v1407 = vadd.f32 0.0, %v1406
      %v1408 = vpop.f32.mrb[0].mxu0
      %1409 = vmatprep.mubr.bf16.mxu0 0
      %1410 = vmatmul.mubr.bf16.gmra.mrb[0].mxu0 %v1261
      %v1411 = vpop.f32.mrb[0].mxu0
      %v1412 = vadd.f32 0.0, %v1411
      %v1413 = vpop.f32.mrb[0].mxu0
      %v1414 = vpop.f32.mrb[0].mxu0
      %v1415 = vadd.f32 0.0, %v1414
      %v1416 = vpop.f32.mrb[0].mxu0
      %1417 = vmatprep.mubr.bf16.mxu0 0
      %1418 = vmatmul.mubr.bf16.gmra.mrb[0].mxu0 %v1264
      %v1419 = vpop.f32.mrb[0].mxu0
      %v1420 = vadd.f32 0.0, %v1419
      %v1421 = vpop.f32.mrb[0].mxu0
      %v1422 = vpop.f32.mrb[0].mxu0
      %v1423 = vadd.f32 0.0, %v1422
      %v1424 = vpop.f32.mrb[0].mxu0
      %1425 = vmatprep.mubr.bf16.mxu0 0
      %1426 = vmatmul.mubr.bf16.gmra.mrb[0].mxu0 %v1267
      %v1427 = vpop.f32.mrb[0].mxu0
      %v1428 = vadd.f32 0.0, %v1427
      %v1429 = vpop.f32.mrb[0].mxu0
      %v1430 = vpop.f32.mrb[0].mxu0
      %v1431 = vadd.f32 0.0, %v1430
      %v1432 = vpop.f32.mrb[0].mxu0
      %1433 = vdwg.mxu0
      %v1435 = vunpack.c.l.b16 %v606
      %v1436 = vunpack.c.h.b16 %v606
      %v1437 = vpack.c.b16 %v1435, %v1435
      %v1438 = vpack.c.b16 %v1436, %v1436
      %1441 = vxpose.xlu0.c.b16.start [1/8] %v1437, 128
      %1442 = vxpose.xlu0.c.b16.cont [2/8] 0, 128
      %1443 = vxpose.xlu0.c.b16.cont [3/8] 0, 128
      %1444 = vxpose.xlu0.c.b16.cont [4/8] 0, 128
      %1445 = vxpose.xlu0.c.b16.cont [5/8] 0, 128
      %1446 = vxpose.xlu0.c.b16.cont [6/8] 0, 128
      %1447 = vxpose.xlu0.c.b16.cont [7/8] 0, 128
      %1448 = vxpose.xlu0.c.b16.end [8/8] 0, 128
      %v1449 = vpop.trf.xlu0
      %v1450 = vpop.trf.xlu0
      %v1451 = vpop.trf.xlu0
      %v1452 = vpop.trf.xlu0
      %v1453 = vpop.trf.xlu0
      %v1454 = vpop.trf.xlu0
      %v1455 = vpop.trf.xlu0
      %v1456 = vpop.trf.xlu0
      %1457 = vxpose.xlu0.c.b16.start [1/8] %v1438, 128
      %1458 = vxpose.xlu0.c.b16.cont [2/8] 0, 128
      %1459 = vxpose.xlu0.c.b16.cont [3/8] 0, 128
      %1460 = vxpose.xlu0.c.b16.cont [4/8] 0, 128
      %1461 = vxpose.xlu0.c.b16.cont [5/8] 0, 128
      %1462 = vxpose.xlu0.c.b16.cont [6/8] 0, 128
      %1463 = vxpose.xlu0.c.b16.cont [7/8] 0, 128
      %1464 = vxpose.xlu0.c.b16.end [8/8] 0, 128
      %v1465 = vpop.trf.xlu0
      %v1466 = vpop.trf.xlu0
      %v1467 = vpop.trf.xlu0
      %v1468 = vpop.trf.xlu0
      %v1469 = vpop.trf.xlu0
      %v1470 = vpop.trf.xlu0
      %v1471 = vpop.trf.xlu0
      %v1472 = vpop.trf.xlu0
      %v1474 = vsel %vm344, %v1449, 0
      %v1477 = vsel %vm344, %v1450, 0
      %v1480 = vsel %vm344, %v1451, 0
      %v1483 = vsel %vm344, %v1452, 0
      %v1486 = vsel %vm344, %v1453, 0
      %v1489 = vsel %vm344, %v1454, 0
      %v1492 = vsel %vm344, %v1455, 0
      %v1495 = vsel %vm344, %v1456, 0
      %v1498 = vsel %vm344, %v1465, 0
      %v1501 = vsel %vm344, %v1466, 0
      %v1504 = vsel %vm344, %v1467, 0
      %v1507 = vsel %vm344, %v1468, 0
      %v1510 = vsel %vm344, %v1469, 0
      %v1513 = vsel %vm344, %v1470, 0
      %v1516 = vsel %vm344, %v1471, 0
      %v1519 = vsel %vm344, %v1472, 0
      %v1522 = vsel %vm393, %v1217, 0
      %1524 = vmatprep.subr.bf16.mxu0 0
      %1525 = vmatpush1.bf16.msra.mxu0 %v1522
      %1526 = vmatprep.subr.bf16.mxu0 0
      %1527 = vmatpush1.bf16.msra.mxu0 0
      %1528 = vmatprep.subr.bf16.mxu0 0
      %1529 = vmatpush1.bf16.msra.mxu0 0
      %1530 = vmatprep.subr.bf16.mxu0 0
      %1531 = vmatpush1.bf16.msra.mxu0 0
      %1532 = vmatprep.subr.bf16.mxu0 0
      %1533 = vmatpush1.bf16.msra.mxu0 0
      %1534 = vmatprep.subr.bf16.mxu0 0
      %1535 = vmatpush1.bf16.msra.mxu0 0
      %1536 = vmatprep.subr.bf16.mxu0 0
      %1537 = vmatpush1.bf16.msra.mxu0 0
      %1538 = vmatprep.subr.bf16.mxu0 0
      %1539 = vmatpush1.bf16.msra.mxu0 0
      %1540 = vmatprep.subr.bf16.mxu0 0
      %1541 = vmatpush1.bf16.msra.mxu0 0
      %1542 = vmatprep.subr.bf16.mxu0 0
      %1543 = vmatpush1.bf16.msra.mxu0 0
      %1544 = vmatprep.subr.bf16.mxu0 0
      %1545 = vmatpush1.bf16.msra.mxu0 0
      %1546 = vmatprep.subr.bf16.mxu0 0
      %1547 = vmatpush1.bf16.msra.mxu0 0
      %1548 = vmatprep.subr.bf16.mxu0 0
      %1549 = vmatpush1.bf16.msra.mxu0 0
      %1550 = vmatprep.subr.bf16.mxu0 0
      %1551 = vmatpush1.bf16.msra.mxu0 0
      %1552 = vmatprep.subr.bf16.mxu0 0
      %1553 = vmatpush1.bf16.msra.mxu0 0
      %1554 = vmatprep.subr.bf16.mxu0 0
      %1555 = vmatpush1.bf16.msra.mxu0 0
      %1556 = vmatprep.mubr.bf16.mxu0 0
      %1557 = vmatmul.mubr.bf16.gmra.mrb[0].mxu0 %v1474
      %v1558 = vpop.f32.mrb[0].mxu0
      %v1559 = vadd.f32 %v1308, %v1558
      %v1560 = vpop.f32.mrb[0].mxu0
      %v1561 = vpop.f32.mrb[0].mxu0
      %v1562 = vadd.f32 %v1311, %v1561
      %v1563 = vpop.f32.mrb[0].mxu0
      %1564 = vmatprep.mubr.bf16.mxu0 0
      %1565 = vmatmul.mubr.bf16.gmra.mrb[0].mxu0 %v1477
      %v1566 = vpop.f32.mrb[0].mxu0
      %v1567 = vadd.f32 %v1316, %v1566
      %v1568 = vpop.f32.mrb[0].mxu0
      %v1569 = vpop.f32.mrb[0].mxu0
      %v1570 = vadd.f32 %v1319, %v1569
      %v1571 = vpop.f32.mrb[0].mxu0
      %1572 = vmatprep.mubr.bf16.mxu0 0
      %1573 = vmatmul.mubr.bf16.gmra.mrb[0].mxu0 %v1480
      %v1574 = vpop.f32.mrb[0].mxu0
      %v1575 = vadd.f32 %v1324, %v1574
      %v1576 = vpop.f32.mrb[0].mxu0
      %v1577 = vpop.f32.mrb[0].mxu0
      %v1578 = vadd.f32 %v1327, %v1577
      %v1579 = vpop.f32.mrb[0].mxu0
      %1580 = vmatprep.mubr.bf16.mxu0 0
      %1581 = vmatmul.mubr.bf16.gmra.mrb[0].mxu0 %v1483
      %v1582 = vpop.f32.mrb[0].mxu0
      %v1583 = vadd.f32 %v1332, %v1582
      %v1584 = vpop.f32.mrb[0].mxu0
      %v1585 = vpop.f32.mrb[0].mxu0
      %v1586 = vadd.f32 %v1335, %v1585
      %v1587 = vpop.f32.mrb[0].mxu0
      %1588 = vmatprep.mubr.bf16.mxu0 0
      %1589 = vmatmul.mubr.bf16.gmra.mrb[0].mxu0 %v1486
      %v1590 = vpop.f32.mrb[0].mxu0
      %v1591 = vadd.f32 %v1340, %v1590
      %v1592 = vpop.f32.mrb[0].mxu0
      %v1593 = vpop.f32.mrb[0].mxu0
      %v1594 = vadd.f32 %v1343, %v1593
      %v1595 = vpop.f32.mrb[0].mxu0
      %1596 = vmatprep.mubr.bf16.mxu0 0
      %1597 = vmatmul.mubr.bf16.gmra.mrb[0].mxu0 %v1489
      %v1598 = vpop.f32.mrb[0].mxu0
      %v1599 = vadd.f32 %v1348, %v1598
      %v1600 = vpop.f32.mrb[0].mxu0
      %v1601 = vpop.f32.mrb[0].mxu0
      %v1602 = vadd.f32 %v1351, %v1601
      %v1603 = vpop.f32.mrb[0].mxu0
      %1604 = vmatprep.mubr.bf16.mxu0 0
      %1605 = vmatmul.mubr.bf16.gmra.mrb[0].mxu0 %v1492
      %v1606 = vpop.f32.mrb[0].mxu0
      %v1607 = vadd.f32 %v1356, %v1606
      %v1608 = vpop.f32.mrb[0].mxu0
      %v1609 = vpop.f32.mrb[0].mxu0
      %v1610 = vadd.f32 %v1359, %v1609
      %v1611 = vpop.f32.mrb[0].mxu0
      %1612 = vmatprep.mubr.bf16.mxu0 0
      %1613 = vmatmul.mubr.bf16.gmra.mrb[0].mxu0 %v1495
      %v1614 = vpop.f32.mrb[0].mxu0
      %v1615 = vadd.f32 %v1364, %v1614
      %v1616 = vpop.f32.mrb[0].mxu0
      %v1617 = vpop.f32.mrb[0].mxu0
      %v1618 = vadd.f32 %v1367, %v1617
      %v1619 = vpop.f32.mrb[0].mxu0
      %1620 = vmatprep.mubr.bf16.mxu0 0
      %1621 = vmatmul.mubr.bf16.gmra.mrb[0].mxu0 %v1498
      %v1622 = vpop.f32.mrb[0].mxu0
      %v1623 = vadd.f32 %v1372, %v1622
      %v1624 = vpop.f32.mrb[0].mxu0
      %v1625 = vpop.f32.mrb[0].mxu0
      %v1626 = vadd.f32 %v1375, %v1625
      %v1627 = vpop.f32.mrb[0].mxu0
      %1628 = vmatprep.mubr.bf16.mxu0 0
      %1629 = vmatmul.mubr.bf16.gmra.mrb[0].mxu0 %v1501
      %v1630 = vpop.f32.mrb[0].mxu0
      %v1631 = vadd.f32 %v1380, %v1630
      %v1632 = vpop.f32.mrb[0].mxu0
      %v1633 = vpop.f32.mrb[0].mxu0
      %v1634 = vadd.f32 %v1383, %v1633
      %v1635 = vpop.f32.mrb[0].mxu0
      %1636 = vmatprep.mubr.bf16.mxu0 0
      %1637 = vmatmul.mubr.bf16.gmra.mrb[0].mxu0 %v1504
      %v1638 = vpop.f32.mrb[0].mxu0
      %v1639 = vadd.f32 %v1388, %v1638
      %v1640 = vpop.f32.mrb[0].mxu0
      %v1641 = vpop.f32.mrb[0].mxu0
      %v1642 = vadd.f32 %v1391, %v1641
      %v1643 = vpop.f32.mrb[0].mxu0
      %1644 = vmatprep.mubr.bf16.mxu0 0
      %1645 = vmatmul.mubr.bf16.gmra.mrb[0].mxu0 %v1507
      %v1646 = vpop.f32.mrb[0].mxu0
      %v1647 = vadd.f32 %v1396, %v1646
      %v1648 = vpop.f32.mrb[0].mxu0
      %v1649 = vpop.f32.mrb[0].mxu0
      %v1650 = vadd.f32 %v1399, %v1649
      %v1651 = vpop.f32.mrb[0].mxu0
      %1652 = vmatprep.mubr.bf16.mxu0 0
      %1653 = vmatmul.mubr.bf16.gmra.mrb[0].mxu0 %v1510
      %v1654 = vpop.f32.mrb[0].mxu0
      %v1655 = vadd.f32 %v1404, %v1654
      %v1656 = vpop.f32.mrb[0].mxu0
      %v1657 = vpop.f32.mrb[0].mxu0
      %v1658 = vadd.f32 %v1407, %v1657
      %v1659 = vpop.f32.mrb[0].mxu0
      %1660 = vmatprep.mubr.bf16.mxu0 0
      %1661 = vmatmul.mubr.bf16.gmra.mrb[0].mxu0 %v1513
      %v1662 = vpop.f32.mrb[0].mxu0
      %v1663 = vadd.f32 %v1412, %v1662
      %v1664 = vpop.f32.mrb[0].mxu0
      %v1665 = vpop.f32.mrb[0].mxu0
      %v1666 = vadd.f32 %v1415, %v1665
      %v1667 = vpop.f32.mrb[0].mxu0
      %1668 = vmatprep.mubr.bf16.mxu0 0
      %1669 = vmatmul.mubr.bf16.gmra.mrb[0].mxu0 %v1516
      %v1670 = vpop.f32.mrb[0].mxu0
      %v1671 = vadd.f32 %v1420, %v1670
      %v1672 = vpop.f32.mrb[0].mxu0
      %v1673 = vpop.f32.mrb[0].mxu0
      %v1674 = vadd.f32 %v1423, %v1673
      %v1675 = vpop.f32.mrb[0].mxu0
      %1676 = vmatprep.mubr.bf16.mxu0 0
      %1677 = vmatmul.mubr.bf16.gmra.mrb[0].mxu0 %v1519
      %v1678 = vpop.f32.mrb[0].mxu0
      %v1679 = vadd.f32 %v1428, %v1678
      %v1680 = vpop.f32.mrb[0].mxu0
      %v1681 = vpop.f32.mrb[0].mxu0
      %v1682 = vadd.f32 %v1431, %v1681
      %v1683 = vpop.f32.mrb[0].mxu0
      %1684 = vdwg.mxu0
      %s1685 = scalar_lea.vmem %s3, 16
      %v1686 = vld [vmem:[%s1685] sm:$0xf]
      %s1687 = scalar_lea.vmem %s4, 8
      %v1688 = vld [vmem:[%s1687] sm:$0x3]
      %v1690 = vsel %vm1269, %v1688, 0
      %1692 = vmatprep.subr.bf16.mxu0 0
      %1693 = vmatpush1.bf16.msra.mxu0 %v1690
      %1694 = vmatprep.subr.bf16.mxu0 0
      %1695 = vmatpush1.bf16.msra.mxu0 0
      %1696 = vmatprep.subr.bf16.mxu0 0
      %1697 = vmatpush1.bf16.msra.mxu0 0
      %1698 = vmatprep.subr.bf16.mxu0 0
      %1699 = vmatpush1.bf16.msra.mxu0 0
      %1700 = vmatprep.subr.bf16.mxu0 0
      %1701 = vmatpush1.bf16.msra.mxu0 0
      %1702 = vmatprep.subr.bf16.mxu0 0
      %1703 = vmatpush1.bf16.msra.mxu0 0
      %1704 = vmatprep.subr.bf16.mxu0 0
      %1705 = vmatpush1.bf16.msra.mxu0 0
      %1706 = vmatprep.subr.bf16.mxu0 0
      %1707 = vmatpush1.bf16.msra.mxu0 0
      %1708 = vmatprep.subr.bf16.mxu0 0
      %1709 = vmatpush1.bf16.msra.mxu0 0
      %1710 = vmatprep.subr.bf16.mxu0 0
      %1711 = vmatpush1.bf16.msra.mxu0 0
      %1712 = vmatprep.subr.bf16.mxu0 0
      %1713 = vmatpush1.bf16.msra.mxu0 0
      %1714 = vmatprep.subr.bf16.mxu0 0
      %1715 = vmatpush1.bf16.msra.mxu0 0
      %1716 = vmatprep.subr.bf16.mxu0 0
      %1717 = vmatpush1.bf16.msra.mxu0 0
      %1718 = vmatprep.subr.bf16.mxu0 0
      %1719 = vmatpush1.bf16.msra.mxu0 0
      %1720 = vmatprep.subr.bf16.mxu0 0
      %1721 = vmatpush1.bf16.msra.mxu0 0
      %1722 = vmatprep.subr.bf16.mxu0 0
      %1723 = vmatpush1.bf16.msra.mxu0 0
      %1724 = vmatprep.mubr.bf16.mxu0 0
      %1725 = vmatmul.mubr.bf16.gmra.mrb[0].mxu0 %v1222
      %v1726 = vpop.f32.mrb[0].mxu0
      %v1727 = vadd.f32 0.0, %v1726
      %v1728 = vpop.f32.mrb[0].mxu0
      %v1729 = vpop.f32.mrb[0].mxu0
      %v1730 = vadd.f32 0.0, %v1729
      %v1731 = vpop.f32.mrb[0].mxu0
      %1732 = vmatprep.mubr.bf16.mxu0 0
      %1733 = vmatmul.mubr.bf16.gmra.mrb[0].mxu0 %v1225
      %v1734 = vpop.f32.mrb[0].mxu0
      %v1735 = vadd.f32 0.0, %v1734
      %v1736 = vpop.f32.mrb[0].mxu0
      %v1737 = vpop.f32.mrb[0].mxu0
      %v1738 = vadd.f32 0.0, %v1737
      %v1739 = vpop.f32.mrb[0].mxu0
      %1740 = vmatprep.mubr.bf16.mxu0 0
      %1741 = vmatmul.mubr.bf16.gmra.mrb[0].mxu0 %v1228
      %v1742 = vpop.f32.mrb[0].mxu0
      %v1743 = vadd.f32 0.0, %v1742
      %v1744 = vpop.f32.mrb[0].mxu0
      %v1745 = vpop.f32.mrb[0].mxu0
      %v1746 = vadd.f32 0.0, %v1745
      %v1747 = vpop.f32.mrb[0].mxu0
      %1748 = vmatprep.mubr.bf16.mxu0 0
      %1749 = vmatmul.mubr.bf16.gmra.mrb[0].mxu0 %v1231
      %v1750 = vpop.f32.mrb[0].mxu0
      %v1751 = vadd.f32 0.0, %v1750
      %v1752 = vpop.f32.mrb[0].mxu0
      %v1753 = vpop.f32.mrb[0].mxu0
      %v1754 = vadd.f32 0.0, %v1753
      %v1755 = vpop.f32.mrb[0].mxu0
      %1756 = vmatprep.mubr.bf16.mxu0 0
      %1757 = vmatmul.mubr.bf16.gmra.mrb[0].mxu0 %v1234
      %v1758 = vpop.f32.mrb[0].mxu0
      %v1759 = vadd.f32 0.0, %v1758
      %v1760 = vpop.f32.mrb[0].mxu0
      %v1761 = vpop.f32.mrb[0].mxu0
      %v1762 = vadd.f32 0.0, %v1761
      %v1763 = vpop.f32.mrb[0].mxu0
      %1764 = vmatprep.mubr.bf16.mxu0 0
      %1765 = vmatmul.mubr.bf16.gmra.mrb[0].mxu0 %v1237
      %v1766 = vpop.f32.mrb[0].mxu0
      %v1767 = vadd.f32 0.0, %v1766
      %v1768 = vpop.f32.mrb[0].mxu0
      %v1769 = vpop.f32.mrb[0].mxu0
      %v1770 = vadd.f32 0.0, %v1769
      %v1771 = vpop.f32.mrb[0].mxu0
      %1772 = vmatprep.mubr.bf16.mxu0 0
      %1773 = vmatmul.mubr.bf16.gmra.mrb[0].mxu0 %v1240
      %v1774 = vpop.f32.mrb[0].mxu0
      %v1775 = vadd.f32 0.0, %v1774
      %v1776 = vpop.f32.mrb[0].mxu0
      %v1777 = vpop.f32.mrb[0].mxu0
      %v1778 = vadd.f32 0.0, %v1777
      %v1779 = vpop.f32.mrb[0].mxu0
      %1780 = vmatprep.mubr.bf16.mxu0 0
      %1781 = vmatmul.mubr.bf16.gmra.mrb[0].mxu0 %v1243
      %v1782 = vpop.f32.mrb[0].mxu0
      %v1783 = vadd.f32 0.0, %v1782
      %v1784 = vpop.f32.mrb[0].mxu0
      %v1785 = vpop.f32.mrb[0].mxu0
      %v1786 = vadd.f32 0.0, %v1785
      %v1787 = vpop.f32.mrb[0].mxu0
      %1788 = vmatprep.mubr.bf16.mxu0 0
      %1789 = vmatmul.mubr.bf16.gmra.mrb[0].mxu0 %v1246
      %v1790 = vpop.f32.mrb[0].mxu0
      %v1791 = vadd.f32 0.0, %v1790
      %v1792 = vpop.f32.mrb[0].mxu0
      %v1793 = vpop.f32.mrb[0].mxu0
      %v1794 = vadd.f32 0.0, %v1793
      %v1795 = vpop.f32.mrb[0].mxu0
      %1796 = vmatprep.mubr.bf16.mxu0 0
      %1797 = vmatmul.mubr.bf16.gmra.mrb[0].mxu0 %v1249
      %v1798 = vpop.f32.mrb[0].mxu0
      %v1799 = vadd.f32 0.0, %v1798
      %v1800 = vpop.f32.mrb[0].mxu0
      %v1801 = vpop.f32.mrb[0].mxu0
      %v1802 = vadd.f32 0.0, %v1801
      %v1803 = vpop.f32.mrb[0].mxu0
      %1804 = vmatprep.mubr.bf16.mxu0 0
      %1805 = vmatmul.mubr.bf16.gmra.mrb[0].mxu0 %v1252
      %v1806 = vpop.f32.mrb[0].mxu0
      %v1807 = vadd.f32 0.0, %v1806
      %v1808 = vpop.f32.mrb[0].mxu0
      %v1809 = vpop.f32.mrb[0].mxu0
      %v1810 = vadd.f32 0.0, %v1809
      %v1811 = vpop.f32.mrb[0].mxu0
      %1812 = vmatprep.mubr.bf16.mxu0 0
      %1813 = vmatmul.mubr.bf16.gmra.mrb[0].mxu0 %v1255
      %v1814 = vpop.f32.mrb[0].mxu0
      %v1815 = vadd.f32 0.0, %v1814
      %v1816 = vpop.f32.mrb[0].mxu0
      %v1817 = vpop.f32.mrb[0].mxu0
      %v1818 = vadd.f32 0.0, %v1817
      %v1819 = vpop.f32.mrb[0].mxu0
      %1820 = vmatprep.mubr.bf16.mxu0 0
      %1821 = vmatmul.mubr.bf16.gmra.mrb[0].mxu0 %v1258
      %v1822 = vpop.f32.mrb[0].mxu0
      %v1823 = vadd.f32 0.0, %v1822
      %v1824 = vpop.f32.mrb[0].mxu0
      %v1825 = vpop.f32.mrb[0].mxu0
      %v1826 = vadd.f32 0.0, %v1825
      %v1827 = vpop.f32.mrb[0].mxu0
      %1828 = vmatprep.mubr.bf16.mxu0 0
      %1829 = vmatmul.mubr.bf16.gmra.mrb[0].mxu0 %v1261
      %v1830 = vpop.f32.mrb[0].mxu0
      %v1831 = vadd.f32 0.0, %v1830
      %v1832 = vpop.f32.mrb[0].mxu0
      %v1833 = vpop.f32.mrb[0].mxu0
      %v1834 = vadd.f32 0.0, %v1833
      %v1835 = vpop.f32.mrb[0].mxu0
      %1836 = vmatprep.mubr.bf16.mxu0 0
      %1837 = vmatmul.mubr.bf16.gmra.mrb[0].mxu0 %v1264
      %v1838 = vpop.f32.mrb[0].mxu0
      %v1839 = vadd.f32 0.0, %v1838
      %v1840 = vpop.f32.mrb[0].mxu0
      %v1841 = vpop.f32.mrb[0].mxu0
      %v1842 = vadd.f32 0.0, %v1841
      %v1843 = vpop.f32.mrb[0].mxu0
      %1844 = vmatprep.mubr.bf16.mxu0 0
      %1845 = vmatmul.mubr.bf16.gmra.mrb[0].mxu0 %v1267
      %v1846 = vpop.f32.mrb[0].mxu0
      %v1847 = vadd.f32 0.0, %v1846
      %v1848 = vpop.f32.mrb[0].mxu0
      %v1849 = vpop.f32.mrb[0].mxu0
      %v1850 = vadd.f32 0.0, %v1849
      %v1851 = vpop.f32.mrb[0].mxu0
      %1852 = vdwg.mxu0
      %v1854 = vsel %vm393, %v1686, 0
      %1856 = vmatprep.subr.bf16.mxu0 0
      %1857 = vmatpush1.bf16.msra.mxu0 %v1854
      %1858 = vmatprep.subr.bf16.mxu0 0
      %1859 = vmatpush1.bf16.msra.mxu0 0
      %1860 = vmatprep.subr.bf16.mxu0 0
      %1861 = vmatpush1.bf16.msra.mxu0 0
      %1862 = vmatprep.subr.bf16.mxu0 0
      %1863 = vmatpush1.bf16.msra.mxu0 0
      %1864 = vmatprep.subr.bf16.mxu0 0
      %1865 = vmatpush1.bf16.msra.mxu0 0
      %1866 = vmatprep.subr.bf16.mxu0 0
      %1867 = vmatpush1.bf16.msra.mxu0 0
      %1868 = vmatprep.subr.bf16.mxu0 0
      %1869 = vmatpush1.bf16.msra.mxu0 0
      %1870 = vmatprep.subr.bf16.mxu0 0
      %1871 = vmatpush1.bf16.msra.mxu0 0
      %1872 = vmatprep.subr.bf16.mxu0 0
      %1873 = vmatpush1.bf16.msra.mxu0 0
      %1874 = vmatprep.subr.bf16.mxu0 0
      %1875 = vmatpush1.bf16.msra.mxu0 0
      %1876 = vmatprep.subr.bf16.mxu0 0
      %1877 = vmatpush1.bf16.msra.mxu0 0
      %1878 = vmatprep.subr.bf16.mxu0 0
      %1879 = vmatpush1.bf16.msra.mxu0 0
      %1880 = vmatprep.subr.bf16.mxu0 0
      %1881 = vmatpush1.bf16.msra.mxu0 0
      %1882 = vmatprep.subr.bf16.mxu0 0
      %1883 = vmatpush1.bf16.msra.mxu0 0
      %1884 = vmatprep.subr.bf16.mxu0 0
      %1885 = vmatpush1.bf16.msra.mxu0 0
      %1886 = vmatprep.subr.bf16.mxu0 0
      %1887 = vmatpush1.bf16.msra.mxu0 0
      %1888 = vmatprep.mubr.bf16.mxu0 0
      %1889 = vmatmul.mubr.bf16.gmra.mrb[0].mxu0 %v1474
      %v1890 = vpop.f32.mrb[0].mxu0
      %v1891 = vadd.f32 %v1727, %v1890
      %v1892 = vpop.f32.mrb[0].mxu0
      %v1893 = vpop.f32.mrb[0].mxu0
      %v1894 = vadd.f32 %v1730, %v1893
      %v1895 = vpop.f32.mrb[0].mxu0
      %1896 = vmatprep.mubr.bf16.mxu0 0
      %1897 = vmatmul.mubr.bf16.gmra.mrb[0].mxu0 %v1477
      %v1898 = vpop.f32.mrb[0].mxu0
      %v1899 = vadd.f32 %v1735, %v1898
      %v1900 = vpop.f32.mrb[0].mxu0
      %v1901 = vpop.f32.mrb[0].mxu0
      %v1902 = vadd.f32 %v1738, %v1901
      %v1903 = vpop.f32.mrb[0].mxu0
      %1904 = vmatprep.mubr.bf16.mxu0 0
      %1905 = vmatmul.mubr.bf16.gmra.mrb[0].mxu0 %v1480
      %v1906 = vpop.f32.mrb[0].mxu0
      %v1907 = vadd.f32 %v1743, %v1906
      %v1908 = vpop.f32.mrb[0].mxu0
      %v1909 = vpop.f32.mrb[0].mxu0
      %v1910 = vadd.f32 %v1746, %v1909
      %v1911 = vpop.f32.mrb[0].mxu0
      %1912 = vmatprep.mubr.bf16.mxu0 0
      %1913 = vmatmul.mubr.bf16.gmra.mrb[0].mxu0 %v1483
      %v1914 = vpop.f32.mrb[0].mxu0
      %v1915 = vadd.f32 %v1751, %v1914
      %v1916 = vpop.f32.mrb[0].mxu0
      %v1917 = vpop.f32.mrb[0].mxu0
      %v1918 = vadd.f32 %v1754, %v1917
      %v1919 = vpop.f32.mrb[0].mxu0
      %1920 = vmatprep.mubr.bf16.mxu0 0
      %1921 = vmatmul.mubr.bf16.gmra.mrb[0].mxu0 %v1486
      %v1922 = vpop.f32.mrb[0].mxu0
      %v1923 = vadd.f32 %v1759, %v1922
      %v1924 = vpop.f32.mrb[0].mxu0
      %v1925 = vpop.f32.mrb[0].mxu0
      %v1926 = vadd.f32 %v1762, %v1925
      %v1927 = vpop.f32.mrb[0].mxu0
      %1928 = vmatprep.mubr.bf16.mxu0 0
      %1929 = vmatmul.mubr.bf16.gmra.mrb[0].mxu0 %v1489
      %v1930 = vpop.f32.mrb[0].mxu0
      %v1931 = vadd.f32 %v1767, %v1930
      %v1932 = vpop.f32.mrb[0].mxu0
      %v1933 = vpop.f32.mrb[0].mxu0
      %v1934 = vadd.f32 %v1770, %v1933
      %v1935 = vpop.f32.mrb[0].mxu0
      %1936 = vmatprep.mubr.bf16.mxu0 0
      %1937 = vmatmul.mubr.bf16.gmra.mrb[0].mxu0 %v1492
      %v1938 = vpop.f32.mrb[0].mxu0
      %v1939 = vadd.f32 %v1775, %v1938
      %v1940 = vpop.f32.mrb[0].mxu0
      %v1941 = vpop.f32.mrb[0].mxu0
      %v1942 = vadd.f32 %v1778, %v1941
      %v1943 = vpop.f32.mrb[0].mxu0
      %1944 = vmatprep.mubr.bf16.mxu0 0
      %1945 = vmatmul.mubr.bf16.gmra.mrb[0].mxu0 %v1495
      %v1946 = vpop.f32.mrb[0].mxu0
      %v1947 = vadd.f32 %v1783, %v1946
      %v1948 = vpop.f32.mrb[0].mxu0
      %v1949 = vpop.f32.mrb[0].mxu0
      %v1950 = vadd.f32 %v1786, %v1949
      %v1951 = vpop.f32.mrb[0].mxu0
      %1952 = vmatprep.mubr.bf16.mxu0 0
      %1953 = vmatmul.mubr.bf16.gmra.mrb[0].mxu0 %v1498
      %v1954 = vpop.f32.mrb[0].mxu0
      %v1955 = vadd.f32 %v1791, %v1954
      %v1956 = vpop.f32.mrb[0].mxu0
      %v1957 = vpop.f32.mrb[0].mxu0
      %v1958 = vadd.f32 %v1794, %v1957
      %v1959 = vpop.f32.mrb[0].mxu0
      %1960 = vmatprep.mubr.bf16.mxu0 0
      %1961 = vmatmul.mubr.bf16.gmra.mrb[0].mxu0 %v1501
      %v1962 = vpop.f32.mrb[0].mxu0
      %v1963 = vadd.f32 %v1799, %v1962
      %v1964 = vpop.f32.mrb[0].mxu0
      %v1965 = vpop.f32.mrb[0].mxu0
      %v1966 = vadd.f32 %v1802, %v1965
      %v1967 = vpop.f32.mrb[0].mxu0
      %1968 = vmatprep.mubr.bf16.mxu0 0
      %1969 = vmatmul.mubr.bf16.gmra.mrb[0].mxu0 %v1504
      %v1970 = vpop.f32.mrb[0].mxu0
      %v1971 = vadd.f32 %v1807, %v1970
      %v1972 = vpop.f32.mrb[0].mxu0
      %v1973 = vpop.f32.mrb[0].mxu0
      %v1974 = vadd.f32 %v1810, %v1973
      %v1975 = vpop.f32.mrb[0].mxu0
      %1976 = vmatprep.mubr.bf16.mxu0 0
      %1977 = vmatmul.mubr.bf16.gmra.mrb[0].mxu0 %v1507
      %v1978 = vpop.f32.mrb[0].mxu0
      %v1979 = vadd.f32 %v1815, %v1978
      %v1980 = vpop.f32.mrb[0].mxu0
      %v1981 = vpop.f32.mrb[0].mxu0
      %v1982 = vadd.f32 %v1818, %v1981
      %v1983 = vpop.f32.mrb[0].mxu0
      %1984 = vmatprep.mubr.bf16.mxu0 0
      %1985 = vmatmul.mubr.bf16.gmra.mrb[0].mxu0 %v1510
      %v1986 = vpop.f32.mrb[0].mxu0
      %v1987 = vadd.f32 %v1823, %v1986
      %v1988 = vpop.f32.mrb[0].mxu0
      %v1989 = vpop.f32.mrb[0].mxu0
      %v1990 = vadd.f32 %v1826, %v1989
      %v1991 = vpop.f32.mrb[0].mxu0
      %1992 = vmatprep.mubr.bf16.mxu0 0
      %1993 = vmatmul.mubr.bf16.gmra.mrb[0].mxu0 %v1513
      %v1994 = vpop.f32.mrb[0].mxu0
      %v1995 = vadd.f32 %v1831, %v1994
      %v1996 = vpop.f32.mrb[0].mxu0
      %v1997 = vpop.f32.mrb[0].mxu0
      %v1998 = vadd.f32 %v1834, %v1997
      %v1999 = vpop.f32.mrb[0].mxu0
      %2000 = vmatprep.mubr.bf16.mxu0 0
      %2001 = vmatmul.mubr.bf16.gmra.mrb[0].mxu0 %v1516
      %v2002 = vpop.f32.mrb[0].mxu0
      %v2003 = vadd.f32 %v1839, %v2002
      %v2004 = vpop.f32.mrb[0].mxu0
      %v2005 = vpop.f32.mrb[0].mxu0
      %v2006 = vadd.f32 %v1842, %v2005
      %v2007 = vpop.f32.mrb[0].mxu0
      %2008 = vmatprep.mubr.bf16.mxu0 0
      %2009 = vmatmul.mubr.bf16.gmra.mrb[0].mxu0 %v1519
      %v2010 = vpop.f32.mrb[0].mxu0
      %v2011 = vadd.f32 %v1847, %v2010
      %v2012 = vpop.f32.mrb[0].mxu0
      %v2013 = vpop.f32.mrb[0].mxu0
      %v2014 = vadd.f32 %v1850, %v2013
      %v2015 = vpop.f32.mrb[0].mxu0
      %2016 = vdwg.mxu0
      %s2017 = scalar_lea.vmem %s3, 20
      %v2018 = vld [vmem:[%s2017] sm:$0xf]
      %s2019 = scalar_lea.vmem %s4, 10
      %v2020 = vld [vmem:[%s2019] sm:$0x3]
      %v2022 = vsel %vm1269, %v2020, 0
      %2024 = vmatprep.subr.bf16.mxu0 0
      %2025 = vmatpush1.bf16.msra.mxu0 %v2022
      %2026 = vmatprep.subr.bf16.mxu0 0
      %2027 = vmatpush1.bf16.msra.mxu0 0
      %2028 = vmatprep.subr.bf16.mxu0 0
      %2029 = vmatpush1.bf16.msra.mxu0 0
      %2030 = vmatprep.subr.bf16.mxu0 0
      %2031 = vmatpush1.bf16.msra.mxu0 0
      %2032 = vmatprep.subr.bf16.mxu0 0
      %2033 = vmatpush1.bf16.msra.mxu0 0
      %2034 = vmatprep.subr.bf16.mxu0 0
      %2035 = vmatpush1.bf16.msra.mxu0 0
      %2036 = vmatprep.subr.bf16.mxu0 0
      %2037 = vmatpush1.bf16.msra.mxu0 0
      %2038 = vmatprep.subr.bf16.mxu0 0
      %2039 = vmatpush1.bf16.msra.mxu0 0
      %2040 = vmatprep.subr.bf16.mxu0 0
      %2041 = vmatpush1.bf16.msra.mxu0 0
      %2042 = vmatprep.subr.bf16.mxu0 0
      %2043 = vmatpush1.bf16.msra.mxu0 0
      %2044 = vmatprep.subr.bf16.mxu0 0
      %2045 = vmatpush1.bf16.msra.mxu0 0
      %2046 = vmatprep.subr.bf16.mxu0 0
      %2047 = vmatpush1.bf16.msra.mxu0 0
      %2048 = vmatprep.subr.bf16.mxu0 0
      %2049 = vmatpush1.bf16.msra.mxu0 0
      %2050 = vmatprep.subr.bf16.mxu0 0
      %2051 = vmatpush1.bf16.msra.mxu0 0
      %2052 = vmatprep.subr.bf16.mxu0 0
      %2053 = vmatpush1.bf16.msra.mxu0 0
      %2054 = vmatprep.subr.bf16.mxu0 0
      %2055 = vmatpush1.bf16.msra.mxu0 0
      %2056 = vmatprep.mubr.bf16.mxu0 0
      %2057 = vmatmul.mubr.bf16.gmra.mrb[0].mxu0 %v1222
      %v2058 = vpop.f32.mrb[0].mxu0
      %v2059 = vadd.f32 0.0, %v2058
      %v2060 = vpop.f32.mrb[0].mxu0
      %v2061 = vpop.f32.mrb[0].mxu0
      %v2062 = vadd.f32 0.0, %v2061
      %v2063 = vpop.f32.mrb[0].mxu0
      %2064 = vmatprep.mubr.bf16.mxu0 0
      %2065 = vmatmul.mubr.bf16.gmra.mrb[0].mxu0 %v1225
      %v2066 = vpop.f32.mrb[0].mxu0
      %v2067 = vadd.f32 0.0, %v2066
      %v2068 = vpop.f32.mrb[0].mxu0
      %v2069 = vpop.f32.mrb[0].mxu0
      %v2070 = vadd.f32 0.0, %v2069
      %v2071 = vpop.f32.mrb[0].mxu0
      %2072 = vmatprep.mubr.bf16.mxu0 0
      %2073 = vmatmul.mubr.bf16.gmra.mrb[0].mxu0 %v1228
      %v2074 = vpop.f32.mrb[0].mxu0
      %v2075 = vadd.f32 0.0, %v2074
      %v2076 = vpop.f32.mrb[0].mxu0
      %v2077 = vpop.f32.mrb[0].mxu0
      %v2078 = vadd.f32 0.0, %v2077
      %v2079 = vpop.f32.mrb[0].mxu0
      %2080 = vmatprep.mubr.bf16.mxu0 0
      %2081 = vmatmul.mubr.bf16.gmra.mrb[0].mxu0 %v1231
      %v2082 = vpop.f32.mrb[0].mxu0
      %v2083 = vadd.f32 0.0, %v2082
      %v2084 = vpop.f32.mrb[0].mxu0
      %v2085 = vpop.f32.mrb[0].mxu0
      %v2086 = vadd.f32 0.0, %v2085
      %v2087 = vpop.f32.mrb[0].mxu0
      %2088 = vmatprep.mubr.bf16.mxu0 0
      %2089 = vmatmul.mubr.bf16.gmra.mrb[0].mxu0 %v1234
      %v2090 = vpop.f32.mrb[0].mxu0
      %v2091 = vadd.f32 0.0, %v2090
      %v2092 = vpop.f32.mrb[0].mxu0
      %v2093 = vpop.f32.mrb[0].mxu0
      %v2094 = vadd.f32 0.0, %v2093
      %v2095 = vpop.f32.mrb[0].mxu0
      %2096 = vmatprep.mubr.bf16.mxu0 0
      %2097 = vmatmul.mubr.bf16.gmra.mrb[0].mxu0 %v1237
      %v2098 = vpop.f32.mrb[0].mxu0
      %v2099 = vadd.f32 0.0, %v2098
      %v2100 = vpop.f32.mrb[0].mxu0
      %v2101 = vpop.f32.mrb[0].mxu0
      %v2102 = vadd.f32 0.0, %v2101
      %v2103 = vpop.f32.mrb[0].mxu0
      %2104 = vmatprep.mubr.bf16.mxu0 0
      %2105 = vmatmul.mubr.bf16.gmra.mrb[0].mxu0 %v1240
      %v2106 = vpop.f32.mrb[0].mxu0
      %v2107 = vadd.f32 0.0, %v2106
      %v2108 = vpop.f32.mrb[0].mxu0
      %v2109 = vpop.f32.mrb[0].mxu0
      %v2110 = vadd.f32 0.0, %v2109
      %v2111 = vpop.f32.mrb[0].mxu0
      %2112 = vmatprep.mubr.bf16.mxu0 0
      %2113 = vmatmul.mubr.bf16.gmra.mrb[0].mxu0 %v1243
      %v2114 = vpop.f32.mrb[0].mxu0
      %v2115 = vadd.f32 0.0, %v2114
      %v2116 = vpop.f32.mrb[0].mxu0
      %v2117 = vpop.f32.mrb[0].mxu0
      %v2118 = vadd.f32 0.0, %v2117
      %v2119 = vpop.f32.mrb[0].mxu0
      %2120 = vmatprep.mubr.bf16.mxu0 0
      %2121 = vmatmul.mubr.bf16.gmra.mrb[0].mxu0 %v1246
      %v2122 = vpop.f32.mrb[0].mxu0
      %v2123 = vadd.f32 0.0, %v2122
      %v2124 = vpop.f32.mrb[0].mxu0
      %v2125 = vpop.f32.mrb[0].mxu0
      %v2126 = vadd.f32 0.0, %v2125
      %v2127 = vpop.f32.mrb[0].mxu0
      %2128 = vmatprep.mubr.bf16.mxu0 0
      %2129 = vmatmul.mubr.bf16.gmra.mrb[0].mxu0 %v1249
      %v2130 = vpop.f32.mrb[0].mxu0
      %v2131 = vadd.f32 0.0, %v2130
      %v2132 = vpop.f32.mrb[0].mxu0
      %v2133 = vpop.f32.mrb[0].mxu0
      %v2134 = vadd.f32 0.0, %v2133
      %v2135 = vpop.f32.mrb[0].mxu0
      %2136 = vmatprep.mubr.bf16.mxu0 0
      %2137 = vmatmul.mubr.bf16.gmra.mrb[0].mxu0 %v1252
      %v2138 = vpop.f32.mrb[0].mxu0
      %v2139 = vadd.f32 0.0, %v2138
      %v2140 = vpop.f32.mrb[0].mxu0
      %v2141 = vpop.f32.mrb[0].mxu0
      %v2142 = vadd.f32 0.0, %v2141
      %v2143 = vpop.f32.mrb[0].mxu0
      %2144 = vmatprep.mubr.bf16.mxu0 0
      %2145 = vmatmul.mubr.bf16.gmra.mrb[0].mxu0 %v1255
      %v2146 = vpop.f32.mrb[0].mxu0
      %v2147 = vadd.f32 0.0, %v2146
      %v2148 = vpop.f32.mrb[0].mxu0
      %v2149 = vpop.f32.mrb[0].mxu0
      %v2150 = vadd.f32 0.0, %v2149
      %v2151 = vpop.f32.mrb[0].mxu0
      %2152 = vmatprep.mubr.bf16.mxu0 0
      %2153 = vmatmul.mubr.bf16.gmra.mrb[0].mxu0 %v1258
      %v2154 = vpop.f32.mrb[0].mxu0
      %v2155 = vadd.f32 0.0, %v2154
      %v2156 = vpop.f32.mrb[0].mxu0
      %v2157 = vpop.f32.mrb[0].mxu0
      %v2158 = vadd.f32 0.0, %v2157
      %v2159 = vpop.f32.mrb[0].mxu0
      %2160 = vmatprep.mubr.bf16.mxu0 0
      %2161 = vmatmul.mubr.bf16.gmra.mrb[0].mxu0 %v1261
      %v2162 = vpop.f32.mrb[0].mxu0
      %v2163 = vadd.f32 0.0, %v2162
      %v2164 = vpop.f32.mrb[0].mxu0
      %v2165 = vpop.f32.mrb[0].mxu0
      %v2166 = vadd.f32 0.0, %v2165
      %v2167 = vpop.f32.mrb[0].mxu0
      %2168 = vmatprep.mubr.bf16.mxu0 0
      %2169 = vmatmul.mubr.bf16.gmra.mrb[0].mxu0 %v1264
      %v2170 = vpop.f32.mrb[0].mxu0
      %v2171 = vadd.f32 0.0, %v2170
      %v2172 = vpop.f32.mrb[0].mxu0
      %v2173 = vpop.f32.mrb[0].mxu0
      %v2174 = vadd.f32 0.0, %v2173
      %v2175 = vpop.f32.mrb[0].mxu0
      %2176 = vmatprep.mubr.bf16.mxu0 0
      %2177 = vmatmul.mubr.bf16.gmra.mrb[0].mxu0 %v1267
      %v2178 = vpop.f32.mrb[0].mxu0
      %v2179 = vadd.f32 0.0, %v2178
      %v2180 = vpop.f32.mrb[0].mxu0
      %v2181 = vpop.f32.mrb[0].mxu0
      %v2182 = vadd.f32 0.0, %v2181
      %v2183 = vpop.f32.mrb[0].mxu0
      %2184 = vdwg.mxu0
      %v2186 = vsel %vm393, %v2018, 0
      %2188 = vmatprep.subr.bf16.mxu0 0
      %2189 = vmatpush1.bf16.msra.mxu0 %v2186
      %2190 = vmatprep.subr.bf16.mxu0 0
      %2191 = vmatpush1.bf16.msra.mxu0 0
      %2192 = vmatprep.subr.bf16.mxu0 0
      %2193 = vmatpush1.bf16.msra.mxu0 0
      %2194 = vmatprep.subr.bf16.mxu0 0
      %2195 = vmatpush1.bf16.msra.mxu0 0
      %2196 = vmatprep.subr.bf16.mxu0 0
      %2197 = vmatpush1.bf16.msra.mxu0 0
      %2198 = vmatprep.subr.bf16.mxu0 0
      %2199 = vmatpush1.bf16.msra.mxu0 0
      %2200 = vmatprep.subr.bf16.mxu0 0
      %2201 = vmatpush1.bf16.msra.mxu0 0
      %2202 = vmatprep.subr.bf16.mxu0 0
      %2203 = vmatpush1.bf16.msra.mxu0 0
      %2204 = vmatprep.subr.bf16.mxu0 0
      %2205 = vmatpush1.bf16.msra.mxu0 0
      %2206 = vmatprep.subr.bf16.mxu0 0
      %2207 = vmatpush1.bf16.msra.mxu0 0
      %2208 = vmatprep.subr.bf16.mxu0 0
      %2209 = vmatpush1.bf16.msra.mxu0 0
      %2210 = vmatprep.subr.bf16.mxu0 0
      %2211 = vmatpush1.bf16.msra.mxu0 0
      %2212 = vmatprep.subr.bf16.mxu0 0
      %2213 = vmatpush1.bf16.msra.mxu0 0
      %2214 = vmatprep.subr.bf16.mxu0 0
      %2215 = vmatpush1.bf16.msra.mxu0 0
      %2216 = vmatprep.subr.bf16.mxu0 0
      %2217 = vmatpush1.bf16.msra.mxu0 0
      %2218 = vmatprep.subr.bf16.mxu0 0
      %2219 = vmatpush1.bf16.msra.mxu0 0
      %2220 = vmatprep.mubr.bf16.mxu0 0
      %2221 = vmatmul.mubr.bf16.gmra.mrb[0].mxu0 %v1474
      %v2222 = vpop.f32.mrb[0].mxu0
      %v2223 = vadd.f32 %v2059, %v2222
      %v2224 = vpop.f32.mrb[0].mxu0
      %v2225 = vpop.f32.mrb[0].mxu0
      %v2226 = vadd.f32 %v2062, %v2225
      %v2227 = vpop.f32.mrb[0].mxu0
      %2228 = vmatprep.mubr.bf16.mxu0 0
      %2229 = vmatmul.mubr.bf16.gmra.mrb[0].mxu0 %v1477
      %v2230 = vpop.f32.mrb[0].mxu0
      %v2231 = vadd.f32 %v2067, %v2230
      %v2232 = vpop.f32.mrb[0].mxu0
      %v2233 = vpop.f32.mrb[0].mxu0
      %v2234 = vadd.f32 %v2070, %v2233
      %v2235 = vpop.f32.mrb[0].mxu0
      %2236 = vmatprep.mubr.bf16.mxu0 0
      %2237 = vmatmul.mubr.bf16.gmra.mrb[0].mxu0 %v1480
      %v2238 = vpop.f32.mrb[0].mxu0
      %v2239 = vadd.f32 %v2075, %v2238
      %v2240 = vpop.f32.mrb[0].mxu0
      %v2241 = vpop.f32.mrb[0].mxu0
      %v2242 = vadd.f32 %v2078, %v2241
      %v2243 = vpop.f32.mrb[0].mxu0
      %2244 = vmatprep.mubr.bf16.mxu0 0
      %2245 = vmatmul.mubr.bf16.gmra.mrb[0].mxu0 %v1483
      %v2246 = vpop.f32.mrb[0].mxu0
      %v2247 = vadd.f32 %v2083, %v2246
      %v2248 = vpop.f32.mrb[0].mxu0
      %v2249 = vpop.f32.mrb[0].mxu0
      %v2250 = vadd.f32 %v2086, %v2249
      %v2251 = vpop.f32.mrb[0].mxu0
      %2252 = vmatprep.mubr.bf16.mxu0 0
      %2253 = vmatmul.mubr.bf16.gmra.mrb[0].mxu0 %v1486
      %v2254 = vpop.f32.mrb[0].mxu0
      %v2255 = vadd.f32 %v2091, %v2254
      %v2256 = vpop.f32.mrb[0].mxu0
      %v2257 = vpop.f32.mrb[0].mxu0
      %v2258 = vadd.f32 %v2094, %v2257
      %v2259 = vpop.f32.mrb[0].mxu0
      %2260 = vmatprep.mubr.bf16.mxu0 0
      %2261 = vmatmul.mubr.bf16.gmra.mrb[0].mxu0 %v1489
      %v2262 = vpop.f32.mrb[0].mxu0
      %v2263 = vadd.f32 %v2099, %v2262
      %v2264 = vpop.f32.mrb[0].mxu0
      %v2265 = vpop.f32.mrb[0].mxu0
      %v2266 = vadd.f32 %v2102, %v2265
      %v2267 = vpop.f32.mrb[0].mxu0
      %2268 = vmatprep.mubr.bf16.mxu0 0
      %2269 = vmatmul.mubr.bf16.gmra.mrb[0].mxu0 %v1492
      %v2270 = vpop.f32.mrb[0].mxu0
      %v2271 = vadd.f32 %v2107, %v2270
      %v2272 = vpop.f32.mrb[0].mxu0
      %v2273 = vpop.f32.mrb[0].mxu0
      %v2274 = vadd.f32 %v2110, %v2273
      %v2275 = vpop.f32.mrb[0].mxu0
      %2276 = vmatprep.mubr.bf16.mxu0 0
      %2277 = vmatmul.mubr.bf16.gmra.mrb[0].mxu0 %v1495
      %v2278 = vpop.f32.mrb[0].mxu0
      %v2279 = vadd.f32 %v2115, %v2278
      %v2280 = vpop.f32.mrb[0].mxu0
      %v2281 = vpop.f32.mrb[0].mxu0
      %v2282 = vadd.f32 %v2118, %v2281
      %v2283 = vpop.f32.mrb[0].mxu0
      %2284 = vmatprep.mubr.bf16.mxu0 0
      %2285 = vmatmul.mubr.bf16.gmra.mrb[0].mxu0 %v1498
      %v2286 = vpop.f32.mrb[0].mxu0
      %v2287 = vadd.f32 %v2123, %v2286
      %v2288 = vpop.f32.mrb[0].mxu0
      %v2289 = vpop.f32.mrb[0].mxu0
      %v2290 = vadd.f32 %v2126, %v2289
      %v2291 = vpop.f32.mrb[0].mxu0
      %2292 = vmatprep.mubr.bf16.mxu0 0
      %2293 = vmatmul.mubr.bf16.gmra.mrb[0].mxu0 %v1501
      %v2294 = vpop.f32.mrb[0].mxu0
      %v2295 = vadd.f32 %v2131, %v2294
      %v2296 = vpop.f32.mrb[0].mxu0
      %v2297 = vpop.f32.mrb[0].mxu0
      %v2298 = vadd.f32 %v2134, %v2297
      %v2299 = vpop.f32.mrb[0].mxu0
      %2300 = vmatprep.mubr.bf16.mxu0 0
      %2301 = vmatmul.mubr.bf16.gmra.mrb[0].mxu0 %v1504
      %v2302 = vpop.f32.mrb[0].mxu0
      %v2303 = vadd.f32 %v2139, %v2302
      %v2304 = vpop.f32.mrb[0].mxu0
      %v2305 = vpop.f32.mrb[0].mxu0
      %v2306 = vadd.f32 %v2142, %v2305
      %v2307 = vpop.f32.mrb[0].mxu0
      %2308 = vmatprep.mubr.bf16.mxu0 0
      %2309 = vmatmul.mubr.bf16.gmra.mrb[0].mxu0 %v1507
      %v2310 = vpop.f32.mrb[0].mxu0
      %v2311 = vadd.f32 %v2147, %v2310
      %v2312 = vpop.f32.mrb[0].mxu0
      %v2313 = vpop.f32.mrb[0].mxu0
      %v2314 = vadd.f32 %v2150, %v2313
      %v2315 = vpop.f32.mrb[0].mxu0
      %2316 = vmatprep.mubr.bf16.mxu0 0
      %2317 = vmatmul.mubr.bf16.gmra.mrb[0].mxu0 %v1510
      %v2318 = vpop.f32.mrb[0].mxu0
      %v2319 = vadd.f32 %v2155, %v2318
      %v2320 = vpop.f32.mrb[0].mxu0
      %v2321 = vpop.f32.mrb[0].mxu0
      %v2322 = vadd.f32 %v2158, %v2321
      %v2323 = vpop.f32.mrb[0].mxu0
      %2324 = vmatprep.mubr.bf16.mxu0 0
      %2325 = vmatmul.mubr.bf16.gmra.mrb[0].mxu0 %v1513
      %v2326 = vpop.f32.mrb[0].mxu0
      %v2327 = vadd.f32 %v2163, %v2326
      %v2328 = vpop.f32.mrb[0].mxu0
      %v2329 = vpop.f32.mrb[0].mxu0
      %v2330 = vadd.f32 %v2166, %v2329
      %v2331 = vpop.f32.mrb[0].mxu0
      %2332 = vmatprep.mubr.bf16.mxu0 0
      %2333 = vmatmul.mubr.bf16.gmra.mrb[0].mxu0 %v1516
      %v2334 = vpop.f32.mrb[0].mxu0
      %v2335 = vadd.f32 %v2171, %v2334
      %v2336 = vpop.f32.mrb[0].mxu0
      %v2337 = vpop.f32.mrb[0].mxu0
      %v2338 = vadd.f32 %v2174, %v2337
      %v2339 = vpop.f32.mrb[0].mxu0
      %2340 = vmatprep.mubr.bf16.mxu0 0
      %2341 = vmatmul.mubr.bf16.gmra.mrb[0].mxu0 %v1519
      %v2342 = vpop.f32.mrb[0].mxu0
      %v2343 = vadd.f32 %v2179, %v2342
      %v2344 = vpop.f32.mrb[0].mxu0
      %v2345 = vpop.f32.mrb[0].mxu0
      %v2346 = vadd.f32 %v2182, %v2345
      %v2347 = vpop.f32.mrb[0].mxu0
      %2348 = vdwg.mxu0
      %v2349 = vmul.f32 %v1088, %v1559
      %v2350 = vmul.f32 %v1089, %v1562
      %v2351 = vmul.f32 %v1090, %v1567
      %v2352 = vmul.f32 %v1091, %v1570
      %v2353 = vmul.f32 %v1092, %v1575
      %v2354 = vmul.f32 %v1093, %v1578
      %v2355 = vmul.f32 %v1094, %v1583
      %v2356 = vmul.f32 %v1095, %v1586
      %v2357 = vmul.f32 %v1096, %v1591
      %v2358 = vmul.f32 %v1097, %v1594
      %v2359 = vmul.f32 %v1098, %v1599
      %v2360 = vmul.f32 %v1099, %v1602
      %v2361 = vmul.f32 %v1100, %v1607
      %v2362 = vmul.f32 %v1101, %v1610
      %v2363 = vmul.f32 %v1102, %v1615
      %v2364 = vmul.f32 %v1103, %v1618
      %v2365 = vmul.f32 %v1104, %v1623
      %v2366 = vmul.f32 %v1105, %v1626
      %v2367 = vmul.f32 %v1106, %v1631
      %v2368 = vmul.f32 %v1107, %v1634
      %v2369 = vmul.f32 %v1108, %v1639
      %v2370 = vmul.f32 %v1109, %v1642
      %v2371 = vmul.f32 %v1110, %v1647
      %v2372 = vmul.f32 %v1111, %v1650
      %v2373 = vmul.f32 %v1112, %v1655
      %v2374 = vmul.f32 %v1113, %v1658
      %v2375 = vmul.f32 %v1114, %v1663
      %v2376 = vmul.f32 %v1115, %v1666
      %v2377 = vmul.f32 %v1116, %v1671
      %v2378 = vmul.f32 %v1117, %v1674
      %v2379 = vmul.f32 %v1118, %v1679
      %v2380 = vmul.f32 %v1119, %v1682
      %v2381 = vrot.slane %v2349, 7
      %v2382 = vrot.slane %v2350, 7
      %v2383 = vrot.slane %v2351, 7
      %v2384 = vrot.slane %v2352, 7
      %v2385 = vrot.slane %v2353, 7
      %v2386 = vrot.slane %v2354, 7
      %v2387 = vrot.slane %v2355, 7
      %v2388 = vrot.slane %v2356, 7
      %v2389 = vrot.slane %v2357, 7
      %v2390 = vrot.slane %v2358, 7
      %v2391 = vrot.slane %v2359, 7
      %v2392 = vrot.slane %v2360, 7
      %v2393 = vrot.slane %v2361, 7
      %v2394 = vrot.slane %v2362, 7
      %v2395 = vrot.slane %v2363, 7
      %v2396 = vrot.slane %v2364, 7
      %v2397 = vrot.slane %v2365, 7
      %v2398 = vrot.slane %v2366, 7
      %v2399 = vrot.slane %v2367, 7
      %v2400 = vrot.slane %v2368, 7
      %v2401 = vrot.slane %v2369, 7
      %v2402 = vrot.slane %v2370, 7
      %v2403 = vrot.slane %v2371, 7
      %v2404 = vrot.slane %v2372, 7
      %v2405 = vrot.slane %v2373, 7
      %v2406 = vrot.slane %v2374, 7
      %v2407 = vrot.slane %v2375, 7
      %v2408 = vrot.slane %v2376, 7
      %v2409 = vrot.slane %v2377, 7
      %v2410 = vrot.slane %v2378, 7
      %v2411 = vrot.slane %v2379, 7
      %v2412 = vrot.slane %v2380, 7
      %vm2413 = vcmp.lt.s32.totalorder %v608, 1
      %v2414 = vsel %vm2413, %v2411, %v2412
      %v2415 = vsel %vm2413, %v2410, %v2411
      %v2416 = vsel %vm2413, %v2409, %v2410
      %v2417 = vsel %vm2413, %v2408, %v2409
      %v2418 = vsel %vm2413, %v2407, %v2408
      %v2419 = vsel %vm2413, %v2406, %v2407
      %v2420 = vsel %vm2413, %v2405, %v2406
      %v2421 = vsel %vm2413, %v2404, %v2405
      %v2422 = vsel %vm2413, %v2403, %v2404
      %v2423 = vsel %vm2413, %v2402, %v2403
      %v2424 = vsel %vm2413, %v2401, %v2402
      %v2425 = vsel %vm2413, %v2400, %v2401
      %v2426 = vsel %vm2413, %v2399, %v2400
      %v2427 = vsel %vm2413, %v2398, %v2399
      %v2428 = vsel %vm2413, %v2397, %v2398
      %v2429 = vsel %vm2413, %v2396, %v2397
      %v2430 = vsel %vm2413, %v2395, %v2396
      %v2431 = vsel %vm2413, %v2394, %v2395
      %v2432 = vsel %vm2413, %v2393, %v2394
      %v2433 = vsel %vm2413, %v2392, %v2393
      %v2434 = vsel %vm2413, %v2391, %v2392
      %v2435 = vsel %vm2413, %v2390, %v2391
      %v2436 = vsel %vm2413, %v2389, %v2390
      %v2437 = vsel %vm2413, %v2388, %v2389
      %v2438 = vsel %vm2413, %v2387, %v2388
      %v2439 = vsel %vm2413, %v2386, %v2387
      %v2440 = vsel %vm2413, %v2385, %v2386
      %v2441 = vsel %vm2413, %v2384, %v2385
      %v2442 = vsel %vm2413, %v2383, %v2384
      %v2443 = vsel %vm2413, %v2382, %v2383
      %v2444 = vsel %vm2413, %v2381, %v2382
      %v2445 = vsel %vm2413, %v2412, %v2381
      %v2446 = vadd.f32 %v1891, %v2445
      %v2447 = vadd.f32 %v1894, %v2444
      %v2448 = vadd.f32 %v1899, %v2443
      %v2449 = vadd.f32 %v1902, %v2442
      %v2450 = vadd.f32 %v1907, %v2441
      %v2451 = vadd.f32 %v1910, %v2440
      %v2452 = vadd.f32 %v1915, %v2439
      %v2453 = vadd.f32 %v1918, %v2438
      %v2454 = vadd.f32 %v1923, %v2437
      %v2455 = vadd.f32 %v1926, %v2436
      %v2456 = vadd.f32 %v1931, %v2435
      %v2457 = vadd.f32 %v1934, %v2434
      %v2458 = vadd.f32 %v1939, %v2433
      %v2459 = vadd.f32 %v1942, %v2432
      %v2460 = vadd.f32 %v1947, %v2431
      %v2461 = vadd.f32 %v1950, %v2430
      %v2462 = vadd.f32 %v1955, %v2429
      %v2463 = vadd.f32 %v1958, %v2428
      %v2464 = vadd.f32 %v1963, %v2427
      %v2465 = vadd.f32 %v1966, %v2426
      %v2466 = vadd.f32 %v1971, %v2425
      %v2467 = vadd.f32 %v1974, %v2424
      %v2468 = vadd.f32 %v1979, %v2423
      %v2469 = vadd.f32 %v1982, %v2422
      %v2470 = vadd.f32 %v1987, %v2421
      %v2471 = vadd.f32 %v1990, %v2420
      %v2472 = vadd.f32 %v1995, %v2419
      %v2473 = vadd.f32 %v1998, %v2418
      %v2474 = vadd.f32 %v2003, %v2417
      %v2475 = vadd.f32 %v2006, %v2416
      %v2476 = vadd.f32 %v2011, %v2415
      %v2477 = vadd.f32 %v2014, %v2414
      %v2478 = vmul.f32 %v1184, %v2223
      %v2479 = vmul.f32 %v1185, %v2226
      %v2480 = vmul.f32 %v1186, %v2231
      %v2481 = vmul.f32 %v1187, %v2234
      %v2482 = vmul.f32 %v1188, %v2239
      %v2483 = vmul.f32 %v1189, %v2242
      %v2484 = vmul.f32 %v1190, %v2247
      %v2485 = vmul.f32 %v1191, %v2250
      %v2486 = vmul.f32 %v1192, %v2255
      %v2487 = vmul.f32 %v1193, %v2258
      %v2488 = vmul.f32 %v1194, %v2263
      %v2489 = vmul.f32 %v1195, %v2266
      %v2490 = vmul.f32 %v1196, %v2271
      %v2491 = vmul.f32 %v1197, %v2274
      %v2492 = vmul.f32 %v1198, %v2279
      %v2493 = vmul.f32 %v1199, %v2282
      %v2494 = vmul.f32 %v1200, %v2287
      %v2495 = vmul.f32 %v1201, %v2290
      %v2496 = vmul.f32 %v1202, %v2295
      %v2497 = vmul.f32 %v1203, %v2298
      %v2498 = vmul.f32 %v1204, %v2303
      %v2499 = vmul.f32 %v1205, %v2306
      %v2500 = vmul.f32 %v1206, %v2311
      %v2501 = vmul.f32 %v1207, %v2314
      %v2502 = vmul.f32 %v1208, %v2319
      %v2503 = vmul.f32 %v1209, %v2322
      %v2504 = vmul.f32 %v1210, %v2327
      %v2505 = vmul.f32 %v1211, %v2330
      %v2506 = vmul.f32 %v1212, %v2335
      %v2507 = vmul.f32 %v1213, %v2338
      %v2508 = vmul.f32 %v1214, %v2343
      %v2509 = vmul.f32 %v1215, %v2346
      %v2510 = vrot.slane %v2478, 1
      %v2511 = vrot.slane %v2479, 1
      %v2512 = vrot.slane %v2480, 1
      %v2513 = vrot.slane %v2481, 1
      %v2514 = vrot.slane %v2482, 1
      %v2515 = vrot.slane %v2483, 1
      %v2516 = vrot.slane %v2484, 1
      %v2517 = vrot.slane %v2485, 1
      %v2518 = vrot.slane %v2486, 1
      %v2519 = vrot.slane %v2487, 1
      %v2520 = vrot.slane %v2488, 1
      %v2521 = vrot.slane %v2489, 1
      %v2522 = vrot.slane %v2490, 1
      %v2523 = vrot.slane %v2491, 1
      %v2524 = vrot.slane %v2492, 1
      %v2525 = vrot.slane %v2493, 1
      %v2526 = vrot.slane %v2494, 1
      %v2527 = vrot.slane %v2495, 1
      %v2528 = vrot.slane %v2496, 1
      %v2529 = vrot.slane %v2497, 1
      %v2530 = vrot.slane %v2498, 1
      %v2531 = vrot.slane %v2499, 1
      %v2532 = vrot.slane %v2500, 1
      %v2533 = vrot.slane %v2501, 1
      %v2534 = vrot.slane %v2502, 1
      %v2535 = vrot.slane %v2503, 1
      %v2536 = vrot.slane %v2504, 1
      %v2537 = vrot.slane %v2505, 1
      %v2538 = vrot.slane %v2506, 1
      %v2539 = vrot.slane %v2507, 1
      %v2540 = vrot.slane %v2508, 1
      %v2541 = vrot.slane %v2509, 1
      %vm2542 = vcmp.lt.s32.totalorder %v608, 7
      %v2543 = vsel %vm2542, %v2540, %v2541
      %v2544 = vsel %vm2542, %v2539, %v2540
      %v2545 = vsel %vm2542, %v2538, %v2539
      %v2546 = vsel %vm2542, %v2537, %v2538
      %v2547 = vsel %vm2542, %v2536, %v2537
      %v2548 = vsel %vm2542, %v2535, %v2536
      %v2549 = vsel %vm2542, %v2534, %v2535
      %v2550 = vsel %vm2542, %v2533, %v2534
      %v2551 = vsel %vm2542, %v2532, %v2533
      %v2552 = vsel %vm2542, %v2531, %v2532
      %v2553 = vsel %vm2542, %v2530, %v2531
      %v2554 = vsel %vm2542, %v2529, %v2530
      %v2555 = vsel %vm2542, %v2528, %v2529
      %v2556 = vsel %vm2542, %v2527, %v2528
      %v2557 = vsel %vm2542, %v2526, %v2527
      %v2558 = vsel %vm2542, %v2525, %v2526
      %v2559 = vsel %vm2542, %v2524, %v2525
      %v2560 = vsel %vm2542, %v2523, %v2524
      %v2561 = vsel %vm2542, %v2522, %v2523
      %v2562 = vsel %vm2542, %v2521, %v2522
      %v2563 = vsel %vm2542, %v2520, %v2521
      %v2564 = vsel %vm2542, %v2519, %v2520
      %v2565 = vsel %vm2542, %v2518, %v2519
      %v2566 = vsel %vm2542, %v2517, %v2518
      %v2567 = vsel %vm2542, %v2516, %v2517
      %v2568 = vsel %vm2542, %v2515, %v2516
      %v2569 = vsel %vm2542, %v2514, %v2515
      %v2570 = vsel %vm2542, %v2513, %v2514
      %v2571 = vsel %vm2542, %v2512, %v2513
      %v2572 = vsel %vm2542, %v2511, %v2512
      %v2573 = vsel %vm2542, %v2510, %v2511
      %v2574 = vsel %vm2542, %v2541, %v2510
      %v2575 = vadd.f32 %v2446, %v2573
      %v2576 = vadd.f32 %v2447, %v2572
      %v2577 = vadd.f32 %v2448, %v2571
      %v2578 = vadd.f32 %v2449, %v2570
      %v2579 = vadd.f32 %v2450, %v2569
      %v2580 = vadd.f32 %v2451, %v2568
      %v2581 = vadd.f32 %v2452, %v2567
      %v2582 = vadd.f32 %v2453, %v2566
      %v2583 = vadd.f32 %v2454, %v2565
      %v2584 = vadd.f32 %v2455, %v2564
      %v2585 = vadd.f32 %v2456, %v2563
      %v2586 = vadd.f32 %v2457, %v2562
      %v2587 = vadd.f32 %v2458, %v2561
      %v2588 = vadd.f32 %v2459, %v2560
      %v2589 = vadd.f32 %v2460, %v2559
      %v2590 = vadd.f32 %v2461, %v2558
      %v2591 = vadd.f32 %v2462, %v2557
      %v2592 = vadd.f32 %v2463, %v2556
      %v2593 = vadd.f32 %v2464, %v2555
      %v2594 = vadd.f32 %v2465, %v2554
      %v2595 = vadd.f32 %v2466, %v2553
      %v2596 = vadd.f32 %v2467, %v2552
      %v2597 = vadd.f32 %v2468, %v2551
      %v2598 = vadd.f32 %v2469, %v2550
      %v2599 = vadd.f32 %v2470, %v2549
      %v2600 = vadd.f32 %v2471, %v2548
      %v2601 = vadd.f32 %v2472, %v2547
      %v2602 = vadd.f32 %v2473, %v2546
      %v2603 = vadd.f32 %v2474, %v2545
      %v2604 = vadd.f32 %v2475, %v2544
      %v2605 = vadd.f32 %v2476, %v2543
      %v2606 = vadd.f32 %v2477, %v2574
      %2607 = vst.msk [vmem:[#allocation2 + $0x10] sm:$0xff] %vm344, %v2575
      %2608 = vst.msk [vmem:[#allocation2 + $0x18] sm:$0xff] %vm344, %v2576
      %2609 = vst.msk [vmem:[#allocation2 + $0x20] sm:$0xff] %vm344, %v2577
      %2610 = vst.msk [vmem:[#allocation2 + $0x28] sm:$0xff] %vm344, %v2578
      %2611 = vst.msk [vmem:[#allocation2 + $0x30] sm:$0xff] %vm344, %v2579
      %2612 = vst.msk [vmem:[#allocation2 + $0x38] sm:$0xff] %vm344, %v2580
      %2613 = vst.msk [vmem:[#allocation2 + $0x40] sm:$0xff] %vm344, %v2581
      %2614 = vst.msk [vmem:[#allocation2 + $0x48] sm:$0xff] %vm344, %v2582
      %2615 = vst.msk [vmem:[#allocation2 + $0x50] sm:$0xff] %vm344, %v2583
      %2616 = vst.msk [vmem:[#allocation2 + $0x58] sm:$0xff] %vm344, %v2584
      %2617 = vst.msk [vmem:[#allocation2 + $0x60] sm:$0xff] %vm344, %v2585
      %2618 = vst.msk [vmem:[#allocation2 + $0x68] sm:$0xff] %vm344, %v2586
      %2619 = vst.msk [vmem:[#allocation2 + $0x70] sm:$0xff] %vm344, %v2587
      %2620 = vst.msk [vmem:[#allocation2 + $0x78] sm:$0xff] %vm344, %v2588
      %2621 = vst.msk [vmem:[#allocation2 + $0x80] sm:$0xff] %vm344, %v2589
      %2622 = vst.msk [vmem:[#allocation2 + $0x88] sm:$0xff] %vm344, %v2590
      %2623 = vst.msk [vmem:[#allocation2 + $0x90] sm:$0xff] %vm344, %v2591
      %2624 = vst.msk [vmem:[#allocation2 + $0x98] sm:$0xff] %vm344, %v2592
      %2625 = vst.msk [vmem:[#allocation2 + $0xa0] sm:$0xff] %vm344, %v2593
      %2626 = vst.msk [vmem:[#allocation2 + $0xa8] sm:$0xff] %vm344, %v2594
      %2627 = vst.msk [vmem:[#allocation2 + $0xb0] sm:$0xff] %vm344, %v2595
      %2628 = vst.msk [vmem:[#allocation2 + $0xb8] sm:$0xff] %vm344, %v2596
      %2629 = vst.msk [vmem:[#allocation2 + $0xc0] sm:$0xff] %vm344, %v2597
      %2630 = vst.msk [vmem:[#allocation2 + $0xc8] sm:$0xff] %vm344, %v2598
      %2631 = vst.msk [vmem:[#allocation2 + $0xd0] sm:$0xff] %vm344, %v2599
      %2632 = vst.msk [vmem:[#allocation2 + $0xd8] sm:$0xff] %vm344, %v2600
      %2633 = vst.msk [vmem:[#allocation2 + $0xe0] sm:$0xff] %vm344, %v2601
      %2634 = vst.msk [vmem:[#allocation2 + $0xe8] sm:$0xff] %vm344, %v2602
      %2635 = vst.msk [vmem:[#allocation2 + $0xf0] sm:$0xff] %vm344, %v2603
      %2636 = vst.msk [vmem:[#allocation2 + $0xf8] sm:$0xff] %vm344, %v2604
      %2637 = vst.msk [vmem:[#allocation2 + $0x100] sm:$0xff] %vm344, %v2605
      %2638 = vst.msk [vmem:[#allocation2 + $0x108] sm:$0xff] %vm344, %v2606
      %v2639 = vld [vmem:[%s3] sm:$0xf]
      %v2640 = vld [vmem:[%s4] sm:$0x3]
      %v2642 = vsel %vm1269, %v2640, 0
      %2644 = vmatprep.subr.bf16.mxu0 0
      %2645 = vmatpush1.bf16.msra.mxu0 %v2642
      %2646 = vmatprep.subr.bf16.mxu0 0
      %2647 = vmatpush1.bf16.msra.mxu0 0
      %2648 = vmatprep.subr.bf16.mxu0 0
      %2649 = vmatpush1.bf16.msra.mxu0 0
      %2650 = vmatprep.subr.bf16.mxu0 0
      %2651 = vmatpush1.bf16.msra.mxu0 0
      %2652 = vmatprep.subr.bf16.mxu0 0
      %2653 = vmatpush1.bf16.msra.mxu0 0
      %2654 = vmatprep.subr.bf16.mxu0 0
      %2655 = vmatpush1.bf16.msra.mxu0 0
      %2656 = vmatprep.subr.bf16.mxu0 0
      %2657 = vmatpush1.bf16.msra.mxu0 0
      %2658 = vmatprep.subr.bf16.mxu0 0
      %2659 = vmatpush1.bf16.msra.mxu0 0
      %2660 = vmatprep.subr.bf16.mxu0 0
      %2661 = vmatpush1.bf16.msra.mxu0 0
      %2662 = vmatprep.subr.bf16.mxu0 0
      %2663 = vmatpush1.bf16.msra.mxu0 0
      %2664 = vmatprep.subr.bf16.mxu0 0
      %2665 = vmatpush1.bf16.msra.mxu0 0
      %2666 = vmatprep.subr.bf16.mxu0 0
      %2667 = vmatpush1.bf16.msra.mxu0 0
      %2668 = vmatprep.subr.bf16.mxu0 0
      %2669 = vmatpush1.bf16.msra.mxu0 0
      %2670 = vmatprep.subr.bf16.mxu0 0
      %2671 = vmatpush1.bf16.msra.mxu0 0
      %2672 = vmatprep.subr.bf16.mxu0 0
      %2673 = vmatpush1.bf16.msra.mxu0 0
      %2674 = vmatprep.subr.bf16.mxu0 0
      %2675 = vmatpush1.bf16.msra.mxu0 0
      %2676 = vmatprep.mubr.bf16.mxu0 0
      %2677 = vmatmul.mubr.bf16.gmra.mrb[0].mxu0 %v1222
      %v2678 = vpop.f32.mrb[0].mxu0
      %v2679 = vadd.f32 0.0, %v2678
      %v2680 = vpop.f32.mrb[0].mxu0
      %v2681 = vpop.f32.mrb[0].mxu0
      %v2682 = vadd.f32 0.0, %v2681
      %v2683 = vpop.f32.mrb[0].mxu0
      %2684 = vmatprep.mubr.bf16.mxu0 0
      %2685 = vmatmul.mubr.bf16.gmra.mrb[0].mxu0 %v1225
      %v2686 = vpop.f32.mrb[0].mxu0
      %v2687 = vadd.f32 0.0, %v2686
      %v2688 = vpop.f32.mrb[0].mxu0
      %v2689 = vpop.f32.mrb[0].mxu0
      %v2690 = vadd.f32 0.0, %v2689
      %v2691 = vpop.f32.mrb[0].mxu0
      %2692 = vmatprep.mubr.bf16.mxu0 0
      %2693 = vmatmul.mubr.bf16.gmra.mrb[0].mxu0 %v1228
      %v2694 = vpop.f32.mrb[0].mxu0
      %v2695 = vadd.f32 0.0, %v2694
      %v2696 = vpop.f32.mrb[0].mxu0
      %v2697 = vpop.f32.mrb[0].mxu0
      %v2698 = vadd.f32 0.0, %v2697
      %v2699 = vpop.f32.mrb[0].mxu0
      %2700 = vmatprep.mubr.bf16.mxu0 0
      %2701 = vmatmul.mubr.bf16.gmra.mrb[0].mxu0 %v1231
      %v2702 = vpop.f32.mrb[0].mxu0
      %v2703 = vadd.f32 0.0, %v2702
      %v2704 = vpop.f32.mrb[0].mxu0
      %v2705 = vpop.f32.mrb[0].mxu0
      %v2706 = vadd.f32 0.0, %v2705
      %v2707 = vpop.f32.mrb[0].mxu0
      %2708 = vmatprep.mubr.bf16.mxu0 0
      %2709 = vmatmul.mubr.bf16.gmra.mrb[0].mxu0 %v1234
      %v2710 = vpop.f32.mrb[0].mxu0
      %v2711 = vadd.f32 0.0, %v2710
      %v2712 = vpop.f32.mrb[0].mxu0
      %v2713 = vpop.f32.mrb[0].mxu0
      %v2714 = vadd.f32 0.0, %v2713
      %v2715 = vpop.f32.mrb[0].mxu0
      %2716 = vmatprep.mubr.bf16.mxu0 0
      %2717 = vmatmul.mubr.bf16.gmra.mrb[0].mxu0 %v1237
      %v2718 = vpop.f32.mrb[0].mxu0
      %v2719 = vadd.f32 0.0, %v2718
      %v2720 = vpop.f32.mrb[0].mxu0
      %v2721 = vpop.f32.mrb[0].mxu0
      %v2722 = vadd.f32 0.0, %v2721
      %v2723 = vpop.f32.mrb[0].mxu0
      %2724 = vmatprep.mubr.bf16.mxu0 0
      %2725 = vmatmul.mubr.bf16.gmra.mrb[0].mxu0 %v1240
      %v2726 = vpop.f32.mrb[0].mxu0
      %v2727 = vadd.f32 0.0, %v2726
      %v2728 = vpop.f32.mrb[0].mxu0
      %v2729 = vpop.f32.mrb[0].mxu0
      %v2730 = vadd.f32 0.0, %v2729
      %v2731 = vpop.f32.mrb[0].mxu0
      %2732 = vmatprep.mubr.bf16.mxu0 0
      %2733 = vmatmul.mubr.bf16.gmra.mrb[0].mxu0 %v1243
      %v2734 = vpop.f32.mrb[0].mxu0
      %v2735 = vadd.f32 0.0, %v2734
      %v2736 = vpop.f32.mrb[0].mxu0
      %v2737 = vpop.f32.mrb[0].mxu0
      %v2738 = vadd.f32 0.0, %v2737
      %v2739 = vpop.f32.mrb[0].mxu0
      %2740 = vmatprep.mubr.bf16.mxu0 0
      %2741 = vmatmul.mubr.bf16.gmra.mrb[0].mxu0 %v1246
      %v2742 = vpop.f32.mrb[0].mxu0
      %v2743 = vadd.f32 0.0, %v2742
      %v2744 = vpop.f32.mrb[0].mxu0
      %v2745 = vpop.f32.mrb[0].mxu0
      %v2746 = vadd.f32 0.0, %v2745
      %v2747 = vpop.f32.mrb[0].mxu0
      %2748 = vmatprep.mubr.bf16.mxu0 0
      %2749 = vmatmul.mubr.bf16.gmra.mrb[0].mxu0 %v1249
      %v2750 = vpop.f32.mrb[0].mxu0
      %v2751 = vadd.f32 0.0, %v2750
      %v2752 = vpop.f32.mrb[0].mxu0
      %v2753 = vpop.f32.mrb[0].mxu0
      %v2754 = vadd.f32 0.0, %v2753
      %v2755 = vpop.f32.mrb[0].mxu0
      %2756 = vmatprep.mubr.bf16.mxu0 0
      %2757 = vmatmul.mubr.bf16.gmra.mrb[0].mxu0 %v1252
      %v2758 = vpop.f32.mrb[0].mxu0
      %v2759 = vadd.f32 0.0, %v2758
      %v2760 = vpop.f32.mrb[0].mxu0
      %v2761 = vpop.f32.mrb[0].mxu0
      %v2762 = vadd.f32 0.0, %v2761
      %v2763 = vpop.f32.mrb[0].mxu0
      %2764 = vmatprep.mubr.bf16.mxu0 0
      %2765 = vmatmul.mubr.bf16.gmra.mrb[0].mxu0 %v1255
      %v2766 = vpop.f32.mrb[0].mxu0
      %v2767 = vadd.f32 0.0, %v2766
      %v2768 = vpop.f32.mrb[0].mxu0
      %v2769 = vpop.f32.mrb[0].mxu0
      %v2770 = vadd.f32 0.0, %v2769
      %v2771 = vpop.f32.mrb[0].mxu0
      %2772 = vmatprep.mubr.bf16.mxu0 0
      %2773 = vmatmul.mubr.bf16.gmra.mrb[0].mxu0 %v1258
      %v2774 = vpop.f32.mrb[0].mxu0
      %v2775 = vadd.f32 0.0, %v2774
      %v2776 = vpop.f32.mrb[0].mxu0
      %v2777 = vpop.f32.mrb[0].mxu0
      %v2778 = vadd.f32 0.0, %v2777
      %v2779 = vpop.f32.mrb[0].mxu0
      %2780 = vmatprep.mubr.bf16.mxu0 0
      %2781 = vmatmul.mubr.bf16.gmra.mrb[0].mxu0 %v1261
      %v2782 = vpop.f32.mrb[0].mxu0
      %v2783 = vadd.f32 0.0, %v2782
      %v2784 = vpop.f32.mrb[0].mxu0
      %v2785 = vpop.f32.mrb[0].mxu0
      %v2786 = vadd.f32 0.0, %v2785
      %v2787 = vpop.f32.mrb[0].mxu0
      %2788 = vmatprep.mubr.bf16.mxu0 0
      %2789 = vmatmul.mubr.bf16.gmra.mrb[0].mxu0 %v1264
      %v2790 = vpop.f32.mrb[0].mxu0
      %v2791 = vadd.f32 0.0, %v2790
      %v2792 = vpop.f32.mrb[0].mxu0
      %v2793 = vpop.f32.mrb[0].mxu0
      %v2794 = vadd.f32 0.0, %v2793
      %v2795 = vpop.f32.mrb[0].mxu0
      %2796 = vmatprep.mubr.bf16.mxu0 0
      %2797 = vmatmul.mubr.bf16.gmra.mrb[0].mxu0 %v1267
      %v2798 = vpop.f32.mrb[0].mxu0
      %v2799 = vadd.f32 0.0, %v2798
      %v2800 = vpop.f32.mrb[0].mxu0
      %v2801 = vpop.f32.mrb[0].mxu0
      %v2802 = vadd.f32 0.0, %v2801
      %v2803 = vpop.f32.mrb[0].mxu0
      %2804 = vdwg.mxu0
      %v2806 = vsel %vm393, %v2639, 0
      %2808 = vmatprep.subr.bf16.mxu0 0
      %2809 = vmatpush1.bf16.msra.mxu0 %v2806
      %2810 = vmatprep.subr.bf16.mxu0 0
      %2811 = vmatpush1.bf16.msra.mxu0 0
      %2812 = vmatprep.subr.bf16.mxu0 0
      %2813 = vmatpush1.bf16.msra.mxu0 0
      %2814 = vmatprep.subr.bf16.mxu0 0
      %2815 = vmatpush1.bf16.msra.mxu0 0
      %2816 = vmatprep.subr.bf16.mxu0 0
      %2817 = vmatpush1.bf16.msra.mxu0 0
      %2818 = vmatprep.subr.bf16.mxu0 0
      %2819 = vmatpush1.bf16.msra.mxu0 0
      %2820 = vmatprep.subr.bf16.mxu0 0
      %2821 = vmatpush1.bf16.msra.mxu0 0
      %2822 = vmatprep.subr.bf16.mxu0 0
      %2823 = vmatpush1.bf16.msra.mxu0 0
      %2824 = vmatprep.subr.bf16.mxu0 0
      %2825 = vmatpush1.bf16.msra.mxu0 0
      %2826 = vmatprep.subr.bf16.mxu0 0
      %2827 = vmatpush1.bf16.msra.mxu0 0
      %2828 = vmatprep.subr.bf16.mxu0 0
      %2829 = vmatpush1.bf16.msra.mxu0 0
      %2830 = vmatprep.subr.bf16.mxu0 0
      %2831 = vmatpush1.bf16.msra.mxu0 0
      %2832 = vmatprep.subr.bf16.mxu0 0
      %2833 = vmatpush1.bf16.msra.mxu0 0
      %2834 = vmatprep.subr.bf16.mxu0 0
      %2835 = vmatpush1.bf16.msra.mxu0 0
      %2836 = vmatprep.subr.bf16.mxu0 0
      %2837 = vmatpush1.bf16.msra.mxu0 0
      %2838 = vmatprep.subr.bf16.mxu0 0
      %2839 = vmatpush1.bf16.msra.mxu0 0
      %2840 = vmatprep.mubr.bf16.mxu0 0
      %2841 = vmatmul.mubr.bf16.gmra.mrb[0].mxu0 %v1474
      %v2842 = vpop.f32.mrb[0].mxu0
      %v2843 = vadd.f32 %v2679, %v2842
      %v2844 = vpop.f32.mrb[0].mxu0
      %v2845 = vpop.f32.mrb[0].mxu0
      %v2846 = vadd.f32 %v2682, %v2845
      %v2847 = vpop.f32.mrb[0].mxu0
      %2848 = vmatprep.mubr.bf16.mxu0 0
      %2849 = vmatmul.mubr.bf16.gmra.mrb[0].mxu0 %v1477
      %v2850 = vpop.f32.mrb[0].mxu0
      %v2851 = vadd.f32 %v2687, %v2850
      %v2852 = vpop.f32.mrb[0].mxu0
      %v2853 = vpop.f32.mrb[0].mxu0
      %v2854 = vadd.f32 %v2690, %v2853
      %v2855 = vpop.f32.mrb[0].mxu0
      %2856 = vmatprep.mubr.bf16.mxu0 0
      %2857 = vmatmul.mubr.bf16.gmra.mrb[0].mxu0 %v1480
      %v2858 = vpop.f32.mrb[0].mxu0
      %v2859 = vadd.f32 %v2695, %v2858
      %v2860 = vpop.f32.mrb[0].mxu0
      %v2861 = vpop.f32.mrb[0].mxu0
      %v2862 = vadd.f32 %v2698, %v2861
      %v2863 = vpop.f32.mrb[0].mxu0
      %2864 = vmatprep.mubr.bf16.mxu0 0
      %2865 = vmatmul.mubr.bf16.gmra.mrb[0].mxu0 %v1483
      %v2866 = vpop.f32.mrb[0].mxu0
      %v2867 = vadd.f32 %v2703, %v2866
      %v2868 = vpop.f32.mrb[0].mxu0
      %v2869 = vpop.f32.mrb[0].mxu0
      %v2870 = vadd.f32 %v2706, %v2869
      %v2871 = vpop.f32.mrb[0].mxu0
      %2872 = vmatprep.mubr.bf16.mxu0 0
      %2873 = vmatmul.mubr.bf16.gmra.mrb[0].mxu0 %v1486
      %v2874 = vpop.f32.mrb[0].mxu0
      %v2875 = vadd.f32 %v2711, %v2874
      %v2876 = vpop.f32.mrb[0].mxu0
      %v2877 = vpop.f32.mrb[0].mxu0
      %v2878 = vadd.f32 %v2714, %v2877
      %v2879 = vpop.f32.mrb[0].mxu0
      %2880 = vmatprep.mubr.bf16.mxu0 0
      %2881 = vmatmul.mubr.bf16.gmra.mrb[0].mxu0 %v1489
      %v2882 = vpop.f32.mrb[0].mxu0
      %v2883 = vadd.f32 %v2719, %v2882
      %v2884 = vpop.f32.mrb[0].mxu0
      %v2885 = vpop.f32.mrb[0].mxu0
      %v2886 = vadd.f32 %v2722, %v2885
      %v2887 = vpop.f32.mrb[0].mxu0
      %2888 = vmatprep.mubr.bf16.mxu0 0
      %2889 = vmatmul.mubr.bf16.gmra.mrb[0].mxu0 %v1492
      %v2890 = vpop.f32.mrb[0].mxu0
      %v2891 = vadd.f32 %v2727, %v2890
      %v2892 = vpop.f32.mrb[0].mxu0
      %v2893 = vpop.f32.mrb[0].mxu0
      %v2894 = vadd.f32 %v2730, %v2893
      %v2895 = vpop.f32.mrb[0].mxu0
      %2896 = vmatprep.mubr.bf16.mxu0 0
      %2897 = vmatmul.mubr.bf16.gmra.mrb[0].mxu0 %v1495
      %v2898 = vpop.f32.mrb[0].mxu0
      %v2899 = vadd.f32 %v2735, %v2898
      %v2900 = vpop.f32.mrb[0].mxu0
      %v2901 = vpop.f32.mrb[0].mxu0
      %v2902 = vadd.f32 %v2738, %v2901
      %v2903 = vpop.f32.mrb[0].mxu0
      %2904 = vmatprep.mubr.bf16.mxu0 0
      %2905 = vmatmul.mubr.bf16.gmra.mrb[0].mxu0 %v1498
      %v2906 = vpop.f32.mrb[0].mxu0
      %v2907 = vadd.f32 %v2743, %v2906
      %v2908 = vpop.f32.mrb[0].mxu0
      %v2909 = vpop.f32.mrb[0].mxu0
      %v2910 = vadd.f32 %v2746, %v2909
      %v2911 = vpop.f32.mrb[0].mxu0
      %2912 = vmatprep.mubr.bf16.mxu0 0
      %2913 = vmatmul.mubr.bf16.gmra.mrb[0].mxu0 %v1501
      %v2914 = vpop.f32.mrb[0].mxu0
      %v2915 = vadd.f32 %v2751, %v2914
      %v2916 = vpop.f32.mrb[0].mxu0
      %v2917 = vpop.f32.mrb[0].mxu0
      %v2918 = vadd.f32 %v2754, %v2917
      %v2919 = vpop.f32.mrb[0].mxu0
      %2920 = vmatprep.mubr.bf16.mxu0 0
      %2921 = vmatmul.mubr.bf16.gmra.mrb[0].mxu0 %v1504
      %v2922 = vpop.f32.mrb[0].mxu0
      %v2923 = vadd.f32 %v2759, %v2922
      %v2924 = vpop.f32.mrb[0].mxu0
      %v2925 = vpop.f32.mrb[0].mxu0
      %v2926 = vadd.f32 %v2762, %v2925
      %v2927 = vpop.f32.mrb[0].mxu0
      %2928 = vmatprep.mubr.bf16.mxu0 0
      %2929 = vmatmul.mubr.bf16.gmra.mrb[0].mxu0 %v1507
      %v2930 = vpop.f32.mrb[0].mxu0
      %v2931 = vadd.f32 %v2767, %v2930
      %v2932 = vpop.f32.mrb[0].mxu0
      %v2933 = vpop.f32.mrb[0].mxu0
      %v2934 = vadd.f32 %v2770, %v2933
      %v2935 = vpop.f32.mrb[0].mxu0
      %2936 = vmatprep.mubr.bf16.mxu0 0
      %2937 = vmatmul.mubr.bf16.gmra.mrb[0].mxu0 %v1510
      %v2938 = vpop.f32.mrb[0].mxu0
      %v2939 = vadd.f32 %v2775, %v2938
      %v2940 = vpop.f32.mrb[0].mxu0
      %v2941 = vpop.f32.mrb[0].mxu0
      %v2942 = vadd.f32 %v2778, %v2941
      %v2943 = vpop.f32.mrb[0].mxu0
      %2944 = vmatprep.mubr.bf16.mxu0 0
      %2945 = vmatmul.mubr.bf16.gmra.mrb[0].mxu0 %v1513
      %v2946 = vpop.f32.mrb[0].mxu0
      %v2947 = vadd.f32 %v2783, %v2946
      %v2948 = vpop.f32.mrb[0].mxu0
      %v2949 = vpop.f32.mrb[0].mxu0
      %v2950 = vadd.f32 %v2786, %v2949
      %v2951 = vpop.f32.mrb[0].mxu0
      %2952 = vmatprep.mubr.bf16.mxu0 0
      %2953 = vmatmul.mubr.bf16.gmra.mrb[0].mxu0 %v1516
      %v2954 = vpop.f32.mrb[0].mxu0
      %v2955 = vadd.f32 %v2791, %v2954
      %v2956 = vpop.f32.mrb[0].mxu0
      %v2957 = vpop.f32.mrb[0].mxu0
      %v2958 = vadd.f32 %v2794, %v2957
      %v2959 = vpop.f32.mrb[0].mxu0
      %2960 = vmatprep.mubr.bf16.mxu0 0
      %2961 = vmatmul.mubr.bf16.gmra.mrb[0].mxu0 %v1519
      %v2962 = vpop.f32.mrb[0].mxu0
      %v2963 = vadd.f32 %v2799, %v2962
      %v2964 = vpop.f32.mrb[0].mxu0
      %v2965 = vpop.f32.mrb[0].mxu0
      %v2966 = vadd.f32 %v2802, %v2965
      %v2967 = vpop.f32.mrb[0].mxu0
      %2968 = vdwg.mxu0
      %s2969 = scalar_lea.vmem %s3, 4
      %v2970 = vld [vmem:[%s2969] sm:$0xf]
      %s2971 = scalar_lea.vmem %s4, 2
      %v2972 = vld [vmem:[%s2971] sm:$0x3]
      %v2974 = vsel %vm1269, %v2972, 0
      %2976 = vmatprep.subr.bf16.mxu0 0
      %2977 = vmatpush1.bf16.msra.mxu0 %v2974
      %2978 = vmatprep.subr.bf16.mxu0 0
      %2979 = vmatpush1.bf16.msra.mxu0 0
      %2980 = vmatprep.subr.bf16.mxu0 0
      %2981 = vmatpush1.bf16.msra.mxu0 0
      %2982 = vmatprep.subr.bf16.mxu0 0
      %2983 = vmatpush1.bf16.msra.mxu0 0
      %2984 = vmatprep.subr.bf16.mxu0 0
      %2985 = vmatpush1.bf16.msra.mxu0 0
      %2986 = vmatprep.subr.bf16.mxu0 0
      %2987 = vmatpush1.bf16.msra.mxu0 0
      %2988 = vmatprep.subr.bf16.mxu0 0
      %2989 = vmatpush1.bf16.msra.mxu0 0
      %2990 = vmatprep.subr.bf16.mxu0 0
      %2991 = vmatpush1.bf16.msra.mxu0 0
      %2992 = vmatprep.subr.bf16.mxu0 0
      %2993 = vmatpush1.bf16.msra.mxu0 0
      %2994 = vmatprep.subr.bf16.mxu0 0
      %2995 = vmatpush1.bf16.msra.mxu0 0
      %2996 = vmatprep.subr.bf16.mxu0 0
      %2997 = vmatpush1.bf16.msra.mxu0 0
      %2998 = vmatprep.subr.bf16.mxu0 0
      %2999 = vmatpush1.bf16.msra.mxu0 0
      %3000 = vmatprep.subr.bf16.mxu0 0
      %3001 = vmatpush1.bf16.msra.mxu0 0
      %3002 = vmatprep.subr.bf16.mxu0 0
      %3003 = vmatpush1.bf16.msra.mxu0 0
      %3004 = vmatprep.subr.bf16.mxu0 0
      %3005 = vmatpush1.bf16.msra.mxu0 0
      %3006 = vmatprep.subr.bf16.mxu0 0
      %3007 = vmatpush1.bf16.msra.mxu0 0
      %3008 = vmatprep.mubr.bf16.mxu0 0
      %3009 = vmatmul.mubr.bf16.gmra.mrb[0].mxu0 %v1222
      %v3010 = vpop.f32.mrb[0].mxu0
      %v3011 = vadd.f32 0.0, %v3010
      %v3012 = vpop.f32.mrb[0].mxu0
      %v3013 = vpop.f32.mrb[0].mxu0
      %v3014 = vadd.f32 0.0, %v3013
      %v3015 = vpop.f32.mrb[0].mxu0
      %3016 = vmatprep.mubr.bf16.mxu0 0
      %3017 = vmatmul.mubr.bf16.gmra.mrb[0].mxu0 %v1225
      %v3018 = vpop.f32.mrb[0].mxu0
      %v3019 = vadd.f32 0.0, %v3018
      %v3020 = vpop.f32.mrb[0].mxu0
      %v3021 = vpop.f32.mrb[0].mxu0
      %v3022 = vadd.f32 0.0, %v3021
      %v3023 = vpop.f32.mrb[0].mxu0
      %3024 = vmatprep.mubr.bf16.mxu0 0
      %3025 = vmatmul.mubr.bf16.gmra.mrb[0].mxu0 %v1228
      %v3026 = vpop.f32.mrb[0].mxu0
      %v3027 = vadd.f32 0.0, %v3026
      %v3028 = vpop.f32.mrb[0].mxu0
      %v3029 = vpop.f32.mrb[0].mxu0
      %v3030 = vadd.f32 0.0, %v3029
      %v3031 = vpop.f32.mrb[0].mxu0
      %3032 = vmatprep.mubr.bf16.mxu0 0
      %3033 = vmatmul.mubr.bf16.gmra.mrb[0].mxu0 %v1231
      %v3034 = vpop.f32.mrb[0].mxu0
      %v3035 = vadd.f32 0.0, %v3034
      %v3036 = vpop.f32.mrb[0].mxu0
      %v3037 = vpop.f32.mrb[0].mxu0
      %v3038 = vadd.f32 0.0, %v3037
      %v3039 = vpop.f32.mrb[0].mxu0
      %3040 = vmatprep.mubr.bf16.mxu0 0
      %3041 = vmatmul.mubr.bf16.gmra.mrb[0].mxu0 %v1234
      %v3042 = vpop.f32.mrb[0].mxu0
      %v3043 = vadd.f32 0.0, %v3042
      %v3044 = vpop.f32.mrb[0].mxu0
      %v3045 = vpop.f32.mrb[0].mxu0
      %v3046 = vadd.f32 0.0, %v3045
      %v3047 = vpop.f32.mrb[0].mxu0
      %3048 = vmatprep.mubr.bf16.mxu0 0
      %3049 = vmatmul.mubr.bf16.gmra.mrb[0].mxu0 %v1237
      %v3050 = vpop.f32.mrb[0].mxu0
      %v3051 = vadd.f32 0.0, %v3050
      %v3052 = vpop.f32.mrb[0].mxu0
      %v3053 = vpop.f32.mrb[0].mxu0
      %v3054 = vadd.f32 0.0, %v3053
      %v3055 = vpop.f32.mrb[0].mxu0
      %3056 = vmatprep.mubr.bf16.mxu0 0
      %3057 = vmatmul.mubr.bf16.gmra.mrb[0].mxu0 %v1240
      %v3058 = vpop.f32.mrb[0].mxu0
      %v3059 = vadd.f32 0.0, %v3058
      %v3060 = vpop.f32.mrb[0].mxu0
      %v3061 = vpop.f32.mrb[0].mxu0
      %v3062 = vadd.f32 0.0, %v3061
      %v3063 = vpop.f32.mrb[0].mxu0
      %3064 = vmatprep.mubr.bf16.mxu0 0
      %3065 = vmatmul.mubr.bf16.gmra.mrb[0].mxu0 %v1243
      %v3066 = vpop.f32.mrb[0].mxu0
      %v3067 = vadd.f32 0.0, %v3066
      %v3068 = vpop.f32.mrb[0].mxu0
      %v3069 = vpop.f32.mrb[0].mxu0
      %v3070 = vadd.f32 0.0, %v3069
      %v3071 = vpop.f32.mrb[0].mxu0
      %3072 = vmatprep.mubr.bf16.mxu0 0
      %3073 = vmatmul.mubr.bf16.gmra.mrb[0].mxu0 %v1246
      %v3074 = vpop.f32.mrb[0].mxu0
      %v3075 = vadd.f32 0.0, %v3074
      %v3076 = vpop.f32.mrb[0].mxu0
      %v3077 = vpop.f32.mrb[0].mxu0
      %v3078 = vadd.f32 0.0, %v3077
      %v3079 = vpop.f32.mrb[0].mxu0
      %3080 = vmatprep.mubr.bf16.mxu0 0
      %3081 = vmatmul.mubr.bf16.gmra.mrb[0].mxu0 %v1249
      %v3082 = vpop.f32.mrb[0].mxu0
      %v3083 = vadd.f32 0.0, %v3082
      %v3084 = vpop.f32.mrb[0].mxu0
      %v3085 = vpop.f32.mrb[0].mxu0
      %v3086 = vadd.f32 0.0, %v3085
      %v3087 = vpop.f32.mrb[0].mxu0
      %3088 = vmatprep.mubr.bf16.mxu0 0
      %3089 = vmatmul.mubr.bf16.gmra.mrb[0].mxu0 %v1252
      %v3090 = vpop.f32.mrb[0].mxu0
      %v3091 = vadd.f32 0.0, %v3090
      %v3092 = vpop.f32.mrb[0].mxu0
      %v3093 = vpop.f32.mrb[0].mxu0
      %v3094 = vadd.f32 0.0, %v3093
      %v3095 = vpop.f32.mrb[0].mxu0
      %3096 = vmatprep.mubr.bf16.mxu0 0
      %3097 = vmatmul.mubr.bf16.gmra.mrb[0].mxu0 %v1255
      %v3098 = vpop.f32.mrb[0].mxu0
      %v3099 = vadd.f32 0.0, %v3098
      %v3100 = vpop.f32.mrb[0].mxu0
      %v3101 = vpop.f32.mrb[0].mxu0
      %v3102 = vadd.f32 0.0, %v3101
      %v3103 = vpop.f32.mrb[0].mxu0
      %3104 = vmatprep.mubr.bf16.mxu0 0
      %3105 = vmatmul.mubr.bf16.gmra.mrb[0].mxu0 %v1258
      %v3106 = vpop.f32.mrb[0].mxu0
      %v3107 = vadd.f32 0.0, %v3106
      %v3108 = vpop.f32.mrb[0].mxu0
      %v3109 = vpop.f32.mrb[0].mxu0
      %v3110 = vadd.f32 0.0, %v3109
      %v3111 = vpop.f32.mrb[0].mxu0
      %3112 = vmatprep.mubr.bf16.mxu0 0
      %3113 = vmatmul.mubr.bf16.gmra.mrb[0].mxu0 %v1261
      %v3114 = vpop.f32.mrb[0].mxu0
      %v3115 = vadd.f32 0.0, %v3114
      %v3116 = vpop.f32.mrb[0].mxu0
      %v3117 = vpop.f32.mrb[0].mxu0
      %v3118 = vadd.f32 0.0, %v3117
      %v3119 = vpop.f32.mrb[0].mxu0
      %3120 = vmatprep.mubr.bf16.mxu0 0
      %3121 = vmatmul.mubr.bf16.gmra.mrb[0].mxu0 %v1264
      %v3122 = vpop.f32.mrb[0].mxu0
      %v3123 = vadd.f32 0.0, %v3122
      %v3124 = vpop.f32.mrb[0].mxu0
      %v3125 = vpop.f32.mrb[0].mxu0
      %v3126 = vadd.f32 0.0, %v3125
      %v3127 = vpop.f32.mrb[0].mxu0
      %3128 = vmatprep.mubr.bf16.mxu0 0
      %3129 = vmatmul.mubr.bf16.gmra.mrb[0].mxu0 %v1267
      %v3130 = vpop.f32.mrb[0].mxu0
      %v3131 = vadd.f32 0.0, %v3130
      %v3132 = vpop.f32.mrb[0].mxu0
      %v3133 = vpop.f32.mrb[0].mxu0
      %v3134 = vadd.f32 0.0, %v3133
      %v3135 = vpop.f32.mrb[0].mxu0
      %3136 = vdwg.mxu0
      %v3138 = vsel %vm393, %v2970, 0
      %3140 = vmatprep.subr.bf16.mxu0 0
      %3141 = vmatpush1.bf16.msra.mxu0 %v3138
      %3142 = vmatprep.subr.bf16.mxu0 0
      %3143 = vmatpush1.bf16.msra.mxu0 0
      %3144 = vmatprep.subr.bf16.mxu0 0
      %3145 = vmatpush1.bf16.msra.mxu0 0
      %3146 = vmatprep.subr.bf16.mxu0 0
      %3147 = vmatpush1.bf16.msra.mxu0 0
      %3148 = vmatprep.subr.bf16.mxu0 0
      %3149 = vmatpush1.bf16.msra.mxu0 0
      %3150 = vmatprep.subr.bf16.mxu0 0
      %3151 = vmatpush1.bf16.msra.mxu0 0
      %3152 = vmatprep.subr.bf16.mxu0 0
      %3153 = vmatpush1.bf16.msra.mxu0 0
      %3154 = vmatprep.subr.bf16.mxu0 0
      %3155 = vmatpush1.bf16.msra.mxu0 0
      %3156 = vmatprep.subr.bf16.mxu0 0
      %3157 = vmatpush1.bf16.msra.mxu0 0
      %3158 = vmatprep.subr.bf16.mxu0 0
      %3159 = vmatpush1.bf16.msra.mxu0 0
      %3160 = vmatprep.subr.bf16.mxu0 0
      %3161 = vmatpush1.bf16.msra.mxu0 0
      %3162 = vmatprep.subr.bf16.mxu0 0
      %3163 = vmatpush1.bf16.msra.mxu0 0
      %3164 = vmatprep.subr.bf16.mxu0 0
      %3165 = vmatpush1.bf16.msra.mxu0 0
      %3166 = vmatprep.subr.bf16.mxu0 0
      %3167 = vmatpush1.bf16.msra.mxu0 0
      %3168 = vmatprep.subr.bf16.mxu0 0
      %3169 = vmatpush1.bf16.msra.mxu0 0
      %3170 = vmatprep.subr.bf16.mxu0 0
      %3171 = vmatpush1.bf16.msra.mxu0 0
      %3172 = vmatprep.mubr.bf16.mxu0 0
      %3173 = vmatmul.mubr.bf16.gmra.mrb[0].mxu0 %v1474
      %v3174 = vpop.f32.mrb[0].mxu0
      %v3175 = vadd.f32 %v3011, %v3174
      %v3176 = vpop.f32.mrb[0].mxu0
      %v3177 = vpop.f32.mrb[0].mxu0
      %v3178 = vadd.f32 %v3014, %v3177
      %v3179 = vpop.f32.mrb[0].mxu0
      %3180 = vmatprep.mubr.bf16.mxu0 0
      %3181 = vmatmul.mubr.bf16.gmra.mrb[0].mxu0 %v1477
      %v3182 = vpop.f32.mrb[0].mxu0
      %v3183 = vadd.f32 %v3019, %v3182
      %v3184 = vpop.f32.mrb[0].mxu0
      %v3185 = vpop.f32.mrb[0].mxu0
      %v3186 = vadd.f32 %v3022, %v3185
      %v3187 = vpop.f32.mrb[0].mxu0
      %3188 = vmatprep.mubr.bf16.mxu0 0
      %3189 = vmatmul.mubr.bf16.gmra.mrb[0].mxu0 %v1480
      %v3190 = vpop.f32.mrb[0].mxu0
      %v3191 = vadd.f32 %v3027, %v3190
      %v3192 = vpop.f32.mrb[0].mxu0
      %v3193 = vpop.f32.mrb[0].mxu0
      %v3194 = vadd.f32 %v3030, %v3193
      %v3195 = vpop.f32.mrb[0].mxu0
      %3196 = vmatprep.mubr.bf16.mxu0 0
      %3197 = vmatmul.mubr.bf16.gmra.mrb[0].mxu0 %v1483
      %v3198 = vpop.f32.mrb[0].mxu0
      %v3199 = vadd.f32 %v3035, %v3198
      %v3200 = vpop.f32.mrb[0].mxu0
      %v3201 = vpop.f32.mrb[0].mxu0
      %v3202 = vadd.f32 %v3038, %v3201
      %v3203 = vpop.f32.mrb[0].mxu0
      %3204 = vmatprep.mubr.bf16.mxu0 0
      %3205 = vmatmul.mubr.bf16.gmra.mrb[0].mxu0 %v1486
      %v3206 = vpop.f32.mrb[0].mxu0
      %v3207 = vadd.f32 %v3043, %v3206
      %v3208 = vpop.f32.mrb[0].mxu0
      %v3209 = vpop.f32.mrb[0].mxu0
      %v3210 = vadd.f32 %v3046, %v3209
      %v3211 = vpop.f32.mrb[0].mxu0
      %3212 = vmatprep.mubr.bf16.mxu0 0
      %3213 = vmatmul.mubr.bf16.gmra.mrb[0].mxu0 %v1489
      %v3214 = vpop.f32.mrb[0].mxu0
      %v3215 = vadd.f32 %v3051, %v3214
      %v3216 = vpop.f32.mrb[0].mxu0
      %v3217 = vpop.f32.mrb[0].mxu0
      %v3218 = vadd.f32 %v3054, %v3217
      %v3219 = vpop.f32.mrb[0].mxu0
      %3220 = vmatprep.mubr.bf16.mxu0 0
      %3221 = vmatmul.mubr.bf16.gmra.mrb[0].mxu0 %v1492
      %v3222 = vpop.f32.mrb[0].mxu0
      %v3223 = vadd.f32 %v3059, %v3222
      %v3224 = vpop.f32.mrb[0].mxu0
      %v3225 = vpop.f32.mrb[0].mxu0
      %v3226 = vadd.f32 %v3062, %v3225
      %v3227 = vpop.f32.mrb[0].mxu0
      %3228 = vmatprep.mubr.bf16.mxu0 0
      %3229 = vmatmul.mubr.bf16.gmra.mrb[0].mxu0 %v1495
      %v3230 = vpop.f32.mrb[0].mxu0
      %v3231 = vadd.f32 %v3067, %v3230
      %v3232 = vpop.f32.mrb[0].mxu0
      %v3233 = vpop.f32.mrb[0].mxu0
      %v3234 = vadd.f32 %v3070, %v3233
      %v3235 = vpop.f32.mrb[0].mxu0
      %3236 = vmatprep.mubr.bf16.mxu0 0
      %3237 = vmatmul.mubr.bf16.gmra.mrb[0].mxu0 %v1498
      %v3238 = vpop.f32.mrb[0].mxu0
      %v3239 = vadd.f32 %v3075, %v3238
      %v3240 = vpop.f32.mrb[0].mxu0
      %v3241 = vpop.f32.mrb[0].mxu0
      %v3242 = vadd.f32 %v3078, %v3241
      %v3243 = vpop.f32.mrb[0].mxu0
      %3244 = vmatprep.mubr.bf16.mxu0 0
      %3245 = vmatmul.mubr.bf16.gmra.mrb[0].mxu0 %v1501
      %v3246 = vpop.f32.mrb[0].mxu0
      %v3247 = vadd.f32 %v3083, %v3246
      %v3248 = vpop.f32.mrb[0].mxu0
      %v3249 = vpop.f32.mrb[0].mxu0
      %v3250 = vadd.f32 %v3086, %v3249
      %v3251 = vpop.f32.mrb[0].mxu0
      %3252 = vmatprep.mubr.bf16.mxu0 0
      %3253 = vmatmul.mubr.bf16.gmra.mrb[0].mxu0 %v1504
      %v3254 = vpop.f32.mrb[0].mxu0
      %v3255 = vadd.f32 %v3091, %v3254
      %v3256 = vpop.f32.mrb[0].mxu0
      %v3257 = vpop.f32.mrb[0].mxu0
      %v3258 = vadd.f32 %v3094, %v3257
      %v3259 = vpop.f32.mrb[0].mxu0
      %3260 = vmatprep.mubr.bf16.mxu0 0
      %3261 = vmatmul.mubr.bf16.gmra.mrb[0].mxu0 %v1507
      %v3262 = vpop.f32.mrb[0].mxu0
      %v3263 = vadd.f32 %v3099, %v3262
      %v3264 = vpop.f32.mrb[0].mxu0
      %v3265 = vpop.f32.mrb[0].mxu0
      %v3266 = vadd.f32 %v3102, %v3265
      %v3267 = vpop.f32.mrb[0].mxu0
      %3268 = vmatprep.mubr.bf16.mxu0 0
      %3269 = vmatmul.mubr.bf16.gmra.mrb[0].mxu0 %v1510
      %v3270 = vpop.f32.mrb[0].mxu0
      %v3271 = vadd.f32 %v3107, %v3270
      %v3272 = vpop.f32.mrb[0].mxu0
      %v3273 = vpop.f32.mrb[0].mxu0
      %v3274 = vadd.f32 %v3110, %v3273
      %v3275 = vpop.f32.mrb[0].mxu0
      %3276 = vmatprep.mubr.bf16.mxu0 0
      %3277 = vmatmul.mubr.bf16.gmra.mrb[0].mxu0 %v1513
      %v3278 = vpop.f32.mrb[0].mxu0
      %v3279 = vadd.f32 %v3115, %v3278
      %v3280 = vpop.f32.mrb[0].mxu0
      %v3281 = vpop.f32.mrb[0].mxu0
      %v3282 = vadd.f32 %v3118, %v3281
      %v3283 = vpop.f32.mrb[0].mxu0
      %3284 = vmatprep.mubr.bf16.mxu0 0
      %3285 = vmatmul.mubr.bf16.gmra.mrb[0].mxu0 %v1516
      %v3286 = vpop.f32.mrb[0].mxu0
      %v3287 = vadd.f32 %v3123, %v3286
      %v3288 = vpop.f32.mrb[0].mxu0
      %v3289 = vpop.f32.mrb[0].mxu0
      %v3290 = vadd.f32 %v3126, %v3289
      %v3291 = vpop.f32.mrb[0].mxu0
      %3292 = vmatprep.mubr.bf16.mxu0 0
      %3293 = vmatmul.mubr.bf16.gmra.mrb[0].mxu0 %v1519
      %v3294 = vpop.f32.mrb[0].mxu0
      %v3295 = vadd.f32 %v3131, %v3294
      %v3296 = vpop.f32.mrb[0].mxu0
      %v3297 = vpop.f32.mrb[0].mxu0
      %v3298 = vadd.f32 %v3134, %v3297
      %v3299 = vpop.f32.mrb[0].mxu0
      %3300 = vdwg.mxu0
      %s3301 = scalar_lea.vmem %s3, 8
      %v3302 = vld [vmem:[%s3301] sm:$0xf]
      %s3303 = scalar_lea.vmem %s4, 4
      %v3304 = vld [vmem:[%s3303] sm:$0x3]
      %v3306 = vsel %vm1269, %v3304, 0
      %3308 = vmatprep.subr.bf16.mxu0 0
      %3309 = vmatpush1.bf16.msra.mxu0 %v3306
      %3310 = vmatprep.subr.bf16.mxu0 0
      %3311 = vmatpush1.bf16.msra.mxu0 0
      %3312 = vmatprep.subr.bf16.mxu0 0
      %3313 = vmatpush1.bf16.msra.mxu0 0
      %3314 = vmatprep.subr.bf16.mxu0 0
      %3315 = vmatpush1.bf16.msra.mxu0 0
      %3316 = vmatprep.subr.bf16.mxu0 0
      %3317 = vmatpush1.bf16.msra.mxu0 0
      %3318 = vmatprep.subr.bf16.mxu0 0
      %3319 = vmatpush1.bf16.msra.mxu0 0
      %3320 = vmatprep.subr.bf16.mxu0 0
      %3321 = vmatpush1.bf16.msra.mxu0 0
      %3322 = vmatprep.subr.bf16.mxu0 0
      %3323 = vmatpush1.bf16.msra.mxu0 0
      %3324 = vmatprep.subr.bf16.mxu0 0
      %3325 = vmatpush1.bf16.msra.mxu0 0
      %3326 = vmatprep.subr.bf16.mxu0 0
      %3327 = vmatpush1.bf16.msra.mxu0 0
      %3328 = vmatprep.subr.bf16.mxu0 0
      %3329 = vmatpush1.bf16.msra.mxu0 0
      %3330 = vmatprep.subr.bf16.mxu0 0
      %3331 = vmatpush1.bf16.msra.mxu0 0
      %3332 = vmatprep.subr.bf16.mxu0 0
      %3333 = vmatpush1.bf16.msra.mxu0 0
      %3334 = vmatprep.subr.bf16.mxu0 0
      %3335 = vmatpush1.bf16.msra.mxu0 0
      %3336 = vmatprep.subr.bf16.mxu0 0
      %3337 = vmatpush1.bf16.msra.mxu0 0
      %3338 = vmatprep.subr.bf16.mxu0 0
      %3339 = vmatpush1.bf16.msra.mxu0 0
      %3340 = vmatprep.mubr.bf16.mxu0 0
      %3341 = vmatmul.mubr.bf16.gmra.mrb[0].mxu0 %v1222
      %v3342 = vpop.f32.mrb[0].mxu0
      %v3343 = vadd.f32 0.0, %v3342
      %v3344 = vpop.f32.mrb[0].mxu0
      %v3345 = vpop.f32.mrb[0].mxu0
      %v3346 = vadd.f32 0.0, %v3345
      %v3347 = vpop.f32.mrb[0].mxu0
      %3348 = vmatprep.mubr.bf16.mxu0 0
      %3349 = vmatmul.mubr.bf16.gmra.mrb[0].mxu0 %v1225
      %v3350 = vpop.f32.mrb[0].mxu0
      %v3351 = vadd.f32 0.0, %v3350
      %v3352 = vpop.f32.mrb[0].mxu0
      %v3353 = vpop.f32.mrb[0].mxu0
      %v3354 = vadd.f32 0.0, %v3353
      %v3355 = vpop.f32.mrb[0].mxu0
      %3356 = vmatprep.mubr.bf16.mxu0 0
      %3357 = vmatmul.mubr.bf16.gmra.mrb[0].mxu0 %v1228
      %v3358 = vpop.f32.mrb[0].mxu0
      %v3359 = vadd.f32 0.0, %v3358
      %v3360 = vpop.f32.mrb[0].mxu0
      %v3361 = vpop.f32.mrb[0].mxu0
      %v3362 = vadd.f32 0.0, %v3361
      %v3363 = vpop.f32.mrb[0].mxu0
      %3364 = vmatprep.mubr.bf16.mxu0 0
      %3365 = vmatmul.mubr.bf16.gmra.mrb[0].mxu0 %v1231
      %v3366 = vpop.f32.mrb[0].mxu0
      %v3367 = vadd.f32 0.0, %v3366
      %v3368 = vpop.f32.mrb[0].mxu0
      %v3369 = vpop.f32.mrb[0].mxu0
      %v3370 = vadd.f32 0.0, %v3369
      %v3371 = vpop.f32.mrb[0].mxu0
      %3372 = vmatprep.mubr.bf16.mxu0 0
      %3373 = vmatmul.mubr.bf16.gmra.mrb[0].mxu0 %v1234
      %v3374 = vpop.f32.mrb[0].mxu0
      %v3375 = vadd.f32 0.0, %v3374
      %v3376 = vpop.f32.mrb[0].mxu0
      %v3377 = vpop.f32.mrb[0].mxu0
      %v3378 = vadd.f32 0.0, %v3377
      %v3379 = vpop.f32.mrb[0].mxu0
      %3380 = vmatprep.mubr.bf16.mxu0 0
      %3381 = vmatmul.mubr.bf16.gmra.mrb[0].mxu0 %v1237
      %v3382 = vpop.f32.mrb[0].mxu0
      %v3383 = vadd.f32 0.0, %v3382
      %v3384 = vpop.f32.mrb[0].mxu0
      %v3385 = vpop.f32.mrb[0].mxu0
      %v3386 = vadd.f32 0.0, %v3385
      %v3387 = vpop.f32.mrb[0].mxu0
      %3388 = vmatprep.mubr.bf16.mxu0 0
      %3389 = vmatmul.mubr.bf16.gmra.mrb[0].mxu0 %v1240
      %v3390 = vpop.f32.mrb[0].mxu0
      %v3391 = vadd.f32 0.0, %v3390
      %v3392 = vpop.f32.mrb[0].mxu0
      %v3393 = vpop.f32.mrb[0].mxu0
      %v3394 = vadd.f32 0.0, %v3393
      %v3395 = vpop.f32.mrb[0].mxu0
      %3396 = vmatprep.mubr.bf16.mxu0 0
      %3397 = vmatmul.mubr.bf16.gmra.mrb[0].mxu0 %v1243
      %v3398 = vpop.f32.mrb[0].mxu0
      %v3399 = vadd.f32 0.0, %v3398
      %v3400 = vpop.f32.mrb[0].mxu0
      %v3401 = vpop.f32.mrb[0].mxu0
      %v3402 = vadd.f32 0.0, %v3401
      %v3403 = vpop.f32.mrb[0].mxu0
      %3404 = vmatprep.mubr.bf16.mxu0 0
      %3405 = vmatmul.mubr.bf16.gmra.mrb[0].mxu0 %v1246
      %v3406 = vpop.f32.mrb[0].mxu0
      %v3407 = vadd.f32 0.0, %v3406
      %v3408 = vpop.f32.mrb[0].mxu0
      %v3409 = vpop.f32.mrb[0].mxu0
      %v3410 = vadd.f32 0.0, %v3409
      %v3411 = vpop.f32.mrb[0].mxu0
      %3412 = vmatprep.mubr.bf16.mxu0 0
      %3413 = vmatmul.mubr.bf16.gmra.mrb[0].mxu0 %v1249
      %v3414 = vpop.f32.mrb[0].mxu0
      %v3415 = vadd.f32 0.0, %v3414
      %v3416 = vpop.f32.mrb[0].mxu0
      %v3417 = vpop.f32.mrb[0].mxu0
      %v3418 = vadd.f32 0.0, %v3417
      %v3419 = vpop.f32.mrb[0].mxu0
      %3420 = vmatprep.mubr.bf16.mxu0 0
      %3421 = vmatmul.mubr.bf16.gmra.mrb[0].mxu0 %v1252
      %v3422 = vpop.f32.mrb[0].mxu0
      %v3423 = vadd.f32 0.0, %v3422
      %v3424 = vpop.f32.mrb[0].mxu0
      %v3425 = vpop.f32.mrb[0].mxu0
      %v3426 = vadd.f32 0.0, %v3425
      %v3427 = vpop.f32.mrb[0].mxu0
      %3428 = vmatprep.mubr.bf16.mxu0 0
      %3429 = vmatmul.mubr.bf16.gmra.mrb[0].mxu0 %v1255
      %v3430 = vpop.f32.mrb[0].mxu0
      %v3431 = vadd.f32 0.0, %v3430
      %v3432 = vpop.f32.mrb[0].mxu0
      %v3433 = vpop.f32.mrb[0].mxu0
      %v3434 = vadd.f32 0.0, %v3433
      %v3435 = vpop.f32.mrb[0].mxu0
      %3436 = vmatprep.mubr.bf16.mxu0 0
      %3437 = vmatmul.mubr.bf16.gmra.mrb[0].mxu0 %v1258
      %v3438 = vpop.f32.mrb[0].mxu0
      %v3439 = vadd.f32 0.0, %v3438
      %v3440 = vpop.f32.mrb[0].mxu0
      %v3441 = vpop.f32.mrb[0].mxu0
      %v3442 = vadd.f32 0.0, %v3441
      %v3443 = vpop.f32.mrb[0].mxu0
      %3444 = vmatprep.mubr.bf16.mxu0 0
      %3445 = vmatmul.mubr.bf16.gmra.mrb[0].mxu0 %v1261
      %v3446 = vpop.f32.mrb[0].mxu0
      %v3447 = vadd.f32 0.0, %v3446
      %v3448 = vpop.f32.mrb[0].mxu0
      %v3449 = vpop.f32.mrb[0].mxu0
      %v3450 = vadd.f32 0.0, %v3449
      %v3451 = vpop.f32.mrb[0].mxu0
      %3452 = vmatprep.mubr.bf16.mxu0 0
      %3453 = vmatmul.mubr.bf16.gmra.mrb[0].mxu0 %v1264
      %v3454 = vpop.f32.mrb[0].mxu0
      %v3455 = vadd.f32 0.0, %v3454
      %v3456 = vpop.f32.mrb[0].mxu0
      %v3457 = vpop.f32.mrb[0].mxu0
      %v3458 = vadd.f32 0.0, %v3457
      %v3459 = vpop.f32.mrb[0].mxu0
      %3460 = vmatprep.mubr.bf16.mxu0 0
      %3461 = vmatmul.mubr.bf16.gmra.mrb[0].mxu0 %v1267
      %v3462 = vpop.f32.mrb[0].mxu0
      %v3463 = vadd.f32 0.0, %v3462
      %v3464 = vpop.f32.mrb[0].mxu0
      %v3465 = vpop.f32.mrb[0].mxu0
      %v3466 = vadd.f32 0.0, %v3465
      %v3467 = vpop.f32.mrb[0].mxu0
      %3468 = vdwg.mxu0
      %v3470 = vsel %vm393, %v3302, 0
      %3472 = vmatprep.subr.bf16.mxu0 0
      %3473 = vmatpush1.bf16.msra.mxu0 %v3470
      %3474 = vmatprep.subr.bf16.mxu0 0
      %3475 = vmatpush1.bf16.msra.mxu0 0
      %3476 = vmatprep.subr.bf16.mxu0 0
      %3477 = vmatpush1.bf16.msra.mxu0 0
      %3478 = vmatprep.subr.bf16.mxu0 0
      %3479 = vmatpush1.bf16.msra.mxu0 0
      %3480 = vmatprep.subr.bf16.mxu0 0
      %3481 = vmatpush1.bf16.msra.mxu0 0
      %3482 = vmatprep.subr.bf16.mxu0 0
      %3483 = vmatpush1.bf16.msra.mxu0 0
      %3484 = vmatprep.subr.bf16.mxu0 0
      %3485 = vmatpush1.bf16.msra.mxu0 0
      %3486 = vmatprep.subr.bf16.mxu0 0
      %3487 = vmatpush1.bf16.msra.mxu0 0
      %3488 = vmatprep.subr.bf16.mxu0 0
      %3489 = vmatpush1.bf16.msra.mxu0 0
      %3490 = vmatprep.subr.bf16.mxu0 0
      %3491 = vmatpush1.bf16.msra.mxu0 0
      %3492 = vmatprep.subr.bf16.mxu0 0
      %3493 = vmatpush1.bf16.msra.mxu0 0
      %3494 = vmatprep.subr.bf16.mxu0 0
      %3495 = vmatpush1.bf16.msra.mxu0 0
      %3496 = vmatprep.subr.bf16.mxu0 0
      %3497 = vmatpush1.bf16.msra.mxu0 0
      %3498 = vmatprep.subr.bf16.mxu0 0
      %3499 = vmatpush1.bf16.msra.mxu0 0
      %3500 = vmatprep.subr.bf16.mxu0 0
      %3501 = vmatpush1.bf16.msra.mxu0 0
      %3502 = vmatprep.subr.bf16.mxu0 0
      %3503 = vmatpush1.bf16.msra.mxu0 0
      %3504 = vmatprep.mubr.bf16.mxu0 0
      %3505 = vmatmul.mubr.bf16.gmra.mrb[0].mxu0 %v1474
      %v3506 = vpop.f32.mrb[0].mxu0
      %v3507 = vadd.f32 %v3343, %v3506
      %v3508 = vpop.f32.mrb[0].mxu0
      %v3509 = vpop.f32.mrb[0].mxu0
      %v3510 = vadd.f32 %v3346, %v3509
      %v3511 = vpop.f32.mrb[0].mxu0
      %3512 = vmatprep.mubr.bf16.mxu0 0
      %3513 = vmatmul.mubr.bf16.gmra.mrb[0].mxu0 %v1477
      %v3514 = vpop.f32.mrb[0].mxu0
      %v3515 = vadd.f32 %v3351, %v3514
      %v3516 = vpop.f32.mrb[0].mxu0
      %v3517 = vpop.f32.mrb[0].mxu0
      %v3518 = vadd.f32 %v3354, %v3517
      %v3519 = vpop.f32.mrb[0].mxu0
      %3520 = vmatprep.mubr.bf16.mxu0 0
      %3521 = vmatmul.mubr.bf16.gmra.mrb[0].mxu0 %v1480
      %v3522 = vpop.f32.mrb[0].mxu0
      %v3523 = vadd.f32 %v3359, %v3522
      %v3524 = vpop.f32.mrb[0].mxu0
      %v3525 = vpop.f32.mrb[0].mxu0
      %v3526 = vadd.f32 %v3362, %v3525
      %v3527 = vpop.f32.mrb[0].mxu0
      %3528 = vmatprep.mubr.bf16.mxu0 0
      %3529 = vmatmul.mubr.bf16.gmra.mrb[0].mxu0 %v1483
      %v3530 = vpop.f32.mrb[0].mxu0
      %v3531 = vadd.f32 %v3367, %v3530
      %v3532 = vpop.f32.mrb[0].mxu0
      %v3533 = vpop.f32.mrb[0].mxu0
      %v3534 = vadd.f32 %v3370, %v3533
      %v3535 = vpop.f32.mrb[0].mxu0
      %3536 = vmatprep.mubr.bf16.mxu0 0
      %3537 = vmatmul.mubr.bf16.gmra.mrb[0].mxu0 %v1486
      %v3538 = vpop.f32.mrb[0].mxu0
      %v3539 = vadd.f32 %v3375, %v3538
      %v3540 = vpop.f32.mrb[0].mxu0
      %v3541 = vpop.f32.mrb[0].mxu0
      %v3542 = vadd.f32 %v3378, %v3541
      %v3543 = vpop.f32.mrb[0].mxu0
      %3544 = vmatprep.mubr.bf16.mxu0 0
      %3545 = vmatmul.mubr.bf16.gmra.mrb[0].mxu0 %v1489
      %v3546 = vpop.f32.mrb[0].mxu0
      %v3547 = vadd.f32 %v3383, %v3546
      %v3548 = vpop.f32.mrb[0].mxu0
      %v3549 = vpop.f32.mrb[0].mxu0
      %v3550 = vadd.f32 %v3386, %v3549
      %v3551 = vpop.f32.mrb[0].mxu0
      %3552 = vmatprep.mubr.bf16.mxu0 0
      %3553 = vmatmul.mubr.bf16.gmra.mrb[0].mxu0 %v1492
      %v3554 = vpop.f32.mrb[0].mxu0
      %v3555 = vadd.f32 %v3391, %v3554
      %v3556 = vpop.f32.mrb[0].mxu0
      %v3557 = vpop.f32.mrb[0].mxu0
      %v3558 = vadd.f32 %v3394, %v3557
      %v3559 = vpop.f32.mrb[0].mxu0
      %3560 = vmatprep.mubr.bf16.mxu0 0
      %3561 = vmatmul.mubr.bf16.gmra.mrb[0].mxu0 %v1495
      %v3562 = vpop.f32.mrb[0].mxu0
      %v3563 = vadd.f32 %v3399, %v3562
      %v3564 = vpop.f32.mrb[0].mxu0
      %v3565 = vpop.f32.mrb[0].mxu0
      %v3566 = vadd.f32 %v3402, %v3565
      %v3567 = vpop.f32.mrb[0].mxu0
      %3568 = vmatprep.mubr.bf16.mxu0 0
      %3569 = vmatmul.mubr.bf16.gmra.mrb[0].mxu0 %v1498
      %v3570 = vpop.f32.mrb[0].mxu0
      %v3571 = vadd.f32 %v3407, %v3570
      %v3572 = vpop.f32.mrb[0].mxu0
      %v3573 = vpop.f32.mrb[0].mxu0
      %v3574 = vadd.f32 %v3410, %v3573
      %v3575 = vpop.f32.mrb[0].mxu0
      %3576 = vmatprep.mubr.bf16.mxu0 0
      %3577 = vmatmul.mubr.bf16.gmra.mrb[0].mxu0 %v1501
      %v3578 = vpop.f32.mrb[0].mxu0
      %v3579 = vadd.f32 %v3415, %v3578
      %v3580 = vpop.f32.mrb[0].mxu0
      %v3581 = vpop.f32.mrb[0].mxu0
      %v3582 = vadd.f32 %v3418, %v3581
      %v3583 = vpop.f32.mrb[0].mxu0
      %3584 = vmatprep.mubr.bf16.mxu0 0
      %3585 = vmatmul.mubr.bf16.gmra.mrb[0].mxu0 %v1504
      %v3586 = vpop.f32.mrb[0].mxu0
      %v3587 = vadd.f32 %v3423, %v3586
      %v3588 = vpop.f32.mrb[0].mxu0
      %v3589 = vpop.f32.mrb[0].mxu0
      %v3590 = vadd.f32 %v3426, %v3589
      %v3591 = vpop.f32.mrb[0].mxu0
      %3592 = vmatprep.mubr.bf16.mxu0 0
      %3593 = vmatmul.mubr.bf16.gmra.mrb[0].mxu0 %v1507
      %v3594 = vpop.f32.mrb[0].mxu0
      %v3595 = vadd.f32 %v3431, %v3594
      %v3596 = vpop.f32.mrb[0].mxu0
      %v3597 = vpop.f32.mrb[0].mxu0
      %v3598 = vadd.f32 %v3434, %v3597
      %v3599 = vpop.f32.mrb[0].mxu0
      %3600 = vmatprep.mubr.bf16.mxu0 0
      %3601 = vmatmul.mubr.bf16.gmra.mrb[0].mxu0 %v1510
      %v3602 = vpop.f32.mrb[0].mxu0
      %v3603 = vadd.f32 %v3439, %v3602
      %v3604 = vpop.f32.mrb[0].mxu0
      %v3605 = vpop.f32.mrb[0].mxu0
      %v3606 = vadd.f32 %v3442, %v3605
      %v3607 = vpop.f32.mrb[0].mxu0
      %3608 = vmatprep.mubr.bf16.mxu0 0
      %3609 = vmatmul.mubr.bf16.gmra.mrb[0].mxu0 %v1513
      %v3610 = vpop.f32.mrb[0].mxu0
      %v3611 = vadd.f32 %v3447, %v3610
      %v3612 = vpop.f32.mrb[0].mxu0
      %v3613 = vpop.f32.mrb[0].mxu0
      %v3614 = vadd.f32 %v3450, %v3613
      %v3615 = vpop.f32.mrb[0].mxu0
      %3616 = vmatprep.mubr.bf16.mxu0 0
      %3617 = vmatmul.mubr.bf16.gmra.mrb[0].mxu0 %v1516
      %v3618 = vpop.f32.mrb[0].mxu0
      %v3619 = vadd.f32 %v3455, %v3618
      %v3620 = vpop.f32.mrb[0].mxu0
      %v3621 = vpop.f32.mrb[0].mxu0
      %v3622 = vadd.f32 %v3458, %v3621
      %v3623 = vpop.f32.mrb[0].mxu0
      %3624 = vmatprep.mubr.bf16.mxu0 0
      %3625 = vmatmul.mubr.bf16.gmra.mrb[0].mxu0 %v1519
      %v3626 = vpop.f32.mrb[0].mxu0
      %v3627 = vadd.f32 %v3463, %v3626
      %v3628 = vpop.f32.mrb[0].mxu0
      %v3629 = vpop.f32.mrb[0].mxu0
      %v3630 = vadd.f32 %v3466, %v3629
      %v3631 = vpop.f32.mrb[0].mxu0
      %3632 = vdwg.mxu0
      %v3633 = vmul.f32 %v1088, %v2843
      %v3634 = vmul.f32 %v1089, %v2846
      %v3635 = vmul.f32 %v1090, %v2851
      %v3636 = vmul.f32 %v1091, %v2854
      %v3637 = vmul.f32 %v1092, %v2859
      %v3638 = vmul.f32 %v1093, %v2862
      %v3639 = vmul.f32 %v1094, %v2867
      %v3640 = vmul.f32 %v1095, %v2870
      %v3641 = vmul.f32 %v1096, %v2875
      %v3642 = vmul.f32 %v1097, %v2878
      %v3643 = vmul.f32 %v1098, %v2883
      %v3644 = vmul.f32 %v1099, %v2886
      %v3645 = vmul.f32 %v1100, %v2891
      %v3646 = vmul.f32 %v1101, %v2894
      %v3647 = vmul.f32 %v1102, %v2899
      %v3648 = vmul.f32 %v1103, %v2902
      %v3649 = vmul.f32 %v1104, %v2907
      %v3650 = vmul.f32 %v1105, %v2910
      %v3651 = vmul.f32 %v1106, %v2915
      %v3652 = vmul.f32 %v1107, %v2918
      %v3653 = vmul.f32 %v1108, %v2923
      %v3654 = vmul.f32 %v1109, %v2926
      %v3655 = vmul.f32 %v1110, %v2931
      %v3656 = vmul.f32 %v1111, %v2934
      %v3657 = vmul.f32 %v1112, %v2939
      %v3658 = vmul.f32 %v1113, %v2942
      %v3659 = vmul.f32 %v1114, %v2947
      %v3660 = vmul.f32 %v1115, %v2950
      %v3661 = vmul.f32 %v1116, %v2955
      %v3662 = vmul.f32 %v1117, %v2958
      %v3663 = vmul.f32 %v1118, %v2963
      %v3664 = vmul.f32 %v1119, %v2966
      %v3665 = vrot.slane %v3633, 7
      %v3666 = vrot.slane %v3634, 7
      %v3667 = vrot.slane %v3635, 7
      %v3668 = vrot.slane %v3636, 7
      %v3669 = vrot.slane %v3637, 7
      %v3670 = vrot.slane %v3638, 7
      %v3671 = vrot.slane %v3639, 7
      %v3672 = vrot.slane %v3640, 7
      %v3673 = vrot.slane %v3641, 7
      %v3674 = vrot.slane %v3642, 7
      %v3675 = vrot.slane %v3643, 7
      %v3676 = vrot.slane %v3644, 7
      %v3677 = vrot.slane %v3645, 7
      %v3678 = vrot.slane %v3646, 7
      %v3679 = vrot.slane %v3647, 7
      %v3680 = vrot.slane %v3648, 7
      %v3681 = vrot.slane %v3649, 7
      %v3682 = vrot.slane %v3650, 7
      %v3683 = vrot.slane %v3651, 7
      %v3684 = vrot.slane %v3652, 7
      %v3685 = vrot.slane %v3653, 7
      %v3686 = vrot.slane %v3654, 7
      %v3687 = vrot.slane %v3655, 7
      %v3688 = vrot.slane %v3656, 7
      %v3689 = vrot.slane %v3657, 7
      %v3690 = vrot.slane %v3658, 7
      %v3691 = vrot.slane %v3659, 7
      %v3692 = vrot.slane %v3660, 7
      %v3693 = vrot.slane %v3661, 7
      %v3694 = vrot.slane %v3662, 7
      %v3695 = vrot.slane %v3663, 7
      %v3696 = vrot.slane %v3664, 7
      %v3697 = vsel %vm2413, %v3695, %v3696
      %v3698 = vsel %vm2413, %v3694, %v3695
      %v3699 = vsel %vm2413, %v3693, %v3694
      %v3700 = vsel %vm2413, %v3692, %v3693
      %v3701 = vsel %vm2413, %v3691, %v3692
      %v3702 = vsel %vm2413, %v3690, %v3691
      %v3703 = vsel %vm2413, %v3689, %v3690
      %v3704 = vsel %vm2413, %v3688, %v3689
      %v3705 = vsel %vm2413, %v3687, %v3688
      %v3706 = vsel %vm2413, %v3686, %v3687
      %v3707 = vsel %vm2413, %v3685, %v3686
      %v3708 = vsel %vm2413, %v3684, %v3685
      %v3709 = vsel %vm2413, %v3683, %v3684
      %v3710 = vsel %vm2413, %v3682, %v3683
      %v3711 = vsel %vm2413, %v3681, %v3682
      %v3712 = vsel %vm2413, %v3680, %v3681
      %v3713 = vsel %vm2413, %v3679, %v3680
      %v3714 = vsel %vm2413, %v3678, %v3679
      %v3715 = vsel %vm2413, %v3677, %v3678
      %v3716 = vsel %vm2413, %v3676, %v3677
      %v3717 = vsel %vm2413, %v3675, %v3676
      %v3718 = vsel %vm2413, %v3674, %v3675
      %v3719 = vsel %vm2413, %v3673, %v3674
      %v3720 = vsel %vm2413, %v3672, %v3673
      %v3721 = vsel %vm2413, %v3671, %v3672
      %v3722 = vsel %vm2413, %v3670, %v3671
      %v3723 = vsel %vm2413, %v3669, %v3670
      %v3724 = vsel %vm2413, %v3668, %v3669
      %v3725 = vsel %vm2413, %v3667, %v3668
      %v3726 = vsel %vm2413, %v3666, %v3667
      %v3727 = vsel %vm2413, %v3665, %v3666
      %v3728 = vsel %vm2413, %v3696, %v3665
      %v3729 = vadd.f32 %v3175, %v3728
      %v3730 = vadd.f32 %v3178, %v3727
      %v3731 = vadd.f32 %v3183, %v3726
      %v3732 = vadd.f32 %v3186, %v3725
      %v3733 = vadd.f32 %v3191, %v3724
      %v3734 = vadd.f32 %v3194, %v3723
      %v3735 = vadd.f32 %v3199, %v3722
      %v3736 = vadd.f32 %v3202, %v3721
      %v3737 = vadd.f32 %v3207, %v3720
      %v3738 = vadd.f32 %v3210, %v3719
      %v3739 = vadd.f32 %v3215, %v3718
      %v3740 = vadd.f32 %v3218, %v3717
      %v3741 = vadd.f32 %v3223, %v3716
      %v3742 = vadd.f32 %v3226, %v3715
      %v3743 = vadd.f32 %v3231, %v3714
      %v3744 = vadd.f32 %v3234, %v3713
      %v3745 = vadd.f32 %v3239, %v3712
      %v3746 = vadd.f32 %v3242, %v3711
      %v3747 = vadd.f32 %v3247, %v3710
      %v3748 = vadd.f32 %v3250, %v3709
      %v3749 = vadd.f32 %v3255, %v3708
      %v3750 = vadd.f32 %v3258, %v3707
      %v3751 = vadd.f32 %v3263, %v3706
      %v3752 = vadd.f32 %v3266, %v3705
      %v3753 = vadd.f32 %v3271, %v3704
      %v3754 = vadd.f32 %v3274, %v3703
      %v3755 = vadd.f32 %v3279, %v3702
      %v3756 = vadd.f32 %v3282, %v3701
      %v3757 = vadd.f32 %v3287, %v3700
      %v3758 = vadd.f32 %v3290, %v3699
      %v3759 = vadd.f32 %v3295, %v3698
      %v3760 = vadd.f32 %v3298, %v3697
      %v3761 = vmul.f32 %v1184, %v3507
      %v3762 = vmul.f32 %v1185, %v3510
      %v3763 = vmul.f32 %v1186, %v3515
      %v3764 = vmul.f32 %v1187, %v3518
      %v3765 = vmul.f32 %v1188, %v3523
      %v3766 = vmul.f32 %v1189, %v3526
      %v3767 = vmul.f32 %v1190, %v3531
      %v3768 = vmul.f32 %v1191, %v3534
      %v3769 = vmul.f32 %v1192, %v3539
      %v3770 = vmul.f32 %v1193, %v3542
      %v3771 = vmul.f32 %v1194, %v3547
      %v3772 = vmul.f32 %v1195, %v3550
      %v3773 = vmul.f32 %v1196, %v3555
      %v3774 = vmul.f32 %v1197, %v3558
      %v3775 = vmul.f32 %v1198, %v3563
      %v3776 = vmul.f32 %v1199, %v3566
      %v3777 = vmul.f32 %v1200, %v3571
      %v3778 = vmul.f32 %v1201, %v3574
      %v3779 = vmul.f32 %v1202, %v3579
      %v3780 = vmul.f32 %v1203, %v3582
      %v3781 = vmul.f32 %v1204, %v3587
      %v3782 = vmul.f32 %v1205, %v3590
      %v3783 = vmul.f32 %v1206, %v3595
      %v3784 = vmul.f32 %v1207, %v3598
      %v3785 = vmul.f32 %v1208, %v3603
      %v3786 = vmul.f32 %v1209, %v3606
      %v3787 = vmul.f32 %v1210, %v3611
      %v3788 = vmul.f32 %v1211, %v3614
      %v3789 = vmul.f32 %v1212, %v3619
      %v3790 = vmul.f32 %v1213, %v3622
      %v3791 = vmul.f32 %v1214, %v3627
      %v3792 = vmul.f32 %v1215, %v3630
      %v3793 = vrot.slane %v3761, 1
      %v3794 = vrot.slane %v3762, 1
      %v3795 = vrot.slane %v3763, 1
      %v3796 = vrot.slane %v3764, 1
      %v3797 = vrot.slane %v3765, 1
      %v3798 = vrot.slane %v3766, 1
      %v3799 = vrot.slane %v3767, 1
      %v3800 = vrot.slane %v3768, 1
      %v3801 = vrot.slane %v3769, 1
      %v3802 = vrot.slane %v3770, 1
      %v3803 = vrot.slane %v3771, 1
      %v3804 = vrot.slane %v3772, 1
      %v3805 = vrot.slane %v3773, 1
      %v3806 = vrot.slane %v3774, 1
      %v3807 = vrot.slane %v3775, 1
      %v3808 = vrot.slane %v3776, 1
      %v3809 = vrot.slane %v3777, 1
      %v3810 = vrot.slane %v3778, 1
      %v3811 = vrot.slane %v3779, 1
      %v3812 = vrot.slane %v3780, 1
      %v3813 = vrot.slane %v3781, 1
      %v3814 = vrot.slane %v3782, 1
      %v3815 = vrot.slane %v3783, 1
      %v3816 = vrot.slane %v3784, 1
      %v3817 = vrot.slane %v3785, 1
      %v3818 = vrot.slane %v3786, 1
      %v3819 = vrot.slane %v3787, 1
      %v3820 = vrot.slane %v3788, 1
      %v3821 = vrot.slane %v3789, 1
      %v3822 = vrot.slane %v3790, 1
      %v3823 = vrot.slane %v3791, 1
      %v3824 = vrot.slane %v3792, 1
      %v3825 = vsel %vm2542, %v3823, %v3824
      %v3826 = vsel %vm2542, %v3822, %v3823
      %v3827 = vsel %vm2542, %v3821, %v3822
      %v3828 = vsel %vm2542, %v3820, %v3821
      %v3829 = vsel %vm2542, %v3819, %v3820
      %v3830 = vsel %vm2542, %v3818, %v3819
      %v3831 = vsel %vm2542, %v3817, %v3818
      %v3832 = vsel %vm2542, %v3816, %v3817
      %v3833 = vsel %vm2542, %v3815, %v3816
      %v3834 = vsel %vm2542, %v3814, %v3815
      %v3835 = vsel %vm2542, %v3813, %v3814
      %v3836 = vsel %vm2542, %v3812, %v3813
      %v3837 = vsel %vm2542, %v3811, %v3812
      %v3838 = vsel %vm2542, %v3810, %v3811
      %v3839 = vsel %vm2542, %v3809, %v3810
      %v3840 = vsel %vm2542, %v3808, %v3809
      %v3841 = vsel %vm2542, %v3807, %v3808
      %v3842 = vsel %vm2542, %v3806, %v3807
      %v3843 = vsel %vm2542, %v3805, %v3806
      %v3844 = vsel %vm2542, %v3804, %v3805
      %v3845 = vsel %vm2542, %v3803, %v3804
      %v3846 = vsel %vm2542, %v3802, %v3803
      %v3847 = vsel %vm2542, %v3801, %v3802
      %v3848 = vsel %vm2542, %v3800, %v3801
      %v3849 = vsel %vm2542, %v3799, %v3800
      %v3850 = vsel %vm2542, %v3798, %v3799
      %v3851 = vsel %vm2542, %v3797, %v3798
      %v3852 = vsel %vm2542, %v3796, %v3797
      %v3853 = vsel %vm2542, %v3795, %v3796
      %v3854 = vsel %vm2542, %v3794, %v3795
      %v3855 = vsel %vm2542, %v3793, %v3794
      %v3856 = vsel %vm2542, %v3824, %v3793
      %v3857 = vadd.f32 %v3729, %v3855
      %v3858 = vadd.f32 %v3730, %v3854
      %v3859 = vadd.f32 %v3731, %v3853
      %v3860 = vadd.f32 %v3732, %v3852
      %v3861 = vadd.f32 %v3733, %v3851
      %v3862 = vadd.f32 %v3734, %v3850
      %v3863 = vadd.f32 %v3735, %v3849
      %v3864 = vadd.f32 %v3736, %v3848
      %v3865 = vadd.f32 %v3737, %v3847
      %v3866 = vadd.f32 %v3738, %v3846
      %v3867 = vadd.f32 %v3739, %v3845
      %v3868 = vadd.f32 %v3740, %v3844
      %v3869 = vadd.f32 %v3741, %v3843
      %v3870 = vadd.f32 %v3742, %v3842
      %v3871 = vadd.f32 %v3743, %v3841
      %v3872 = vadd.f32 %v3744, %v3840
      %v3873 = vadd.f32 %v3745, %v3839
      %v3874 = vadd.f32 %v3746, %v3838
      %v3875 = vadd.f32 %v3747, %v3837
      %v3876 = vadd.f32 %v3748, %v3836
      %v3877 = vadd.f32 %v3749, %v3835
      %v3878 = vadd.f32 %v3750, %v3834
      %v3879 = vadd.f32 %v3751, %v3833
      %v3880 = vadd.f32 %v3752, %v3832
      %v3881 = vadd.f32 %v3753, %v3831
      %v3882 = vadd.f32 %v3754, %v3830
      %v3883 = vadd.f32 %v3755, %v3829
      %v3884 = vadd.f32 %v3756, %v3828
      %v3885 = vadd.f32 %v3757, %v3827
      %v3886 = vadd.f32 %v3758, %v3826
      %v3887 = vadd.f32 %v3759, %v3825
      %v3888 = vadd.f32 %v3760, %v3856
      %v3889 = vld [vmem:[#allocation2 + $0x20] sm:$0xff]
      %v3890 = vld [vmem:[#allocation2 + $0x28] sm:$0xff]
      %v3891 = vld [vmem:[#allocation2 + $0x30] sm:$0xff]
      %v3892 = vld [vmem:[#allocation2 + $0x38] sm:$0xff]
      %v3893 = vld [vmem:[#allocation2 + $0x40] sm:$0xff]
      %v3894 = vld [vmem:[#allocation2 + $0x48] sm:$0xff]
      %v3895 = vld [vmem:[#allocation2 + $0x50] sm:$0xff]
      %v3896 = vld [vmem:[#allocation2 + $0x58] sm:$0xff]
      %v3897 = vld [vmem:[#allocation2 + $0x60] sm:$0xff]
      %v3898 = vld [vmem:[#allocation2 + $0x68] sm:$0xff]
      %v3899 = vld [vmem:[#allocation2 + $0x70] sm:$0xff]
      %v3900 = vld [vmem:[#allocation2 + $0x78] sm:$0xff]
      %v3901 = vld [vmem:[#allocation2 + $0x80] sm:$0xff]
      %v3902 = vld [vmem:[#allocation2 + $0x88] sm:$0xff]
      %v3903 = vld [vmem:[#allocation2 + $0x90] sm:$0xff]
      %v3904 = vld [vmem:[#allocation2 + $0x98] sm:$0xff]
      %v3905 = vld [vmem:[#allocation2 + $0xa0] sm:$0xff]
      %v3906 = vld [vmem:[#allocation2 + $0xa8] sm:$0xff]
      %v3907 = vld [vmem:[#allocation2 + $0xb0] sm:$0xff]
      %v3908 = vld [vmem:[#allocation2 + $0xb8] sm:$0xff]
      %v3909 = vld [vmem:[#allocation2 + $0xc0] sm:$0xff]
      %v3910 = vld [vmem:[#allocation2 + $0xc8] sm:$0xff]
      %v3911 = vld [vmem:[#allocation2 + $0xd0] sm:$0xff]
      %v3912 = vld [vmem:[#allocation2 + $0xd8] sm:$0xff]
      %v3913 = vld [vmem:[#allocation2 + $0xe0] sm:$0xff]
      %v3914 = vld [vmem:[#allocation2 + $0xe8] sm:$0xff]
      %v3915 = vld [vmem:[#allocation2 + $0xf0] sm:$0xff]
      %v3916 = vld [vmem:[#allocation2 + $0xf8] sm:$0xff]
      %v3917 = vld [vmem:[#allocation2 + $0x100] sm:$0xff]
      %v3918 = vld [vmem:[#allocation2 + $0x108] sm:$0xff]
      %v3919 = vld [vmem:[#allocation2 + $0x110] sm:$0xff]
      %v3920 = vld [vmem:[#allocation2 + $0x118] sm:$0xff]
      %v3921 = vadd.f32 %v3889, %v3857
      %v3922 = vadd.f32 %v3890, %v3858
      %v3923 = vadd.f32 %v3891, %v3859
      %v3924 = vadd.f32 %v3892, %v3860
      %v3925 = vadd.f32 %v3893, %v3861
      %v3926 = vadd.f32 %v3894, %v3862
      %v3927 = vadd.f32 %v3895, %v3863
      %v3928 = vadd.f32 %v3896, %v3864
      %v3929 = vadd.f32 %v3897, %v3865
      %v3930 = vadd.f32 %v3898, %v3866
      %v3931 = vadd.f32 %v3899, %v3867
      %v3932 = vadd.f32 %v3900, %v3868
      %v3933 = vadd.f32 %v3901, %v3869
      %v3934 = vadd.f32 %v3902, %v3870
      %v3935 = vadd.f32 %v3903, %v3871
      %v3936 = vadd.f32 %v3904, %v3872
      %v3937 = vadd.f32 %v3905, %v3873
      %v3938 = vadd.f32 %v3906, %v3874
      %v3939 = vadd.f32 %v3907, %v3875
      %v3940 = vadd.f32 %v3908, %v3876
      %v3941 = vadd.f32 %v3909, %v3877
      %v3942 = vadd.f32 %v3910, %v3878
      %v3943 = vadd.f32 %v3911, %v3879
      %v3944 = vadd.f32 %v3912, %v3880
      %v3945 = vadd.f32 %v3913, %v3881
      %v3946 = vadd.f32 %v3914, %v3882
      %v3947 = vadd.f32 %v3915, %v3883
      %v3948 = vadd.f32 %v3916, %v3884
      %v3949 = vadd.f32 %v3917, %v3885
      %v3950 = vadd.f32 %v3918, %v3886
      %v3951 = vadd.f32 %v3919, %v3887
      %v3952 = vadd.f32 %v3920, %v3888
      %3953 = vst.msk [vmem:[#allocation2 + $0x20] sm:$0xff] %vm344, %v3921
      %3954 = vst.msk [vmem:[#allocation2 + $0x28] sm:$0xff] %vm344, %v3922
      %3955 = vst.msk [vmem:[#allocation2 + $0x30] sm:$0xff] %vm344, %v3923
      %3956 = vst.msk [vmem:[#allocation2 + $0x38] sm:$0xff] %vm344, %v3924
      %3957 = vst.msk [vmem:[#allocation2 + $0x40] sm:$0xff] %vm344, %v3925
      %3958 = vst.msk [vmem:[#allocation2 + $0x48] sm:$0xff] %vm344, %v3926
      %3959 = vst.msk [vmem:[#allocation2 + $0x50] sm:$0xff] %vm344, %v3927
      %3960 = vst.msk [vmem:[#allocation2 + $0x58] sm:$0xff] %vm344, %v3928
      %3961 = vst.msk [vmem:[#allocation2 + $0x60] sm:$0xff] %vm344, %v3929
      %3962 = vst.msk [vmem:[#allocation2 + $0x68] sm:$0xff] %vm344, %v3930
      %3963 = vst.msk [vmem:[#allocation2 + $0x70] sm:$0xff] %vm344, %v3931
      %3964 = vst.msk [vmem:[#allocation2 + $0x78] sm:$0xff] %vm344, %v3932
      %3965 = vst.msk [vmem:[#allocation2 + $0x80] sm:$0xff] %vm344, %v3933
      %3966 = vst.msk [vmem:[#allocation2 + $0x88] sm:$0xff] %vm344, %v3934
      %3967 = vst.msk [vmem:[#allocation2 + $0x90] sm:$0xff] %vm344, %v3935
      %3968 = vst.msk [vmem:[#allocation2 + $0x98] sm:$0xff] %vm344, %v3936
      %3969 = vst.msk [vmem:[#allocation2 + $0xa0] sm:$0xff] %vm344, %v3937
      %3970 = vst.msk [vmem:[#allocation2 + $0xa8] sm:$0xff] %vm344, %v3938
      %3971 = vst.msk [vmem:[#allocation2 + $0xb0] sm:$0xff] %vm344, %v3939
      %3972 = vst.msk [vmem:[#allocation2 + $0xb8] sm:$0xff] %vm344, %v3940
      %3973 = vst.msk [vmem:[#allocation2 + $0xc0] sm:$0xff] %vm344, %v3941
      %3974 = vst.msk [vmem:[#allocation2 + $0xc8] sm:$0xff] %vm344, %v3942
      %3975 = vst.msk [vmem:[#allocation2 + $0xd0] sm:$0xff] %vm344, %v3943
      %3976 = vst.msk [vmem:[#allocation2 + $0xd8] sm:$0xff] %vm344, %v3944
      %3977 = vst.msk [vmem:[#allocation2 + $0xe0] sm:$0xff] %vm344, %v3945
      %3978 = vst.msk [vmem:[#allocation2 + $0xe8] sm:$0xff] %vm344, %v3946
      %3979 = vst.msk [vmem:[#allocation2 + $0xf0] sm:$0xff] %vm344, %v3947
      %3980 = vst.msk [vmem:[#allocation2 + $0xf8] sm:$0xff] %vm344, %v3948
      %3981 = vst.msk [vmem:[#allocation2 + $0x100] sm:$0xff] %vm344, %v3949
      %3982 = vst.msk [vmem:[#allocation2 + $0x108] sm:$0xff] %vm344, %v3950
      %3983 = vst.msk [vmem:[#allocation2 + $0x110] sm:$0xff] %vm344, %v3951
      %3984 = vst.msk [vmem:[#allocation2 + $0x118] sm:$0xff] %vm344, %v3952
      %s3985 = scalar_lea.vmem %s3, 24
      %v3986 = vld [vmem:[%s3985] sm:$0xf]
      %s3987 = scalar_lea.vmem %s4, 12
      %v3988 = vld [vmem:[%s3987] sm:$0x3]
      %v3990 = vsel %vm1269, %v3988, 0
      %3992 = vmatprep.subr.bf16.mxu0 0
      %3993 = vmatpush1.bf16.msra.mxu0 %v3990
      %3994 = vmatprep.subr.bf16.mxu0 0
      %3995 = vmatpush1.bf16.msra.mxu0 0
      %3996 = vmatprep.subr.bf16.mxu0 0
      %3997 = vmatpush1.bf16.msra.mxu0 0
      %3998 = vmatprep.subr.bf16.mxu0 0
      %3999 = vmatpush1.bf16.msra.mxu0 0
      %4000 = vmatprep.subr.bf16.mxu0 0
      %4001 = vmatpush1.bf16.msra.mxu0 0
      %4002 = vmatprep.subr.bf16.mxu0 0
      %4003 = vmatpush1.bf16.msra.mxu0 0
      %4004 = vmatprep.subr.bf16.mxu0 0
      %4005 = vmatpush1.bf16.msra.mxu0 0
      %4006 = vmatprep.subr.bf16.mxu0 0
      %4007 = vmatpush1.bf16.msra.mxu0 0
      %4008 = vmatprep.subr.bf16.mxu0 0
      %4009 = vmatpush1.bf16.msra.mxu0 0
      %4010 = vmatprep.subr.bf16.mxu0 0
      %4011 = vmatpush1.bf16.msra.mxu0 0
      %4012 = vmatprep.subr.bf16.mxu0 0
      %4013 = vmatpush1.bf16.msra.mxu0 0
      %4014 = vmatprep.subr.bf16.mxu0 0
      %4015 = vmatpush1.bf16.msra.mxu0 0
      %4016 = vmatprep.subr.bf16.mxu0 0
      %4017 = vmatpush1.bf16.msra.mxu0 0
      %4018 = vmatprep.subr.bf16.mxu0 0
      %4019 = vmatpush1.bf16.msra.mxu0 0
      %4020 = vmatprep.subr.bf16.mxu0 0
      %4021 = vmatpush1.bf16.msra.mxu0 0
      %4022 = vmatprep.subr.bf16.mxu0 0
      %4023 = vmatpush1.bf16.msra.mxu0 0
      %4024 = vmatprep.mubr.bf16.mxu0 0
      %4025 = vmatmul.mubr.bf16.gmra.mrb[0].mxu0 %v1222
      %v4026 = vpop.f32.mrb[0].mxu0
      %v4027 = vadd.f32 0.0, %v4026
      %v4028 = vpop.f32.mrb[0].mxu0
      %v4029 = vpop.f32.mrb[0].mxu0
      %v4030 = vadd.f32 0.0, %v4029
      %v4031 = vpop.f32.mrb[0].mxu0
      %4032 = vmatprep.mubr.bf16.mxu0 0
      %4033 = vmatmul.mubr.bf16.gmra.mrb[0].mxu0 %v1225
      %v4034 = vpop.f32.mrb[0].mxu0
      %v4035 = vadd.f32 0.0, %v4034
      %v4036 = vpop.f32.mrb[0].mxu0
      %v4037 = vpop.f32.mrb[0].mxu0
      %v4038 = vadd.f32 0.0, %v4037
      %v4039 = vpop.f32.mrb[0].mxu0
      %4040 = vmatprep.mubr.bf16.mxu0 0
      %4041 = vmatmul.mubr.bf16.gmra.mrb[0].mxu0 %v1228
      %v4042 = vpop.f32.mrb[0].mxu0
      %v4043 = vadd.f32 0.0, %v4042
      %v4044 = vpop.f32.mrb[0].mxu0
      %v4045 = vpop.f32.mrb[0].mxu0
      %v4046 = vadd.f32 0.0, %v4045
      %v4047 = vpop.f32.mrb[0].mxu0
      %4048 = vmatprep.mubr.bf16.mxu0 0
      %4049 = vmatmul.mubr.bf16.gmra.mrb[0].mxu0 %v1231
      %v4050 = vpop.f32.mrb[0].mxu0
      %v4051 = vadd.f32 0.0, %v4050
      %v4052 = vpop.f32.mrb[0].mxu0
      %v4053 = vpop.f32.mrb[0].mxu0
      %v4054 = vadd.f32 0.0, %v4053
      %v4055 = vpop.f32.mrb[0].mxu0
      %4056 = vmatprep.mubr.bf16.mxu0 0
      %4057 = vmatmul.mubr.bf16.gmra.mrb[0].mxu0 %v1234
      %v4058 = vpop.f32.mrb[0].mxu0
      %v4059 = vadd.f32 0.0, %v4058
      %v4060 = vpop.f32.mrb[0].mxu0
      %v4061 = vpop.f32.mrb[0].mxu0
      %v4062 = vadd.f32 0.0, %v4061
      %v4063 = vpop.f32.mrb[0].mxu0
      %4064 = vmatprep.mubr.bf16.mxu0 0
      %4065 = vmatmul.mubr.bf16.gmra.mrb[0].mxu0 %v1237
      %v4066 = vpop.f32.mrb[0].mxu0
      %v4067 = vadd.f32 0.0, %v4066
      %v4068 = vpop.f32.mrb[0].mxu0
      %v4069 = vpop.f32.mrb[0].mxu0
      %v4070 = vadd.f32 0.0, %v4069
      %v4071 = vpop.f32.mrb[0].mxu0
      %4072 = vmatprep.mubr.bf16.mxu0 0
      %4073 = vmatmul.mubr.bf16.gmra.mrb[0].mxu0 %v1240
      %v4074 = vpop.f32.mrb[0].mxu0
      %v4075 = vadd.f32 0.0, %v4074
      %v4076 = vpop.f32.mrb[0].mxu0
      %v4077 = vpop.f32.mrb[0].mxu0
      %v4078 = vadd.f32 0.0, %v4077
      %v4079 = vpop.f32.mrb[0].mxu0
      %4080 = vmatprep.mubr.bf16.mxu0 0
      %4081 = vmatmul.mubr.bf16.gmra.mrb[0].mxu0 %v1243
      %v4082 = vpop.f32.mrb[0].mxu0
      %v4083 = vadd.f32 0.0, %v4082
      %v4084 = vpop.f32.mrb[0].mxu0
      %v4085 = vpop.f32.mrb[0].mxu0
      %v4086 = vadd.f32 0.0, %v4085
      %v4087 = vpop.f32.mrb[0].mxu0
      %4088 = vmatprep.mubr.bf16.mxu0 0
      %4089 = vmatmul.mubr.bf16.gmra.mrb[0].mxu0 %v1246
      %v4090 = vpop.f32.mrb[0].mxu0
      %v4091 = vadd.f32 0.0, %v4090
      %v4092 = vpop.f32.mrb[0].mxu0
      %v4093 = vpop.f32.mrb[0].mxu0
      %v4094 = vadd.f32 0.0, %v4093
      %v4095 = vpop.f32.mrb[0].mxu0
      %4096 = vmatprep.mubr.bf16.mxu0 0
      %4097 = vmatmul.mubr.bf16.gmra.mrb[0].mxu0 %v1249
      %v4098 = vpop.f32.mrb[0].mxu0
      %v4099 = vadd.f32 0.0, %v4098
      %v4100 = vpop.f32.mrb[0].mxu0
      %v4101 = vpop.f32.mrb[0].mxu0
      %v4102 = vadd.f32 0.0, %v4101
      %v4103 = vpop.f32.mrb[0].mxu0
      %4104 = vmatprep.mubr.bf16.mxu0 0
      %4105 = vmatmul.mubr.bf16.gmra.mrb[0].mxu0 %v1252
      %v4106 = vpop.f32.mrb[0].mxu0
      %v4107 = vadd.f32 0.0, %v4106
      %v4108 = vpop.f32.mrb[0].mxu0
      %v4109 = vpop.f32.mrb[0].mxu0
      %v4110 = vadd.f32 0.0, %v4109
      %v4111 = vpop.f32.mrb[0].mxu0
      %4112 = vmatprep.mubr.bf16.mxu0 0
      %4113 = vmatmul.mubr.bf16.gmra.mrb[0].mxu0 %v1255
      %v4114 = vpop.f32.mrb[0].mxu0
      %v4115 = vadd.f32 0.0, %v4114
      %v4116 = vpop.f32.mrb[0].mxu0
      %v4117 = vpop.f32.mrb[0].mxu0
      %v4118 = vadd.f32 0.0, %v4117
      %v4119 = vpop.f32.mrb[0].mxu0
      %4120 = vmatprep.mubr.bf16.mxu0 0
      %4121 = vmatmul.mubr.bf16.gmra.mrb[0].mxu0 %v1258
      %v4122 = vpop.f32.mrb[0].mxu0
      %v4123 = vadd.f32 0.0, %v4122
      %v4124 = vpop.f32.mrb[0].mxu0
      %v4125 = vpop.f32.mrb[0].mxu0
      %v4126 = vadd.f32 0.0, %v4125
      %v4127 = vpop.f32.mrb[0].mxu0
      %4128 = vmatprep.mubr.bf16.mxu0 0
      %4129 = vmatmul.mubr.bf16.gmra.mrb[0].mxu0 %v1261
      %v4130 = vpop.f32.mrb[0].mxu0
      %v4131 = vadd.f32 0.0, %v4130
      %v4132 = vpop.f32.mrb[0].mxu0
      %v4133 = vpop.f32.mrb[0].mxu0
      %v4134 = vadd.f32 0.0, %v4133
      %v4135 = vpop.f32.mrb[0].mxu0
      %4136 = vmatprep.mubr.bf16.mxu0 0
      %4137 = vmatmul.mubr.bf16.gmra.mrb[0].mxu0 %v1264
      %v4138 = vpop.f32.mrb[0].mxu0
      %v4139 = vadd.f32 0.0, %v4138
      %v4140 = vpop.f32.mrb[0].mxu0
      %v4141 = vpop.f32.mrb[0].mxu0
      %v4142 = vadd.f32 0.0, %v4141
      %v4143 = vpop.f32.mrb[0].mxu0
      %4144 = vmatprep.mubr.bf16.mxu0 0
      %4145 = vmatmul.mubr.bf16.gmra.mrb[0].mxu0 %v1267
      %v4146 = vpop.f32.mrb[0].mxu0
      %v4147 = vadd.f32 0.0, %v4146
      %v4148 = vpop.f32.mrb[0].mxu0
      %v4149 = vpop.f32.mrb[0].mxu0
      %v4150 = vadd.f32 0.0, %v4149
      %v4151 = vpop.f32.mrb[0].mxu0
      %4152 = vdwg.mxu0
      %v4154 = vsel %vm393, %v3986, 0
      %4156 = vmatprep.subr.bf16.mxu0 0
      %4157 = vmatpush1.bf16.msra.mxu0 %v4154
      %4158 = vmatprep.subr.bf16.mxu0 0
      %4159 = vmatpush1.bf16.msra.mxu0 0
      %4160 = vmatprep.subr.bf16.mxu0 0
      %4161 = vmatpush1.bf16.msra.mxu0 0
      %4162 = vmatprep.subr.bf16.mxu0 0
      %4163 = vmatpush1.bf16.msra.mxu0 0
      %4164 = vmatprep.subr.bf16.mxu0 0
      %4165 = vmatpush1.bf16.msra.mxu0 0
      %4166 = vmatprep.subr.bf16.mxu0 0
      %4167 = vmatpush1.bf16.msra.mxu0 0
      %4168 = vmatprep.subr.bf16.mxu0 0
      %4169 = vmatpush1.bf16.msra.mxu0 0
      %4170 = vmatprep.subr.bf16.mxu0 0
      %4171 = vmatpush1.bf16.msra.mxu0 0
      %4172 = vmatprep.subr.bf16.mxu0 0
      %4173 = vmatpush1.bf16.msra.mxu0 0
      %4174 = vmatprep.subr.bf16.mxu0 0
      %4175 = vmatpush1.bf16.msra.mxu0 0
      %4176 = vmatprep.subr.bf16.mxu0 0
      %4177 = vmatpush1.bf16.msra.mxu0 0
      %4178 = vmatprep.subr.bf16.mxu0 0
      %4179 = vmatpush1.bf16.msra.mxu0 0
      %4180 = vmatprep.subr.bf16.mxu0 0
      %4181 = vmatpush1.bf16.msra.mxu0 0
      %4182 = vmatprep.subr.bf16.mxu0 0
      %4183 = vmatpush1.bf16.msra.mxu0 0
      %4184 = vmatprep.subr.bf16.mxu0 0
      %4185 = vmatpush1.bf16.msra.mxu0 0
      %4186 = vmatprep.subr.bf16.mxu0 0
      %4187 = vmatpush1.bf16.msra.mxu0 0
      %4188 = vmatprep.mubr.bf16.mxu0 0
      %4189 = vmatmul.mubr.bf16.gmra.mrb[0].mxu0 %v1474
      %v4190 = vpop.f32.mrb[0].mxu0
      %v4191 = vadd.f32 %v4027, %v4190
      %v4192 = vpop.f32.mrb[0].mxu0
      %v4193 = vpop.f32.mrb[0].mxu0
      %v4194 = vadd.f32 %v4030, %v4193
      %v4195 = vpop.f32.mrb[0].mxu0
      %4196 = vmatprep.mubr.bf16.mxu0 0
      %4197 = vmatmul.mubr.bf16.gmra.mrb[0].mxu0 %v1477
      %v4198 = vpop.f32.mrb[0].mxu0
      %v4199 = vadd.f32 %v4035, %v4198
      %v4200 = vpop.f32.mrb[0].mxu0
      %v4201 = vpop.f32.mrb[0].mxu0
      %v4202 = vadd.f32 %v4038, %v4201
      %v4203 = vpop.f32.mrb[0].mxu0
      %4204 = vmatprep.mubr.bf16.mxu0 0
      %4205 = vmatmul.mubr.bf16.gmra.mrb[0].mxu0 %v1480
      %v4206 = vpop.f32.mrb[0].mxu0
      %v4207 = vadd.f32 %v4043, %v4206
      %v4208 = vpop.f32.mrb[0].mxu0
      %v4209 = vpop.f32.mrb[0].mxu0
      %v4210 = vadd.f32 %v4046, %v4209
      %v4211 = vpop.f32.mrb[0].mxu0
      %4212 = vmatprep.mubr.bf16.mxu0 0
      %4213 = vmatmul.mubr.bf16.gmra.mrb[0].mxu0 %v1483
      %v4214 = vpop.f32.mrb[0].mxu0
      %v4215 = vadd.f32 %v4051, %v4214
      %v4216 = vpop.f32.mrb[0].mxu0
      %v4217 = vpop.f32.mrb[0].mxu0
      %v4218 = vadd.f32 %v4054, %v4217
      %v4219 = vpop.f32.mrb[0].mxu0
      %4220 = vmatprep.mubr.bf16.mxu0 0
      %4221 = vmatmul.mubr.bf16.gmra.mrb[0].mxu0 %v1486
      %v4222 = vpop.f32.mrb[0].mxu0
      %v4223 = vadd.f32 %v4059, %v4222
      %v4224 = vpop.f32.mrb[0].mxu0
      %v4225 = vpop.f32.mrb[0].mxu0
      %v4226 = vadd.f32 %v4062, %v4225
      %v4227 = vpop.f32.mrb[0].mxu0
      %4228 = vmatprep.mubr.bf16.mxu0 0
      %4229 = vmatmul.mubr.bf16.gmra.mrb[0].mxu0 %v1489
      %v4230 = vpop.f32.mrb[0].mxu0
      %v4231 = vadd.f32 %v4067, %v4230
      %v4232 = vpop.f32.mrb[0].mxu0
      %v4233 = vpop.f32.mrb[0].mxu0
      %v4234 = vadd.f32 %v4070, %v4233
      %v4235 = vpop.f32.mrb[0].mxu0
      %4236 = vmatprep.mubr.bf16.mxu0 0
      %4237 = vmatmul.mubr.bf16.gmra.mrb[0].mxu0 %v1492
      %v4238 = vpop.f32.mrb[0].mxu0
      %v4239 = vadd.f32 %v4075, %v4238
      %v4240 = vpop.f32.mrb[0].mxu0
      %v4241 = vpop.f32.mrb[0].mxu0
      %v4242 = vadd.f32 %v4078, %v4241
      %v4243 = vpop.f32.mrb[0].mxu0
      %4244 = vmatprep.mubr.bf16.mxu0 0
      %4245 = vmatmul.mubr.bf16.gmra.mrb[0].mxu0 %v1495
      %v4246 = vpop.f32.mrb[0].mxu0
      %v4247 = vadd.f32 %v4083, %v4246
      %v4248 = vpop.f32.mrb[0].mxu0
      %v4249 = vpop.f32.mrb[0].mxu0
      %v4250 = vadd.f32 %v4086, %v4249
      %v4251 = vpop.f32.mrb[0].mxu0
      %4252 = vmatprep.mubr.bf16.mxu0 0
      %4253 = vmatmul.mubr.bf16.gmra.mrb[0].mxu0 %v1498
      %v4254 = vpop.f32.mrb[0].mxu0
      %v4255 = vadd.f32 %v4091, %v4254
      %v4256 = vpop.f32.mrb[0].mxu0
      %v4257 = vpop.f32.mrb[0].mxu0
      %v4258 = vadd.f32 %v4094, %v4257
      %v4259 = vpop.f32.mrb[0].mxu0
      %4260 = vmatprep.mubr.bf16.mxu0 0
      %4261 = vmatmul.mubr.bf16.gmra.mrb[0].mxu0 %v1501
      %v4262 = vpop.f32.mrb[0].mxu0
      %v4263 = vadd.f32 %v4099, %v4262
      %v4264 = vpop.f32.mrb[0].mxu0
      %v4265 = vpop.f32.mrb[0].mxu0
      %v4266 = vadd.f32 %v4102, %v4265
      %v4267 = vpop.f32.mrb[0].mxu0
      %4268 = vmatprep.mubr.bf16.mxu0 0
      %4269 = vmatmul.mubr.bf16.gmra.mrb[0].mxu0 %v1504
      %v4270 = vpop.f32.mrb[0].mxu0
      %v4271 = vadd.f32 %v4107, %v4270
      %v4272 = vpop.f32.mrb[0].mxu0
      %v4273 = vpop.f32.mrb[0].mxu0
      %v4274 = vadd.f32 %v4110, %v4273
      %v4275 = vpop.f32.mrb[0].mxu0
      %4276 = vmatprep.mubr.bf16.mxu0 0
      %4277 = vmatmul.mubr.bf16.gmra.mrb[0].mxu0 %v1507
      %v4278 = vpop.f32.mrb[0].mxu0
      %v4279 = vadd.f32 %v4115, %v4278
      %v4280 = vpop.f32.mrb[0].mxu0
      %v4281 = vpop.f32.mrb[0].mxu0
      %v4282 = vadd.f32 %v4118, %v4281
      %v4283 = vpop.f32.mrb[0].mxu0
      %4284 = vmatprep.mubr.bf16.mxu0 0
      %4285 = vmatmul.mubr.bf16.gmra.mrb[0].mxu0 %v1510
      %v4286 = vpop.f32.mrb[0].mxu0
      %v4287 = vadd.f32 %v4123, %v4286
      %v4288 = vpop.f32.mrb[0].mxu0
      %v4289 = vpop.f32.mrb[0].mxu0
      %v4290 = vadd.f32 %v4126, %v4289
      %v4291 = vpop.f32.mrb[0].mxu0
      %4292 = vmatprep.mubr.bf16.mxu0 0
      %4293 = vmatmul.mubr.bf16.gmra.mrb[0].mxu0 %v1513
      %v4294 = vpop.f32.mrb[0].mxu0
      %v4295 = vadd.f32 %v4131, %v4294
      %v4296 = vpop.f32.mrb[0].mxu0
      %v4297 = vpop.f32.mrb[0].mxu0
      %v4298 = vadd.f32 %v4134, %v4297
      %v4299 = vpop.f32.mrb[0].mxu0
      %4300 = vmatprep.mubr.bf16.mxu0 0
      %4301 = vmatmul.mubr.bf16.gmra.mrb[0].mxu0 %v1516
      %v4302 = vpop.f32.mrb[0].mxu0
      %v4303 = vadd.f32 %v4139, %v4302
      %v4304 = vpop.f32.mrb[0].mxu0
      %v4305 = vpop.f32.mrb[0].mxu0
      %v4306 = vadd.f32 %v4142, %v4305
      %v4307 = vpop.f32.mrb[0].mxu0
      %4308 = vmatprep.mubr.bf16.mxu0 0
      %4309 = vmatmul.mubr.bf16.gmra.mrb[0].mxu0 %v1519
      %v4310 = vpop.f32.mrb[0].mxu0
      %v4311 = vadd.f32 %v4147, %v4310
      %v4312 = vpop.f32.mrb[0].mxu0
      %v4313 = vpop.f32.mrb[0].mxu0
      %v4314 = vadd.f32 %v4150, %v4313
      %v4315 = vpop.f32.mrb[0].mxu0
      %4316 = vdwg.mxu0
      %s4317 = scalar_lea.vmem %s3, 28
      %v4318 = vld [vmem:[%s4317] sm:$0xf]
      %s4319 = scalar_lea.vmem %s4, 14
      %v4320 = vld [vmem:[%s4319] sm:$0x3]
      %v4322 = vsel %vm1269, %v4320, 0
      %4324 = vmatprep.subr.bf16.mxu0 0
      %4325 = vmatpush1.bf16.msra.mxu0 %v4322
      %4326 = vmatprep.subr.bf16.mxu0 0
      %4327 = vmatpush1.bf16.msra.mxu0 0
      %4328 = vmatprep.subr.bf16.mxu0 0
      %4329 = vmatpush1.bf16.msra.mxu0 0
      %4330 = vmatprep.subr.bf16.mxu0 0
      %4331 = vmatpush1.bf16.msra.mxu0 0
      %4332 = vmatprep.subr.bf16.mxu0 0
      %4333 = vmatpush1.bf16.msra.mxu0 0
      %4334 = vmatprep.subr.bf16.mxu0 0
      %4335 = vmatpush1.bf16.msra.mxu0 0
      %4336 = vmatprep.subr.bf16.mxu0 0
      %4337 = vmatpush1.bf16.msra.mxu0 0
      %4338 = vmatprep.subr.bf16.mxu0 0
      %4339 = vmatpush1.bf16.msra.mxu0 0
      %4340 = vmatprep.subr.bf16.mxu0 0
      %4341 = vmatpush1.bf16.msra.mxu0 0
      %4342 = vmatprep.subr.bf16.mxu0 0
      %4343 = vmatpush1.bf16.msra.mxu0 0
      %4344 = vmatprep.subr.bf16.mxu0 0
      %4345 = vmatpush1.bf16.msra.mxu0 0
      %4346 = vmatprep.subr.bf16.mxu0 0
      %4347 = vmatpush1.bf16.msra.mxu0 0
      %4348 = vmatprep.subr.bf16.mxu0 0
      %4349 = vmatpush1.bf16.msra.mxu0 0
      %4350 = vmatprep.subr.bf16.mxu0 0
      %4351 = vmatpush1.bf16.msra.mxu0 0
      %4352 = vmatprep.subr.bf16.mxu0 0
      %4353 = vmatpush1.bf16.msra.mxu0 0
      %4354 = vmatprep.subr.bf16.mxu0 0
      %4355 = vmatpush1.bf16.msra.mxu0 0
      %4356 = vmatprep.mubr.bf16.mxu0 0
      %4357 = vmatmul.mubr.bf16.gmra.mrb[0].mxu0 %v1222
      %v4358 = vpop.f32.mrb[0].mxu0
      %v4359 = vadd.f32 0.0, %v4358
      %v4360 = vpop.f32.mrb[0].mxu0
      %v4361 = vpop.f32.mrb[0].mxu0
      %v4362 = vadd.f32 0.0, %v4361
      %v4363 = vpop.f32.mrb[0].mxu0
      %4364 = vmatprep.mubr.bf16.mxu0 0
      %4365 = vmatmul.mubr.bf16.gmra.mrb[0].mxu0 %v1225
      %v4366 = vpop.f32.mrb[0].mxu0
      %v4367 = vadd.f32 0.0, %v4366
      %v4368 = vpop.f32.mrb[0].mxu0
      %v4369 = vpop.f32.mrb[0].mxu0
      %v4370 = vadd.f32 0.0, %v4369
      %v4371 = vpop.f32.mrb[0].mxu0
      %4372 = vmatprep.mubr.bf16.mxu0 0
      %4373 = vmatmul.mubr.bf16.gmra.mrb[0].mxu0 %v1228
      %v4374 = vpop.f32.mrb[0].mxu0
      %v4375 = vadd.f32 0.0, %v4374
      %v4376 = vpop.f32.mrb[0].mxu0
      %v4377 = vpop.f32.mrb[0].mxu0
      %v4378 = vadd.f32 0.0, %v4377
      %v4379 = vpop.f32.mrb[0].mxu0
      %4380 = vmatprep.mubr.bf16.mxu0 0
      %4381 = vmatmul.mubr.bf16.gmra.mrb[0].mxu0 %v1231
      %v4382 = vpop.f32.mrb[0].mxu0
      %v4383 = vadd.f32 0.0, %v4382
      %v4384 = vpop.f32.mrb[0].mxu0
      %v4385 = vpop.f32.mrb[0].mxu0
      %v4386 = vadd.f32 0.0, %v4385
      %v4387 = vpop.f32.mrb[0].mxu0
      %4388 = vmatprep.mubr.bf16.mxu0 0
      %4389 = vmatmul.mubr.bf16.gmra.mrb[0].mxu0 %v1234
      %v4390 = vpop.f32.mrb[0].mxu0
      %v4391 = vadd.f32 0.0, %v4390
      %v4392 = vpop.f32.mrb[0].mxu0
      %v4393 = vpop.f32.mrb[0].mxu0
      %v4394 = vadd.f32 0.0, %v4393
      %v4395 = vpop.f32.mrb[0].mxu0
      %4396 = vmatprep.mubr.bf16.mxu0 0
      %4397 = vmatmul.mubr.bf16.gmra.mrb[0].mxu0 %v1237
      %v4398 = vpop.f32.mrb[0].mxu0
      %v4399 = vadd.f32 0.0, %v4398
      %v4400 = vpop.f32.mrb[0].mxu0
      %v4401 = vpop.f32.mrb[0].mxu0
      %v4402 = vadd.f32 0.0, %v4401
      %v4403 = vpop.f32.mrb[0].mxu0
      %4404 = vmatprep.mubr.bf16.mxu0 0
      %4405 = vmatmul.mubr.bf16.gmra.mrb[0].mxu0 %v1240
      %v4406 = vpop.f32.mrb[0].mxu0
      %v4407 = vadd.f32 0.0, %v4406
      %v4408 = vpop.f32.mrb[0].mxu0
      %v4409 = vpop.f32.mrb[0].mxu0
      %v4410 = vadd.f32 0.0, %v4409
      %v4411 = vpop.f32.mrb[0].mxu0
      %4412 = vmatprep.mubr.bf16.mxu0 0
      %4413 = vmatmul.mubr.bf16.gmra.mrb[0].mxu0 %v1243
      %v4414 = vpop.f32.mrb[0].mxu0
      %v4415 = vadd.f32 0.0, %v4414
      %v4416 = vpop.f32.mrb[0].mxu0
      %v4417 = vpop.f32.mrb[0].mxu0
      %v4418 = vadd.f32 0.0, %v4417
      %v4419 = vpop.f32.mrb[0].mxu0
      %4420 = vmatprep.mubr.bf16.mxu0 0
      %4421 = vmatmul.mubr.bf16.gmra.mrb[0].mxu0 %v1246
      %v4422 = vpop.f32.mrb[0].mxu0
      %v4423 = vadd.f32 0.0, %v4422
      %v4424 = vpop.f32.mrb[0].mxu0
      %v4425 = vpop.f32.mrb[0].mxu0
      %v4426 = vadd.f32 0.0, %v4425
      %v4427 = vpop.f32.mrb[0].mxu0
      %4428 = vmatprep.mubr.bf16.mxu0 0
      %4429 = vmatmul.mubr.bf16.gmra.mrb[0].mxu0 %v1249
      %v4430 = vpop.f32.mrb[0].mxu0
      %v4431 = vadd.f32 0.0, %v4430
      %v4432 = vpop.f32.mrb[0].mxu0
      %v4433 = vpop.f32.mrb[0].mxu0
      %v4434 = vadd.f32 0.0, %v4433
      %v4435 = vpop.f32.mrb[0].mxu0
      %4436 = vmatprep.mubr.bf16.mxu0 0
      %4437 = vmatmul.mubr.bf16.gmra.mrb[0].mxu0 %v1252
      %v4438 = vpop.f32.mrb[0].mxu0
      %v4439 = vadd.f32 0.0, %v4438
      %v4440 = vpop.f32.mrb[0].mxu0
      %v4441 = vpop.f32.mrb[0].mxu0
      %v4442 = vadd.f32 0.0, %v4441
      %v4443 = vpop.f32.mrb[0].mxu0
      %4444 = vmatprep.mubr.bf16.mxu0 0
      %4445 = vmatmul.mubr.bf16.gmra.mrb[0].mxu0 %v1255
      %v4446 = vpop.f32.mrb[0].mxu0
      %v4447 = vadd.f32 0.0, %v4446
      %v4448 = vpop.f32.mrb[0].mxu0
      %v4449 = vpop.f32.mrb[0].mxu0
      %v4450 = vadd.f32 0.0, %v4449
      %v4451 = vpop.f32.mrb[0].mxu0
      %4452 = vmatprep.mubr.bf16.mxu0 0
      %4453 = vmatmul.mubr.bf16.gmra.mrb[0].mxu0 %v1258
      %v4454 = vpop.f32.mrb[0].mxu0
      %v4455 = vadd.f32 0.0, %v4454
      %v4456 = vpop.f32.mrb[0].mxu0
      %v4457 = vpop.f32.mrb[0].mxu0
      %v4458 = vadd.f32 0.0, %v4457
      %v4459 = vpop.f32.mrb[0].mxu0
      %4460 = vmatprep.mubr.bf16.mxu0 0
      %4461 = vmatmul.mubr.bf16.gmra.mrb[0].mxu0 %v1261
      %v4462 = vpop.f32.mrb[0].mxu0
      %v4463 = vadd.f32 0.0, %v4462
      %v4464 = vpop.f32.mrb[0].mxu0
      %v4465 = vpop.f32.mrb[0].mxu0
      %v4466 = vadd.f32 0.0, %v4465
      %v4467 = vpop.f32.mrb[0].mxu0
      %4468 = vmatprep.mubr.bf16.mxu0 0
      %4469 = vmatmul.mubr.bf16.gmra.mrb[0].mxu0 %v1264
      %v4470 = vpop.f32.mrb[0].mxu0
      %v4471 = vadd.f32 0.0, %v4470
      %v4472 = vpop.f32.mrb[0].mxu0
      %v4473 = vpop.f32.mrb[0].mxu0
      %v4474 = vadd.f32 0.0, %v4473
      %v4475 = vpop.f32.mrb[0].mxu0
      %4476 = vmatprep.mubr.bf16.mxu0 0
      %4477 = vmatmul.mubr.bf16.gmra.mrb[0].mxu0 %v1267
      %v4478 = vpop.f32.mrb[0].mxu0
      %v4479 = vadd.f32 0.0, %v4478
      %v4480 = vpop.f32.mrb[0].mxu0
      %v4481 = vpop.f32.mrb[0].mxu0
      %v4482 = vadd.f32 0.0, %v4481
      %v4483 = vpop.f32.mrb[0].mxu0
      %4484 = vdwg.mxu0
      %v4486 = vsel %vm393, %v4318, 0
      %4488 = vmatprep.subr.bf16.mxu0 0
      %4489 = vmatpush1.bf16.msra.mxu0 %v4486
      %4490 = vmatprep.subr.bf16.mxu0 0
      %4491 = vmatpush1.bf16.msra.mxu0 0
      %4492 = vmatprep.subr.bf16.mxu0 0
      %4493 = vmatpush1.bf16.msra.mxu0 0
      %4494 = vmatprep.subr.bf16.mxu0 0
      %4495 = vmatpush1.bf16.msra.mxu0 0
      %4496 = vmatprep.subr.bf16.mxu0 0
      %4497 = vmatpush1.bf16.msra.mxu0 0
      %4498 = vmatprep.subr.bf16.mxu0 0
      %4499 = vmatpush1.bf16.msra.mxu0 0
      %4500 = vmatprep.subr.bf16.mxu0 0
      %4501 = vmatpush1.bf16.msra.mxu0 0
      %4502 = vmatprep.subr.bf16.mxu0 0
      %4503 = vmatpush1.bf16.msra.mxu0 0
      %4504 = vmatprep.subr.bf16.mxu0 0
      %4505 = vmatpush1.bf16.msra.mxu0 0
      %4506 = vmatprep.subr.bf16.mxu0 0
      %4507 = vmatpush1.bf16.msra.mxu0 0
      %4508 = vmatprep.subr.bf16.mxu0 0
      %4509 = vmatpush1.bf16.msra.mxu0 0
      %4510 = vmatprep.subr.bf16.mxu0 0
      %4511 = vmatpush1.bf16.msra.mxu0 0
      %4512 = vmatprep.subr.bf16.mxu0 0
      %4513 = vmatpush1.bf16.msra.mxu0 0
      %4514 = vmatprep.subr.bf16.mxu0 0
      %4515 = vmatpush1.bf16.msra.mxu0 0
      %4516 = vmatprep.subr.bf16.mxu0 0
      %4517 = vmatpush1.bf16.msra.mxu0 0
      %4518 = vmatprep.subr.bf16.mxu0 0
      %4519 = vmatpush1.bf16.msra.mxu0 0
      %4520 = vmatprep.mubr.bf16.mxu0 0
      %4521 = vmatmul.mubr.bf16.gmra.mrb[0].mxu0 %v1474
      %v4522 = vpop.f32.mrb[0].mxu0
      %v4523 = vadd.f32 %v4359, %v4522
      %v4524 = vpop.f32.mrb[0].mxu0
      %v4525 = vpop.f32.mrb[0].mxu0
      %v4526 = vadd.f32 %v4362, %v4525
      %v4527 = vpop.f32.mrb[0].mxu0
      %4528 = vmatprep.mubr.bf16.mxu0 0
      %4529 = vmatmul.mubr.bf16.gmra.mrb[0].mxu0 %v1477
      %v4530 = vpop.f32.mrb[0].mxu0
      %v4531 = vadd.f32 %v4367, %v4530
      %v4532 = vpop.f32.mrb[0].mxu0
      %v4533 = vpop.f32.mrb[0].mxu0
      %v4534 = vadd.f32 %v4370, %v4533
      %v4535 = vpop.f32.mrb[0].mxu0
      %4536 = vmatprep.mubr.bf16.mxu0 0
      %4537 = vmatmul.mubr.bf16.gmra.mrb[0].mxu0 %v1480
      %v4538 = vpop.f32.mrb[0].mxu0
      %v4539 = vadd.f32 %v4375, %v4538
      %v4540 = vpop.f32.mrb[0].mxu0
      %v4541 = vpop.f32.mrb[0].mxu0
      %v4542 = vadd.f32 %v4378, %v4541
      %v4543 = vpop.f32.mrb[0].mxu0
      %4544 = vmatprep.mubr.bf16.mxu0 0
      %4545 = vmatmul.mubr.bf16.gmra.mrb[0].mxu0 %v1483
      %v4546 = vpop.f32.mrb[0].mxu0
      %v4547 = vadd.f32 %v4383, %v4546
      %v4548 = vpop.f32.mrb[0].mxu0
      %v4549 = vpop.f32.mrb[0].mxu0
      %v4550 = vadd.f32 %v4386, %v4549
      %v4551 = vpop.f32.mrb[0].mxu0
      %4552 = vmatprep.mubr.bf16.mxu0 0
      %4553 = vmatmul.mubr.bf16.gmra.mrb[0].mxu0 %v1486
      %v4554 = vpop.f32.mrb[0].mxu0
      %v4555 = vadd.f32 %v4391, %v4554
      %v4556 = vpop.f32.mrb[0].mxu0
      %v4557 = vpop.f32.mrb[0].mxu0
      %v4558 = vadd.f32 %v4394, %v4557
      %v4559 = vpop.f32.mrb[0].mxu0
      %4560 = vmatprep.mubr.bf16.mxu0 0
      %4561 = vmatmul.mubr.bf16.gmra.mrb[0].mxu0 %v1489
      %v4562 = vpop.f32.mrb[0].mxu0
      %v4563 = vadd.f32 %v4399, %v4562
      %v4564 = vpop.f32.mrb[0].mxu0
      %v4565 = vpop.f32.mrb[0].mxu0
      %v4566 = vadd.f32 %v4402, %v4565
      %v4567 = vpop.f32.mrb[0].mxu0
      %4568 = vmatprep.mubr.bf16.mxu0 0
      %4569 = vmatmul.mubr.bf16.gmra.mrb[0].mxu0 %v1492
      %v4570 = vpop.f32.mrb[0].mxu0
      %v4571 = vadd.f32 %v4407, %v4570
      %v4572 = vpop.f32.mrb[0].mxu0
      %v4573 = vpop.f32.mrb[0].mxu0
      %v4574 = vadd.f32 %v4410, %v4573
      %v4575 = vpop.f32.mrb[0].mxu0
      %4576 = vmatprep.mubr.bf16.mxu0 0
      %4577 = vmatmul.mubr.bf16.gmra.mrb[0].mxu0 %v1495
      %v4578 = vpop.f32.mrb[0].mxu0
      %v4579 = vadd.f32 %v4415, %v4578
      %v4580 = vpop.f32.mrb[0].mxu0
      %v4581 = vpop.f32.mrb[0].mxu0
      %v4582 = vadd.f32 %v4418, %v4581
      %v4583 = vpop.f32.mrb[0].mxu0
      %4584 = vmatprep.mubr.bf16.mxu0 0
      %4585 = vmatmul.mubr.bf16.gmra.mrb[0].mxu0 %v1498
      %v4586 = vpop.f32.mrb[0].mxu0
      %v4587 = vadd.f32 %v4423, %v4586
      %v4588 = vpop.f32.mrb[0].mxu0
      %v4589 = vpop.f32.mrb[0].mxu0
      %v4590 = vadd.f32 %v4426, %v4589
      %v4591 = vpop.f32.mrb[0].mxu0
      %4592 = vmatprep.mubr.bf16.mxu0 0
      %4593 = vmatmul.mubr.bf16.gmra.mrb[0].mxu0 %v1501
      %v4594 = vpop.f32.mrb[0].mxu0
      %v4595 = vadd.f32 %v4431, %v4594
      %v4596 = vpop.f32.mrb[0].mxu0
      %v4597 = vpop.f32.mrb[0].mxu0
      %v4598 = vadd.f32 %v4434, %v4597
      %v4599 = vpop.f32.mrb[0].mxu0
      %4600 = vmatprep.mubr.bf16.mxu0 0
      %4601 = vmatmul.mubr.bf16.gmra.mrb[0].mxu0 %v1504
      %v4602 = vpop.f32.mrb[0].mxu0
      %v4603 = vadd.f32 %v4439, %v4602
      %v4604 = vpop.f32.mrb[0].mxu0
      %v4605 = vpop.f32.mrb[0].mxu0
      %v4606 = vadd.f32 %v4442, %v4605
      %v4607 = vpop.f32.mrb[0].mxu0
      %4608 = vmatprep.mubr.bf16.mxu0 0
      %4609 = vmatmul.mubr.bf16.gmra.mrb[0].mxu0 %v1507
      %v4610 = vpop.f32.mrb[0].mxu0
      %v4611 = vadd.f32 %v4447, %v4610
      %v4612 = vpop.f32.mrb[0].mxu0
      %v4613 = vpop.f32.mrb[0].mxu0
      %v4614 = vadd.f32 %v4450, %v4613
      %v4615 = vpop.f32.mrb[0].mxu0
      %4616 = vmatprep.mubr.bf16.mxu0 0
      %4617 = vmatmul.mubr.bf16.gmra.mrb[0].mxu0 %v1510
      %v4618 = vpop.f32.mrb[0].mxu0
      %v4619 = vadd.f32 %v4455, %v4618
      %v4620 = vpop.f32.mrb[0].mxu0
      %v4621 = vpop.f32.mrb[0].mxu0
      %v4622 = vadd.f32 %v4458, %v4621
      %v4623 = vpop.f32.mrb[0].mxu0
      %4624 = vmatprep.mubr.bf16.mxu0 0
      %4625 = vmatmul.mubr.bf16.gmra.mrb[0].mxu0 %v1513
      %v4626 = vpop.f32.mrb[0].mxu0
      %v4627 = vadd.f32 %v4463, %v4626
      %v4628 = vpop.f32.mrb[0].mxu0
      %v4629 = vpop.f32.mrb[0].mxu0
      %v4630 = vadd.f32 %v4466, %v4629
      %v4631 = vpop.f32.mrb[0].mxu0
      %4632 = vmatprep.mubr.bf16.mxu0 0
      %4633 = vmatmul.mubr.bf16.gmra.mrb[0].mxu0 %v1516
      %v4634 = vpop.f32.mrb[0].mxu0
      %v4635 = vadd.f32 %v4471, %v4634
      %v4636 = vpop.f32.mrb[0].mxu0
      %v4637 = vpop.f32.mrb[0].mxu0
      %v4638 = vadd.f32 %v4474, %v4637
      %v4639 = vpop.f32.mrb[0].mxu0
      %4640 = vmatprep.mubr.bf16.mxu0 0
      %4641 = vmatmul.mubr.bf16.gmra.mrb[0].mxu0 %v1519
      %v4642 = vpop.f32.mrb[0].mxu0
      %v4643 = vadd.f32 %v4479, %v4642
      %v4644 = vpop.f32.mrb[0].mxu0
      %v4645 = vpop.f32.mrb[0].mxu0
      %v4646 = vadd.f32 %v4482, %v4645
      %v4647 = vpop.f32.mrb[0].mxu0
      %4648 = vdwg.mxu0
      %s4649 = scalar_lea.vmem %s3, 32
      %v4650 = vld [vmem:[%s4649] sm:$0xf]
      %s4651 = scalar_lea.vmem %s4, 16
      %v4652 = vld [vmem:[%s4651] sm:$0x3]
      %v4654 = vsel %vm1269, %v4652, 0
      %4656 = vmatprep.subr.bf16.mxu0 0
      %4657 = vmatpush1.bf16.msra.mxu0 %v4654
      %4658 = vmatprep.subr.bf16.mxu0 0
      %4659 = vmatpush1.bf16.msra.mxu0 0
      %4660 = vmatprep.subr.bf16.mxu0 0
      %4661 = vmatpush1.bf16.msra.mxu0 0
      %4662 = vmatprep.subr.bf16.mxu0 0
      %4663 = vmatpush1.bf16.msra.mxu0 0
      %4664 = vmatprep.subr.bf16.mxu0 0
      %4665 = vmatpush1.bf16.msra.mxu0 0
      %4666 = vmatprep.subr.bf16.mxu0 0
      %4667 = vmatpush1.bf16.msra.mxu0 0
      %4668 = vmatprep.subr.bf16.mxu0 0
      %4669 = vmatpush1.bf16.msra.mxu0 0
      %4670 = vmatprep.subr.bf16.mxu0 0
      %4671 = vmatpush1.bf16.msra.mxu0 0
      %4672 = vmatprep.subr.bf16.mxu0 0
      %4673 = vmatpush1.bf16.msra.mxu0 0
      %4674 = vmatprep.subr.bf16.mxu0 0
      %4675 = vmatpush1.bf16.msra.mxu0 0
      %4676 = vmatprep.subr.bf16.mxu0 0
      %4677 = vmatpush1.bf16.msra.mxu0 0
      %4678 = vmatprep.subr.bf16.mxu0 0
      %4679 = vmatpush1.bf16.msra.mxu0 0
      %4680 = vmatprep.subr.bf16.mxu0 0
      %4681 = vmatpush1.bf16.msra.mxu0 0
      %4682 = vmatprep.subr.bf16.mxu0 0
      %4683 = vmatpush1.bf16.msra.mxu0 0
      %4684 = vmatprep.subr.bf16.mxu0 0
      %4685 = vmatpush1.bf16.msra.mxu0 0
      %4686 = vmatprep.subr.bf16.mxu0 0
      %4687 = vmatpush1.bf16.msra.mxu0 0
      %4688 = vmatprep.mubr.bf16.mxu0 0
      %4689 = vmatmul.mubr.bf16.gmra.mrb[0].mxu0 %v1222
      %v4690 = vpop.f32.mrb[0].mxu0
      %v4691 = vadd.f32 0.0, %v4690
      %v4692 = vpop.f32.mrb[0].mxu0
      %v4693 = vpop.f32.mrb[0].mxu0
      %v4694 = vadd.f32 0.0, %v4693
      %v4695 = vpop.f32.mrb[0].mxu0
      %4696 = vmatprep.mubr.bf16.mxu0 0
      %4697 = vmatmul.mubr.bf16.gmra.mrb[0].mxu0 %v1225
      %v4698 = vpop.f32.mrb[0].mxu0
      %v4699 = vadd.f32 0.0, %v4698
      %v4700 = vpop.f32.mrb[0].mxu0
      %v4701 = vpop.f32.mrb[0].mxu0
      %v4702 = vadd.f32 0.0, %v4701
      %v4703 = vpop.f32.mrb[0].mxu0
      %4704 = vmatprep.mubr.bf16.mxu0 0
      %4705 = vmatmul.mubr.bf16.gmra.mrb[0].mxu0 %v1228
      %v4706 = vpop.f32.mrb[0].mxu0
      %v4707 = vadd.f32 0.0, %v4706
      %v4708 = vpop.f32.mrb[0].mxu0
      %v4709 = vpop.f32.mrb[0].mxu0
      %v4710 = vadd.f32 0.0, %v4709
      %v4711 = vpop.f32.mrb[0].mxu0
      %4712 = vmatprep.mubr.bf16.mxu0 0
      %4713 = vmatmul.mubr.bf16.gmra.mrb[0].mxu0 %v1231
      %v4714 = vpop.f32.mrb[0].mxu0
      %v4715 = vadd.f32 0.0, %v4714
      %v4716 = vpop.f32.mrb[0].mxu0
      %v4717 = vpop.f32.mrb[0].mxu0
      %v4718 = vadd.f32 0.0, %v4717
      %v4719 = vpop.f32.mrb[0].mxu0
      %4720 = vmatprep.mubr.bf16.mxu0 0
      %4721 = vmatmul.mubr.bf16.gmra.mrb[0].mxu0 %v1234
      %v4722 = vpop.f32.mrb[0].mxu0
      %v4723 = vadd.f32 0.0, %v4722
      %v4724 = vpop.f32.mrb[0].mxu0
      %v4725 = vpop.f32.mrb[0].mxu0
      %v4726 = vadd.f32 0.0, %v4725
      %v4727 = vpop.f32.mrb[0].mxu0
      %4728 = vmatprep.mubr.bf16.mxu0 0
      %4729 = vmatmul.mubr.bf16.gmra.mrb[0].mxu0 %v1237
      %v4730 = vpop.f32.mrb[0].mxu0
      %v4731 = vadd.f32 0.0, %v4730
      %v4732 = vpop.f32.mrb[0].mxu0
      %v4733 = vpop.f32.mrb[0].mxu0
      %v4734 = vadd.f32 0.0, %v4733
      %v4735 = vpop.f32.mrb[0].mxu0
      %4736 = vmatprep.mubr.bf16.mxu0 0
      %4737 = vmatmul.mubr.bf16.gmra.mrb[0].mxu0 %v1240
      %v4738 = vpop.f32.mrb[0].mxu0
      %v4739 = vadd.f32 0.0, %v4738
      %v4740 = vpop.f32.mrb[0].mxu0
      %v4741 = vpop.f32.mrb[0].mxu0
      %v4742 = vadd.f32 0.0, %v4741
      %v4743 = vpop.f32.mrb[0].mxu0
      %4744 = vmatprep.mubr.bf16.mxu0 0
      %4745 = vmatmul.mubr.bf16.gmra.mrb[0].mxu0 %v1243
      %v4746 = vpop.f32.mrb[0].mxu0
      %v4747 = vadd.f32 0.0, %v4746
      %v4748 = vpop.f32.mrb[0].mxu0
      %v4749 = vpop.f32.mrb[0].mxu0
      %v4750 = vadd.f32 0.0, %v4749
      %v4751 = vpop.f32.mrb[0].mxu0
      %4752 = vmatprep.mubr.bf16.mxu0 0
      %4753 = vmatmul.mubr.bf16.gmra.mrb[0].mxu0 %v1246
      %v4754 = vpop.f32.mrb[0].mxu0
      %v4755 = vadd.f32 0.0, %v4754
      %v4756 = vpop.f32.mrb[0].mxu0
      %v4757 = vpop.f32.mrb[0].mxu0
      %v4758 = vadd.f32 0.0, %v4757
      %v4759 = vpop.f32.mrb[0].mxu0
      %4760 = vmatprep.mubr.bf16.mxu0 0
      %4761 = vmatmul.mubr.bf16.gmra.mrb[0].mxu0 %v1249
      %v4762 = vpop.f32.mrb[0].mxu0
      %v4763 = vadd.f32 0.0, %v4762
      %v4764 = vpop.f32.mrb[0].mxu0
      %v4765 = vpop.f32.mrb[0].mxu0
      %v4766 = vadd.f32 0.0, %v4765
      %v4767 = vpop.f32.mrb[0].mxu0
      %4768 = vmatprep.mubr.bf16.mxu0 0
      %4769 = vmatmul.mubr.bf16.gmra.mrb[0].mxu0 %v1252
      %v4770 = vpop.f32.mrb[0].mxu0
      %v4771 = vadd.f32 0.0, %v4770
      %v4772 = vpop.f32.mrb[0].mxu0
      %v4773 = vpop.f32.mrb[0].mxu0
      %v4774 = vadd.f32 0.0, %v4773
      %v4775 = vpop.f32.mrb[0].mxu0
      %4776 = vmatprep.mubr.bf16.mxu0 0
      %4777 = vmatmul.mubr.bf16.gmra.mrb[0].mxu0 %v1255
      %v4778 = vpop.f32.mrb[0].mxu0
      %v4779 = vadd.f32 0.0, %v4778
      %v4780 = vpop.f32.mrb[0].mxu0
      %v4781 = vpop.f32.mrb[0].mxu0
      %v4782 = vadd.f32 0.0, %v4781
      %v4783 = vpop.f32.mrb[0].mxu0
      %4784 = vmatprep.mubr.bf16.mxu0 0
      %4785 = vmatmul.mubr.bf16.gmra.mrb[0].mxu0 %v1258
      %v4786 = vpop.f32.mrb[0].mxu0
      %v4787 = vadd.f32 0.0, %v4786
      %v4788 = vpop.f32.mrb[0].mxu0
      %v4789 = vpop.f32.mrb[0].mxu0
      %v4790 = vadd.f32 0.0, %v4789
      %v4791 = vpop.f32.mrb[0].mxu0
      %4792 = vmatprep.mubr.bf16.mxu0 0
      %4793 = vmatmul.mubr.bf16.gmra.mrb[0].mxu0 %v1261
      %v4794 = vpop.f32.mrb[0].mxu0
      %v4795 = vadd.f32 0.0, %v4794
      %v4796 = vpop.f32.mrb[0].mxu0
      %v4797 = vpop.f32.mrb[0].mxu0
      %v4798 = vadd.f32 0.0, %v4797
      %v4799 = vpop.f32.mrb[0].mxu0
      %4800 = vmatprep.mubr.bf16.mxu0 0
      %4801 = vmatmul.mubr.bf16.gmra.mrb[0].mxu0 %v1264
      %v4802 = vpop.f32.mrb[0].mxu0
      %v4803 = vadd.f32 0.0, %v4802
      %v4804 = vpop.f32.mrb[0].mxu0
      %v4805 = vpop.f32.mrb[0].mxu0
      %v4806 = vadd.f32 0.0, %v4805
      %v4807 = vpop.f32.mrb[0].mxu0
      %4808 = vmatprep.mubr.bf16.mxu0 0
      %4809 = vmatmul.mubr.bf16.gmra.mrb[0].mxu0 %v1267
      %v4810 = vpop.f32.mrb[0].mxu0
      %v4811 = vadd.f32 0.0, %v4810
      %v4812 = vpop.f32.mrb[0].mxu0
      %v4813 = vpop.f32.mrb[0].mxu0
      %v4814 = vadd.f32 0.0, %v4813
      %v4815 = vpop.f32.mrb[0].mxu0
      %4816 = vdwg.mxu0
      %v4818 = vsel %vm393, %v4650, 0
      %4820 = vmatprep.subr.bf16.mxu0 0
      %4821 = vmatpush1.bf16.msra.mxu0 %v4818
      %4822 = vmatprep.subr.bf16.mxu0 0
      %4823 = vmatpush1.bf16.msra.mxu0 0
      %4824 = vmatprep.subr.bf16.mxu0 0
      %4825 = vmatpush1.bf16.msra.mxu0 0
      %4826 = vmatprep.subr.bf16.mxu0 0
      %4827 = vmatpush1.bf16.msra.mxu0 0
      %4828 = vmatprep.subr.bf16.mxu0 0
      %4829 = vmatpush1.bf16.msra.mxu0 0
      %4830 = vmatprep.subr.bf16.mxu0 0
      %4831 = vmatpush1.bf16.msra.mxu0 0
      %4832 = vmatprep.subr.bf16.mxu0 0
      %4833 = vmatpush1.bf16.msra.mxu0 0
      %4834 = vmatprep.subr.bf16.mxu0 0
      %4835 = vmatpush1.bf16.msra.mxu0 0
      %4836 = vmatprep.subr.bf16.mxu0 0
      %4837 = vmatpush1.bf16.msra.mxu0 0
      %4838 = vmatprep.subr.bf16.mxu0 0
      %4839 = vmatpush1.bf16.msra.mxu0 0
      %4840 = vmatprep.subr.bf16.mxu0 0
      %4841 = vmatpush1.bf16.msra.mxu0 0
      %4842 = vmatprep.subr.bf16.mxu0 0
      %4843 = vmatpush1.bf16.msra.mxu0 0
      %4844 = vmatprep.subr.bf16.mxu0 0
      %4845 = vmatpush1.bf16.msra.mxu0 0
      %4846 = vmatprep.subr.bf16.mxu0 0
      %4847 = vmatpush1.bf16.msra.mxu0 0
      %4848 = vmatprep.subr.bf16.mxu0 0
      %4849 = vmatpush1.bf16.msra.mxu0 0
      %4850 = vmatprep.subr.bf16.mxu0 0
      %4851 = vmatpush1.bf16.msra.mxu0 0
      %4852 = vmatprep.mubr.bf16.mxu0 0
      %4853 = vmatmul.mubr.bf16.gmra.mrb[0].mxu0 %v1474
      %v4854 = vpop.f32.mrb[0].mxu0
      %v4855 = vadd.f32 %v4691, %v4854
      %v4856 = vpop.f32.mrb[0].mxu0
      %v4857 = vpop.f32.mrb[0].mxu0
      %v4858 = vadd.f32 %v4694, %v4857
      %v4859 = vpop.f32.mrb[0].mxu0
      %4860 = vmatprep.mubr.bf16.mxu0 0
      %4861 = vmatmul.mubr.bf16.gmra.mrb[0].mxu0 %v1477
      %v4862 = vpop.f32.mrb[0].mxu0
      %v4863 = vadd.f32 %v4699, %v4862
      %v4864 = vpop.f32.mrb[0].mxu0
      %v4865 = vpop.f32.mrb[0].mxu0
      %v4866 = vadd.f32 %v4702, %v4865
      %v4867 = vpop.f32.mrb[0].mxu0
      %4868 = vmatprep.mubr.bf16.mxu0 0
      %4869 = vmatmul.mubr.bf16.gmra.mrb[0].mxu0 %v1480
      %v4870 = vpop.f32.mrb[0].mxu0
      %v4871 = vadd.f32 %v4707, %v4870
      %v4872 = vpop.f32.mrb[0].mxu0
      %v4873 = vpop.f32.mrb[0].mxu0
      %v4874 = vadd.f32 %v4710, %v4873
      %v4875 = vpop.f32.mrb[0].mxu0
      %4876 = vmatprep.mubr.bf16.mxu0 0
      %4877 = vmatmul.mubr.bf16.gmra.mrb[0].mxu0 %v1483
      %v4878 = vpop.f32.mrb[0].mxu0
      %v4879 = vadd.f32 %v4715, %v4878
      %v4880 = vpop.f32.mrb[0].mxu0
      %v4881 = vpop.f32.mrb[0].mxu0
      %v4882 = vadd.f32 %v4718, %v4881
      %v4883 = vpop.f32.mrb[0].mxu0
      %4884 = vmatprep.mubr.bf16.mxu0 0
      %4885 = vmatmul.mubr.bf16.gmra.mrb[0].mxu0 %v1486
      %v4886 = vpop.f32.mrb[0].mxu0
      %v4887 = vadd.f32 %v4723, %v4886
      %v4888 = vpop.f32.mrb[0].mxu0
      %v4889 = vpop.f32.mrb[0].mxu0
      %v4890 = vadd.f32 %v4726, %v4889
      %v4891 = vpop.f32.mrb[0].mxu0
      %4892 = vmatprep.mubr.bf16.mxu0 0
      %4893 = vmatmul.mubr.bf16.gmra.mrb[0].mxu0 %v1489
      %v4894 = vpop.f32.mrb[0].mxu0
      %v4895 = vadd.f32 %v4731, %v4894
      %v4896 = vpop.f32.mrb[0].mxu0
      %v4897 = vpop.f32.mrb[0].mxu0
      %v4898 = vadd.f32 %v4734, %v4897
      %v4899 = vpop.f32.mrb[0].mxu0
      %4900 = vmatprep.mubr.bf16.mxu0 0
      %4901 = vmatmul.mubr.bf16.gmra.mrb[0].mxu0 %v1492
      %v4902 = vpop.f32.mrb[0].mxu0
      %v4903 = vadd.f32 %v4739, %v4902
      %v4904 = vpop.f32.mrb[0].mxu0
      %v4905 = vpop.f32.mrb[0].mxu0
      %v4906 = vadd.f32 %v4742, %v4905
      %v4907 = vpop.f32.mrb[0].mxu0
      %4908 = vmatprep.mubr.bf16.mxu0 0
      %4909 = vmatmul.mubr.bf16.gmra.mrb[0].mxu0 %v1495
      %v4910 = vpop.f32.mrb[0].mxu0
      %v4911 = vadd.f32 %v4747, %v4910
      %v4912 = vpop.f32.mrb[0].mxu0
      %v4913 = vpop.f32.mrb[0].mxu0
      %v4914 = vadd.f32 %v4750, %v4913
      %v4915 = vpop.f32.mrb[0].mxu0
      %4916 = vmatprep.mubr.bf16.mxu0 0
      %4917 = vmatmul.mubr.bf16.gmra.mrb[0].mxu0 %v1498
      %v4918 = vpop.f32.mrb[0].mxu0
      %v4919 = vadd.f32 %v4755, %v4918
      %v4920 = vpop.f32.mrb[0].mxu0
      %v4921 = vpop.f32.mrb[0].mxu0
      %v4922 = vadd.f32 %v4758, %v4921
      %v4923 = vpop.f32.mrb[0].mxu0
      %4924 = vmatprep.mubr.bf16.mxu0 0
      %4925 = vmatmul.mubr.bf16.gmra.mrb[0].mxu0 %v1501
      %v4926 = vpop.f32.mrb[0].mxu0
      %v4927 = vadd.f32 %v4763, %v4926
      %v4928 = vpop.f32.mrb[0].mxu0
      %v4929 = vpop.f32.mrb[0].mxu0
      %v4930 = vadd.f32 %v4766, %v4929
      %v4931 = vpop.f32.mrb[0].mxu0
      %4932 = vmatprep.mubr.bf16.mxu0 0
      %4933 = vmatmul.mubr.bf16.gmra.mrb[0].mxu0 %v1504
      %v4934 = vpop.f32.mrb[0].mxu0
      %v4935 = vadd.f32 %v4771, %v4934
      %v4936 = vpop.f32.mrb[0].mxu0
      %v4937 = vpop.f32.mrb[0].mxu0
      %v4938 = vadd.f32 %v4774, %v4937
      %v4939 = vpop.f32.mrb[0].mxu0
      %4940 = vmatprep.mubr.bf16.mxu0 0
      %4941 = vmatmul.mubr.bf16.gmra.mrb[0].mxu0 %v1507
      %v4942 = vpop.f32.mrb[0].mxu0
      %v4943 = vadd.f32 %v4779, %v4942
      %v4944 = vpop.f32.mrb[0].mxu0
      %v4945 = vpop.f32.mrb[0].mxu0
      %v4946 = vadd.f32 %v4782, %v4945
      %v4947 = vpop.f32.mrb[0].mxu0
      %4948 = vmatprep.mubr.bf16.mxu0 0
      %4949 = vmatmul.mubr.bf16.gmra.mrb[0].mxu0 %v1510
      %v4950 = vpop.f32.mrb[0].mxu0
      %v4951 = vadd.f32 %v4787, %v4950
      %v4952 = vpop.f32.mrb[0].mxu0
      %v4953 = vpop.f32.mrb[0].mxu0
      %v4954 = vadd.f32 %v4790, %v4953
      %v4955 = vpop.f32.mrb[0].mxu0
      %4956 = vmatprep.mubr.bf16.mxu0 0
      %4957 = vmatmul.mubr.bf16.gmra.mrb[0].mxu0 %v1513
      %v4958 = vpop.f32.mrb[0].mxu0
      %v4959 = vadd.f32 %v4795, %v4958
      %v4960 = vpop.f32.mrb[0].mxu0
      %v4961 = vpop.f32.mrb[0].mxu0
      %v4962 = vadd.f32 %v4798, %v4961
      %v4963 = vpop.f32.mrb[0].mxu0
      %4964 = vmatprep.mubr.bf16.mxu0 0
      %4965 = vmatmul.mubr.bf16.gmra.mrb[0].mxu0 %v1516
      %v4966 = vpop.f32.mrb[0].mxu0
      %v4967 = vadd.f32 %v4803, %v4966
      %v4968 = vpop.f32.mrb[0].mxu0
      %v4969 = vpop.f32.mrb[0].mxu0
      %v4970 = vadd.f32 %v4806, %v4969
      %v4971 = vpop.f32.mrb[0].mxu0
      %4972 = vmatprep.mubr.bf16.mxu0 0
      %4973 = vmatmul.mubr.bf16.gmra.mrb[0].mxu0 %v1519
      %v4974 = vpop.f32.mrb[0].mxu0
      %v4975 = vadd.f32 %v4811, %v4974
      %v4976 = vpop.f32.mrb[0].mxu0
      %v4977 = vpop.f32.mrb[0].mxu0
      %v4978 = vadd.f32 %v4814, %v4977
      %v4979 = vpop.f32.mrb[0].mxu0
      %4980 = vdwg.mxu0
      %v4981 = vmul.f32 %v1088, %v4191
      %v4982 = vmul.f32 %v1089, %v4194
      %v4983 = vmul.f32 %v1090, %v4199
      %v4984 = vmul.f32 %v1091, %v4202
      %v4985 = vmul.f32 %v1092, %v4207
      %v4986 = vmul.f32 %v1093, %v4210
      %v4987 = vmul.f32 %v1094, %v4215
      %v4988 = vmul.f32 %v1095, %v4218
      %v4989 = vmul.f32 %v1096, %v4223
      %v4990 = vmul.f32 %v1097, %v4226
      %v4991 = vmul.f32 %v1098, %v4231
      %v4992 = vmul.f32 %v1099, %v4234
      %v4993 = vmul.f32 %v1100, %v4239
      %v4994 = vmul.f32 %v1101, %v4242
      %v4995 = vmul.f32 %v1102, %v4247
      %v4996 = vmul.f32 %v1103, %v4250
      %v4997 = vmul.f32 %v1104, %v4255
      %v4998 = vmul.f32 %v1105, %v4258
      %v4999 = vmul.f32 %v1106, %v4263
      %v5000 = vmul.f32 %v1107, %v4266
      %v5001 = vmul.f32 %v1108, %v4271
      %v5002 = vmul.f32 %v1109, %v4274
      %v5003 = vmul.f32 %v1110, %v4279
      %v5004 = vmul.f32 %v1111, %v4282
      %v5005 = vmul.f32 %v1112, %v4287
      %v5006 = vmul.f32 %v1113, %v4290
      %v5007 = vmul.f32 %v1114, %v4295
      %v5008 = vmul.f32 %v1115, %v4298
      %v5009 = vmul.f32 %v1116, %v4303
      %v5010 = vmul.f32 %v1117, %v4306
      %v5011 = vmul.f32 %v1118, %v4311
      %v5012 = vmul.f32 %v1119, %v4314
      %v5013 = vrot.slane %v4981, 7
      %v5014 = vrot.slane %v4982, 7
      %v5015 = vrot.slane %v4983, 7
      %v5016 = vrot.slane %v4984, 7
      %v5017 = vrot.slane %v4985, 7
      %v5018 = vrot.slane %v4986, 7
      %v5019 = vrot.slane %v4987, 7
      %v5020 = vrot.slane %v4988, 7
      %v5021 = vrot.slane %v4989, 7
      %v5022 = vrot.slane %v4990, 7
      %v5023 = vrot.slane %v4991, 7
      %v5024 = vrot.slane %v4992, 7
      %v5025 = vrot.slane %v4993, 7
      %v5026 = vrot.slane %v4994, 7
      %v5027 = vrot.slane %v4995, 7
      %v5028 = vrot.slane %v4996, 7
      %v5029 = vrot.slane %v4997, 7
      %v5030 = vrot.slane %v4998, 7
      %v5031 = vrot.slane %v4999, 7
      %v5032 = vrot.slane %v5000, 7
      %v5033 = vrot.slane %v5001, 7
      %v5034 = vrot.slane %v5002, 7
      %v5035 = vrot.slane %v5003, 7
      %v5036 = vrot.slane %v5004, 7
      %v5037 = vrot.slane %v5005, 7
      %v5038 = vrot.slane %v5006, 7
      %v5039 = vrot.slane %v5007, 7
      %v5040 = vrot.slane %v5008, 7
      %v5041 = vrot.slane %v5009, 7
      %v5042 = vrot.slane %v5010, 7
      %v5043 = vrot.slane %v5011, 7
      %v5044 = vrot.slane %v5012, 7
      %v5045 = vsel %vm2413, %v5043, %v5044
      %v5046 = vsel %vm2413, %v5042, %v5043
      %v5047 = vsel %vm2413, %v5041, %v5042
      %v5048 = vsel %vm2413, %v5040, %v5041
      %v5049 = vsel %vm2413, %v5039, %v5040
      %v5050 = vsel %vm2413, %v5038, %v5039
      %v5051 = vsel %vm2413, %v5037, %v5038
      %v5052 = vsel %vm2413, %v5036, %v5037
      %v5053 = vsel %vm2413, %v5035, %v5036
      %v5054 = vsel %vm2413, %v5034, %v5035
      %v5055 = vsel %vm2413, %v5033, %v5034
      %v5056 = vsel %vm2413, %v5032, %v5033
      %v5057 = vsel %vm2413, %v5031, %v5032
      %v5058 = vsel %vm2413, %v5030, %v5031
      %v5059 = vsel %vm2413, %v5029, %v5030
      %v5060 = vsel %vm2413, %v5028, %v5029
      %v5061 = vsel %vm2413, %v5027, %v5028
      %v5062 = vsel %vm2413, %v5026, %v5027
      %v5063 = vsel %vm2413, %v5025, %v5026
      %v5064 = vsel %vm2413, %v5024, %v5025
      %v5065 = vsel %vm2413, %v5023, %v5024
      %v5066 = vsel %vm2413, %v5022, %v5023
      %v5067 = vsel %vm2413, %v5021, %v5022
      %v5068 = vsel %vm2413, %v5020, %v5021
      %v5069 = vsel %vm2413, %v5019, %v5020
      %v5070 = vsel %vm2413, %v5018, %v5019
      %v5071 = vsel %vm2413, %v5017, %v5018
      %v5072 = vsel %vm2413, %v5016, %v5017
      %v5073 = vsel %vm2413, %v5015, %v5016
      %v5074 = vsel %vm2413, %v5014, %v5015
      %v5075 = vsel %vm2413, %v5013, %v5014
      %v5076 = vsel %vm2413, %v5044, %v5013
      %v5077 = vadd.f32 %v4523, %v5076
      %v5078 = vadd.f32 %v4526, %v5075
      %v5079 = vadd.f32 %v4531, %v5074
      %v5080 = vadd.f32 %v4534, %v5073
      %v5081 = vadd.f32 %v4539, %v5072
      %v5082 = vadd.f32 %v4542, %v5071
      %v5083 = vadd.f32 %v4547, %v5070
      %v5084 = vadd.f32 %v4550, %v5069
      %v5085 = vadd.f32 %v4555, %v5068
      %v5086 = vadd.f32 %v4558, %v5067
      %v5087 = vadd.f32 %v4563, %v5066
      %v5088 = vadd.f32 %v4566, %v5065
      %v5089 = vadd.f32 %v4571, %v5064
      %v5090 = vadd.f32 %v4574, %v5063
      %v5091 = vadd.f32 %v4579, %v5062
      %v5092 = vadd.f32 %v4582, %v5061
      %v5093 = vadd.f32 %v4587, %v5060
      %v5094 = vadd.f32 %v4590, %v5059
      %v5095 = vadd.f32 %v4595, %v5058
      %v5096 = vadd.f32 %v4598, %v5057
      %v5097 = vadd.f32 %v4603, %v5056
      %v5098 = vadd.f32 %v4606, %v5055
      %v5099 = vadd.f32 %v4611, %v5054
      %v5100 = vadd.f32 %v4614, %v5053
      %v5101 = vadd.f32 %v4619, %v5052
      %v5102 = vadd.f32 %v4622, %v5051
      %v5103 = vadd.f32 %v4627, %v5050
      %v5104 = vadd.f32 %v4630, %v5049
      %v5105 = vadd.f32 %v4635, %v5048
      %v5106 = vadd.f32 %v4638, %v5047
      %v5107 = vadd.f32 %v4643, %v5046
      %v5108 = vadd.f32 %v4646, %v5045
      %v5109 = vmul.f32 %v1184, %v4855
      %v5110 = vmul.f32 %v1185, %v4858
      %v5111 = vmul.f32 %v1186, %v4863
      %v5112 = vmul.f32 %v1187, %v4866
      %v5113 = vmul.f32 %v1188, %v4871
      %v5114 = vmul.f32 %v1189, %v4874
      %v5115 = vmul.f32 %v1190, %v4879
      %v5116 = vmul.f32 %v1191, %v4882
      %v5117 = vmul.f32 %v1192, %v4887
      %v5118 = vmul.f32 %v1193, %v4890
      %v5119 = vmul.f32 %v1194, %v4895
      %v5120 = vmul.f32 %v1195, %v4898
      %v5121 = vmul.f32 %v1196, %v4903
      %v5122 = vmul.f32 %v1197, %v4906
      %v5123 = vmul.f32 %v1198, %v4911
      %v5124 = vmul.f32 %v1199, %v4914
      %v5125 = vmul.f32 %v1200, %v4919
      %v5126 = vmul.f32 %v1201, %v4922
      %v5127 = vmul.f32 %v1202, %v4927
      %v5128 = vmul.f32 %v1203, %v4930
      %v5129 = vmul.f32 %v1204, %v4935
      %v5130 = vmul.f32 %v1205, %v4938
      %v5131 = vmul.f32 %v1206, %v4943
      %v5132 = vmul.f32 %v1207, %v4946
      %v5133 = vmul.f32 %v1208, %v4951
      %v5134 = vmul.f32 %v1209, %v4954
      %v5135 = vmul.f32 %v1210, %v4959
      %v5136 = vmul.f32 %v1211, %v4962
      %v5137 = vmul.f32 %v1212, %v4967
      %v5138 = vmul.f32 %v1213, %v4970
      %v5139 = vmul.f32 %v1214, %v4975
      %v5140 = vmul.f32 %v1215, %v4978
      %v5141 = vrot.slane %v5109, 1
      %v5142 = vrot.slane %v5110, 1
      %v5143 = vrot.slane %v5111, 1
      %v5144 = vrot.slane %v5112, 1
      %v5145 = vrot.slane %v5113, 1
      %v5146 = vrot.slane %v5114, 1
      %v5147 = vrot.slane %v5115, 1
      %v5148 = vrot.slane %v5116, 1
      %v5149 = vrot.slane %v5117, 1
      %v5150 = vrot.slane %v5118, 1
      %v5151 = vrot.slane %v5119, 1
      %v5152 = vrot.slane %v5120, 1
      %v5153 = vrot.slane %v5121, 1
      %v5154 = vrot.slane %v5122, 1
      %v5155 = vrot.slane %v5123, 1
      %v5156 = vrot.slane %v5124, 1
      %v5157 = vrot.slane %v5125, 1
      %v5158 = vrot.slane %v5126, 1
      %v5159 = vrot.slane %v5127, 1
      %v5160 = vrot.slane %v5128, 1
      %v5161 = vrot.slane %v5129, 1
      %v5162 = vrot.slane %v5130, 1
      %v5163 = vrot.slane %v5131, 1
      %v5164 = vrot.slane %v5132, 1
      %v5165 = vrot.slane %v5133, 1
      %v5166 = vrot.slane %v5134, 1
      %v5167 = vrot.slane %v5135, 1
      %v5168 = vrot.slane %v5136, 1
      %v5169 = vrot.slane %v5137, 1
      %v5170 = vrot.slane %v5138, 1
      %v5171 = vrot.slane %v5139, 1
      %v5172 = vrot.slane %v5140, 1
      %v5173 = vsel %vm2542, %v5171, %v5172
      %v5174 = vsel %vm2542, %v5170, %v5171
      %v5175 = vsel %vm2542, %v5169, %v5170
      %v5176 = vsel %vm2542, %v5168, %v5169
      %v5177 = vsel %vm2542, %v5167, %v5168
      %v5178 = vsel %vm2542, %v5166, %v5167
      %v5179 = vsel %vm2542, %v5165, %v5166
      %v5180 = vsel %vm2542, %v5164, %v5165
      %v5181 = vsel %vm2542, %v5163, %v5164
      %v5182 = vsel %vm2542, %v5162, %v5163
      %v5183 = vsel %vm2542, %v5161, %v5162
      %v5184 = vsel %vm2542, %v5160, %v5161
      %v5185 = vsel %vm2542, %v5159, %v5160
      %v5186 = vsel %vm2542, %v5158, %v5159
      %v5187 = vsel %vm2542, %v5157, %v5158
      %v5188 = vsel %vm2542, %v5156, %v5157
      %v5189 = vsel %vm2542, %v5155, %v5156
      %v5190 = vsel %vm2542, %v5154, %v5155
      %v5191 = vsel %vm2542, %v5153, %v5154
      %v5192 = vsel %vm2542, %v5152, %v5153
      %v5193 = vsel %vm2542, %v5151, %v5152
      %v5194 = vsel %vm2542, %v5150, %v5151
      %v5195 = vsel %vm2542, %v5149, %v5150
      %v5196 = vsel %vm2542, %v5148, %v5149
      %v5197 = vsel %vm2542, %v5147, %v5148
      %v5198 = vsel %vm2542, %v5146, %v5147
      %v5199 = vsel %vm2542, %v5145, %v5146
      %v5200 = vsel %vm2542, %v5144, %v5145
      %v5201 = vsel %vm2542, %v5143, %v5144
      %v5202 = vsel %vm2542, %v5142, %v5143
      %v5203 = vsel %vm2542, %v5141, %v5142
      %v5204 = vsel %vm2542, %v5172, %v5141
      %v5205 = vadd.f32 %v5077, %v5203
      %v5206 = vadd.f32 %v5078, %v5202
      %v5207 = vadd.f32 %v5079, %v5201
      %v5208 = vadd.f32 %v5080, %v5200
      %v5209 = vadd.f32 %v5081, %v5199
      %v5210 = vadd.f32 %v5082, %v5198
      %v5211 = vadd.f32 %v5083, %v5197
      %v5212 = vadd.f32 %v5084, %v5196
      %v5213 = vadd.f32 %v5085, %v5195
      %v5214 = vadd.f32 %v5086, %v5194
      %v5215 = vadd.f32 %v5087, %v5193
      %v5216 = vadd.f32 %v5088, %v5192
      %v5217 = vadd.f32 %v5089, %v5191
      %v5218 = vadd.f32 %v5090, %v5190
      %v5219 = vadd.f32 %v5091, %v5189
      %v5220 = vadd.f32 %v5092, %v5188
      %v5221 = vadd.f32 %v5093, %v5187
      %v5222 = vadd.f32 %v5094, %v5186
      %v5223 = vadd.f32 %v5095, %v5185
      %v5224 = vadd.f32 %v5096, %v5184
      %v5225 = vadd.f32 %v5097, %v5183
      %v5226 = vadd.f32 %v5098, %v5182
      %v5227 = vadd.f32 %v5099, %v5181
      %v5228 = vadd.f32 %v5100, %v5180
      %v5229 = vadd.f32 %v5101, %v5179
      %v5230 = vadd.f32 %v5102, %v5178
      %v5231 = vadd.f32 %v5103, %v5177
      %v5232 = vadd.f32 %v5104, %v5176
      %v5233 = vadd.f32 %v5105, %v5175
      %v5234 = vadd.f32 %v5106, %v5174
      %v5235 = vadd.f32 %v5107, %v5173
      %v5236 = vadd.f32 %v5108, %v5204
      %v5237 = vld [vmem:[#allocation2] sm:$0xff]
      %v5238 = vld [vmem:[#allocation2 + $0x8] sm:$0xff]
      %v5239 = vld [vmem:[#allocation2 + $0x10] sm:$0xff]
      %v5240 = vld [vmem:[#allocation2 + $0x18] sm:$0xff]
      %v5241 = vld [vmem:[#allocation2 + $0x20] sm:$0xff]
      %v5242 = vld [vmem:[#allocation2 + $0x28] sm:$0xff]
      %v5243 = vld [vmem:[#allocation2 + $0x30] sm:$0xff]
      %v5244 = vld [vmem:[#allocation2 + $0x38] sm:$0xff]
      %v5245 = vld [vmem:[#allocation2 + $0x40] sm:$0xff]
      %v5246 = vld [vmem:[#allocation2 + $0x48] sm:$0xff]
      %v5247 = vld [vmem:[#allocation2 + $0x50] sm:$0xff]
      %v5248 = vld [vmem:[#allocation2 + $0x58] sm:$0xff]
      %v5249 = vld [vmem:[#allocation2 + $0x60] sm:$0xff]
      %v5250 = vld [vmem:[#allocation2 + $0x68] sm:$0xff]
      %v5251 = vld [vmem:[#allocation2 + $0x70] sm:$0xff]
      %v5252 = vld [vmem:[#allocation2 + $0x78] sm:$0xff]
      %v5253 = vld [vmem:[#allocation2 + $0x80] sm:$0xff]
      %v5254 = vld [vmem:[#allocation2 + $0x88] sm:$0xff]
      %v5255 = vld [vmem:[#allocation2 + $0x90] sm:$0xff]
      %v5256 = vld [vmem:[#allocation2 + $0x98] sm:$0xff]
      %v5257 = vld [vmem:[#allocation2 + $0xa0] sm:$0xff]
      %v5258 = vld [vmem:[#allocation2 + $0xa8] sm:$0xff]
      %v5259 = vld [vmem:[#allocation2 + $0xb0] sm:$0xff]
      %v5260 = vld [vmem:[#allocation2 + $0xb8] sm:$0xff]
      %v5261 = vld [vmem:[#allocation2 + $0xc0] sm:$0xff]
      %v5262 = vld [vmem:[#allocation2 + $0xc8] sm:$0xff]
      %v5263 = vld [vmem:[#allocation2 + $0xd0] sm:$0xff]
      %v5264 = vld [vmem:[#allocation2 + $0xd8] sm:$0xff]
      %v5265 = vld [vmem:[#allocation2 + $0xe0] sm:$0xff]
      %v5266 = vld [vmem:[#allocation2 + $0xe8] sm:$0xff]
      %v5267 = vld [vmem:[#allocation2 + $0xf0] sm:$0xff]
      %v5268 = vld [vmem:[#allocation2 + $0xf8] sm:$0xff]
      %v5269 = vadd.f32 %v5237, %v5205
      %v5270 = vadd.f32 %v5238, %v5206
      %v5271 = vadd.f32 %v5239, %v5207
      %v5272 = vadd.f32 %v5240, %v5208
      %v5273 = vadd.f32 %v5241, %v5209
      %v5274 = vadd.f32 %v5242, %v5210
      %v5275 = vadd.f32 %v5243, %v5211
      %v5276 = vadd.f32 %v5244, %v5212
      %v5277 = vadd.f32 %v5245, %v5213
      %v5278 = vadd.f32 %v5246, %v5214
      %v5279 = vadd.f32 %v5247, %v5215
      %v5280 = vadd.f32 %v5248, %v5216
      %v5281 = vadd.f32 %v5249, %v5217
      %v5282 = vadd.f32 %v5250, %v5218
      %v5283 = vadd.f32 %v5251, %v5219
      %v5284 = vadd.f32 %v5252, %v5220
      %v5285 = vadd.f32 %v5253, %v5221
      %v5286 = vadd.f32 %v5254, %v5222
      %v5287 = vadd.f32 %v5255, %v5223
      %v5288 = vadd.f32 %v5256, %v5224
      %v5289 = vadd.f32 %v5257, %v5225
      %v5290 = vadd.f32 %v5258, %v5226
      %v5291 = vadd.f32 %v5259, %v5227
      %v5292 = vadd.f32 %v5260, %v5228
      %v5293 = vadd.f32 %v5261, %v5229
      %v5294 = vadd.f32 %v5262, %v5230
      %v5295 = vadd.f32 %v5263, %v5231
      %v5296 = vadd.f32 %v5264, %v5232
      %v5297 = vadd.f32 %v5265, %v5233
      %v5298 = vadd.f32 %v5266, %v5234
      %v5299 = vadd.f32 %v5267, %v5235
      %v5300 = vadd.f32 %v5268, %v5236
      %5301 = vst.msk [vmem:[#allocation2] sm:$0xff] %vm344, %v5269
      %5302 = vst.msk [vmem:[#allocation2 + $0x8] sm:$0xff] %vm344, %v5270
      %5303 = vst.msk [vmem:[#allocation2 + $0x10] sm:$0xff] %vm344, %v5271
      %5304 = vst.msk [vmem:[#allocation2 + $0x18] sm:$0xff] %vm344, %v5272
      %5305 = vst.msk [vmem:[#allocation2 + $0x20] sm:$0xff] %vm344, %v5273
      %5306 = vst.msk [vmem:[#allocation2 + $0x28] sm:$0xff] %vm344, %v5274
      %5307 = vst.msk [vmem:[#allocation2 + $0x30] sm:$0xff] %vm344, %v5275
      %5308 = vst.msk [vmem:[#allocation2 + $0x38] sm:$0xff] %vm344, %v5276
      %5309 = vst.msk [vmem:[#allocation2 + $0x40] sm:$0xff] %vm344, %v5277
      %5310 = vst.msk [vmem:[#allocation2 + $0x48] sm:$0xff] %vm344, %v5278
      %5311 = vst.msk [vmem:[#allocation2 + $0x50] sm:$0xff] %vm344, %v5279
      %5312 = vst.msk [vmem:[#allocation2 + $0x58] sm:$0xff] %vm344, %v5280
      %5313 = vst.msk [vmem:[#allocation2 + $0x60] sm:$0xff] %vm344, %v5281
      %5314 = vst.msk [vmem:[#allocation2 + $0x68] sm:$0xff] %vm344, %v5282
      %5315 = vst.msk [vmem:[#allocation2 + $0x70] sm:$0xff] %vm344, %v5283
      %5316 = vst.msk [vmem:[#allocation2 + $0x78] sm:$0xff] %vm344, %v5284
      %5317 = vst.msk [vmem:[#allocation2 + $0x80] sm:$0xff] %vm344, %v5285
      %5318 = vst.msk [vmem:[#allocation2 + $0x88] sm:$0xff] %vm344, %v5286
      %5319 = vst.msk [vmem:[#allocation2 + $0x90] sm:$0xff] %vm344, %v5287
      %5320 = vst.msk [vmem:[#allocation2 + $0x98] sm:$0xff] %vm344, %v5288
      %5321 = vst.msk [vmem:[#allocation2 + $0xa0] sm:$0xff] %vm344, %v5289
      %5322 = vst.msk [vmem:[#allocation2 + $0xa8] sm:$0xff] %vm344, %v5290
      %5323 = vst.msk [vmem:[#allocation2 + $0xb0] sm:$0xff] %vm344, %v5291
      %5324 = vst.msk [vmem:[#allocation2 + $0xb8] sm:$0xff] %vm344, %v5292
      %5325 = vst.msk [vmem:[#allocation2 + $0xc0] sm:$0xff] %vm344, %v5293
      %5326 = vst.msk [vmem:[#allocation2 + $0xc8] sm:$0xff] %vm344, %v5294
      %5327 = vst.msk [vmem:[#allocation2 + $0xd0] sm:$0xff] %vm344, %v5295
      %5328 = vst.msk [vmem:[#allocation2 + $0xd8] sm:$0xff] %vm344, %v5296
      %5329 = vst.msk [vmem:[#allocation2 + $0xe0] sm:$0xff] %vm344, %v5297
      %5330 = vst.msk [vmem:[#allocation2 + $0xe8] sm:$0xff] %vm344, %v5298
      %5331 = vst.msk [vmem:[#allocation2 + $0xf0] sm:$0xff] %vm344, %v5299
      %5332 = vst.msk [vmem:[#allocation2 + $0xf8] sm:$0xff] %vm344, %v5300
      %v5333 = vld [vmem:[#allocation2 + $0x10] sm:$0xff]
      %v5334 = vld [vmem:[#allocation2 + $0x18] sm:$0xff]
      %v5335 = vld [vmem:[#allocation2 + $0x20] sm:$0xff]
      %v5336 = vld [vmem:[#allocation2 + $0x28] sm:$0xff]
      %v5337 = vld [vmem:[#allocation2 + $0x30] sm:$0xff]
      %v5338 = vld [vmem:[#allocation2 + $0x38] sm:$0xff]
      %v5339 = vld [vmem:[#allocation2 + $0x40] sm:$0xff]
      %v5340 = vld [vmem:[#allocation2 + $0x48] sm:$0xff]
      %v5341 = vld [vmem:[#allocation2 + $0x50] sm:$0xff]
      %v5342 = vld [vmem:[#allocation2 + $0x58] sm:$0xff]
      %v5343 = vld [vmem:[#allocation2 + $0x60] sm:$0xff]
      %v5344 = vld [vmem:[#allocation2 + $0x68] sm:$0xff]
      %v5345 = vld [vmem:[#allocation2 + $0x70] sm:$0xff]
      %v5346 = vld [vmem:[#allocation2 + $0x78] sm:$0xff]
      %v5347 = vld [vmem:[#allocation2 + $0x80] sm:$0xff]
      %v5348 = vld [vmem:[#allocation2 + $0x88] sm:$0xff]
      %v5349 = vld [vmem:[#allocation2 + $0x90] sm:$0xff]
      %v5350 = vld [vmem:[#allocation2 + $0x98] sm:$0xff]
      %v5351 = vld [vmem:[#allocation2 + $0xa0] sm:$0xff]
      %v5352 = vld [vmem:[#allocation2 + $0xa8] sm:$0xff]
      %v5353 = vld [vmem:[#allocation2 + $0xb0] sm:$0xff]
      %v5354 = vld [vmem:[#allocation2 + $0xb8] sm:$0xff]
      %v5355 = vld [vmem:[#allocation2 + $0xc0] sm:$0xff]
      %v5356 = vld [vmem:[#allocation2 + $0xc8] sm:$0xff]
      %v5357 = vld [vmem:[#allocation2 + $0xd0] sm:$0xff]
      %v5358 = vld [vmem:[#allocation2 + $0xd8] sm:$0xff]
      %v5359 = vld [vmem:[#allocation2 + $0xe0] sm:$0xff]
      %v5360 = vld [vmem:[#allocation2 + $0xe8] sm:$0xff]
      %v5361 = vld [vmem:[#allocation2 + $0xf0] sm:$0xff]
      %v5362 = vld [vmem:[#allocation2 + $0xf8] sm:$0xff]
      %v5363 = vld [vmem:[#allocation2 + $0x100] sm:$0xff]
      %v5364 = vld [vmem:[#allocation2 + $0x108] sm:$0xff]
      %v5365 = vld [vmem:[%s6] sm:$0x1]
      %v5367 = vlaneseq
      %v5368 = vshrl.u32 %v5367, 7
      %v5369 = vsub.s32 0, %v5368
      %v5370 = vrot.slane %v5365, %v5369
      %v5372 = vadd.f32 %v5333, %v5370
      %v5373 = vadd.f32 %v5334, %v5370
      %v5374 = vadd.f32 %v5335, %v5370
      %v5375 = vadd.f32 %v5336, %v5370
      %v5376 = vadd.f32 %v5337, %v5370
      %v5377 = vadd.f32 %v5338, %v5370
      %v5378 = vadd.f32 %v5339, %v5370
      %v5379 = vadd.f32 %v5340, %v5370
      %v5380 = vadd.f32 %v5341, %v5370
      %v5381 = vadd.f32 %v5342, %v5370
      %v5382 = vadd.f32 %v5343, %v5370
      %v5383 = vadd.f32 %v5344, %v5370
      %v5384 = vadd.f32 %v5345, %v5370
      %v5385 = vadd.f32 %v5346, %v5370
      %v5386 = vadd.f32 %v5347, %v5370
      %v5387 = vadd.f32 %v5348, %v5370
      %v5388 = vadd.f32 %v5349, %v5370
      %v5389 = vadd.f32 %v5350, %v5370
      %v5390 = vadd.f32 %v5351, %v5370
      %v5391 = vadd.f32 %v5352, %v5370
      %v5392 = vadd.f32 %v5353, %v5370
      %v5393 = vadd.f32 %v5354, %v5370
      %v5394 = vadd.f32 %v5355, %v5370
      %v5395 = vadd.f32 %v5356, %v5370
      %v5396 = vadd.f32 %v5357, %v5370
      %v5397 = vadd.f32 %v5358, %v5370
      %v5398 = vadd.f32 %v5359, %v5370
      %v5399 = vadd.f32 %v5360, %v5370
      %v5400 = vadd.f32 %v5361, %v5370
      %v5401 = vadd.f32 %v5362, %v5370
      %v5402 = vadd.f32 %v5363, %v5370
      %v5403 = vadd.f32 %v5364, %v5370
      %v5404 = vmax.f32 %v5372, 0.0
      %v5405 = vmax.f32 %v5373, 0.0
      %v5406 = vmax.f32 %v5374, 0.0
      %v5407 = vmax.f32 %v5375, 0.0
      %v5408 = vmax.f32 %v5376, 0.0
      %v5409 = vmax.f32 %v5377, 0.0
      %v5410 = vmax.f32 %v5378, 0.0
      %v5411 = vmax.f32 %v5379, 0.0
      %v5412 = vmax.f32 %v5380, 0.0
      %v5413 = vmax.f32 %v5381, 0.0
      %v5414 = vmax.f32 %v5382, 0.0
      %v5415 = vmax.f32 %v5383, 0.0
      %v5416 = vmax.f32 %v5384, 0.0
      %v5417 = vmax.f32 %v5385, 0.0
      %v5418 = vmax.f32 %v5386, 0.0
      %v5419 = vmax.f32 %v5387, 0.0
      %v5420 = vmax.f32 %v5388, 0.0
      %v5421 = vmax.f32 %v5389, 0.0
      %v5422 = vmax.f32 %v5390, 0.0
      %v5423 = vmax.f32 %v5391, 0.0
      %v5424 = vmax.f32 %v5392, 0.0
      %v5425 = vmax.f32 %v5393, 0.0
      %v5426 = vmax.f32 %v5394, 0.0
      %v5427 = vmax.f32 %v5395, 0.0
      %v5428 = vmax.f32 %v5396, 0.0
      %v5429 = vmax.f32 %v5397, 0.0
      %v5430 = vmax.f32 %v5398, 0.0
      %v5431 = vmax.f32 %v5399, 0.0
      %v5432 = vmax.f32 %v5400, 0.0
      %v5433 = vmax.f32 %v5401, 0.0
      %v5434 = vmax.f32 %v5402, 0.0
      %v5435 = vmax.f32 %v5403, 0.0
      %v5436 = vpack.c.bf16 %v5405, %v5404
      %v5437 = vpack.c.bf16 %v5407, %v5406
      %v5438 = vpack.c.bf16 %v5409, %v5408
      %v5439 = vpack.c.bf16 %v5411, %v5410
      %v5440 = vpack.c.bf16 %v5413, %v5412
      %v5441 = vpack.c.bf16 %v5415, %v5414
      %v5442 = vpack.c.bf16 %v5417, %v5416
      %v5443 = vpack.c.bf16 %v5419, %v5418
      %v5444 = vpack.c.bf16 %v5421, %v5420
      %v5445 = vpack.c.bf16 %v5423, %v5422
      %v5446 = vpack.c.bf16 %v5425, %v5424
      %v5447 = vpack.c.bf16 %v5427, %v5426
      %v5448 = vpack.c.bf16 %v5429, %v5428
      %v5449 = vpack.c.bf16 %v5431, %v5430
      %v5450 = vpack.c.bf16 %v5433, %v5432
      %v5451 = vpack.c.bf16 %v5435, %v5434
      %v5468 = vunpack.c.l.b16 %v5436
      %v5469 = vunpack.c.h.b16 %v5436
      %v5470 = vunpack.c.l.b16 %v5437
      %v5471 = vunpack.c.h.b16 %v5437
      %v5472 = vunpack.c.l.b16 %v5438
      %v5473 = vunpack.c.h.b16 %v5438
      %v5474 = vunpack.c.l.b16 %v5439
      %v5475 = vunpack.c.h.b16 %v5439
      %v5476 = vunpack.c.l.b16 %v5440
      %v5477 = vunpack.c.h.b16 %v5440
      %v5478 = vunpack.c.l.b16 %v5441
      %v5479 = vunpack.c.h.b16 %v5441
      %v5480 = vunpack.c.l.b16 %v5442
      %v5481 = vunpack.c.h.b16 %v5442
      %v5482 = vunpack.c.l.b16 %v5443
      %v5483 = vunpack.c.h.b16 %v5443
      %v5484 = vunpack.c.l.b16 %v5444
      %v5485 = vunpack.c.h.b16 %v5444
      %v5486 = vunpack.c.l.b16 %v5445
      %v5487 = vunpack.c.h.b16 %v5445
      %v5488 = vunpack.c.l.b16 %v5446
      %v5489 = vunpack.c.h.b16 %v5446
      %v5490 = vunpack.c.l.b16 %v5447
      %v5491 = vunpack.c.h.b16 %v5447
      %v5492 = vunpack.c.l.b16 %v5448
      %v5493 = vunpack.c.h.b16 %v5448
      %v5494 = vunpack.c.l.b16 %v5449
      %v5495 = vunpack.c.h.b16 %v5449
      %v5496 = vunpack.c.l.b16 %v5450
      %v5497 = vunpack.c.h.b16 %v5450
      %v5498 = vunpack.c.l.b16 %v5451
      %v5499 = vunpack.c.h.b16 %v5451
      %v5500 = vpack.c.b16 %v5468, %v5468
      %v5501 = vpack.c.b16 %v5469, %v5469
      %v5502 = vpack.c.b16 %v5470, %v5470
      %v5503 = vpack.c.b16 %v5471, %v5471
      %v5504 = vpack.c.b16 %v5472, %v5472
      %v5505 = vpack.c.b16 %v5473, %v5473
      %v5506 = vpack.c.b16 %v5474, %v5474
      %v5507 = vpack.c.b16 %v5475, %v5475
      %v5508 = vpack.c.b16 %v5476, %v5476
      %v5509 = vpack.c.b16 %v5477, %v5477
      %v5510 = vpack.c.b16 %v5478, %v5478
      %v5511 = vpack.c.b16 %v5479, %v5479
      %v5512 = vpack.c.b16 %v5480, %v5480
      %v5513 = vpack.c.b16 %v5481, %v5481
      %v5514 = vpack.c.b16 %v5482, %v5482
      %v5515 = vpack.c.b16 %v5483, %v5483
      %v5516 = vpack.c.b16 %v5484, %v5484
      %v5517 = vpack.c.b16 %v5485, %v5485
      %v5518 = vpack.c.b16 %v5486, %v5486
      %v5519 = vpack.c.b16 %v5487, %v5487
      %v5520 = vpack.c.b16 %v5488, %v5488
      %v5521 = vpack.c.b16 %v5489, %v5489
      %v5522 = vpack.c.b16 %v5490, %v5490
      %v5523 = vpack.c.b16 %v5491, %v5491
      %v5524 = vpack.c.b16 %v5492, %v5492
      %v5525 = vpack.c.b16 %v5493, %v5493
      %v5526 = vpack.c.b16 %v5494, %v5494
      %v5527 = vpack.c.b16 %v5495, %v5495
      %v5528 = vpack.c.b16 %v5496, %v5496
      %v5529 = vpack.c.b16 %v5497, %v5497
      %v5530 = vpack.c.b16 %v5498, %v5498
      %v5531 = vpack.c.b16 %v5499, %v5499
      %vm5564 = vcmask 60416
      %5565 = vst.msk [vmem:[%s298] sm:$0xf] %vm5564, %v5500
      %5566 = vst.msk [vmem:[%s298 + $0x4] sm:$0xf] %vm5564, %v5501
      %5567 = vst.msk [vmem:[%s298 + $0x8] sm:$0xf] %vm5564, %v5502
      %5568 = vst.msk [vmem:[%s298 + $0xc] sm:$0xf] %vm5564, %v5503
      %5569 = vst.msk [vmem:[%s298 + $0x10] sm:$0xf] %vm5564, %v5504
      %5570 = vst.msk [vmem:[%s298 + $0x14] sm:$0xf] %vm5564, %v5505
      %5571 = vst.msk [vmem:[%s298 + $0x18] sm:$0xf] %vm5564, %v5506
      %5572 = vst.msk [vmem:[%s298 + $0x1c] sm:$0xf] %vm5564, %v5507
      %5573 = vst.msk [vmem:[%s298 + $0x20] sm:$0xf] %vm5564, %v5508
      %5574 = vst.msk [vmem:[%s298 + $0x24] sm:$0xf] %vm5564, %v5509
      %5575 = vst.msk [vmem:[%s298 + $0x28] sm:$0xf] %vm5564, %v5510
      %5576 = vst.msk [vmem:[%s298 + $0x2c] sm:$0xf] %vm5564, %v5511
      %5577 = vst.msk [vmem:[%s298 + $0x30] sm:$0xf] %vm5564, %v5512
      %5578 = vst.msk [vmem:[%s298 + $0x34] sm:$0xf] %vm5564, %v5513
      %5579 = vst.msk [vmem:[%s298 + $0x38] sm:$0xf] %vm5564, %v5514
      %5580 = vst.msk [vmem:[%s298 + $0x3c] sm:$0xf] %vm5564, %v5515
      %5581 = vst.msk [vmem:[%s298 + $0x40] sm:$0xf] %vm5564, %v5516
      %5582 = vst.msk [vmem:[%s298 + $0x44] sm:$0xf] %vm5564, %v5517
      %5583 = vst.msk [vmem:[%s298 + $0x48] sm:$0xf] %vm5564, %v5518
      %5584 = vst.msk [vmem:[%s298 + $0x4c] sm:$0xf] %vm5564, %v5519
      %5585 = vst.msk [vmem:[%s298 + $0x50] sm:$0xf] %vm5564, %v5520
      %5586 = vst.msk [vmem:[%s298 + $0x54] sm:$0xf] %vm5564, %v5521
      %5587 = vst.msk [vmem:[%s298 + $0x58] sm:$0xf] %vm5564, %v5522
      %5588 = vst.msk [vmem:[%s298 + $0x5c] sm:$0xf] %vm5564, %v5523
      %5589 = vst.msk [vmem:[%s298 + $0x60] sm:$0xf] %vm5564, %v5524
      %5590 = vst.msk [vmem:[%s298 + $0x64] sm:$0xf] %vm5564, %v5525
      %5591 = vst.msk [vmem:[%s298 + $0x68] sm:$0xf] %vm5564, %v5526
      %5592 = vst.msk [vmem:[%s298 + $0x6c] sm:$0xf] %vm5564, %v5527
      %5593 = vst.msk [vmem:[%s298 + $0x70] sm:$0xf] %vm5564, %v5528
      %5594 = vst.msk [vmem:[%s298 + $0x74] sm:$0xf] %vm5564, %v5529
      %5595 = vst.msk [vmem:[%s298 + $0x78] sm:$0xf] %vm5564, %v5530
      %5596 = vst.msk [vmem:[%s298 + $0x7c] sm:$0xf] %vm5564, %v5531
      %p5597 = scmp.lt.s32.totalorder %s18, 1
      %s5598 = scalar_select %p5597, %s18, 1
      %s5599 = smul.addr %s5598, 32
      %s5600 = smul.addr %s5599, 4
      %s5601 = scalar_lea.vmem %s7, %s5600
      // Predicated region
      $region49: #{deeplabv3p_decoder_forward.4} parent=47 // pred_check
        %p5602 = pneg %p193
      $region50: #{deeplabv3p_decoder_forward.4} parent=47 // pred_check_branch
        %5604 = sbr.rel (%p5602) target = $region52
      $region51: #{deeplabv3p_decoder_forward.4} parent=47 // pred_region
        _
      $region52: #{deeplabv3p_decoder_forward.4} parent=47 // pred_fallthru
        _
    $region48: #{deeplabv3p_decoder_forward.4} parent=5 // pred_fallthru
      _
    %p5605 = scmp.le.s32.totalorder 2, %s13
    // Predicated region
    $region53: #{deeplabv3p_decoder_forward.4} parent=5 // pred_check
      %p5606 = pneg %p5605
    $region54: #{deeplabv3p_decoder_forward.4} parent=5 // pred_check_branch
      %5608 = sbr.rel (%p5606) target = $region56
    $region55: #{deeplabv3p_decoder_forward.4} parent=5 // pred_region
      %s5609 = ssub.s32 %s13, 2
      // Predicated region
      $region57: #{deeplabv3p_decoder_forward.4} parent=55 // pred_check
        %p5610 = pneg %p199
      $region58: #{deeplabv3p_decoder_forward.4} parent=55 // pred_check_branch
        %5612 = sbr.rel (%p5610) target = $region60
      $region59: #{deeplabv3p_decoder_forward.4} parent=55 // pred_region
        %p5613 = scmp.lt.s32.totalorder %s19, 1
        %s5614 = scalar_select %p5613, %s19, 1
        %s5615 = smul.addr %s5614, 32
        %s5616 = smul.addr %s5615, 4
        %s5617 = scalar_lea.vmem %s7, %s5616
      $region60: #{deeplabv3p_decoder_forward.4} parent=55 // pred_fallthru
        _
    $region56: #{deeplabv3p_decoder_forward.4} parent=5 // pred_fallthru
      _
  $region6: #{deeplabv3p_decoder_forward.4} parent=0 // loop_footer
    %s17 = sadd.s32 1, %s13
  $region7: #{deeplabv3p_decoder_forward.4} parent=0 // loop_footer_branch
    %12 = sbr.rel target = $region3
  $region8: #{deeplabv3p_decoder_forward.4} parent=0 // loop_exit
    _

</llo_original>
